<compile_context>
chip_gen: v5e
topology: v5e:2x2
jax: 0.10.0
libtpu: 0.0.40
codegen_flags: <defaults>
</compile_context>

<pallas_src>
import functools

import jax
import jax.numpy as jnp
from jax.experimental import pallas as pl
from jax.experimental.pallas import tpu as pltpu


# ----------------------------------------------------------------------------------
# Config (equivalent to the hparams the torch __init__ reads)
# ----------------------------------------------------------------------------------
FEAT_SIZE = 2          # self.feat_size
N_GRAPH = 2            # n_expand + n_contract
N_EXPAND = 1
EXPANSION_FACTOR = 4.0
GRAPH_OUT = 10         # self.graph_out default
KNN_K = 6              # self.k default
GMM_DIM = 3            # GMMConv(dim=3, ...)
GMM_KERNELS = 3        # GMMConv(..., kernel_size=3)
N_SAMPLES = 8          # config.system_config.n_samples
N_DET = 16             # number of detector rows in coo / feat
N_BATCH = 2            # number of events (values of coo[:, 2])

BN_EPS = 1e-5          # torch BatchNorm1d default
GMM_EPS = 1e-15        # PyG GMMConv EPS


def compute_graph_planes():
    """Replicates Graph3DNet.__init__ 'linear' reduction plane schedule."""
    planes = [FEAT_SIZE]
    n_contract = N_GRAPH - N_EXPAND
    if N_EXPAND > 0:
        exp = int((planes[0] * EXPANSION_FACTOR - planes[0]) / N_EXPAND)
        for _ in range(N_EXPAND):
            planes.append(planes[-1] + exp)
        if n_contract > 0:
            red = int((planes[-1] - GRAPH_OUT) / n_contract)
            for _ in range(n_contract):
                planes.append(planes[-1] - red)
    else:
        red = int((planes[0] - GRAPH_OUT) / N_GRAPH)
        for _ in range(N_GRAPH):
            planes.append(planes[-1] - red)
    planes[-1] = int(GRAPH_OUT)
    return planes


def _gaussian_dtype():
    """bf16 elementwise Gaussian path on chips with bf16 VALU/EUP (v6e/v7x);
    keep f32 on <=v5 which has neither."""
    try:
        kind = jax.devices()[0].device_kind.lower()
    except Exception:
        return jnp.float32
    if any(tag in kind for tag in ("v2", "v3", "v4", "v5")):
        return jnp.float32
    return jnp.bfloat16


# ----------------------------------------------------------------------------------
# Pallas kernel: whole graph net (all GMMConv + BatchNorm + ReLU layers) fused
# ----------------------------------------------------------------------------------
def fused_gmm_net_kernel(*refs, n_layers, K, D, gdtype):
    # Fixed, layer-invariant inputs.
    (x_ref, adj_ref, posc_ref, posr_ref,
     invdeg_ref, nmask_ref, invcnt_ref) = refs[:7]
    lrefs = refs[7:7 + 7 * n_layers]               # per-layer parameter refs
    out_ref = refs[7 + 7 * n_layers]
    u_scr, w_scr, h_scr = refs[7 + 7 * n_layers + 1:]   # VMEM scratch

    N = adj_ref.shape[0]

    # ---- Cartesian pseudo-coordinates, computed once and shared by all layers ----
    # u[i, j, d] = (pos[j, d] - pos[i, d]) * scale + 0.5  (source j -> target i).
    # pos is pre-scaled in the wrapper, so only the subtract and +0.5 remain; one
    # f32 slab per dim, stored in gdtype (bf16 on v6e/v7x).
    for d in range(D):
        u_scr[d] = ((posr_ref[d:d + 1, :] - posc_ref[:, d:d + 1]) + 0.5).astype(gdtype)

    adj = adj_ref[...]                             # gdtype, 1.0 on real edges
    inv_deg = invdeg_ref[...]                      # f32 [N, 1] 1/max(in-degree, 1)
    nm = nmask_ref[...]                            # f32 [N, 1] valid-node mask
    inv_cnt = invcnt_ref[0]                        # f32 scalar 1/max(#valid, 1)

    x = x_ref[...]                                 # f32 [N, F0] (invalid rows zeroed)
    for li in range(n_layers):
        (g_ref, root_ref, bias_ref, gamma_ref, beta_ref,
         mu_ref, coef_ref) = lrefs[7 * li:7 * (li + 1)]
        fout = root_ref.shape[1]
        x_mm = x.astype(jnp.bfloat16)              # bf16 MXU operand

        for kk in range(K):
            # Gaussian edge weights exp(sum_d coef_kd * (u_d - mu_kd)^2), coef <= 0.
            # Multiply-only inner loop (coef hoisted in the wrapper); all in gdtype.
            df = u_scr[0] - mu_ref[kk, 0].astype(gdtype)
            logw = (df * df) * coef_ref[kk, 0].astype(gdtype)
            for d in range(1, D):
                df = u_scr[d] - mu_ref[kk, d].astype(gdtype)
                logw = logw + (df * df) * coef_ref[kk, d].astype(gdtype)
            w = adj * jnp.exp(logw)                               # mask to real edges
            # Stack the K weight matrices side by side (lane-aligned bf16 scratch).
            w_scr[:, kk * N:(kk + 1) * N] = w.astype(jnp.bfloat16)
            # h_k = x @ g_k written straight into the stacked [K*N, M] operand
            # (no jnp.concatenate copy; lane-aligned per-kernel weight slab).
            h_scr[kk * N:(kk + 1) * N, :fout] = jnp.dot(
                x_mm, g_ref[kk], preferred_element_type=jnp.float32
            ).astype(jnp.bfloat16)

        # Single stacked MXU call: [N, K*N] @ [K*N, M] == sum_k w_k @ h_k.
        agg = jnp.dot(w_scr[...], h_scr[:, :fout],
                      preferred_element_type=jnp.float32)
        agg = agg * inv_deg                                      # scatter-mean

        out = agg + jnp.dot(x_mm, root_ref[...],
                            preferred_element_type=jnp.float32) + bias_ref[...]

        # BatchNorm1d (training-mode statistics over valid nodes) + ReLU + re-mask.
        mean = jnp.sum(out * nm, axis=0, keepdims=True) * inv_cnt
        cen = (out - mean) * nm
        var = jnp.sum(cen * cen, axis=0, keepdims=True) * inv_cnt
        y = gamma_ref[...] * ((out - mean) * jax.lax.rsqrt(var + BN_EPS)) + beta_ref[...]
        x = jnp.maximum(y, 0.0) * nm                             # next layer's input

    out_ref[...] = x


def fused_graph_net(x0, adj, pos_scaled, inv_deg, nmask, inv_cnt, params,
                    *, K=GMM_KERNELS, D=GMM_DIM, gdtype=None):
    if gdtype is None:
        gdtype = _gaussian_dtype()
    N = adj.shape[0]
    f0 = x0.shape[1]
    m_last = params[-1]["root"].shape[1]
    m_max = max(p["root"].shape[1] for p in params)

    zeros2 = lambda i: (0, 0)
    zeros3 = lambda i: (0, 0, 0)
    smem = lambda: pl.BlockSpec(memory_space=pltpu.MemorySpace.SMEM)

    args = [x0, adj.astype(gdtype), pos_scaled, pos_scaled.T,
            inv_deg, nmask, inv_cnt]
    in_specs = [
        pl.BlockSpec((N, f0), zeros2),        # x0
        pl.BlockSpec((N, N), zeros2),         # adjacency (0/1), gdtype
        pl.BlockSpec((N, D), zeros2),         # pre-scaled pos (pos_i along sublanes)
        pl.BlockSpec((D, N), zeros2),         # pre-scaled pos^T (pos_j along lanes)
        pl.BlockSpec((N, 1), zeros2),         # 1/max(deg,1)
        pl.BlockSpec((N, 1), zeros2),         # valid-node mask
        smem(),                               # 1/max(#valid,1)
    ]
    for p in params:
        fin, fout = p["root"].shape
        # Hoisted Gaussian coefficient: the kernel's inner loop is multiply-only.
        coef = -0.5 / (p["sigma"] ** 2 + GMM_EPS)
        args += [p["g"].astype(jnp.bfloat16), p["root"].astype(jnp.bfloat16),
                 p["bias"], p["gamma"], p["beta"], p["mu"], coef]
        in_specs += [
            pl.BlockSpec((K, fin, fout), zeros3),   # g  [K, fin, M] bf16
            pl.BlockSpec((fin, fout), zeros2),      # root weight bf16
            pl.BlockSpec((1, fout), zeros2),        # bias
            pl.BlockSpec((1, fout), zeros2),        # bn gamma
            pl.BlockSpec((1, fout), zeros2),        # bn beta
            smem(),                                 # mu   [K, D]
            smem(),                                 # coef [K, D]
        ]

    kernel = functools.partial(fused_gmm_net_kernel,
                               n_layers=len(params), K=K, D=D, gdtype=gdtype)
    # TODO(synk): v7x has 2 TensorCores; split the node rows into two 64-row blocks
    # (grid / core_map) with a cross-core combine of the BatchNorm sum/sumsq before
    # normalize+ReLU.  At N=128 the whole problem fits one core comfortably.
    return pl.pallas_call(
        kernel,
        out_shape=jax.ShapeDtypeStruct((N, m_last), jnp.float32),
        grid=(1,),
        in_specs=in_specs,
        out_specs=pl.BlockSpec((N, m_last), zeros2),
        scratch_shapes=[
            pltpu.VMEM((D, N, N), gdtype),             # pre-scaled pseudo-coords u
            pltpu.VMEM((N, K * N), jnp.bfloat16),      # stacked gaussian weights W
            pltpu.VMEM((K * N, m_max), jnp.bfloat16),  # stacked per-kernel features H
        ],
        compiler_params=pltpu.CompilerParams(dimension_semantics=("arbitrary",)),
    )(*args)


# ----------------------------------------------------------------------------------
# Glue: graph construction (knn_graph equivalent) and full forward
# ----------------------------------------------------------------------------------
def graph3dnet_forward(coo, feat, params, *, n_samples=N_SAMPLES, k=KNN_K):
    n_det = coo.shape[0]
    N = n_det * n_samples

    feat_flat = feat.reshape(N, FEAT_SIZE).astype(jnp.float32)
    valid = jnp.sum(feat_flat, axis=1) != 0            # nonzero_rows
    # TODO(synk): torch drops zero rows (dynamic shape); here they are kept but masked
    # out of the graph, the BatchNorm statistics and the output (rows zeroed).

    batch = jnp.repeat(coo[:, 2], n_samples)                           # [N]
    pos_xy = jnp.repeat(coo[:, 0:2], n_samples, axis=0)                # [N, 2]
    z = jnp.tile(jnp.arange(n_samples, dtype=coo.dtype), n_det)[:, None]
    pos = jnp.concatenate([pos_xy, z], axis=1).astype(jnp.float32)     # [N, 3]

    # knn_graph(pos, k, batch, loop=False): adj[i, j] = 1 iff j is one of the k
    # nearest same-batch neighbours of i (messages flow source j -> target i).
    same = batch[:, None] == batch[None, :]
    cand = same & valid[:, None] & valid[None, :] & (~jnp.eye(N, dtype=bool))
    diff = pos[None, :, :] - pos[:, None, :]            # diff[i, j, :] = pos[j]-pos[i]
    d2 = jnp.sum(diff * diff, axis=-1)
    d2 = jnp.where(cand, d2, jnp.inf)
    neg, idx = jax.lax.top_k(-d2, k)
    w = (neg > -jnp.inf).astype(jnp.float32)
    adj = jnp.zeros((N, N), jnp.float32).at[jnp.arange(N)[:, None], idx].add(w)

    # Cartesian normalization hoisted out of the kernel (perf review):
    # u = diff / (2*max|diff| over edges) + 0.5  ->  fold the scale into pos.
    mx = jnp.max(jnp.abs(diff) * (adj > 0.0)[:, :, None])
    scale = 1.0 / jnp.maximum(2.0 * mx, 1e-12)           # guard: zero-edge graph
    pos_scaled = pos * scale

    # Layer-invariant quantities, hoisted out of the kernel.
    nmask = valid.astype(jnp.float32)[:, None]                         # [N, 1]
    inv_deg = 1.0 / jnp.maximum(jnp.sum(adj, axis=1, keepdims=True), 1.0)
    inv_cnt = (1.0 / jnp.maximum(jnp.sum(nmask), 1.0)).reshape(1)      # clamp cnt>=1

    x0 = feat_flat * nmask
    return fused_graph_net(x0, adj, pos_scaled, inv_deg, nmask, inv_cnt, params)


def init_params(key, planes, K=GMM_KERNELS, D=GMM_DIM):
    params = []
    for i in range(len(planes) - 1):
        fin, fout = planes[i], planes[i + 1]
        key, k1, k2, k3, k4, k5 = jax.random.split(key, 6)
        params.append(dict(
            # torch GMMConv stores g as [fin, K*fout]; kept kernel-major here so each
            # per-kernel slab g[k] is a lane-aligned [fin, fout] matmul operand.
            g=jax.random.normal(k1, (K, fin, fout), jnp.float32) / jnp.sqrt(fin),
            root=jax.random.normal(k2, (fin, fout), jnp.float32) / jnp.sqrt(fin),
            bias=jax.random.normal(k3, (1, fout), jnp.float32) * 0.1,
            mu=jax.random.normal(k4, (K, D), jnp.float32),
            sigma=jax.random.uniform(k5, (K, D), jnp.float32, minval=0.5, maxval=1.5),
            gamma=jnp.ones((1, fout), jnp.float32),   # BatchNorm defaults
            beta=jnp.zeros((1, fout), jnp.float32),
        ))
    return params


if __name__ == "__main__":
    planes = compute_graph_planes()                    # [2, 8, 10]
    key = jax.random.PRNGKey(0)
    kc, kf, kp = jax.random.split(key, 3)

    # coo: [n_det, 3] = (x, y, event_id);  feat: [n_det, n_samples, 2]
    xy = jax.random.randint(kc, (N_DET, 2), 0, 10, dtype=jnp.int32)
    event = jnp.repeat(jnp.arange(N_BATCH, dtype=jnp.int32), N_DET // N_BATCH)[:, None]
    coo = jnp.concatenate([xy, event], axis=1)
    feat = jax.random.normal(kf, (N_DET, N_SAMPLES, FEAT_SIZE), jnp.float32)

    params = init_params(kp, planes)

    out = jax.jit(graph3dnet_forward)(coo, feat, params)   # [128, 10]
    jax.block_until_ready(out)
    assert out.shape == (N_DET * N_SAMPLES, GRAPH_OUT)
    print("KERNEL_OK")
</pallas_src>

<mosaic_0001>
module attributes {stable_mosaic.version = 11 : i64} {
  func.func @fused_gmm_net_kernel(%arg0: i32, %arg1: memref<128x2xf32, #tpu.memory_space<vmem>>, %arg2: memref<128x128xbf16, #tpu.memory_space<vmem>>, %arg3: memref<128x3xf32, #tpu.memory_space<vmem>>, %arg4: memref<3x128xf32, #tpu.memory_space<vmem>>, %arg5: memref<128x1xf32, #tpu.memory_space<vmem>>, %arg6: memref<128x1xf32, #tpu.memory_space<vmem>>, %arg7: memref<1xf32, #tpu.memory_space<smem>>, %arg8: memref<3x2x8xbf16, #tpu.memory_space<vmem>>, %arg9: memref<2x8xbf16, #tpu.memory_space<vmem>>, %arg10: memref<1x8xf32, #tpu.memory_space<vmem>>, %arg11: memref<1x8xf32, #tpu.memory_space<vmem>>, %arg12: memref<1x8xf32, #tpu.memory_space<vmem>>, %arg13: memref<3x3xf32, #tpu.memory_space<smem>>, %arg14: memref<3x3xf32, #tpu.memory_space<smem>>, %arg15: memref<3x8x10xbf16, #tpu.memory_space<vmem>>, %arg16: memref<8x10xbf16, #tpu.memory_space<vmem>>, %arg17: memref<1x10xf32, #tpu.memory_space<vmem>>, %arg18: memref<1x10xf32, #tpu.memory_space<vmem>>, %arg19: memref<1x10xf32, #tpu.memory_space<vmem>>, %arg20: memref<3x3xf32, #tpu.memory_space<smem>>, %arg21: memref<3x3xf32, #tpu.memory_space<smem>>, %arg22: memref<128x10xf32, #tpu.memory_space<vmem>>, %arg23: memref<3x128x128xbf16, #tpu.memory_space<vmem>>, %arg24: memref<128x384xbf16, #tpu.memory_space<vmem>>, %arg25: memref<384x10xbf16, #tpu.memory_space<vmem>>) attributes {dimension_semantics = [#tpu.dimension_semantics<arbitrary>], iteration_bounds = array<i64: 1>, scalar_prefetch = 0 : i64, scratch_operands = 3 : i64, tpu.core_type = #tpu.core_type<tc>, window_params = [{pipeline_mode = #tpu.pipeline_mode<synchronous>, transform_indices = @transform_0, window_bounds = array<i64: 128, 2>}, {pipeline_mode = #tpu.pipeline_mode<synchronous>, transform_indices = @transform_1, window_bounds = array<i64: 128, 128>}, {pipeline_mode = #tpu.pipeline_mode<synchronous>, transform_indices = @transform_2, window_bounds = array<i64: 128, 3>}, {pipeline_mode = #tpu.pipeline_mode<synchronous>, transform_indices = @transform_3, window_bounds = array<i64: 3, 128>}, {pipeline_mode = #tpu.pipeline_mode<synchronous>, transform_indices = @transform_4, window_bounds = array<i64: 128, 1>}, {pipeline_mode = #tpu.pipeline_mode<synchronous>, transform_indices = @transform_5, window_bounds = array<i64: 128, 1>}, {transform_indices = @transform_6, window_bounds = array<i64: 1>}, {pipeline_mode = #tpu.pipeline_mode<synchronous>, transform_indices = @transform_7, window_bounds = array<i64: 3, 2, 8>}, {pipeline_mode = #tpu.pipeline_mode<synchronous>, transform_indices = @transform_8, window_bounds = array<i64: 2, 8>}, {pipeline_mode = #tpu.pipeline_mode<synchronous>, transform_indices = @transform_9, window_bounds = array<i64: 1, 8>}, {pipeline_mode = #tpu.pipeline_mode<synchronous>, transform_indices = @transform_10, window_bounds = array<i64: 1, 8>}, {pipeline_mode = #tpu.pipeline_mode<synchronous>, transform_indices = @transform_11, window_bounds = array<i64: 1, 8>}, {transform_indices = @transform_12, window_bounds = array<i64: 3, 3>}, {transform_indices = @transform_13, window_bounds = array<i64: 3, 3>}, {pipeline_mode = #tpu.pipeline_mode<synchronous>, transform_indices = @transform_14, window_bounds = array<i64: 3, 8, 10>}, {pipeline_mode = #tpu.pipeline_mode<synchronous>, transform_indices = @transform_15, window_bounds = array<i64: 8, 10>}, {pipeline_mode = #tpu.pipeline_mode<synchronous>, transform_indices = @transform_16, window_bounds = array<i64: 1, 10>}, {pipeline_mode = #tpu.pipeline_mode<synchronous>, transform_indices = @transform_17, window_bounds = array<i64: 1, 10>}, {pipeline_mode = #tpu.pipeline_mode<synchronous>, transform_indices = @transform_18, window_bounds = array<i64: 1, 10>}, {transform_indices = @transform_19, window_bounds = array<i64: 3, 3>}, {transform_indices = @transform_20, window_bounds = array<i64: 3, 3>}, {pipeline_mode = #tpu.pipeline_mode<synchronous>, transform_indices = @transform_21, window_bounds = array<i64: 128, 10>}]} {
    %c0 = arith.constant 0 : index
    %c0_0 = arith.constant 0 : index
    %0 = vector.load %arg4[%c0, %c0_0] : memref<3x128xf32, #tpu.memory_space<vmem>>, vector<1x128xf32>
    %c0_1 = arith.constant 0 : index
    %c0_2 = arith.constant 0 : index
    %1 = vector.load %arg3[%c0_1, %c0_2] : memref<128x3xf32, #tpu.memory_space<vmem>>, vector<128x1xf32>
    %2 = vector.broadcast %0 : vector<1x128xf32> to vector<128x128xf32>
    %3 = vector.broadcast %1 : vector<128x1xf32> to vector<128x128xf32>
    %4 = arith.subf %2, %3 : vector<128x128xf32>
    %cst = arith.constant 5.000000e-01 : f32
    %5 = vector.broadcast %cst : f32 to vector<128x128xf32>
    %6 = arith.addf %4, %5 : vector<128x128xf32>
    %7 = arith.truncf %6 : vector<128x128xf32> to vector<128x128xbf16>
    %c0_3 = arith.constant 0 : index
    %c0_4 = arith.constant 0 : index
    %c0_5 = arith.constant 0 : index
    %8 = vector.load %arg23[%c0_3, %c0_4, %c0_5] : memref<3x128x128xbf16, #tpu.memory_space<vmem>>, vector<1x128x128xbf16>
    %9 = vector.shape_cast %8 : vector<1x128x128xbf16> to vector<128x128xbf16>
    %10 = vector.shape_cast %7 : vector<128x128xbf16> to vector<1x128x128xbf16>
    tpu.vector_store %arg23[%c0_3, %c0_4, %c0_5], %10 {strides = array<i32>} : memref<3x128x128xbf16, #tpu.memory_space<vmem>>, vector<1x128x128xbf16>,
    %c1 = arith.constant 1 : index
    %c0_6 = arith.constant 0 : index
    %11 = vector.load %arg4[%c1, %c0_6] : memref<3x128xf32, #tpu.memory_space<vmem>>, vector<1x128xf32>
    %c0_7 = arith.constant 0 : index
    %c1_8 = arith.constant 1 : index
    %12 = vector.load %arg3[%c0_7, %c1_8] : memref<128x3xf32, #tpu.memory_space<vmem>>, vector<128x1xf32>
    %13 = vector.broadcast %11 : vector<1x128xf32> to vector<128x128xf32>
    %14 = vector.broadcast %12 : vector<128x1xf32> to vector<128x128xf32>
    %15 = arith.subf %13, %14 : vector<128x128xf32>
    %cst_9 = arith.constant 5.000000e-01 : f32
    %16 = vector.broadcast %cst_9 : f32 to vector<128x128xf32>
    %17 = arith.addf %15, %16 : vector<128x128xf32>
    %18 = arith.truncf %17 : vector<128x128xf32> to vector<128x128xbf16>
    %c1_10 = arith.constant 1 : index
    %c0_11 = arith.constant 0 : index
    %c0_12 = arith.constant 0 : index
    %19 = vector.load %arg23[%c1_10, %c0_11, %c0_12] : memref<3x128x128xbf16, #tpu.memory_space<vmem>>, vector<1x128x128xbf16>
    %20 = vector.shape_cast %19 : vector<1x128x128xbf16> to vector<128x128xbf16>
    %21 = vector.shape_cast %18 : vector<128x128xbf16> to vector<1x128x128xbf16>
    tpu.vector_store %arg23[%c1_10, %c0_11, %c0_12], %21 {strides = array<i32>} : memref<3x128x128xbf16, #tpu.memory_space<vmem>>, vector<1x128x128xbf16>,
    %c2 = arith.constant 2 : index
    %c0_13 = arith.constant 0 : index
    %22 = vector.load %arg4[%c2, %c0_13] : memref<3x128xf32, #tpu.memory_space<vmem>>, vector<1x128xf32>
    %c0_14 = arith.constant 0 : index
    %c2_15 = arith.constant 2 : index
    %23 = vector.load %arg3[%c0_14, %c2_15] : memref<128x3xf32, #tpu.memory_space<vmem>>, vector<128x1xf32>
    %24 = vector.broadcast %22 : vector<1x128xf32> to vector<128x128xf32>
    %25 = vector.broadcast %23 : vector<128x1xf32> to vector<128x128xf32>
    %26 = arith.subf %24, %25 : vector<128x128xf32>
    %cst_16 = arith.constant 5.000000e-01 : f32
    %27 = vector.broadcast %cst_16 : f32 to vector<128x128xf32>
    %28 = arith.addf %26, %27 : vector<128x128xf32>
    %29 = arith.truncf %28 : vector<128x128xf32> to vector<128x128xbf16>
    %c2_17 = arith.constant 2 : index
    %c0_18 = arith.constant 0 : index
    %c0_19 = arith.constant 0 : index
    %30 = vector.load %arg23[%c2_17, %c0_18, %c0_19] : memref<3x128x128xbf16, #tpu.memory_space<vmem>>, vector<1x128x128xbf16>
    %31 = vector.shape_cast %30 : vector<1x128x128xbf16> to vector<128x128xbf16>
    %32 = vector.shape_cast %29 : vector<128x128xbf16> to vector<1x128x128xbf16>
    tpu.vector_store %arg23[%c2_17, %c0_18, %c0_19], %32 {strides = array<i32>} : memref<3x128x128xbf16, #tpu.memory_space<vmem>>, vector<1x128x128xbf16>,
    %c0_20 = arith.constant 0 : index
    %c0_21 = arith.constant 0 : index
    %33 = vector.load %arg2[%c0_20, %c0_21] : memref<128x128xbf16, #tpu.memory_space<vmem>>, vector<128x128xbf16>
    %c0_22 = arith.constant 0 : index
    %c0_23 = arith.constant 0 : index
    %34 = vector.load %arg5[%c0_22, %c0_23] : memref<128x1xf32, #tpu.memory_space<vmem>>, vector<128x1xf32>
    %c0_24 = arith.constant 0 : index
    %c0_25 = arith.constant 0 : index
    %35 = vector.load %arg6[%c0_24, %c0_25] : memref<128x1xf32, #tpu.memory_space<vmem>>, vector<128x1xf32>
    %c0_26 = arith.constant 0 : index
    %36 = memref.load %arg7[%c0_26] : memref<1xf32, #tpu.memory_space<smem>>
    %c0_27 = arith.constant 0 : index
    %c0_28 = arith.constant 0 : index
    %37 = vector.load %arg1[%c0_27, %c0_28] : memref<128x2xf32, #tpu.memory_space<vmem>>, vector<128x2xf32>
    %38 = arith.truncf %37 : vector<128x2xf32> to vector<128x2xbf16>
    %c0_29 = arith.constant 0 : index
    %c0_30 = arith.constant 0 : index
    %c0_31 = arith.constant 0 : index
    %39 = vector.load %arg23[%c0_29, %c0_30, %c0_31] : memref<3x128x128xbf16, #tpu.memory_space<vmem>>, vector<1x128x128xbf16>
    %40 = vector.shape_cast %39 : vector<1x128x128xbf16> to vector<128x128xbf16>
    %c0_32 = arith.constant 0 : index
    %c0_33 = arith.constant 0 : index
    %41 = memref.load %arg13[%c0_32, %c0_33] : memref<3x3xf32, #tpu.memory_space<smem>>
    %42 = arith.truncf %41 : f32 to bf16
    %43 = vector.broadcast %42 : bf16 to vector<128x128xbf16>
    %44 = arith.subf %40, %43 : vector<128x128xbf16>
    %45 = arith.mulf %44, %44 : vector<128x128xbf16>
    %c0_34 = arith.constant 0 : index
    %c0_35 = arith.constant 0 : index
    %46 = memref.load %arg14[%c0_34, %c0_35] : memref<3x3xf32, #tpu.memory_space<smem>>
    %47 = arith.truncf %46 : f32 to bf16
    %48 = vector.broadcast %47 : bf16 to vector<128x128xbf16>
    %49 = arith.mulf %45, %48 : vector<128x128xbf16>
    %c1_36 = arith.constant 1 : index
    %c0_37 = arith.constant 0 : index
    %c0_38 = arith.constant 0 : index
    %50 = vector.load %arg23[%c1_36, %c0_37, %c0_38] : memref<3x128x128xbf16, #tpu.memory_space<vmem>>, vector<1x128x128xbf16>
    %51 = vector.shape_cast %50 : vector<1x128x128xbf16> to vector<128x128xbf16>
    %c0_39 = arith.constant 0 : index
    %c1_40 = arith.constant 1 : index
    %52 = memref.load %arg13[%c0_39, %c1_40] : memref<3x3xf32, #tpu.memory_space<smem>>
    %53 = arith.truncf %52 : f32 to bf16
    %54 = vector.broadcast %53 : bf16 to vector<128x128xbf16>
    %55 = arith.subf %51, %54 : vector<128x128xbf16>
    %56 = arith.mulf %55, %55 : vector<128x128xbf16>
    %c0_41 = arith.constant 0 : index
    %c1_42 = arith.constant 1 : index
    %57 = memref.load %arg14[%c0_41, %c1_42] : memref<3x3xf32, #tpu.memory_space<smem>>
    %58 = arith.truncf %57 : f32 to bf16
    %59 = vector.broadcast %58 : bf16 to vector<128x128xbf16>
    %60 = arith.mulf %56, %59 : vector<128x128xbf16>
    %61 = arith.addf %49, %60 : vector<128x128xbf16>
    %c2_43 = arith.constant 2 : index
    %c0_44 = arith.constant 0 : index
    %c0_45 = arith.constant 0 : index
    %62 = vector.load %arg23[%c2_43, %c0_44, %c0_45] : memref<3x128x128xbf16, #tpu.memory_space<vmem>>, vector<1x128x128xbf16>
    %63 = vector.shape_cast %62 : vector<1x128x128xbf16> to vector<128x128xbf16>
    %c0_46 = arith.constant 0 : index
    %c2_47 = arith.constant 2 : index
    %64 = memref.load %arg13[%c0_46, %c2_47] : memref<3x3xf32, #tpu.memory_space<smem>>
    %65 = arith.truncf %64 : f32 to bf16
    %66 = vector.broadcast %65 : bf16 to vector<128x128xbf16>
    %67 = arith.subf %63, %66 : vector<128x128xbf16>
    %68 = arith.mulf %67, %67 : vector<128x128xbf16>
    %c0_48 = arith.constant 0 : index
    %c2_49 = arith.constant 2 : index
    %69 = memref.load %arg14[%c0_48, %c2_49] : memref<3x3xf32, #tpu.memory_space<smem>>
    %70 = arith.truncf %69 : f32 to bf16
    %71 = vector.broadcast %70 : bf16 to vector<128x128xbf16>
    %72 = arith.mulf %68, %71 : vector<128x128xbf16>
    %73 = arith.addf %61, %72 : vector<128x128xbf16>
    %74 = math.exp %73 : vector<128x128xbf16>
    %75 = arith.mulf %33, %74 : vector<128x128xbf16>
    %c0_50 = arith.constant 0 : index
    %c0_51 = arith.constant 0 : index
    %76 = vector.load %arg24[%c0_50, %c0_51] : memref<128x384xbf16, #tpu.memory_space<vmem>>, vector<128x128xbf16>
    tpu.vector_store %arg24[%c0_50, %c0_51], %75 {strides = array<i32>} : memref<128x384xbf16, #tpu.memory_space<vmem>>, vector<128x128xbf16>,
    %c0_52 = arith.constant 0 : index
    %c0_53 = arith.constant 0 : index
    %c0_54 = arith.constant 0 : index
    %77 = vector.load %arg8[%c0_52, %c0_53, %c0_54] : memref<3x2x8xbf16, #tpu.memory_space<vmem>>, vector<1x2x8xbf16>
    %78 = vector.shape_cast %77 : vector<1x2x8xbf16> to vector<2x8xbf16>
    %cst_55 = arith.constant dense<0.000000e+00> : vector<128x8xf32>
    %79 = tpu.matmul %38, %78, %cst_55 {dimension_numbers = #tpu.dot_dimension_numbers<[1], [0], [0], [1], [0, 0, 1, 1], [], []>} : vector<128x2xbf16>, vector<2x8xbf16>, vector<128x8xf32> -> vector<128x8xf32>
    %80 = arith.truncf %79 : vector<128x8xf32> to vector<128x8xbf16>
    %c0_56 = arith.constant 0 : index
    %c0_57 = arith.constant 0 : index
    %81 = vector.load %arg25[%c0_56, %c0_57] : memref<384x10xbf16, #tpu.memory_space<vmem>>, vector<128x8xbf16>
    tpu.vector_store %arg25[%c0_56, %c0_57], %80 {strides = array<i32>} : memref<384x10xbf16, #tpu.memory_space<vmem>>, vector<128x8xbf16>,
    %c0_58 = arith.constant 0 : index
    %c0_59 = arith.constant 0 : index
    %c0_60 = arith.constant 0 : index
    %82 = vector.load %arg23[%c0_58, %c0_59, %c0_60] : memref<3x128x128xbf16, #tpu.memory_space<vmem>>, vector<1x128x128xbf16>
    %83 = vector.shape_cast %82 : vector<1x128x128xbf16> to vector<128x128xbf16>
    %c1_61 = arith.constant 1 : index
    %c0_62 = arith.constant 0 : index
    %84 = memref.load %arg13[%c1_61, %c0_62] : memref<3x3xf32, #tpu.memory_space<smem>>
    %85 = arith.truncf %84 : f32 to bf16
    %86 = vector.broadcast %85 : bf16 to vector<128x128xbf16>
    %87 = arith.subf %83, %86 : vector<128x128xbf16>
    %88 = arith.mulf %87, %87 : vector<128x128xbf16>
    %c1_63 = arith.constant 1 : index
    %c0_64 = arith.constant 0 : index
    %89 = memref.load %arg14[%c1_63, %c0_64] : memref<3x3xf32, #tpu.memory_space<smem>>
    %90 = arith.truncf %89 : f32 to bf16
    %91 = vector.broadcast %90 : bf16 to vector<128x128xbf16>
    %92 = arith.mulf %88, %91 : vector<128x128xbf16>
    %c1_65 = arith.constant 1 : index
    %c0_66 = arith.constant 0 : index
    %c0_67 = arith.constant 0 : index
    %93 = vector.load %arg23[%c1_65, %c0_66, %c0_67] : memref<3x128x128xbf16, #tpu.memory_space<vmem>>, vector<1x128x128xbf16>
    %94 = vector.shape_cast %93 : vector<1x128x128xbf16> to vector<128x128xbf16>
    %c1_68 = arith.constant 1 : index
    %c1_69 = arith.constant 1 : index
    %95 = memref.load %arg13[%c1_68, %c1_69] : memref<3x3xf32, #tpu.memory_space<smem>>
    %96 = arith.truncf %95 : f32 to bf16
    %97 = vector.broadcast %96 : bf16 to vector<128x128xbf16>
    %98 = arith.subf %94, %97 : vector<128x128xbf16>
    %99 = arith.mulf %98, %98 : vector<128x128xbf16>
    %c1_70 = arith.constant 1 : index
    %c1_71 = arith.constant 1 : index
    %100 = memref.load %arg14[%c1_70, %c1_71] : memref<3x3xf32, #tpu.memory_space<smem>>
    %101 = arith.truncf %100 : f32 to bf16
    %102 = vector.broadcast %101 : bf16 to vector<128x128xbf16>
    %103 = arith.mulf %99, %102 : vector<128x128xbf16>
    %104 = arith.addf %92, %103 : vector<128x128xbf16>
    %c2_72 = arith.constant 2 : index
    %c0_73 = arith.constant 0 : index
    %c0_74 = arith.constant 0 : index
    %105 = vector.load %arg23[%c2_72, %c0_73, %c0_74] : memref<3x128x128xbf16, #tpu.memory_space<vmem>>, vector<1x128x128xbf16>
    %106 = vector.shape_cast %105 : vector<1x128x128xbf16> to vector<128x128xbf16>
    %c1_75 = arith.constant 1 : index
    %c2_76 = arith.constant 2 : index
    %107 = memref.load %arg13[%c1_75, %c2_76] : memref<3x3xf32, #tpu.memory_space<smem>>
    %108 = arith.truncf %107 : f32 to bf16
    %109 = vector.broadcast %108 : bf16 to vector<128x128xbf16>
    %110 = arith.subf %106, %109 : vector<128x128xbf16>
    %111 = arith.mulf %110, %110 : vector<128x128xbf16>
    %c1_77 = arith.constant 1 : index
    %c2_78 = arith.constant 2 : index
    %112 = memref.load %arg14[%c1_77, %c2_78] : memref<3x3xf32, #tpu.memory_space<smem>>
    %113 = arith.truncf %112 : f32 to bf16
    %114 = vector.broadcast %113 : bf16 to vector<128x128xbf16>
    %115 = arith.mulf %111, %114 : vector<128x128xbf16>
    %116 = arith.addf %104, %115 : vector<128x128xbf16>
    %117 = math.exp %116 : vector<128x128xbf16>
    %118 = arith.mulf %33, %117 : vector<128x128xbf16>
    %c0_79 = arith.constant 0 : index
    %c128 = arith.constant 128 : index
    %119 = vector.load %arg24[%c0_79, %c128] : memref<128x384xbf16, #tpu.memory_space<vmem>>, vector<128x128xbf16>
    tpu.vector_store %arg24[%c0_79, %c128], %118 {strides = array<i32>} : memref<128x384xbf16, #tpu.memory_space<vmem>>, vector<128x128xbf16>,
    %c1_80 = arith.constant 1 : index
    %c0_81 = arith.constant 0 : index
    %c0_82 = arith.constant 0 : index
    %120 = vector.load %arg8[%c1_80, %c0_81, %c0_82] : memref<3x2x8xbf16, #tpu.memory_space<vmem>>, vector<1x2x8xbf16>
    %121 = vector.shape_cast %120 : vector<1x2x8xbf16> to vector<2x8xbf16>
    %cst_83 = arith.constant dense<0.000000e+00> : vector<128x8xf32>
    %122 = tpu.matmul %38, %121, %cst_83 {dimension_numbers = #tpu.dot_dimension_numbers<[1], [0], [0], [1], [0, 0, 1, 1], [], []>} : vector<128x2xbf16>, vector<2x8xbf16>, vector<128x8xf32> -> vector<128x8xf32>
    %123 = arith.truncf %122 : vector<128x8xf32> to vector<128x8xbf16>
    %c128_84 = arith.constant 128 : index
    %c0_85 = arith.constant 0 : index
    %124 = vector.load %arg25[%c128_84, %c0_85] : memref<384x10xbf16, #tpu.memory_space<vmem>>, vector<128x8xbf16>
    tpu.vector_store %arg25[%c128_84, %c0_85], %123 {strides = array<i32>} : memref<384x10xbf16, #tpu.memory_space<vmem>>, vector<128x8xbf16>,
    %c0_86 = arith.constant 0 : index
    %c0_87 = arith.constant 0 : index
    %c0_88 = arith.constant 0 : index
    %125 = vector.load %arg23[%c0_86, %c0_87, %c0_88] : memref<3x128x128xbf16, #tpu.memory_space<vmem>>, vector<1x128x128xbf16>
    %126 = vector.shape_cast %125 : vector<1x128x128xbf16> to vector<128x128xbf16>
    %c2_89 = arith.constant 2 : index
    %c0_90 = arith.constant 0 : index
    %127 = memref.load %arg13[%c2_89, %c0_90] : memref<3x3xf32, #tpu.memory_space<smem>>
    %128 = arith.truncf %127 : f32 to bf16
    %129 = vector.broadcast %128 : bf16 to vector<128x128xbf16>
    %130 = arith.subf %126, %129 : vector<128x128xbf16>
    %131 = arith.mulf %130, %130 : vector<128x128xbf16>
    %c2_91 = arith.constant 2 : index
    %c0_92 = arith.constant 0 : index
    %132 = memref.load %arg14[%c2_91, %c0_92] : memref<3x3xf32, #tpu.memory_space<smem>>
    %133 = arith.truncf %132 : f32 to bf16
    %134 = vector.broadcast %133 : bf16 to vector<128x128xbf16>
    %135 = arith.mulf %131, %134 : vector<128x128xbf16>
    %c1_93 = arith.constant 1 : index
    %c0_94 = arith.constant 0 : index
    %c0_95 = arith.constant 0 : index
    %136 = vector.load %arg23[%c1_93, %c0_94, %c0_95] : memref<3x128x128xbf16, #tpu.memory_space<vmem>>, vector<1x128x128xbf16>
    %137 = vector.shape_cast %136 : vector<1x128x128xbf16> to vector<128x128xbf16>
    %c2_96 = arith.constant 2 : index
    %c1_97 = arith.constant 1 : index
    %138 = memref.load %arg13[%c2_96, %c1_97] : memref<3x3xf32, #tpu.memory_space<smem>>
    %139 = arith.truncf %138 : f32 to bf16
    %140 = vector.broadcast %139 : bf16 to vector<128x128xbf16>
    %141 = arith.subf %137, %140 : vector<128x128xbf16>
    %142 = arith.mulf %141, %141 : vector<128x128xbf16>
    %c2_98 = arith.constant 2 : index
    %c1_99 = arith.constant 1 : index
    %143 = memref.load %arg14[%c2_98, %c1_99] : memref<3x3xf32, #tpu.memory_space<smem>>
    %144 = arith.truncf %143 : f32 to bf16
    %145 = vector.broadcast %144 : bf16 to vector<128x128xbf16>
    %146 = arith.mulf %142, %145 : vector<128x128xbf16>
    %147 = arith.addf %135, %146 : vector<128x128xbf16>
    %c2_100 = arith.constant 2 : index
    %c0_101 = arith.constant 0 : index
    %c0_102 = arith.constant 0 : index
    %148 = vector.load %arg23[%c2_100, %c0_101, %c0_102] : memref<3x128x128xbf16, #tpu.memory_space<vmem>>, vector<1x128x128xbf16>
    %149 = vector.shape_cast %148 : vector<1x128x128xbf16> to vector<128x128xbf16>
    %c2_103 = arith.constant 2 : index
    %c2_104 = arith.constant 2 : index
    %150 = memref.load %arg13[%c2_103, %c2_104] : memref<3x3xf32, #tpu.memory_space<smem>>
    %151 = arith.truncf %150 : f32 to bf16
    %152 = vector.broadcast %151 : bf16 to vector<128x128xbf16>
    %153 = arith.subf %149, %152 : vector<128x128xbf16>
    %154 = arith.mulf %153, %153 : vector<128x128xbf16>
    %c2_105 = arith.constant 2 : index
    %c2_106 = arith.constant 2 : index
    %155 = memref.load %arg14[%c2_105, %c2_106] : memref<3x3xf32, #tpu.memory_space<smem>>
    %156 = arith.truncf %155 : f32 to bf16
    %157 = vector.broadcast %156 : bf16 to vector<128x128xbf16>
    %158 = arith.mulf %154, %157 : vector<128x128xbf16>
    %159 = arith.addf %147, %158 : vector<128x128xbf16>
    %160 = math.exp %159 : vector<128x128xbf16>
    %161 = arith.mulf %33, %160 : vector<128x128xbf16>
    %c0_107 = arith.constant 0 : index
    %c256 = arith.constant 256 : index
    %162 = vector.load %arg24[%c0_107, %c256] : memref<128x384xbf16, #tpu.memory_space<vmem>>, vector<128x128xbf16>
    tpu.vector_store %arg24[%c0_107, %c256], %161 {strides = array<i32>} : memref<128x384xbf16, #tpu.memory_space<vmem>>, vector<128x128xbf16>,
    %c2_108 = arith.constant 2 : index
    %c0_109 = arith.constant 0 : index
    %c0_110 = arith.constant 0 : index
    %163 = vector.load %arg8[%c2_108, %c0_109, %c0_110] : memref<3x2x8xbf16, #tpu.memory_space<vmem>>, vector<1x2x8xbf16>
    %164 = vector.shape_cast %163 : vector<1x2x8xbf16> to vector<2x8xbf16>
    %cst_111 = arith.constant dense<0.000000e+00> : vector<128x8xf32>
    %165 = tpu.matmul %38, %164, %cst_111 {dimension_numbers = #tpu.dot_dimension_numbers<[1], [0], [0], [1], [0, 0, 1, 1], [], []>} : vector<128x2xbf16>, vector<2x8xbf16>, vector<128x8xf32> -> vector<128x8xf32>
    %166 = arith.truncf %165 : vector<128x8xf32> to vector<128x8xbf16>
    %c256_112 = arith.constant 256 : index
    %c0_113 = arith.constant 0 : index
    %167 = vector.load %arg25[%c256_112, %c0_113] : memref<384x10xbf16, #tpu.memory_space<vmem>>, vector<128x8xbf16>
    tpu.vector_store %arg25[%c256_112, %c0_113], %166 {strides = array<i32>} : memref<384x10xbf16, #tpu.memory_space<vmem>>, vector<128x8xbf16>,
    %c0_114 = arith.constant 0 : index
    %c0_115 = arith.constant 0 : index
    %168 = vector.load %arg24[%c0_114, %c0_115] : memref<128x384xbf16, #tpu.memory_space<vmem>>, vector<128x384xbf16>
    %c0_116 = arith.constant 0 : index
    %c0_117 = arith.constant 0 : index
    %169 = vector.load %arg25[%c0_116, %c0_117] : memref<384x10xbf16, #tpu.memory_space<vmem>>, vector<384x8xbf16>
    %cst_118 = arith.constant dense<0.000000e+00> : vector<128x8xf32>
    %170 = tpu.matmul %168, %169, %cst_118 {dimension_numbers = #tpu.dot_dimension_numbers<[1], [0], [0], [1], [0, 0, 1, 1], [], []>} : vector<128x384xbf16>, vector<384x8xbf16>, vector<128x8xf32> -> vector<128x8xf32>
    %171 = vector.broadcast %34 : vector<128x1xf32> to vector<128x8xf32>
    %172 = arith.mulf %170, %171 : vector<128x8xf32>
    %c0_119 = arith.constant 0 : index
    %c0_120 = arith.constant 0 : index
    %173 = vector.load %arg9[%c0_119, %c0_120] : memref<2x8xbf16, #tpu.memory_space<vmem>>, vector<2x8xbf16>
    %cst_121 = arith.constant dense<0.000000e+00> : vector<128x8xf32>
    %174 = tpu.matmul %38, %173, %cst_121 {dimension_numbers = #tpu.dot_dimension_numbers<[1], [0], [0], [1], [0, 0, 1, 1], [], []>} : vector<128x2xbf16>, vector<2x8xbf16>, vector<128x8xf32> -> vector<128x8xf32>
    %175 = arith.addf %172, %174 : vector<128x8xf32>
    %c0_122 = arith.constant 0 : index
    %c0_123 = arith.constant 0 : index
    %176 = vector.load %arg10[%c0_122, %c0_123] : memref<1x8xf32, #tpu.memory_space<vmem>>, vector<1x8xf32>
    %177 = vector.broadcast %176 : vector<1x8xf32> to vector<128x8xf32>
    %178 = arith.addf %175, %177 : vector<128x8xf32>
    %179 = vector.broadcast %35 : vector<128x1xf32> to vector<128x8xf32>
    %180 = arith.mulf %178, %179 : vector<128x8xf32>
    %cst_124 = arith.constant dense<0.000000e+00> : vector<8xf32>
    %181 = vector.multi_reduction <add>, %180, %cst_124 [0] : vector<128x8xf32> to vector<8xf32>
    %182 = vector.shape_cast %181 : vector<8xf32> to vector<1x8xf32>
    %183 = vector.broadcast %36 : f32 to vector<1x8xf32>
    %184 = arith.mulf %182, %183 : vector<1x8xf32>
    %185 = vector.broadcast %184 : vector<1x8xf32> to vector<128x8xf32>
    %186 = arith.subf %178, %185 : vector<128x8xf32>
    %187 = vector.broadcast %35 : vector<128x1xf32> to vector<128x8xf32>
    %188 = arith.mulf %186, %187 : vector<128x8xf32>
    %189 = arith.mulf %188, %188 : vector<128x8xf32>
    %cst_125 = arith.constant dense<0.000000e+00> : vector<8xf32>
    %190 = vector.multi_reduction <add>, %189, %cst_125 [0] : vector<128x8xf32> to vector<8xf32>
    %191 = vector.shape_cast %190 : vector<8xf32> to vector<1x8xf32>
    %192 = vector.broadcast %36 : f32 to vector<1x8xf32>
    %193 = arith.mulf %191, %192 : vector<1x8xf32>
    %c0_126 = arith.constant 0 : index
    %c0_127 = arith.constant 0 : index
    %194 = vector.load %arg11[%c0_126, %c0_127] : memref<1x8xf32, #tpu.memory_space<vmem>>, vector<1x8xf32>
    %195 = vector.broadcast %184 : vector<1x8xf32> to vector<128x8xf32>
    %196 = arith.subf %178, %195 : vector<128x8xf32>
    %cst_128 = arith.constant 9.99999974E-6 : f32
    %197 = vector.broadcast %cst_128 : f32 to vector<1x8xf32>
    %198 = arith.addf %193, %197 : vector<1x8xf32>
    %199 = math.rsqrt %198 : vector<1x8xf32>
    %200 = vector.broadcast %199 : vector<1x8xf32> to vector<128x8xf32>
    %201 = arith.mulf %196, %200 : vector<128x8xf32>
    %202 = vector.broadcast %194 : vector<1x8xf32> to vector<128x8xf32>
    %203 = arith.mulf %202, %201 : vector<128x8xf32>
    %c0_129 = arith.constant 0 : index
    %c0_130 = arith.constant 0 : index
    %204 = vector.load %arg12[%c0_129, %c0_130] : memref<1x8xf32, #tpu.memory_space<vmem>>, vector<1x8xf32>
    %205 = vector.broadcast %204 : vector<1x8xf32> to vector<128x8xf32>
    %206 = arith.addf %203, %205 : vector<128x8xf32>
    %cst_131 = arith.constant 0.000000e+00 : f32
    %207 = vector.broadcast %cst_131 : f32 to vector<128x8xf32>
    %208 = arith.maximumf %206, %207 : vector<128x8xf32>
    %209 = vector.broadcast %35 : vector<128x1xf32> to vector<128x8xf32>
    %210 = arith.mulf %208, %209 : vector<128x8xf32>
    %211 = arith.truncf %210 : vector<128x8xf32> to vector<128x8xbf16>
    %c0_132 = arith.constant 0 : index
    %c0_133 = arith.constant 0 : index
    %c0_134 = arith.constant 0 : index
    %212 = vector.load %arg23[%c0_132, %c0_133, %c0_134] : memref<3x128x128xbf16, #tpu.memory_space<vmem>>, vector<1x128x128xbf16>
    %213 = vector.shape_cast %212 : vector<1x128x128xbf16> to vector<128x128xbf16>
    %c0_135 = arith.constant 0 : index
    %c0_136 = arith.constant 0 : index
    %214 = memref.load %arg20[%c0_135, %c0_136] : memref<3x3xf32, #tpu.memory_space<smem>>
    %215 = arith.truncf %214 : f32 to bf16
    %216 = vector.broadcast %215 : bf16 to vector<128x128xbf16>
    %217 = arith.subf %213, %216 : vector<128x128xbf16>
    %218 = arith.mulf %217, %217 : vector<128x128xbf16>
    %c0_137 = arith.constant 0 : index
    %c0_138 = arith.constant 0 : index
    %219 = memref.load %arg21[%c0_137, %c0_138] : memref<3x3xf32, #tpu.memory_space<smem>>
    %220 = arith.truncf %219 : f32 to bf16
    %221 = vector.broadcast %220 : bf16 to vector<128x128xbf16>
    %222 = arith.mulf %218, %221 : vector<128x128xbf16>
    %c1_139 = arith.constant 1 : index
    %c0_140 = arith.constant 0 : index
    %c0_141 = arith.constant 0 : index
    %223 = vector.load %arg23[%c1_139, %c0_140, %c0_141] : memref<3x128x128xbf16, #tpu.memory_space<vmem>>, vector<1x128x128xbf16>
    %224 = vector.shape_cast %223 : vector<1x128x128xbf16> to vector<128x128xbf16>
    %c0_142 = arith.constant 0 : index
    %c1_143 = arith.constant 1 : index
    %225 = memref.load %arg20[%c0_142, %c1_143] : memref<3x3xf32, #tpu.memory_space<smem>>
    %226 = arith.truncf %225 : f32 to bf16
    %227 = vector.broadcast %226 : bf16 to vector<128x128xbf16>
    %228 = arith.subf %224, %227 : vector<128x128xbf16>
    %229 = arith.mulf %228, %228 : vector<128x128xbf16>
    %c0_144 = arith.constant 0 : index
    %c1_145 = arith.constant 1 : index
    %230 = memref.load %arg21[%c0_144, %c1_145] : memref<3x3xf32, #tpu.memory_space<smem>>
    %231 = arith.truncf %230 : f32 to bf16
    %232 = vector.broadcast %231 : bf16 to vector<128x128xbf16>
    %233 = arith.mulf %229, %232 : vector<128x128xbf16>
    %234 = arith.addf %222, %233 : vector<128x128xbf16>
    %c2_146 = arith.constant 2 : index
    %c0_147 = arith.constant 0 : index
    %c0_148 = arith.constant 0 : index
    %235 = vector.load %arg23[%c2_146, %c0_147, %c0_148] : memref<3x128x128xbf16, #tpu.memory_space<vmem>>, vector<1x128x128xbf16>
    %236 = vector.shape_cast %235 : vector<1x128x128xbf16> to vector<128x128xbf16>
    %c0_149 = arith.constant 0 : index
    %c2_150 = arith.constant 2 : index
    %237 = memref.load %arg20[%c0_149, %c2_150] : memref<3x3xf32, #tpu.memory_space<smem>>
    %238 = arith.truncf %237 : f32 to bf16
    %239 = vector.broadcast %238 : bf16 to vector<128x128xbf16>
    %240 = arith.subf %236, %239 : vector<128x128xbf16>
    %241 = arith.mulf %240, %240 : vector<128x128xbf16>
    %c0_151 = arith.constant 0 : index
    %c2_152 = arith.constant 2 : index
    %242 = memref.load %arg21[%c0_151, %c2_152] : memref<3x3xf32, #tpu.memory_space<smem>>
    %243 = arith.truncf %242 : f32 to bf16
    %244 = vector.broadcast %243 : bf16 to vector<128x128xbf16>
    %245 = arith.mulf %241, %244 : vector<128x128xbf16>
    %246 = arith.addf %234, %245 : vector<128x128xbf16>
    %247 = math.exp %246 : vector<128x128xbf16>
    %248 = arith.mulf %33, %247 : vector<128x128xbf16>
    %c0_153 = arith.constant 0 : index
    %c0_154 = arith.constant 0 : index
    %249 = vector.load %arg24[%c0_153, %c0_154] : memref<128x384xbf16, #tpu.memory_space<vmem>>, vector<128x128xbf16>
    tpu.vector_store %arg24[%c0_153, %c0_154], %248 {strides = array<i32>} : memref<128x384xbf16, #tpu.memory_space<vmem>>, vector<128x128xbf16>,
    %c0_155 = arith.constant 0 : index
    %c0_156 = arith.constant 0 : index
    %c0_157 = arith.constant 0 : index
    %250 = vector.load %arg15[%c0_155, %c0_156, %c0_157] : memref<3x8x10xbf16, #tpu.memory_space<vmem>>, vector<1x8x10xbf16>
    %251 = vector.shape_cast %250 : vector<1x8x10xbf16> to vector<8x10xbf16>
    %cst_158 = arith.constant dense<0.000000e+00> : vector<128x10xf32>
    %252 = tpu.matmul %211, %251, %cst_158 {dimension_numbers = #tpu.dot_dimension_numbers<[1], [0], [0], [1], [0, 0, 1, 1], [], []>} : vector<128x8xbf16>, vector<8x10xbf16>, vector<128x10xf32> -> vector<128x10xf32>
    %253 = arith.truncf %252 : vector<128x10xf32> to vector<128x10xbf16>
    %c0_159 = arith.constant 0 : index
    %c0_160 = arith.constant 0 : index
    %254 = vector.load %arg25[%c0_159, %c0_160] : memref<384x10xbf16, #tpu.memory_space<vmem>>, vector<128x10xbf16>
    tpu.vector_store %arg25[%c0_159, %c0_160], %253 {strides = array<i32>} : memref<384x10xbf16, #tpu.memory_space<vmem>>, vector<128x10xbf16>,
    %c0_161 = arith.constant 0 : index
    %c0_162 = arith.constant 0 : index
    %c0_163 = arith.constant 0 : index
    %255 = vector.load %arg23[%c0_161, %c0_162, %c0_163] : memref<3x128x128xbf16, #tpu.memory_space<vmem>>, vector<1x128x128xbf16>
    %256 = vector.shape_cast %255 : vector<1x128x128xbf16> to vector<128x128xbf16>
    %c1_164 = arith.constant 1 : index
    %c0_165 = arith.constant 0 : index
    %257 = memref.load %arg20[%c1_164, %c0_165] : memref<3x3xf32, #tpu.memory_space<smem>>
    %258 = arith.truncf %257 : f32 to bf16
    %259 = vector.broadcast %258 : bf16 to vector<128x128xbf16>
    %260 = arith.subf %256, %259 : vector<128x128xbf16>
    %261 = arith.mulf %260, %260 : vector<128x128xbf16>
    %c1_166 = arith.constant 1 : index
    %c0_167 = arith.constant 0 : index
    %262 = memref.load %arg21[%c1_166, %c0_167] : memref<3x3xf32, #tpu.memory_space<smem>>
    %263 = arith.truncf %262 : f32 to bf16
    %264 = vector.broadcast %263 : bf16 to vector<128x128xbf16>
    %265 = arith.mulf %261, %264 : vector<128x128xbf16>
    %c1_168 = arith.constant 1 : index
    %c0_169 = arith.constant 0 : index
    %c0_170 = arith.constant 0 : index
    %266 = vector.load %arg23[%c1_168, %c0_169, %c0_170] : memref<3x128x128xbf16, #tpu.memory_space<vmem>>, vector<1x128x128xbf16>
    %267 = vector.shape_cast %266 : vector<1x128x128xbf16> to vector<128x128xbf16>
    %c1_171 = arith.constant 1 : index
    %c1_172 = arith.constant 1 : index
    %268 = memref.load %arg20[%c1_171, %c1_172] : memref<3x3xf32, #tpu.memory_space<smem>>
    %269 = arith.truncf %268 : f32 to bf16
    %270 = vector.broadcast %269 : bf16 to vector<128x128xbf16>
    %271 = arith.subf %267, %270 : vector<128x128xbf16>
    %272 = arith.mulf %271, %271 : vector<128x128xbf16>
    %c1_173 = arith.constant 1 : index
    %c1_174 = arith.constant 1 : index
    %273 = memref.load %arg21[%c1_173, %c1_174] : memref<3x3xf32, #tpu.memory_space<smem>>
    %274 = arith.truncf %273 : f32 to bf16
    %275 = vector.broadcast %274 : bf16 to vector<128x128xbf16>
    %276 = arith.mulf %272, %275 : vector<128x128xbf16>
    %277 = arith.addf %265, %276 : vector<128x128xbf16>
    %c2_175 = arith.constant 2 : index
    %c0_176 = arith.constant 0 : index
    %c0_177 = arith.constant 0 : index
    %278 = vector.load %arg23[%c2_175, %c0_176, %c0_177] : memref<3x128x128xbf16, #tpu.memory_space<vmem>>, vector<1x128x128xbf16>
    %279 = vector.shape_cast %278 : vector<1x128x128xbf16> to vector<128x128xbf16>
    %c1_178 = arith.constant 1 : index
    %c2_179 = arith.constant 2 : index
    %280 = memref.load %arg20[%c1_178, %c2_179] : memref<3x3xf32, #tpu.memory_space<smem>>
    %281 = arith.truncf %280 : f32 to bf16
    %282 = vector.broadcast %281 : bf16 to vector<128x128xbf16>
    %283 = arith.subf %279, %282 : vector<128x128xbf16>
    %284 = arith.mulf %283, %283 : vector<128x128xbf16>
    %c1_180 = arith.constant 1 : index
    %c2_181 = arith.constant 2 : index
    %285 = memref.load %arg21[%c1_180, %c2_181] : memref<3x3xf32, #tpu.memory_space<smem>>
    %286 = arith.truncf %285 : f32 to bf16
    %287 = vector.broadcast %286 : bf16 to vector<128x128xbf16>
    %288 = arith.mulf %284, %287 : vector<128x128xbf16>
    %289 = arith.addf %277, %288 : vector<128x128xbf16>
    %290 = math.exp %289 : vector<128x128xbf16>
    %291 = arith.mulf %33, %290 : vector<128x128xbf16>
    %c0_182 = arith.constant 0 : index
    %c128_183 = arith.constant 128 : index
    %292 = vector.load %arg24[%c0_182, %c128_183] : memref<128x384xbf16, #tpu.memory_space<vmem>>, vector<128x128xbf16>
    tpu.vector_store %arg24[%c0_182, %c128_183], %291 {strides = array<i32>} : memref<128x384xbf16, #tpu.memory_space<vmem>>, vector<128x128xbf16>,
    %c1_184 = arith.constant 1 : index
    %c0_185 = arith.constant 0 : index
    %c0_186 = arith.constant 0 : index
    %293 = vector.load %arg15[%c1_184, %c0_185, %c0_186] : memref<3x8x10xbf16, #tpu.memory_space<vmem>>, vector<1x8x10xbf16>
    %294 = vector.shape_cast %293 : vector<1x8x10xbf16> to vector<8x10xbf16>
    %cst_187 = arith.constant dense<0.000000e+00> : vector<128x10xf32>
    %295 = tpu.matmul %211, %294, %cst_187 {dimension_numbers = #tpu.dot_dimension_numbers<[1], [0], [0], [1], [0, 0, 1, 1], [], []>} : vector<128x8xbf16>, vector<8x10xbf16>, vector<128x10xf32> -> vector<128x10xf32>
    %296 = arith.truncf %295 : vector<128x10xf32> to vector<128x10xbf16>
    %c128_188 = arith.constant 128 : index
    %c0_189 = arith.constant 0 : index
    %297 = vector.load %arg25[%c128_188, %c0_189] : memref<384x10xbf16, #tpu.memory_space<vmem>>, vector<128x10xbf16>
    tpu.vector_store %arg25[%c128_188, %c0_189], %296 {strides = array<i32>} : memref<384x10xbf16, #tpu.memory_space<vmem>>, vector<128x10xbf16>,
    %c0_190 = arith.constant 0 : index
    %c0_191 = arith.constant 0 : index
    %c0_192 = arith.constant 0 : index
    %298 = vector.load %arg23[%c0_190, %c0_191, %c0_192] : memref<3x128x128xbf16, #tpu.memory_space<vmem>>, vector<1x128x128xbf16>
    %299 = vector.shape_cast %298 : vector<1x128x128xbf16> to vector<128x128xbf16>
    %c2_193 = arith.constant 2 : index
    %c0_194 = arith.constant 0 : index
    %300 = memref.load %arg20[%c2_193, %c0_194] : memref<3x3xf32, #tpu.memory_space<smem>>
    %301 = arith.truncf %300 : f32 to bf16
    %302 = vector.broadcast %301 : bf16 to vector<128x128xbf16>
    %303 = arith.subf %299, %302 : vector<128x128xbf16>
    %304 = arith.mulf %303, %303 : vector<128x128xbf16>
    %c2_195 = arith.constant 2 : index
    %c0_196 = arith.constant 0 : index
    %305 = memref.load %arg21[%c2_195, %c0_196] : memref<3x3xf32, #tpu.memory_space<smem>>
    %306 = arith.truncf %305 : f32 to bf16
    %307 = vector.broadcast %306 : bf16 to vector<128x128xbf16>
    %308 = arith.mulf %304, %307 : vector<128x128xbf16>
    %c1_197 = arith.constant 1 : index
    %c0_198 = arith.constant 0 : index
    %c0_199 = arith.constant 0 : index
    %309 = vector.load %arg23[%c1_197, %c0_198, %c0_199] : memref<3x128x128xbf16, #tpu.memory_space<vmem>>, vector<1x128x128xbf16>
    %310 = vector.shape_cast %309 : vector<1x128x128xbf16> to vector<128x128xbf16>
    %c2_200 = arith.constant 2 : index
    %c1_201 = arith.constant 1 : index
    %311 = memref.load %arg20[%c2_200, %c1_201] : memref<3x3xf32, #tpu.memory_space<smem>>
    %312 = arith.truncf %311 : f32 to bf16
    %313 = vector.broadcast %312 : bf16 to vector<128x128xbf16>
    %314 = arith.subf %310, %313 : vector<128x128xbf16>
    %315 = arith.mulf %314, %314 : vector<128x128xbf16>
    %c2_202 = arith.constant 2 : index
    %c1_203 = arith.constant 1 : index
    %316 = memref.load %arg21[%c2_202, %c1_203] : memref<3x3xf32, #tpu.memory_space<smem>>
    %317 = arith.truncf %316 : f32 to bf16
    %318 = vector.broadcast %317 : bf16 to vector<128x128xbf16>
    %319 = arith.mulf %315, %318 : vector<128x128xbf16>
    %320 = arith.addf %308, %319 : vector<128x128xbf16>
    %c2_204 = arith.constant 2 : index
    %c0_205 = arith.constant 0 : index
    %c0_206 = arith.constant 0 : index
    %321 = vector.load %arg23[%c2_204, %c0_205, %c0_206] : memref<3x128x128xbf16, #tpu.memory_space<vmem>>, vector<1x128x128xbf16>
    %322 = vector.shape_cast %321 : vector<1x128x128xbf16> to vector<128x128xbf16>
    %c2_207 = arith.constant 2 : index
    %c2_208 = arith.constant 2 : index
    %323 = memref.load %arg20[%c2_207, %c2_208] : memref<3x3xf32, #tpu.memory_space<smem>>
    %324 = arith.truncf %323 : f32 to bf16
    %325 = vector.broadcast %324 : bf16 to vector<128x128xbf16>
    %326 = arith.subf %322, %325 : vector<128x128xbf16>
    %327 = arith.mulf %326, %326 : vector<128x128xbf16>
    %c2_209 = arith.constant 2 : index
    %c2_210 = arith.constant 2 : index
    %328 = memref.load %arg21[%c2_209, %c2_210] : memref<3x3xf32, #tpu.memory_space<smem>>
    %329 = arith.truncf %328 : f32 to bf16
    %330 = vector.broadcast %329 : bf16 to vector<128x128xbf16>
    %331 = arith.mulf %327, %330 : vector<128x128xbf16>
    %332 = arith.addf %320, %331 : vector<128x128xbf16>
    %333 = math.exp %332 : vector<128x128xbf16>
    %334 = arith.mulf %33, %333 : vector<128x128xbf16>
    %c0_211 = arith.constant 0 : index
    %c256_212 = arith.constant 256 : index
    %335 = vector.load %arg24[%c0_211, %c256_212] : memref<128x384xbf16, #tpu.memory_space<vmem>>, vector<128x128xbf16>
    tpu.vector_store %arg24[%c0_211, %c256_212], %334 {strides = array<i32>} : memref<128x384xbf16, #tpu.memory_space<vmem>>, vector<128x128xbf16>,
    %c2_213 = arith.constant 2 : index
    %c0_214 = arith.constant 0 : index
    %c0_215 = arith.constant 0 : index
    %336 = vector.load %arg15[%c2_213, %c0_214, %c0_215] : memref<3x8x10xbf16, #tpu.memory_space<vmem>>, vector<1x8x10xbf16>
    %337 = vector.shape_cast %336 : vector<1x8x10xbf16> to vector<8x10xbf16>
    %cst_216 = arith.constant dense<0.000000e+00> : vector<128x10xf32>
    %338 = tpu.matmul %211, %337, %cst_216 {dimension_numbers = #tpu.dot_dimension_numbers<[1], [0], [0], [1], [0, 0, 1, 1], [], []>} : vector<128x8xbf16>, vector<8x10xbf16>, vector<128x10xf32> -> vector<128x10xf32>
    %339 = arith.truncf %338 : vector<128x10xf32> to vector<128x10xbf16>
    %c256_217 = arith.constant 256 : index
    %c0_218 = arith.constant 0 : index
    %340 = vector.load %arg25[%c256_217, %c0_218] : memref<384x10xbf16, #tpu.memory_space<vmem>>, vector<128x10xbf16>
    tpu.vector_store %arg25[%c256_217, %c0_218], %339 {strides = array<i32>} : memref<384x10xbf16, #tpu.memory_space<vmem>>, vector<128x10xbf16>,
    %c0_219 = arith.constant 0 : index
    %c0_220 = arith.constant 0 : index
    %341 = vector.load %arg24[%c0_219, %c0_220] : memref<128x384xbf16, #tpu.memory_space<vmem>>, vector<128x384xbf16>
    %c0_221 = arith.constant 0 : index
    %c0_222 = arith.constant 0 : index
    %342 = vector.load %arg25[%c0_221, %c0_222] : memref<384x10xbf16, #tpu.memory_space<vmem>>, vector<384x10xbf16>
    %cst_223 = arith.constant dense<0.000000e+00> : vector<128x10xf32>
    %343 = tpu.matmul %341, %342, %cst_223 {dimension_numbers = #tpu.dot_dimension_numbers<[1], [0], [0], [1], [0, 0, 1, 1], [], []>} : vector<128x384xbf16>, vector<384x10xbf16>, vector<128x10xf32> -> vector<128x10xf32>
    %344 = vector.broadcast %34 : vector<128x1xf32> to vector<128x10xf32>
    %345 = arith.mulf %343, %344 : vector<128x10xf32>
    %c0_224 = arith.constant 0 : index
    %c0_225 = arith.constant 0 : index
    %346 = vector.load %arg16[%c0_224, %c0_225] : memref<8x10xbf16, #tpu.memory_space<vmem>>, vector<8x10xbf16>
    %cst_226 = arith.constant dense<0.000000e+00> : vector<128x10xf32>
    %347 = tpu.matmul %211, %346, %cst_226 {dimension_numbers = #tpu.dot_dimension_numbers<[1], [0], [0], [1], [0, 0, 1, 1], [], []>} : vector<128x8xbf16>, vector<8x10xbf16>, vector<128x10xf32> -> vector<128x10xf32>
    %348 = arith.addf %345, %347 : vector<128x10xf32>
    %c0_227 = arith.constant 0 : index
    %c0_228 = arith.constant 0 : index
    %349 = vector.load %arg17[%c0_227, %c0_228] : memref<1x10xf32, #tpu.memory_space<vmem>>, vector<1x10xf32>
    %350 = vector.broadcast %349 : vector<1x10xf32> to vector<128x10xf32>
    %351 = arith.addf %348, %350 : vector<128x10xf32>
    %352 = vector.broadcast %35 : vector<128x1xf32> to vector<128x10xf32>
    %353 = arith.mulf %351, %352 : vector<128x10xf32>
    %cst_229 = arith.constant dense<0.000000e+00> : vector<10xf32>
    %354 = vector.multi_reduction <add>, %353, %cst_229 [0] : vector<128x10xf32> to vector<10xf32>
    %355 = vector.shape_cast %354 : vector<10xf32> to vector<1x10xf32>
    %356 = vector.broadcast %36 : f32 to vector<1x10xf32>
    %357 = arith.mulf %355, %356 : vector<1x10xf32>
    %358 = vector.broadcast %357 : vector<1x10xf32> to vector<128x10xf32>
    %359 = arith.subf %351, %358 : vector<128x10xf32>
    %360 = vector.broadcast %35 : vector<128x1xf32> to vector<128x10xf32>
    %361 = arith.mulf %359, %360 : vector<128x10xf32>
    %362 = arith.mulf %361, %361 : vector<128x10xf32>
    %cst_230 = arith.constant dense<0.000000e+00> : vector<10xf32>
    %363 = vector.multi_reduction <add>, %362, %cst_230 [0] : vector<128x10xf32> to vector<10xf32>
    %364 = vector.shape_cast %363 : vector<10xf32> to vector<1x10xf32>
    %365 = vector.broadcast %36 : f32 to vector<1x10xf32>
    %366 = arith.mulf %364, %365 : vector<1x10xf32>
    %c0_231 = arith.constant 0 : index
    %c0_232 = arith.constant 0 : index
    %367 = vector.load %arg18[%c0_231, %c0_232] : memref<1x10xf32, #tpu.memory_space<vmem>>, vector<1x10xf32>
    %368 = vector.broadcast %357 : vector<1x10xf32> to vector<128x10xf32>
    %369 = arith.subf %351, %368 : vector<128x10xf32>
    %cst_233 = arith.constant 9.99999974E-6 : f32
    %370 = vector.broadcast %cst_233 : f32 to vector<1x10xf32>
    %371 = arith.addf %366, %370 : vector<1x10xf32>
    %372 = math.rsqrt %371 : vector<1x10xf32>
    %373 = vector.broadcast %372 : vector<1x10xf32> to vector<128x10xf32>
    %374 = arith.mulf %369, %373 : vector<128x10xf32>
    %375 = vector.broadcast %367 : vector<1x10xf32> to vector<128x10xf32>
    %376 = arith.mulf %375, %374 : vector<128x10xf32>
    %c0_234 = arith.constant 0 : index
    %c0_235 = arith.constant 0 : index
    %377 = vector.load %arg19[%c0_234, %c0_235] : memref<1x10xf32, #tpu.memory_space<vmem>>, vector<1x10xf32>
    %378 = vector.broadcast %377 : vector<1x10xf32> to vector<128x10xf32>
    %379 = arith.addf %376, %378 : vector<128x10xf32>
    %cst_236 = arith.constant 0.000000e+00 : f32
    %380 = vector.broadcast %cst_236 : f32 to vector<128x10xf32>
    %381 = arith.maximumf %379, %380 : vector<128x10xf32>
    %382 = vector.broadcast %35 : vector<128x1xf32> to vector<128x10xf32>
    %383 = arith.mulf %381, %382 : vector<128x10xf32>
    %c0_237 = arith.constant 0 : index
    %c0_238 = arith.constant 0 : index
    %384 = vector.load %arg22[%c0_237, %c0_238] : memref<128x10xf32, #tpu.memory_space<vmem>>, vector<128x10xf32>
    tpu.vector_store %arg22[%c0_237, %c0_238], %383 {strides = array<i32>} : memref<128x10xf32, #tpu.memory_space<vmem>>, vector<128x10xf32>,
    return
  }
  func.func @transform_0(%arg0: i32) -> (i32, i32) {
    %c0_i32 = arith.constant 0 : i32
    %c0_i32_0 = arith.constant 0 : i32
    %c0_i32_1 = arith.constant 0 : i32
    return %c0_i32, %c0_i32_0 : i32, i32
  }
  func.func @transform_1(%arg0: i32) -> (i32, i32) {
    %c0_i32 = arith.constant 0 : i32
    %c0_i32_0 = arith.constant 0 : i32
    %c0_i32_1 = arith.constant 0 : i32
    return %c0_i32, %c0_i32_0 : i32, i32
  }
  func.func @transform_2(%arg0: i32) -> (i32, i32) {
    %c0_i32 = arith.constant 0 : i32
    %c0_i32_0 = arith.constant 0 : i32
    %c0_i32_1 = arith.constant 0 : i32
    return %c0_i32, %c0_i32_0 : i32, i32
  }
  func.func @transform_3(%arg0: i32) -> (i32, i32) {
    %c0_i32 = arith.constant 0 : i32
    %c0_i32_0 = arith.constant 0 : i32
    %c0_i32_1 = arith.constant 0 : i32
    return %c0_i32, %c0_i32_0 : i32, i32
  }
  func.func @transform_4(%arg0: i32) -> (i32, i32) {
    %c0_i32 = arith.constant 0 : i32
    %c0_i32_0 = arith.constant 0 : i32
    %c0_i32_1 = arith.constant 0 : i32
    return %c0_i32, %c0_i32_0 : i32, i32
  }
  func.func @transform_5(%arg0: i32) -> (i32, i32) {
    %c0_i32 = arith.constant 0 : i32
    %c0_i32_0 = arith.constant 0 : i32
    %c0_i32_1 = arith.constant 0 : i32
    return %c0_i32, %c0_i32_0 : i32, i32
  }
  func.func @transform_6(%arg0: i32) -> i32 {
    %c0_i32 = arith.constant 0 : i32
    %c0_i32_0 = arith.constant 0 : i32
    return %c0_i32 : i32
  }
  func.func @transform_7(%arg0: i32) -> (i32, i32, i32) {
    %c0_i32 = arith.constant 0 : i32
    %c0_i32_0 = arith.constant 0 : i32
    %c0_i32_1 = arith.constant 0 : i32
    %c0_i32_2 = arith.constant 0 : i32
    return %c0_i32, %c0_i32_0, %c0_i32_1 : i32, i32, i32
  }
  func.func @transform_8(%arg0: i32) -> (i32, i32) {
    %c0_i32 = arith.constant 0 : i32
    %c0_i32_0 = arith.constant 0 : i32
    %c0_i32_1 = arith.constant 0 : i32
    return %c0_i32, %c0_i32_0 : i32, i32
  }
  func.func @transform_9(%arg0: i32) -> (i32, i32) {
    %c0_i32 = arith.constant 0 : i32
    %c0_i32_0 = arith.constant 0 : i32
    %c0_i32_1 = arith.constant 0 : i32
    return %c0_i32, %c0_i32_0 : i32, i32
  }
  func.func @transform_10(%arg0: i32) -> (i32, i32) {
    %c0_i32 = arith.constant 0 : i32
    %c0_i32_0 = arith.constant 0 : i32
    %c0_i32_1 = arith.constant 0 : i32
    return %c0_i32, %c0_i32_0 : i32, i32
  }
  func.func @transform_11(%arg0: i32) -> (i32, i32) {
    %c0_i32 = arith.constant 0 : i32
    %c0_i32_0 = arith.constant 0 : i32
    %c0_i32_1 = arith.constant 0 : i32
    return %c0_i32, %c0_i32_0 : i32, i32
  }
  func.func @transform_12(%arg0: i32) -> (i32, i32) {
    %c0_i32 = arith.constant 0 : i32
    %c0_i32_0 = arith.constant 0 : i32
    %c0_i32_1 = arith.constant 0 : i32
    return %c0_i32, %c0_i32_0 : i32, i32
  }
  func.func @transform_13(%arg0: i32) -> (i32, i32) {
    %c0_i32 = arith.constant 0 : i32
    %c0_i32_0 = arith.constant 0 : i32
    %c0_i32_1 = arith.constant 0 : i32
    return %c0_i32, %c0_i32_0 : i32, i32
  }
  func.func @transform_14(%arg0: i32) -> (i32, i32, i32) {
    %c0_i32 = arith.constant 0 : i32
    %c0_i32_0 = arith.constant 0 : i32
    %c0_i32_1 = arith.constant 0 : i32
    %c0_i32_2 = arith.constant 0 : i32
    return %c0_i32, %c0_i32_0, %c0_i32_1 : i32, i32, i32
  }
  func.func @transform_15(%arg0: i32) -> (i32, i32) {
    %c0_i32 = arith.constant 0 : i32
    %c0_i32_0 = arith.constant 0 : i32
    %c0_i32_1 = arith.constant 0 : i32
    return %c0_i32, %c0_i32_0 : i32, i32
  }
  func.func @transform_16(%arg0: i32) -> (i32, i32) {
    %c0_i32 = arith.constant 0 : i32
    %c0_i32_0 = arith.constant 0 : i32
    %c0_i32_1 = arith.constant 0 : i32
    return %c0_i32, %c0_i32_0 : i32, i32
  }
  func.func @transform_17(%arg0: i32) -> (i32, i32) {
    %c0_i32 = arith.constant 0 : i32
    %c0_i32_0 = arith.constant 0 : i32
    %c0_i32_1 = arith.constant 0 : i32
    return %c0_i32, %c0_i32_0 : i32, i32
  }
  func.func @transform_18(%arg0: i32) -> (i32, i32) {
    %c0_i32 = arith.constant 0 : i32
    %c0_i32_0 = arith.constant 0 : i32
    %c0_i32_1 = arith.constant 0 : i32
    return %c0_i32, %c0_i32_0 : i32, i32
  }
  func.func @transform_19(%arg0: i32) -> (i32, i32) {
    %c0_i32 = arith.constant 0 : i32
    %c0_i32_0 = arith.constant 0 : i32
    %c0_i32_1 = arith.constant 0 : i32
    return %c0_i32, %c0_i32_0 : i32, i32
  }
  func.func @transform_20(%arg0: i32) -> (i32, i32) {
    %c0_i32 = arith.constant 0 : i32
    %c0_i32_0 = arith.constant 0 : i32
    %c0_i32_1 = arith.constant 0 : i32
    return %c0_i32, %c0_i32_0 : i32, i32
  }
  func.func @transform_21(%arg0: i32) -> (i32, i32) {
    %c0_i32 = arith.constant 0 : i32
    %c0_i32_0 = arith.constant 0 : i32
    %c0_i32_1 = arith.constant 0 : i32
    return %c0_i32, %c0_i32_0 : i32, i32
  }
}

</mosaic_0001>

<llo_original>
// kernel: eq.9
$region0: #{eq.9}
  %s0 = inlined_call_operand.vmem [shape: s32[16,8], index: 0, kind: input, shape index: {}]
  %s1 = inlined_call_operand.vmem [shape: s32[128], index: 1, kind: output, shape index: {}]
  $region1: #{eq.9} parent=0
    #allocation0 [shape = 'u8[4096]{0}', space=vmem, size = 0x1000, scoped, tag = 'scoped mem for output reshape']
    %v2 = vld [vmem:[%s0] sm:$0x1]
    %vm3 = vcmask 64512
    %4 = vst.msk [vmem:[#allocation0] sm:$0x1] %vm3, %v2
    %s5 = scalar_lea.vmem %s0, 15
    %v6 = vld [vmem:[%s5] sm:$0x1]
    %7 = vrot.lane.b32.xlu0 %v6, 120
    %v8 = vpop.permute.xlu0 %7
    %vm9 = vcmask 1048512
    %10 = vst.msk [vmem:[#allocation0] sm:$0x1] %vm9, %v8
    %s11 = scalar_lea.vmem %s0, 14
    %v12 = vld [vmem:[%s11] sm:$0x1]
    %13 = vrot.lane.b32.xlu0 %v12, 112
    %v14 = vpop.permute.xlu0 %13
    %vm15 = vcmask 982912
    %16 = vst.msk [vmem:[#allocation0] sm:$0x1] %vm15, %v14
    %s17 = scalar_lea.vmem %s0, 13
    %v18 = vld [vmem:[%s17] sm:$0x1]
    %19 = vrot.lane.b32.xlu0 %v18, 104
    %v20 = vpop.permute.xlu0 %19
    %vm21 = vcmask 917312
    %22 = vst.msk [vmem:[#allocation0] sm:$0x1] %vm21, %v20
    %s23 = scalar_lea.vmem %s0, 12
    %v24 = vld [vmem:[%s23] sm:$0x1]
    %25 = vrot.lane.b32.xlu0 %v24, 96
    %v26 = vpop.permute.xlu0 %25
    %vm27 = vcmask 851712
    %28 = vst.msk [vmem:[#allocation0] sm:$0x1] %vm27, %v26
    %s29 = scalar_lea.vmem %s0, 11
    %v30 = vld [vmem:[%s29] sm:$0x1]
    %31 = vrot.lane.b32.xlu0 %v30, 88
    %v32 = vpop.permute.xlu0 %31
    %vm33 = vcmask 786112
    %34 = vst.msk [vmem:[#allocation0] sm:$0x1] %vm33, %v32
    %s35 = scalar_lea.vmem %s0, 10
    %v36 = vld [vmem:[%s35] sm:$0x1]
    %37 = vrot.lane.b32.xlu0 %v36, 80
    %v38 = vpop.permute.xlu0 %37
    %vm39 = vcmask 720512
    %40 = vst.msk [vmem:[#allocation0] sm:$0x1] %vm39, %v38
    %s41 = scalar_lea.vmem %s0, 9
    %v42 = vld [vmem:[%s41] sm:$0x1]
    %43 = vrot.lane.b32.xlu0 %v42, 72
    %v44 = vpop.permute.xlu0 %43
    %vm45 = vcmask 654912
    %46 = vst.msk [vmem:[#allocation0] sm:$0x1] %vm45, %v44
    %s47 = scalar_lea.vmem %s0, 8
    %v48 = vld [vmem:[%s47] sm:$0x1]
    %49 = vrot.lane.b32.xlu0 %v48, 64
    %v50 = vpop.permute.xlu0 %49
    %vm51 = vcmask 589312
    %52 = vst.msk [vmem:[#allocation0] sm:$0x1] %vm51, %v50
    %s53 = scalar_lea.vmem %s0, 7
    %v54 = vld [vmem:[%s53] sm:$0x1]
    %55 = vrot.lane.b32.xlu0 %v54, 56
    %v56 = vpop.permute.xlu0 %55
    %vm57 = vcmask 523712
    %58 = vst.msk [vmem:[#allocation0] sm:$0x1] %vm57, %v56
    %s59 = scalar_lea.vmem %s0, 6
    %v60 = vld [vmem:[%s59] sm:$0x1]
    %61 = vrot.lane.b32.xlu0 %v60, 48
    %v62 = vpop.permute.xlu0 %61
    %vm63 = vcmask 458112
    %64 = vst.msk [vmem:[#allocation0] sm:$0x1] %vm63, %v62
    %s65 = scalar_lea.vmem %s0, 5
    %v66 = vld [vmem:[%s65] sm:$0x1]
    %67 = vrot.lane.b32.xlu0 %v66, 40
    %v68 = vpop.permute.xlu0 %67
    %vm69 = vcmask 392512
    %70 = vst.msk [vmem:[#allocation0] sm:$0x1] %vm69, %v68
    %s71 = scalar_lea.vmem %s0, 4
    %v72 = vld [vmem:[%s71] sm:$0x1]
    %73 = vrot.lane.b32.xlu0 %v72, 32
    %v74 = vpop.permute.xlu0 %73
    %vm75 = vcmask 326912
    %76 = vst.msk [vmem:[#allocation0] sm:$0x1] %vm75, %v74
    %s77 = scalar_lea.vmem %s0, 3
    %v78 = vld [vmem:[%s77] sm:$0x1]
    %79 = vrot.lane.b32.xlu0 %v78, 24
    %v80 = vpop.permute.xlu0 %79
    %vm81 = vcmask 261312
    %82 = vst.msk [vmem:[#allocation0] sm:$0x1] %vm81, %v80
    %s83 = scalar_lea.vmem %s0, 2
    %v84 = vld [vmem:[%s83] sm:$0x1]
    %85 = vrot.lane.b32.xlu0 %v84, 16
    %v86 = vpop.permute.xlu0 %85
    %vm87 = vcmask 195712
    %88 = vst.msk [vmem:[#allocation0] sm:$0x1] %vm87, %v86
    %s89 = scalar_lea.vmem %s0, 1
    %v90 = vld [vmem:[%s89] sm:$0x1]
    %91 = vrot.lane.b32.xlu0 %v90, 8
    %v92 = vpop.permute.xlu0 %91
    %vm93 = vcmask 130112
    %94 = vst.msk [vmem:[#allocation0] sm:$0x1] %vm93, %v92
    %s96 = ssub.s32 2, 1
    %v97 = vld [vmem:[#allocation0] sm:%s96]
    %s99 = ssub.s32 2, 1
    %100 = vst [vmem:[%s1] sm:%s99] %v97

// kernel: graph3dnet_forward.1
$region0: #{graph3dnet_forward.1}
  #allocation0 [shape = 'u32[]', space=smem, size = 0x4, offset = 0x4, fixed_abs, tag = 'smem constant byte address 0x4 - core index']
  #allocation1 [shape = 'u32[72,128]{1,0:T(1,128)}', space=vmem, size = 0x9000, scoped, tag = 'internal scratch']
  #allocation2 [shape = 'bf16[3,128,128]{2,1,0:T(8,128)(2,1)}', space=vmem, size = 0x18000, scoped, tag = 'scratch operand']
  #allocation3 [shape = 'bf16[128,384]{1,0:T(8,128)(2,1)}', space=vmem, size = 0x18000, scoped, tag = 'scratch operand']
  #allocation4 [shape = 'bf16[384,10]{1,0:T(8,128)(2,1)}', space=vmem, size = 0x18000, scoped, tag = 'scratch operand']
  #allocation5 [shape = 'f32[1]{0:T(128)S(6)}', space=smem, size = 0x200, scoped, tag = 'scoped memory for graph3dnet_forward.1']
  %s0 = inlined_call_operand.vmem [shape: f32[128,2], index: 0, kind: input, shape index: {}]
  %s1 = inlined_call_operand.vmem [shape: bf16[128,128], index: 1, kind: input, shape index: {}]
  %s2 = inlined_call_operand.vmem [shape: f32[128,3], index: 2, kind: input, shape index: {}]
  %s3 = inlined_call_operand.vmem [shape: f32[3,128], index: 3, kind: input, shape index: {}]
  %s4 = inlined_call_operand.vmem [shape: f32[128,1], index: 4, kind: input, shape index: {}]
  %s5 = inlined_call_operand.vmem [shape: f32[128,1], index: 5, kind: input, shape index: {}]
  %s6 = inlined_call_operand.<no memory space> [shape: f32[1], index: 6, kind: input, shape index: {}]
  %s7 = inlined_call_operand.vmem [shape: bf16[3,2,8], index: 7, kind: input, shape index: {}]
  %s8 = inlined_call_operand.vmem [shape: bf16[2,8], index: 8, kind: input, shape index: {}]
  %s9 = inlined_call_operand.vmem [shape: f32[1,8], index: 9, kind: input, shape index: {}]
  %s10 = inlined_call_operand.vmem [shape: f32[1,8], index: 10, kind: input, shape index: {}]
  %s11 = inlined_call_operand.vmem [shape: f32[1,8], index: 11, kind: input, shape index: {}]
  %s12 = inlined_call_operand.vmem [shape: f32[3,3], index: 12, kind: input, shape index: {}]
  %s13 = inlined_call_operand.vmem [shape: f32[3,3], index: 13, kind: input, shape index: {}]
  %s14 = inlined_call_operand.vmem [shape: bf16[3,8,10], index: 14, kind: input, shape index: {}]
  %s15 = inlined_call_operand.vmem [shape: bf16[8,10], index: 15, kind: input, shape index: {}]
  %s16 = inlined_call_operand.vmem [shape: f32[1,10], index: 16, kind: input, shape index: {}]
  %s17 = inlined_call_operand.vmem [shape: f32[1,10], index: 17, kind: input, shape index: {}]
  %s18 = inlined_call_operand.vmem [shape: f32[1,10], index: 18, kind: input, shape index: {}]
  %s19 = inlined_call_operand.vmem [shape: f32[3,3], index: 19, kind: input, shape index: {}]
  %s20 = inlined_call_operand.vmem [shape: f32[3,3], index: 20, kind: input, shape index: {}]
  %s21 = inlined_call_operand.vmem [shape: f32[128,10], index: 21, kind: output, shape index: {}]
  %s22 = sld [smem:[#allocation0]]
  $region110: #{graph3dnet_forward.1} parent=0
    _
  %s24 = ssub.s32 1, %s22
  %s25 = scalar_select 0, %s24, %s22
  %26 = sst [smem:[#allocation5]] %s6
  $region1: #{graph3dnet_forward.1} parent=0
    #allocation6 [shape = 'u8[2048]{0}', space=smem, size = 0x800, scoped, tag = 'input window, operand 12, single buffered']
    #allocation7 [shape = 's32[1]{0}', space=sflag, size = 0x4, scoped, tag = 'scoped memory for graph3dnet_forward.1']
    #allocation8 [shape = 'u8[2048]{0}', space=smem, size = 0x800, scoped, tag = 'input window, operand 13, single buffered']
    #allocation9 [shape = 's32[1]{0}', space=sflag, size = 0x4, scoped, tag = 'scoped memory for graph3dnet_forward.1']
    #allocation10 [shape = 'u8[2048]{0}', space=smem, size = 0x800, scoped, tag = 'input window, operand 19, single buffered']
    #allocation11 [shape = 'u8[2048]{0}', space=smem, size = 0x800, scoped, tag = 'input window, operand 20, single buffered']
    #allocation12 [shape = 's32[1]{0}', space=sflag, size = 0x4, scoped, tag = 'scoped memory for graph3dnet_forward.1']
    %27 = vsyncpa [#allocation7], 0
    %28 = vsyncpa [#allocation9], 0
    %29 = vsyncpa [#allocation12], 0
    // Predicated region
    $region2: #{graph3dnet_forward.1} parent=1 // pred_check
      _
    $region3: #{graph3dnet_forward.1} parent=1 // pred_check_branch
      %31 = sbr.rel (0) target = $region5
    $region4: #{graph3dnet_forward.1} parent=1 // pred_region
      _
    $region5: #{graph3dnet_forward.1} parent=1 // pred_fallthru
      _
    // Predicated region
    $region6: #{graph3dnet_forward.1} parent=1 // pred_check
      _
    $region7: #{graph3dnet_forward.1} parent=1 // pred_check_branch
      %33 = sbr.rel (0) target = $region9
    $region8: #{graph3dnet_forward.1} parent=1 // pred_region
      _
    $region9: #{graph3dnet_forward.1} parent=1 // pred_fallthru
      _
    // Predicated region
    $region10: #{graph3dnet_forward.1} parent=1 // pred_check
      _
    $region11: #{graph3dnet_forward.1} parent=1 // pred_check_branch
      %35 = sbr.rel (0) target = $region13
    $region12: #{graph3dnet_forward.1} parent=1 // pred_region
      _
    $region13: #{graph3dnet_forward.1} parent=1 // pred_fallthru
      _
    // Predicated region
    $region14: #{graph3dnet_forward.1} parent=1 // pred_check
      _
    $region15: #{graph3dnet_forward.1} parent=1 // pred_check_branch
      %37 = sbr.rel (0) target = $region17
    $region16: #{graph3dnet_forward.1} parent=1 // pred_region
      _
    $region17: #{graph3dnet_forward.1} parent=1 // pred_fallthru
      _
    // Predicated region
    $region18: #{graph3dnet_forward.1} parent=1 // pred_check
      _
    $region19: #{graph3dnet_forward.1} parent=1 // pred_check_branch
      %39 = sbr.rel (0) target = $region21
    $region20: #{graph3dnet_forward.1} parent=1 // pred_region
      _
    $region21: #{graph3dnet_forward.1} parent=1 // pred_fallthru
      _
    // Predicated region
    $region22: #{graph3dnet_forward.1} parent=1 // pred_check
      _
    $region23: #{graph3dnet_forward.1} parent=1 // pred_check_branch
      %41 = sbr.rel (0) target = $region25
    $region24: #{graph3dnet_forward.1} parent=1 // pred_region
      _
    $region25: #{graph3dnet_forward.1} parent=1 // pred_fallthru
      _
    // Predicated region
    $region26: #{graph3dnet_forward.1} parent=1 // pred_check
      _
    $region27: #{graph3dnet_forward.1} parent=1 // pred_check_branch
      %43 = sbr.rel (0) target = $region29
    $region28: #{graph3dnet_forward.1} parent=1 // pred_region
      _
    $region29: #{graph3dnet_forward.1} parent=1 // pred_fallthru
      _
    // Predicated region
    $region30: #{graph3dnet_forward.1} parent=1 // pred_check
      _
    $region31: #{graph3dnet_forward.1} parent=1 // pred_check_branch
      %45 = sbr.rel (0) target = $region33
    $region32: #{graph3dnet_forward.1} parent=1 // pred_region
      _
    $region33: #{graph3dnet_forward.1} parent=1 // pred_fallthru
      _
    // Predicated region
    $region34: #{graph3dnet_forward.1} parent=1 // pred_check
      _
    $region35: #{graph3dnet_forward.1} parent=1 // pred_check_branch
      %47 = sbr.rel (0) target = $region37
    $region36: #{graph3dnet_forward.1} parent=1 // pred_region
      _
    $region37: #{graph3dnet_forward.1} parent=1 // pred_fallthru
      _
    // Predicated region
    $region38: #{graph3dnet_forward.1} parent=1 // pred_check
      _
    $region39: #{graph3dnet_forward.1} parent=1 // pred_check_branch
      %49 = sbr.rel (0) target = $region41
    $region40: #{graph3dnet_forward.1} parent=1 // pred_region
      _
    $region41: #{graph3dnet_forward.1} parent=1 // pred_fallthru
      _
    // Predicated region
    $region42: #{graph3dnet_forward.1} parent=1 // pred_check
      _
    $region43: #{graph3dnet_forward.1} parent=1 // pred_check_branch
      %51 = sbr.rel (0) target = $region45
    $region44: #{graph3dnet_forward.1} parent=1 // pred_region
      _
    $region45: #{graph3dnet_forward.1} parent=1 // pred_fallthru
      _
    // Predicated region
    $region46: #{graph3dnet_forward.1} parent=1 // pred_check
      _
    $region47: #{graph3dnet_forward.1} parent=1 // pred_check_branch
      %53 = sbr.rel (0) target = $region49
    $region48: #{graph3dnet_forward.1} parent=1 // pred_region
      _
    $region49: #{graph3dnet_forward.1} parent=1 // pred_fallthru
      _
    // Predicated region
    $region50: #{graph3dnet_forward.1} parent=1 // pred_check
      _
    $region51: #{graph3dnet_forward.1} parent=1 // pred_check_branch
      %55 = sbr.rel (0) target = $region53
    $region52: #{graph3dnet_forward.1} parent=1 // pred_region
      %57 = vsyncadd [#allocation7], 0
      %s59 = sshll.u32 %s12, 4
      %s60 = int_to_ptr.vmem [resolvable:$true] %s59
      %62 = dma.vmem_to_smem %s60, 64, [#allocation6], [#allocation7]
    $region53: #{graph3dnet_forward.1} parent=1 // pred_fallthru
      _
    // Predicated region
    $region54: #{graph3dnet_forward.1} parent=1 // pred_check
      _
    $region55: #{graph3dnet_forward.1} parent=1 // pred_check_branch
      %64 = sbr.rel (0) target = $region57
    $region56: #{graph3dnet_forward.1} parent=1 // pred_region
      %66 = vsyncadd [#allocation9], 0
      %s68 = sshll.u32 %s13, 4
      %s69 = int_to_ptr.vmem [resolvable:$true] %s68
      %71 = dma.vmem_to_smem %s69, 64, [#allocation8], [#allocation9]
    $region57: #{graph3dnet_forward.1} parent=1 // pred_fallthru
      _
    // Predicated region
    $region58: #{graph3dnet_forward.1} parent=1 // pred_check
      _
    $region59: #{graph3dnet_forward.1} parent=1 // pred_check_branch
      %73 = sbr.rel (0) target = $region61
    $region60: #{graph3dnet_forward.1} parent=1 // pred_region
      _
    $region61: #{graph3dnet_forward.1} parent=1 // pred_fallthru
      _
    // Predicated region
    $region62: #{graph3dnet_forward.1} parent=1 // pred_check
      _
    $region63: #{graph3dnet_forward.1} parent=1 // pred_check_branch
      %75 = sbr.rel (0) target = $region65
    $region64: #{graph3dnet_forward.1} parent=1 // pred_region
      _
    $region65: #{graph3dnet_forward.1} parent=1 // pred_fallthru
      _
    // Predicated region
    $region66: #{graph3dnet_forward.1} parent=1 // pred_check
      _
    $region67: #{graph3dnet_forward.1} parent=1 // pred_check_branch
      %77 = sbr.rel (0) target = $region69
    $region68: #{graph3dnet_forward.1} parent=1 // pred_region
      _
    $region69: #{graph3dnet_forward.1} parent=1 // pred_fallthru
      _
    // Predicated region
    $region70: #{graph3dnet_forward.1} parent=1 // pred_check
      _
    $region71: #{graph3dnet_forward.1} parent=1 // pred_check_branch
      %79 = sbr.rel (0) target = $region73
    $region72: #{graph3dnet_forward.1} parent=1 // pred_region
      _
    $region73: #{graph3dnet_forward.1} parent=1 // pred_fallthru
      _
    // Predicated region
    $region74: #{graph3dnet_forward.1} parent=1 // pred_check
      _
    $region75: #{graph3dnet_forward.1} parent=1 // pred_check_branch
      %81 = sbr.rel (0) target = $region77
    $region76: #{graph3dnet_forward.1} parent=1 // pred_region
      _
    $region77: #{graph3dnet_forward.1} parent=1 // pred_fallthru
      _
    // Predicated region
    $region78: #{graph3dnet_forward.1} parent=1 // pred_check
      _
    $region79: #{graph3dnet_forward.1} parent=1 // pred_check_branch
      %83 = sbr.rel (0) target = $region81
    $region80: #{graph3dnet_forward.1} parent=1 // pred_region
      %85 = vsyncadd [#allocation9], 0
      %s87 = sshll.u32 %s19, 4
      %s88 = int_to_ptr.vmem [resolvable:$true] %s87
      %90 = dma.vmem_to_smem %s88, 64, [#allocation10], [#allocation9]
    $region81: #{graph3dnet_forward.1} parent=1 // pred_fallthru
      _
    // Predicated region
    $region82: #{graph3dnet_forward.1} parent=1 // pred_check
      _
    $region83: #{graph3dnet_forward.1} parent=1 // pred_check_branch
      %92 = sbr.rel (0) target = $region85
    $region84: #{graph3dnet_forward.1} parent=1 // pred_region
      %94 = vsyncadd [#allocation12], 0
      %s96 = sshll.u32 %s20, 4
      %s97 = int_to_ptr.vmem [resolvable:$true] %s96
      %99 = dma.vmem_to_smem %s97, 64, [#allocation11], [#allocation12]
    $region85: #{graph3dnet_forward.1} parent=1 // pred_fallthru
      _
    // Predicated region
    $region86: #{graph3dnet_forward.1} parent=1 // pred_check
      _
    $region87: #{graph3dnet_forward.1} parent=1 // pred_check_branch
      %101 = sbr.rel (0) target = $region89
    $region88: #{graph3dnet_forward.1} parent=1 // pred_region
      %103 = dma.done [#allocation7], 64
    $region89: #{graph3dnet_forward.1} parent=1 // pred_fallthru
      _
    // Predicated region
    $region90: #{graph3dnet_forward.1} parent=1 // pred_check
      _
    $region91: #{graph3dnet_forward.1} parent=1 // pred_check_branch
      %105 = sbr.rel (0) target = $region93
    $region92: #{graph3dnet_forward.1} parent=1 // pred_region
      %107 = dma.done [#allocation9], 64
    $region93: #{graph3dnet_forward.1} parent=1 // pred_fallthru
      _
    // Predicated region
    $region94: #{graph3dnet_forward.1} parent=1 // pred_check
      _
    $region95: #{graph3dnet_forward.1} parent=1 // pred_check_branch
      %109 = sbr.rel (0) target = $region97
    $region96: #{graph3dnet_forward.1} parent=1 // pred_region
      %111 = dma.done [#allocation9], 64
    $region97: #{graph3dnet_forward.1} parent=1 // pred_fallthru
      _
    // Predicated region
    $region98: #{graph3dnet_forward.1} parent=1 // pred_check
      _
    $region99: #{graph3dnet_forward.1} parent=1 // pred_check_branch
      %113 = sbr.rel (0) target = $region101
    $region100: #{graph3dnet_forward.1} parent=1 // pred_region
      %115 = dma.done [#allocation12], 64
    $region101: #{graph3dnet_forward.1} parent=1 // pred_fallthru
      _
    %116 = sfence
    %v118 = vld [vmem:[%s3] sm:$0x1]
    %v119 = vld [vmem:[%s2] sm:$0xff]
    %v120 = vld [vmem:[%s2 + $0x8] sm:$0xff]
    %v121 = vld [vmem:[%s2 + $0x10] sm:$0xff]
    %v122 = vld [vmem:[%s2 + $0x18] sm:$0xff]
    %v123 = vld [vmem:[%s2 + $0x20] sm:$0xff]
    %v124 = vld [vmem:[%s2 + $0x28] sm:$0xff]
    %v125 = vld [vmem:[%s2 + $0x30] sm:$0xff]
    %v126 = vld [vmem:[%s2 + $0x38] sm:$0xff]
    %v127 = vld [vmem:[%s2 + $0x40] sm:$0xff]
    %v128 = vld [vmem:[%s2 + $0x48] sm:$0xff]
    %v129 = vld [vmem:[%s2 + $0x50] sm:$0xff]
    %v130 = vld [vmem:[%s2 + $0x58] sm:$0xff]
    %v131 = vld [vmem:[%s2 + $0x60] sm:$0xff]
    %v132 = vld [vmem:[%s2 + $0x68] sm:$0xff]
    %v133 = vld [vmem:[%s2 + $0x70] sm:$0xff]
    %v134 = vld [vmem:[%s2 + $0x78] sm:$0xff]
    %v135 = vperm.slane %v118, 0
    %137 = vset.pattern.permute.xlu0 0
    %138 = vperm.xlu0 %137, %v119
    %v139 = vpop.permute.xlu0 %138
    %142 = vset.pattern.permute.xlu0 0
    %143 = vperm.xlu0 %142, %v120
    %v144 = vpop.permute.xlu0 %143
    %147 = vset.pattern.permute.xlu0 0
    %148 = vperm.xlu0 %147, %v121
    %v149 = vpop.permute.xlu0 %148
    %152 = vset.pattern.permute.xlu0 0
    %153 = vperm.xlu0 %152, %v122
    %v154 = vpop.permute.xlu0 %153
    %157 = vset.pattern.permute.xlu0 0
    %158 = vperm.xlu0 %157, %v123
    %v159 = vpop.permute.xlu0 %158
    %162 = vset.pattern.permute.xlu0 0
    %163 = vperm.xlu0 %162, %v124
    %v164 = vpop.permute.xlu0 %163
    %167 = vset.pattern.permute.xlu0 0
    %168 = vperm.xlu0 %167, %v125
    %v169 = vpop.permute.xlu0 %168
    %172 = vset.pattern.permute.xlu0 0
    %173 = vperm.xlu0 %172, %v126
    %v174 = vpop.permute.xlu0 %173
    %177 = vset.pattern.permute.xlu0 0
    %178 = vperm.xlu0 %177, %v127
    %v179 = vpop.permute.xlu0 %178
    %182 = vset.pattern.permute.xlu0 0
    %183 = vperm.xlu0 %182, %v128
    %v184 = vpop.permute.xlu0 %183
    %187 = vset.pattern.permute.xlu0 0
    %188 = vperm.xlu0 %187, %v129
    %v189 = vpop.permute.xlu0 %188
    %192 = vset.pattern.permute.xlu0 0
    %193 = vperm.xlu0 %192, %v130
    %v194 = vpop.permute.xlu0 %193
    %197 = vset.pattern.permute.xlu0 0
    %198 = vperm.xlu0 %197, %v131
    %v199 = vpop.permute.xlu0 %198
    %202 = vset.pattern.permute.xlu0 0
    %203 = vperm.xlu0 %202, %v132
    %v204 = vpop.permute.xlu0 %203
    %207 = vset.pattern.permute.xlu0 0
    %208 = vperm.xlu0 %207, %v133
    %v209 = vpop.permute.xlu0 %208
    %212 = vset.pattern.permute.xlu0 0
    %213 = vperm.xlu0 %212, %v134
    %v214 = vpop.permute.xlu0 %213
    %v216 = vsub.f32 %v135, %v139
    %v217 = vsub.f32 %v135, %v144
    %v218 = vsub.f32 %v135, %v149
    %v219 = vsub.f32 %v135, %v154
    %v220 = vsub.f32 %v135, %v159
    %v221 = vsub.f32 %v135, %v164
    %v222 = vsub.f32 %v135, %v169
    %v223 = vsub.f32 %v135, %v174
    %v224 = vsub.f32 %v135, %v179
    %v225 = vsub.f32 %v135, %v184
    %v226 = vsub.f32 %v135, %v189
    %v227 = vsub.f32 %v135, %v194
    %v228 = vsub.f32 %v135, %v199
    %v229 = vsub.f32 %v135, %v204
    %v230 = vsub.f32 %v135, %v209
    %v231 = vsub.f32 %v135, %v214
    %v232 = vadd.f32 %v216, 0.5
    %v233 = vadd.f32 %v217, 0.5
    %v234 = vadd.f32 %v218, 0.5
    %v235 = vadd.f32 %v219, 0.5
    %v236 = vadd.f32 %v220, 0.5
    %v237 = vadd.f32 %v221, 0.5
    %v238 = vadd.f32 %v222, 0.5
    %v239 = vadd.f32 %v223, 0.5
    %v240 = vadd.f32 %v224, 0.5
    %v241 = vadd.f32 %v225, 0.5
    %v242 = vadd.f32 %v226, 0.5
    %v243 = vadd.f32 %v227, 0.5
    %v244 = vadd.f32 %v228, 0.5
    %v245 = vadd.f32 %v229, 0.5
    %v246 = vadd.f32 %v230, 0.5
    %v247 = vadd.f32 %v231, 0.5
    %v248 = vpack.c.bf16 %v232, %v232
    %v249 = vpack.c.bf16 %v233, %v233
    %v250 = vpack.c.bf16 %v234, %v234
    %v251 = vpack.c.bf16 %v235, %v235
    %v252 = vpack.c.bf16 %v236, %v236
    %v253 = vpack.c.bf16 %v237, %v237
    %v254 = vpack.c.bf16 %v238, %v238
    %v255 = vpack.c.bf16 %v239, %v239
    %v256 = vpack.c.bf16 %v240, %v240
    %v257 = vpack.c.bf16 %v241, %v241
    %v258 = vpack.c.bf16 %v242, %v242
    %v259 = vpack.c.bf16 %v243, %v243
    %v260 = vpack.c.bf16 %v244, %v244
    %v261 = vpack.c.bf16 %v245, %v245
    %v262 = vpack.c.bf16 %v246, %v246
    %v263 = vpack.c.bf16 %v247, %v247
    %264 = vst [vmem:[#allocation2] sm:$0xf] %v248
    %265 = vst [vmem:[#allocation2 + $0x4] sm:$0xf] %v249
    %266 = vst [vmem:[#allocation2 + $0x8] sm:$0xf] %v250
    %267 = vst [vmem:[#allocation2 + $0xc] sm:$0xf] %v251
    %268 = vst [vmem:[#allocation2 + $0x10] sm:$0xf] %v252
    %269 = vst [vmem:[#allocation2 + $0x14] sm:$0xf] %v253
    %270 = vst [vmem:[#allocation2 + $0x18] sm:$0xf] %v254
    %271 = vst [vmem:[#allocation2 + $0x1c] sm:$0xf] %v255
    %272 = vst [vmem:[#allocation2 + $0x20] sm:$0xf] %v256
    %273 = vst [vmem:[#allocation2 + $0x24] sm:$0xf] %v257
    %274 = vst [vmem:[#allocation2 + $0x28] sm:$0xf] %v258
    %275 = vst [vmem:[#allocation2 + $0x2c] sm:$0xf] %v259
    %276 = vst [vmem:[#allocation2 + $0x30] sm:$0xf] %v260
    %277 = vst [vmem:[#allocation2 + $0x34] sm:$0xf] %v261
    %278 = vst [vmem:[#allocation2 + $0x38] sm:$0xf] %v262
    %279 = vst [vmem:[#allocation2 + $0x3c] sm:$0xf] %v263
    %v280 = vld [vmem:[%s3 + $0x1] sm:$0x1]
    %v281 = vld [vmem:[%s2] sm:$0xff]
    %v282 = vld [vmem:[%s2 + $0x8] sm:$0xff]
    %v283 = vld [vmem:[%s2 + $0x10] sm:$0xff]
    %v284 = vld [vmem:[%s2 + $0x18] sm:$0xff]
    %v285 = vld [vmem:[%s2 + $0x20] sm:$0xff]
    %v286 = vld [vmem:[%s2 + $0x28] sm:$0xff]
    %v287 = vld [vmem:[%s2 + $0x30] sm:$0xff]
    %v288 = vld [vmem:[%s2 + $0x38] sm:$0xff]
    %v289 = vld [vmem:[%s2 + $0x40] sm:$0xff]
    %v290 = vld [vmem:[%s2 + $0x48] sm:$0xff]
    %v291 = vld [vmem:[%s2 + $0x50] sm:$0xff]
    %v292 = vld [vmem:[%s2 + $0x58] sm:$0xff]
    %v293 = vld [vmem:[%s2 + $0x60] sm:$0xff]
    %v294 = vld [vmem:[%s2 + $0x68] sm:$0xff]
    %v295 = vld [vmem:[%s2 + $0x70] sm:$0xff]
    %v296 = vld [vmem:[%s2 + $0x78] sm:$0xff]
    %v297 = vperm.slane %v280, 0
    %299 = vset.pattern.permute.xlu0 1
    %300 = vperm.xlu0 %299, %v281
    %v301 = vpop.permute.xlu0 %300
    %304 = vset.pattern.permute.xlu0 1
    %305 = vperm.xlu0 %304, %v282
    %v306 = vpop.permute.xlu0 %305
    %309 = vset.pattern.permute.xlu0 1
    %310 = vperm.xlu0 %309, %v283
    %v311 = vpop.permute.xlu0 %310
    %314 = vset.pattern.permute.xlu0 1
    %315 = vperm.xlu0 %314, %v284
    %v316 = vpop.permute.xlu0 %315
    %319 = vset.pattern.permute.xlu0 1
    %320 = vperm.xlu0 %319, %v285
    %v321 = vpop.permute.xlu0 %320
    %324 = vset.pattern.permute.xlu0 1
    %325 = vperm.xlu0 %324, %v286
    %v326 = vpop.permute.xlu0 %325
    %329 = vset.pattern.permute.xlu0 1
    %330 = vperm.xlu0 %329, %v287
    %v331 = vpop.permute.xlu0 %330
    %334 = vset.pattern.permute.xlu0 1
    %335 = vperm.xlu0 %334, %v288
    %v336 = vpop.permute.xlu0 %335
    %339 = vset.pattern.permute.xlu0 1
    %340 = vperm.xlu0 %339, %v289
    %v341 = vpop.permute.xlu0 %340
    %344 = vset.pattern.permute.xlu0 1
    %345 = vperm.xlu0 %344, %v290
    %v346 = vpop.permute.xlu0 %345
    %349 = vset.pattern.permute.xlu0 1
    %350 = vperm.xlu0 %349, %v291
    %v351 = vpop.permute.xlu0 %350
    %354 = vset.pattern.permute.xlu0 1
    %355 = vperm.xlu0 %354, %v292
    %v356 = vpop.permute.xlu0 %355
    %359 = vset.pattern.permute.xlu0 1
    %360 = vperm.xlu0 %359, %v293
    %v361 = vpop.permute.xlu0 %360
    %364 = vset.pattern.permute.xlu0 1
    %365 = vperm.xlu0 %364, %v294
    %v366 = vpop.permute.xlu0 %365
    %369 = vset.pattern.permute.xlu0 1
    %370 = vperm.xlu0 %369, %v295
    %v371 = vpop.permute.xlu0 %370
    %374 = vset.pattern.permute.xlu0 1
    %375 = vperm.xlu0 %374, %v296
    %v376 = vpop.permute.xlu0 %375
    %v378 = vsub.f32 %v297, %v301
    %v379 = vsub.f32 %v297, %v306
    %v380 = vsub.f32 %v297, %v311
    %v381 = vsub.f32 %v297, %v316
    %v382 = vsub.f32 %v297, %v321
    %v383 = vsub.f32 %v297, %v326
    %v384 = vsub.f32 %v297, %v331
    %v385 = vsub.f32 %v297, %v336
    %v386 = vsub.f32 %v297, %v341
    %v387 = vsub.f32 %v297, %v346
    %v388 = vsub.f32 %v297, %v351
    %v389 = vsub.f32 %v297, %v356
    %v390 = vsub.f32 %v297, %v361
    %v391 = vsub.f32 %v297, %v366
    %v392 = vsub.f32 %v297, %v371
    %v393 = vsub.f32 %v297, %v376
    %v394 = vadd.f32 %v378, 0.5
    %v395 = vadd.f32 %v379, 0.5
    %v396 = vadd.f32 %v380, 0.5
    %v397 = vadd.f32 %v381, 0.5
    %v398 = vadd.f32 %v382, 0.5
    %v399 = vadd.f32 %v383, 0.5
    %v400 = vadd.f32 %v384, 0.5
    %v401 = vadd.f32 %v385, 0.5
    %v402 = vadd.f32 %v386, 0.5
    %v403 = vadd.f32 %v387, 0.5
    %v404 = vadd.f32 %v388, 0.5
    %v405 = vadd.f32 %v389, 0.5
    %v406 = vadd.f32 %v390, 0.5
    %v407 = vadd.f32 %v391, 0.5
    %v408 = vadd.f32 %v392, 0.5
    %v409 = vadd.f32 %v393, 0.5
    %v410 = vpack.c.bf16 %v394, %v394
    %v411 = vpack.c.bf16 %v395, %v395
    %v412 = vpack.c.bf16 %v396, %v396
    %v413 = vpack.c.bf16 %v397, %v397
    %v414 = vpack.c.bf16 %v398, %v398
    %v415 = vpack.c.bf16 %v399, %v399
    %v416 = vpack.c.bf16 %v400, %v400
    %v417 = vpack.c.bf16 %v401, %v401
    %v418 = vpack.c.bf16 %v402, %v402
    %v419 = vpack.c.bf16 %v403, %v403
    %v420 = vpack.c.bf16 %v404, %v404
    %v421 = vpack.c.bf16 %v405, %v405
    %v422 = vpack.c.bf16 %v406, %v406
    %v423 = vpack.c.bf16 %v407, %v407
    %v424 = vpack.c.bf16 %v408, %v408
    %v425 = vpack.c.bf16 %v409, %v409
    %s426 = scalar_lea.vmem [#allocation2], 64
    %427 = vst [vmem:[%s426] sm:$0xf] %v410
    %428 = vst [vmem:[%s426 + $0x4] sm:$0xf] %v411
    %429 = vst [vmem:[%s426 + $0x8] sm:$0xf] %v412
    %430 = vst [vmem:[%s426 + $0xc] sm:$0xf] %v413
    %431 = vst [vmem:[%s426 + $0x10] sm:$0xf] %v414
    %432 = vst [vmem:[%s426 + $0x14] sm:$0xf] %v415
    %433 = vst [vmem:[%s426 + $0x18] sm:$0xf] %v416
    %434 = vst [vmem:[%s426 + $0x1c] sm:$0xf] %v417
    %435 = vst [vmem:[%s426 + $0x20] sm:$0xf] %v418
    %436 = vst [vmem:[%s426 + $0x24] sm:$0xf] %v419
    %437 = vst [vmem:[%s426 + $0x28] sm:$0xf] %v420
    %438 = vst [vmem:[%s426 + $0x2c] sm:$0xf] %v421
    %439 = vst [vmem:[%s426 + $0x30] sm:$0xf] %v422
    %440 = vst [vmem:[%s426 + $0x34] sm:$0xf] %v423
    %441 = vst [vmem:[%s426 + $0x38] sm:$0xf] %v424
    %442 = vst [vmem:[%s426 + $0x3c] sm:$0xf] %v425
    %v443 = vld [vmem:[%s3 + $0x2] sm:$0x1]
    %v444 = vld [vmem:[%s2] sm:$0xff]
    %v445 = vld [vmem:[%s2 + $0x8] sm:$0xff]
    %v446 = vld [vmem:[%s2 + $0x10] sm:$0xff]
    %v447 = vld [vmem:[%s2 + $0x18] sm:$0xff]
    %v448 = vld [vmem:[%s2 + $0x20] sm:$0xff]
    %v449 = vld [vmem:[%s2 + $0x28] sm:$0xff]
    %v450 = vld [vmem:[%s2 + $0x30] sm:$0xff]
    %v451 = vld [vmem:[%s2 + $0x38] sm:$0xff]
    %v452 = vld [vmem:[%s2 + $0x40] sm:$0xff]
    %v453 = vld [vmem:[%s2 + $0x48] sm:$0xff]
    %v454 = vld [vmem:[%s2 + $0x50] sm:$0xff]
    %v455 = vld [vmem:[%s2 + $0x58] sm:$0xff]
    %v456 = vld [vmem:[%s2 + $0x60] sm:$0xff]
    %v457 = vld [vmem:[%s2 + $0x68] sm:$0xff]
    %v458 = vld [vmem:[%s2 + $0x70] sm:$0xff]
    %v459 = vld [vmem:[%s2 + $0x78] sm:$0xff]
    %v460 = vperm.slane %v443, 0
    %462 = vset.pattern.permute.xlu0 2
    %463 = vperm.xlu0 %462, %v444
    %v464 = vpop.permute.xlu0 %463
    %467 = vset.pattern.permute.xlu0 2
    %468 = vperm.xlu0 %467, %v445
    %v469 = vpop.permute.xlu0 %468
    %472 = vset.pattern.permute.xlu0 2
    %473 = vperm.xlu0 %472, %v446
    %v474 = vpop.permute.xlu0 %473
    %477 = vset.pattern.permute.xlu0 2
    %478 = vperm.xlu0 %477, %v447
    %v479 = vpop.permute.xlu0 %478
    %482 = vset.pattern.permute.xlu0 2
    %483 = vperm.xlu0 %482, %v448
    %v484 = vpop.permute.xlu0 %483
    %487 = vset.pattern.permute.xlu0 2
    %488 = vperm.xlu0 %487, %v449
    %v489 = vpop.permute.xlu0 %488
    %492 = vset.pattern.permute.xlu0 2
    %493 = vperm.xlu0 %492, %v450
    %v494 = vpop.permute.xlu0 %493
    %497 = vset.pattern.permute.xlu0 2
    %498 = vperm.xlu0 %497, %v451
    %v499 = vpop.permute.xlu0 %498
    %502 = vset.pattern.permute.xlu0 2
    %503 = vperm.xlu0 %502, %v452
    %v504 = vpop.permute.xlu0 %503
    %507 = vset.pattern.permute.xlu0 2
    %508 = vperm.xlu0 %507, %v453
    %v509 = vpop.permute.xlu0 %508
    %512 = vset.pattern.permute.xlu0 2
    %513 = vperm.xlu0 %512, %v454
    %v514 = vpop.permute.xlu0 %513
    %517 = vset.pattern.permute.xlu0 2
    %518 = vperm.xlu0 %517, %v455
    %v519 = vpop.permute.xlu0 %518
    %522 = vset.pattern.permute.xlu0 2
    %523 = vperm.xlu0 %522, %v456
    %v524 = vpop.permute.xlu0 %523
    %527 = vset.pattern.permute.xlu0 2
    %528 = vperm.xlu0 %527, %v457
    %v529 = vpop.permute.xlu0 %528
    %532 = vset.pattern.permute.xlu0 2
    %533 = vperm.xlu0 %532, %v458
    %v534 = vpop.permute.xlu0 %533
    %537 = vset.pattern.permute.xlu0 2
    %538 = vperm.xlu0 %537, %v459
    %v539 = vpop.permute.xlu0 %538
    %v541 = vsub.f32 %v460, %v464
    %v542 = vsub.f32 %v460, %v469
    %v543 = vsub.f32 %v460, %v474
    %v544 = vsub.f32 %v460, %v479
    %v545 = vsub.f32 %v460, %v484
    %v546 = vsub.f32 %v460, %v489
    %v547 = vsub.f32 %v460, %v494
    %v548 = vsub.f32 %v460, %v499
    %v549 = vsub.f32 %v460, %v504
    %v550 = vsub.f32 %v460, %v509
    %v551 = vsub.f32 %v460, %v514
    %v552 = vsub.f32 %v460, %v519
    %v553 = vsub.f32 %v460, %v524
    %v554 = vsub.f32 %v460, %v529
    %v555 = vsub.f32 %v460, %v534
    %v556 = vsub.f32 %v460, %v539
    %v557 = vadd.f32 %v541, 0.5
    %v558 = vadd.f32 %v542, 0.5
    %v559 = vadd.f32 %v543, 0.5
    %v560 = vadd.f32 %v544, 0.5
    %v561 = vadd.f32 %v545, 0.5
    %v562 = vadd.f32 %v546, 0.5
    %v563 = vadd.f32 %v547, 0.5
    %v564 = vadd.f32 %v548, 0.5
    %v565 = vadd.f32 %v549, 0.5
    %v566 = vadd.f32 %v550, 0.5
    %v567 = vadd.f32 %v551, 0.5
    %v568 = vadd.f32 %v552, 0.5
    %v569 = vadd.f32 %v553, 0.5
    %v570 = vadd.f32 %v554, 0.5
    %v571 = vadd.f32 %v555, 0.5
    %v572 = vadd.f32 %v556, 0.5
    %v573 = vpack.c.bf16 %v557, %v557
    %v574 = vpack.c.bf16 %v558, %v558
    %v575 = vpack.c.bf16 %v559, %v559
    %v576 = vpack.c.bf16 %v560, %v560
    %v577 = vpack.c.bf16 %v561, %v561
    %v578 = vpack.c.bf16 %v562, %v562
    %v579 = vpack.c.bf16 %v563, %v563
    %v580 = vpack.c.bf16 %v564, %v564
    %v581 = vpack.c.bf16 %v565, %v565
    %v582 = vpack.c.bf16 %v566, %v566
    %v583 = vpack.c.bf16 %v567, %v567
    %v584 = vpack.c.bf16 %v568, %v568
    %v585 = vpack.c.bf16 %v569, %v569
    %v586 = vpack.c.bf16 %v570, %v570
    %v587 = vpack.c.bf16 %v571, %v571
    %v588 = vpack.c.bf16 %v572, %v572
    %s589 = scalar_lea.vmem [#allocation2], 128
    %590 = vst [vmem:[%s589] sm:$0xf] %v573
    %591 = vst [vmem:[%s589 + $0x4] sm:$0xf] %v574
    %592 = vst [vmem:[%s589 + $0x8] sm:$0xf] %v575
    %593 = vst [vmem:[%s589 + $0xc] sm:$0xf] %v576
    %594 = vst [vmem:[%s589 + $0x10] sm:$0xf] %v577
    %595 = vst [vmem:[%s589 + $0x14] sm:$0xf] %v578
    %596 = vst [vmem:[%s589 + $0x18] sm:$0xf] %v579
    %597 = vst [vmem:[%s589 + $0x1c] sm:$0xf] %v580
    %598 = vst [vmem:[%s589 + $0x20] sm:$0xf] %v581
    %599 = vst [vmem:[%s589 + $0x24] sm:$0xf] %v582
    %600 = vst [vmem:[%s589 + $0x28] sm:$0xf] %v583
    %601 = vst [vmem:[%s589 + $0x2c] sm:$0xf] %v584
    %602 = vst [vmem:[%s589 + $0x30] sm:$0xf] %v585
    %603 = vst [vmem:[%s589 + $0x34] sm:$0xf] %v586
    %604 = vst [vmem:[%s589 + $0x38] sm:$0xf] %v587
    %605 = vst [vmem:[%s589 + $0x3c] sm:$0xf] %v588
    %v606 = vld [vmem:[%s1] sm:$0xf]
    %v607 = vld [vmem:[%s1 + $0x4] sm:$0xf]
    %v608 = vld [vmem:[%s1 + $0x8] sm:$0xf]
    %v609 = vld [vmem:[%s1 + $0xc] sm:$0xf]
    %v610 = vld [vmem:[%s1 + $0x10] sm:$0xf]
    %v611 = vld [vmem:[%s1 + $0x14] sm:$0xf]
    %v612 = vld [vmem:[%s1 + $0x18] sm:$0xf]
    %v613 = vld [vmem:[%s1 + $0x1c] sm:$0xf]
    %v614 = vld [vmem:[%s1 + $0x20] sm:$0xf]
    %v615 = vld [vmem:[%s1 + $0x24] sm:$0xf]
    %v616 = vld [vmem:[%s1 + $0x28] sm:$0xf]
    %v617 = vld [vmem:[%s1 + $0x2c] sm:$0xf]
    %v618 = vld [vmem:[%s1 + $0x30] sm:$0xf]
    %v619 = vld [vmem:[%s1 + $0x34] sm:$0xf]
    %v620 = vld [vmem:[%s1 + $0x38] sm:$0xf]
    %v621 = vld [vmem:[%s1 + $0x3c] sm:$0xf]
    %v622 = vld [vmem:[%s4] sm:$0xff]
    %v623 = vld [vmem:[%s4 + $0x8] sm:$0xff]
    %v624 = vld [vmem:[%s4 + $0x10] sm:$0xff]
    %v625 = vld [vmem:[%s4 + $0x18] sm:$0xff]
    %v626 = vld [vmem:[%s4 + $0x20] sm:$0xff]
    %v627 = vld [vmem:[%s4 + $0x28] sm:$0xff]
    %v628 = vld [vmem:[%s4 + $0x30] sm:$0xff]
    %v629 = vld [vmem:[%s4 + $0x38] sm:$0xff]
    %v630 = vld [vmem:[%s4 + $0x40] sm:$0xff]
    %v631 = vld [vmem:[%s4 + $0x48] sm:$0xff]
    %v632 = vld [vmem:[%s4 + $0x50] sm:$0xff]
    %v633 = vld [vmem:[%s4 + $0x58] sm:$0xff]
    %v634 = vld [vmem:[%s4 + $0x60] sm:$0xff]
    %v635 = vld [vmem:[%s4 + $0x68] sm:$0xff]
    %v636 = vld [vmem:[%s4 + $0x70] sm:$0xff]
    %v637 = vld [vmem:[%s4 + $0x78] sm:$0xff]
    %v638 = vld [vmem:[%s5] sm:$0xff]
    %v639 = vld [vmem:[%s5 + $0x8] sm:$0xff]
    %v640 = vld [vmem:[%s5 + $0x10] sm:$0xff]
    %v641 = vld [vmem:[%s5 + $0x18] sm:$0xff]
    %v642 = vld [vmem:[%s5 + $0x20] sm:$0xff]
    %v643 = vld [vmem:[%s5 + $0x28] sm:$0xff]
    %v644 = vld [vmem:[%s5 + $0x30] sm:$0xff]
    %v645 = vld [vmem:[%s5 + $0x38] sm:$0xff]
    %v646 = vld [vmem:[%s5 + $0x40] sm:$0xff]
    %v647 = vld [vmem:[%s5 + $0x48] sm:$0xff]
    %v648 = vld [vmem:[%s5 + $0x50] sm:$0xff]
    %v649 = vld [vmem:[%s5 + $0x58] sm:$0xff]
    %v650 = vld [vmem:[%s5 + $0x60] sm:$0xff]
    %v651 = vld [vmem:[%s5 + $0x68] sm:$0xff]
    %v652 = vld [vmem:[%s5 + $0x70] sm:$0xff]
    %v653 = vld [vmem:[%s5 + $0x78] sm:$0xff]
    %s654 = sld [smem:[#allocation5]]
    %v655 = vld [vmem:[%s0] sm:$0xff]
    %v656 = vld [vmem:[%s0 + $0x8] sm:$0xff]
    %v657 = vld [vmem:[%s0 + $0x10] sm:$0xff]
    %v658 = vld [vmem:[%s0 + $0x18] sm:$0xff]
    %v659 = vld [vmem:[%s0 + $0x20] sm:$0xff]
    %v660 = vld [vmem:[%s0 + $0x28] sm:$0xff]
    %v661 = vld [vmem:[%s0 + $0x30] sm:$0xff]
    %v662 = vld [vmem:[%s0 + $0x38] sm:$0xff]
    %v663 = vld [vmem:[%s0 + $0x40] sm:$0xff]
    %v664 = vld [vmem:[%s0 + $0x48] sm:$0xff]
    %v665 = vld [vmem:[%s0 + $0x50] sm:$0xff]
    %v666 = vld [vmem:[%s0 + $0x58] sm:$0xff]
    %v667 = vld [vmem:[%s0 + $0x60] sm:$0xff]
    %v668 = vld [vmem:[%s0 + $0x68] sm:$0xff]
    %v669 = vld [vmem:[%s0 + $0x70] sm:$0xff]
    %v670 = vld [vmem:[%s0 + $0x78] sm:$0xff]
    %v671 = vpack.c.bf16 %v656, %v655
    %v672 = vpack.c.bf16 %v658, %v657
    %v673 = vpack.c.bf16 %v660, %v659
    %v674 = vpack.c.bf16 %v662, %v661
    %v675 = vpack.c.bf16 %v664, %v663
    %v676 = vpack.c.bf16 %v666, %v665
    %v677 = vpack.c.bf16 %v668, %v667
    %v678 = vpack.c.bf16 %v670, %v669
    %v679 = vld [vmem:[#allocation2] sm:$0xf]
    %v680 = vld [vmem:[#allocation2 + $0x4] sm:$0xf]
    %v681 = vld [vmem:[#allocation2 + $0x8] sm:$0xf]
    %v682 = vld [vmem:[#allocation2 + $0xc] sm:$0xf]
    %v683 = vld [vmem:[#allocation2 + $0x10] sm:$0xf]
    %v684 = vld [vmem:[#allocation2 + $0x14] sm:$0xf]
    %v685 = vld [vmem:[#allocation2 + $0x18] sm:$0xf]
    %v686 = vld [vmem:[#allocation2 + $0x1c] sm:$0xf]
    %v687 = vld [vmem:[#allocation2 + $0x20] sm:$0xf]
    %v688 = vld [vmem:[#allocation2 + $0x24] sm:$0xf]
    %v689 = vld [vmem:[#allocation2 + $0x28] sm:$0xf]
    %v690 = vld [vmem:[#allocation2 + $0x2c] sm:$0xf]
    %v691 = vld [vmem:[#allocation2 + $0x30] sm:$0xf]
    %v692 = vld [vmem:[#allocation2 + $0x34] sm:$0xf]
    %v693 = vld [vmem:[#allocation2 + $0x38] sm:$0xf]
    %v694 = vld [vmem:[#allocation2 + $0x3c] sm:$0xf]
    %s695 = sld [smem:[#allocation6]]
    %p697 = scmp.ne.f32.partialorder %s695, %s695
    %s698 = sshrl.u32 %s695, 16
    %s699 = sand.u32 %s698, 1
    %s700 = sadd.s32 32767, %s699
    %s701 = sadd.s32 %s695, %s700
    %s702 = sand.u32 %s701, 4294901760
    %s703 = scalar_select %p697, 2143289344, %s702
    %s705 = sshrl.u32 %s703, 16
    %s706 = sshll.u32 %s705, 16
    %s707 = sor.u32 %s705, %s706
    %v708 = vstv %s707
    %v710 = vunpack.c.l.bf16 %v679
    %v711 = vunpack.c.l.bf16 %v680
    %v712 = vunpack.c.l.bf16 %v681
    %v713 = vunpack.c.l.bf16 %v682
    %v714 = vunpack.c.l.bf16 %v683
    %v715 = vunpack.c.l.bf16 %v684
    %v716 = vunpack.c.l.bf16 %v685
    %v717 = vunpack.c.l.bf16 %v686
    %v718 = vunpack.c.l.bf16 %v687
    %v719 = vunpack.c.l.bf16 %v688
    %v720 = vunpack.c.l.bf16 %v689
    %v721 = vunpack.c.l.bf16 %v690
    %v722 = vunpack.c.l.bf16 %v691
    %v723 = vunpack.c.l.bf16 %v692
    %v724 = vunpack.c.l.bf16 %v693
    %v725 = vunpack.c.l.bf16 %v694
    %v726 = vunpack.c.l.bf16 %v708
    %v727 = vsub.f32 %v710, %v726
    %v728 = vsub.f32 %v711, %v726
    %v729 = vsub.f32 %v712, %v726
    %v730 = vsub.f32 %v713, %v726
    %v731 = vsub.f32 %v714, %v726
    %v732 = vsub.f32 %v715, %v726
    %v733 = vsub.f32 %v716, %v726
    %v734 = vsub.f32 %v717, %v726
    %v735 = vsub.f32 %v718, %v726
    %v736 = vsub.f32 %v719, %v726
    %v737 = vsub.f32 %v720, %v726
    %v738 = vsub.f32 %v721, %v726
    %v739 = vsub.f32 %v722, %v726
    %v740 = vsub.f32 %v723, %v726
    %v741 = vsub.f32 %v724, %v726
    %v742 = vsub.f32 %v725, %v726
    %v743 = vpack.c.bf16 %v727, %v727
    %v744 = vpack.c.bf16 %v728, %v728
    %v745 = vpack.c.bf16 %v729, %v729
    %v746 = vpack.c.bf16 %v730, %v730
    %v747 = vpack.c.bf16 %v731, %v731
    %v748 = vpack.c.bf16 %v732, %v732
    %v749 = vpack.c.bf16 %v733, %v733
    %v750 = vpack.c.bf16 %v734, %v734
    %v751 = vpack.c.bf16 %v735, %v735
    %v752 = vpack.c.bf16 %v736, %v736
    %v753 = vpack.c.bf16 %v737, %v737
    %v754 = vpack.c.bf16 %v738, %v738
    %v755 = vpack.c.bf16 %v739, %v739
    %v756 = vpack.c.bf16 %v740, %v740
    %v757 = vpack.c.bf16 %v741, %v741
    %v758 = vpack.c.bf16 %v742, %v742
    %v759 = vunpack.c.l.bf16 %v743
    %v760 = vunpack.c.l.bf16 %v744
    %v761 = vunpack.c.l.bf16 %v745
    %v762 = vunpack.c.l.bf16 %v746
    %v763 = vunpack.c.l.bf16 %v747
    %v764 = vunpack.c.l.bf16 %v748
    %v765 = vunpack.c.l.bf16 %v749
    %v766 = vunpack.c.l.bf16 %v750
    %v767 = vunpack.c.l.bf16 %v751
    %v768 = vunpack.c.l.bf16 %v752
    %v769 = vunpack.c.l.bf16 %v753
    %v770 = vunpack.c.l.bf16 %v754
    %v771 = vunpack.c.l.bf16 %v755
    %v772 = vunpack.c.l.bf16 %v756
    %v773 = vunpack.c.l.bf16 %v757
    %v774 = vunpack.c.l.bf16 %v758
    %v775 = vmul.f32 %v759, %v759
    %v776 = vmul.f32 %v760, %v760
    %v777 = vmul.f32 %v761, %v761
    %v778 = vmul.f32 %v762, %v762
    %v779 = vmul.f32 %v763, %v763
    %v780 = vmul.f32 %v764, %v764
    %v781 = vmul.f32 %v765, %v765
    %v782 = vmul.f32 %v766, %v766
    %v783 = vmul.f32 %v767, %v767
    %v784 = vmul.f32 %v768, %v768
    %v785 = vmul.f32 %v769, %v769
    %v786 = vmul.f32 %v770, %v770
    %v787 = vmul.f32 %v771, %v771
    %v788 = vmul.f32 %v772, %v772
    %v789 = vmul.f32 %v773, %v773
    %v790 = vmul.f32 %v774, %v774
    %v791 = vpack.c.bf16 %v775, %v775
    %v792 = vpack.c.bf16 %v776, %v776
    %v793 = vpack.c.bf16 %v777, %v777
    %v794 = vpack.c.bf16 %v778, %v778
    %v795 = vpack.c.bf16 %v779, %v779
    %v796 = vpack.c.bf16 %v780, %v780
    %v797 = vpack.c.bf16 %v781, %v781
    %v798 = vpack.c.bf16 %v782, %v782
    %v799 = vpack.c.bf16 %v783, %v783
    %v800 = vpack.c.bf16 %v784, %v784
    %v801 = vpack.c.bf16 %v785, %v785
    %v802 = vpack.c.bf16 %v786, %v786
    %v803 = vpack.c.bf16 %v787, %v787
    %v804 = vpack.c.bf16 %v788, %v788
    %v805 = vpack.c.bf16 %v789, %v789
    %v806 = vpack.c.bf16 %v790, %v790
    %s807 = sld [smem:[#allocation8]]
    %p809 = scmp.ne.f32.partialorder %s807, %s807
    %s810 = sshrl.u32 %s807, 16
    %s811 = sand.u32 %s810, 1
    %s812 = sadd.s32 32767, %s811
    %s813 = sadd.s32 %s807, %s812
    %s814 = sand.u32 %s813, 4294901760
    %s815 = scalar_select %p809, 2143289344, %s814
    %s817 = sshrl.u32 %s815, 16
    %s818 = sshll.u32 %s817, 16
    %s819 = sor.u32 %s817, %s818
    %v820 = vstv %s819
    %v822 = vunpack.c.l.bf16 %v791
    %v823 = vunpack.c.l.bf16 %v792
    %v824 = vunpack.c.l.bf16 %v793
    %v825 = vunpack.c.l.bf16 %v794
    %v826 = vunpack.c.l.bf16 %v795
    %v827 = vunpack.c.l.bf16 %v796
    %v828 = vunpack.c.l.bf16 %v797
    %v829 = vunpack.c.l.bf16 %v798
    %v830 = vunpack.c.l.bf16 %v799
    %v831 = vunpack.c.l.bf16 %v800
    %v832 = vunpack.c.l.bf16 %v801
    %v833 = vunpack.c.l.bf16 %v802
    %v834 = vunpack.c.l.bf16 %v803
    %v835 = vunpack.c.l.bf16 %v804
    %v836 = vunpack.c.l.bf16 %v805
    %v837 = vunpack.c.l.bf16 %v806
    %v838 = vunpack.c.l.bf16 %v820
    %v839 = vmul.f32 %v822, %v838
    %v840 = vmul.f32 %v823, %v838
    %v841 = vmul.f32 %v824, %v838
    %v842 = vmul.f32 %v825, %v838
    %v843 = vmul.f32 %v826, %v838
    %v844 = vmul.f32 %v827, %v838
    %v845 = vmul.f32 %v828, %v838
    %v846 = vmul.f32 %v829, %v838
    %v847 = vmul.f32 %v830, %v838
    %v848 = vmul.f32 %v831, %v838
    %v849 = vmul.f32 %v832, %v838
    %v850 = vmul.f32 %v833, %v838
    %v851 = vmul.f32 %v834, %v838
    %v852 = vmul.f32 %v835, %v838
    %v853 = vmul.f32 %v836, %v838
    %v854 = vmul.f32 %v837, %v838
    %v855 = vpack.c.bf16 %v839, %v839
    %v856 = vpack.c.bf16 %v840, %v840
    %v857 = vpack.c.bf16 %v841, %v841
    %v858 = vpack.c.bf16 %v842, %v842
    %v859 = vpack.c.bf16 %v843, %v843
    %v860 = vpack.c.bf16 %v844, %v844
    %v861 = vpack.c.bf16 %v845, %v845
    %v862 = vpack.c.bf16 %v846, %v846
    %v863 = vpack.c.bf16 %v847, %v847
    %v864 = vpack.c.bf16 %v848, %v848
    %v865 = vpack.c.bf16 %v849, %v849
    %v866 = vpack.c.bf16 %v850, %v850
    %v867 = vpack.c.bf16 %v851, %v851
    %v868 = vpack.c.bf16 %v852, %v852
    %v869 = vpack.c.bf16 %v853, %v853
    %v870 = vpack.c.bf16 %v854, %v854
    %v871 = vld [vmem:[%s426] sm:$0xf]
    %v872 = vld [vmem:[%s426 + $0x4] sm:$0xf]
    %v873 = vld [vmem:[%s426 + $0x8] sm:$0xf]
    %v874 = vld [vmem:[%s426 + $0xc] sm:$0xf]
    %v875 = vld [vmem:[%s426 + $0x10] sm:$0xf]
    %v876 = vld [vmem:[%s426 + $0x14] sm:$0xf]
    %v877 = vld [vmem:[%s426 + $0x18] sm:$0xf]
    %v878 = vld [vmem:[%s426 + $0x1c] sm:$0xf]
    %v879 = vld [vmem:[%s426 + $0x20] sm:$0xf]
    %v880 = vld [vmem:[%s426 + $0x24] sm:$0xf]
    %v881 = vld [vmem:[%s426 + $0x28] sm:$0xf]
    %v882 = vld [vmem:[%s426 + $0x2c] sm:$0xf]
    %v883 = vld [vmem:[%s426 + $0x30] sm:$0xf]
    %v884 = vld [vmem:[%s426 + $0x34] sm:$0xf]
    %v885 = vld [vmem:[%s426 + $0x38] sm:$0xf]
    %v886 = vld [vmem:[%s426 + $0x3c] sm:$0xf]
    %s887 = sld [smem:[#allocation6 + $0x1]]
    %p889 = scmp.ne.f32.partialorder %s887, %s887
    %s890 = sshrl.u32 %s887, 16
    %s891 = sand.u32 %s890, 1
    %s892 = sadd.s32 32767, %s891
    %s893 = sadd.s32 %s887, %s892
    %s894 = sand.u32 %s893, 4294901760
    %s895 = scalar_select %p889, 2143289344, %s894
    %s897 = sshrl.u32 %s895, 16
    %s898 = sshll.u32 %s897, 16
    %s899 = sor.u32 %s897, %s898
    %v900 = vstv %s899
    %v902 = vunpack.c.l.bf16 %v871
    %v903 = vunpack.c.l.bf16 %v872
    %v904 = vunpack.c.l.bf16 %v873
    %v905 = vunpack.c.l.bf16 %v874
    %v906 = vunpack.c.l.bf16 %v875
    %v907 = vunpack.c.l.bf16 %v876
    %v908 = vunpack.c.l.bf16 %v877
    %v909 = vunpack.c.l.bf16 %v878
    %v910 = vunpack.c.l.bf16 %v879
    %v911 = vunpack.c.l.bf16 %v880
    %v912 = vunpack.c.l.bf16 %v881
    %v913 = vunpack.c.l.bf16 %v882
    %v914 = vunpack.c.l.bf16 %v883
    %v915 = vunpack.c.l.bf16 %v884
    %v916 = vunpack.c.l.bf16 %v885
    %v917 = vunpack.c.l.bf16 %v886
    %v918 = vunpack.c.l.bf16 %v900
    %v919 = vsub.f32 %v902, %v918
    %v920 = vsub.f32 %v903, %v918
    %v921 = vsub.f32 %v904, %v918
    %v922 = vsub.f32 %v905, %v918
    %v923 = vsub.f32 %v906, %v918
    %v924 = vsub.f32 %v907, %v918
    %v925 = vsub.f32 %v908, %v918
    %v926 = vsub.f32 %v909, %v918
    %v927 = vsub.f32 %v910, %v918
    %v928 = vsub.f32 %v911, %v918
    %v929 = vsub.f32 %v912, %v918
    %v930 = vsub.f32 %v913, %v918
    %v931 = vsub.f32 %v914, %v918
    %v932 = vsub.f32 %v915, %v918
    %v933 = vsub.f32 %v916, %v918
    %v934 = vsub.f32 %v917, %v918
    %v935 = vpack.c.bf16 %v919, %v919
    %v936 = vpack.c.bf16 %v920, %v920
    %v937 = vpack.c.bf16 %v921, %v921
    %v938 = vpack.c.bf16 %v922, %v922
    %v939 = vpack.c.bf16 %v923, %v923
    %v940 = vpack.c.bf16 %v924, %v924
    %v941 = vpack.c.bf16 %v925, %v925
    %v942 = vpack.c.bf16 %v926, %v926
    %v943 = vpack.c.bf16 %v927, %v927
    %v944 = vpack.c.bf16 %v928, %v928
    %v945 = vpack.c.bf16 %v929, %v929
    %v946 = vpack.c.bf16 %v930, %v930
    %v947 = vpack.c.bf16 %v931, %v931
    %v948 = vpack.c.bf16 %v932, %v932
    %v949 = vpack.c.bf16 %v933, %v933
    %v950 = vpack.c.bf16 %v934, %v934
    %v951 = vunpack.c.l.bf16 %v935
    %v952 = vunpack.c.l.bf16 %v936
    %v953 = vunpack.c.l.bf16 %v937
    %v954 = vunpack.c.l.bf16 %v938
    %v955 = vunpack.c.l.bf16 %v939
    %v956 = vunpack.c.l.bf16 %v940
    %v957 = vunpack.c.l.bf16 %v941
    %v958 = vunpack.c.l.bf16 %v942
    %v959 = vunpack.c.l.bf16 %v943
    %v960 = vunpack.c.l.bf16 %v944
    %v961 = vunpack.c.l.bf16 %v945
    %v962 = vunpack.c.l.bf16 %v946
    %v963 = vunpack.c.l.bf16 %v947
    %v964 = vunpack.c.l.bf16 %v948
    %v965 = vunpack.c.l.bf16 %v949
    %v966 = vunpack.c.l.bf16 %v950
    %v967 = vmul.f32 %v951, %v951
    %v968 = vmul.f32 %v952, %v952
    %v969 = vmul.f32 %v953, %v953
    %v970 = vmul.f32 %v954, %v954
    %v971 = vmul.f32 %v955, %v955
    %v972 = vmul.f32 %v956, %v956
    %v973 = vmul.f32 %v957, %v957
    %v974 = vmul.f32 %v958, %v958
    %v975 = vmul.f32 %v959, %v959
    %v976 = vmul.f32 %v960, %v960
    %v977 = vmul.f32 %v961, %v961
    %v978 = vmul.f32 %v962, %v962
    %v979 = vmul.f32 %v963, %v963
    %v980 = vmul.f32 %v964, %v964
    %v981 = vmul.f32 %v965, %v965
    %v982 = vmul.f32 %v966, %v966
    %v983 = vpack.c.bf16 %v967, %v967
    %v984 = vpack.c.bf16 %v968, %v968
    %v985 = vpack.c.bf16 %v969, %v969
    %v986 = vpack.c.bf16 %v970, %v970
    %v987 = vpack.c.bf16 %v971, %v971
    %v988 = vpack.c.bf16 %v972, %v972
    %v989 = vpack.c.bf16 %v973, %v973
    %v990 = vpack.c.bf16 %v974, %v974
    %v991 = vpack.c.bf16 %v975, %v975
    %v992 = vpack.c.bf16 %v976, %v976
    %v993 = vpack.c.bf16 %v977, %v977
    %v994 = vpack.c.bf16 %v978, %v978
    %v995 = vpack.c.bf16 %v979, %v979
    %v996 = vpack.c.bf16 %v980, %v980
    %v997 = vpack.c.bf16 %v981, %v981
    %v998 = vpack.c.bf16 %v982, %v982
    %s999 = sld [smem:[#allocation8 + $0x1]]
    %p1001 = scmp.ne.f32.partialorder %s999, %s999
    %s1002 = sshrl.u32 %s999, 16
    %s1003 = sand.u32 %s1002, 1
    %s1004 = sadd.s32 32767, %s1003
    %s1005 = sadd.s32 %s999, %s1004
    %s1006 = sand.u32 %s1005, 4294901760
    %s1007 = scalar_select %p1001, 2143289344, %s1006
    %s1009 = sshrl.u32 %s1007, 16
    %s1010 = sshll.u32 %s1009, 16
    %s1011 = sor.u32 %s1009, %s1010
    %v1012 = vstv %s1011
    %v1014 = vunpack.c.l.bf16 %v983
    %v1015 = vunpack.c.l.bf16 %v984
    %v1016 = vunpack.c.l.bf16 %v985
    %v1017 = vunpack.c.l.bf16 %v986
    %v1018 = vunpack.c.l.bf16 %v987
    %v1019 = vunpack.c.l.bf16 %v988
    %v1020 = vunpack.c.l.bf16 %v989
    %v1021 = vunpack.c.l.bf16 %v990
    %v1022 = vunpack.c.l.bf16 %v991
    %v1023 = vunpack.c.l.bf16 %v992
    %v1024 = vunpack.c.l.bf16 %v993
    %v1025 = vunpack.c.l.bf16 %v994
    %v1026 = vunpack.c.l.bf16 %v995
    %v1027 = vunpack.c.l.bf16 %v996
    %v1028 = vunpack.c.l.bf16 %v997
    %v1029 = vunpack.c.l.bf16 %v998
    %v1030 = vunpack.c.l.bf16 %v1012
    %v1031 = vmul.f32 %v1014, %v1030
    %v1032 = vmul.f32 %v1015, %v1030
    %v1033 = vmul.f32 %v1016, %v1030
    %v1034 = vmul.f32 %v1017, %v1030
    %v1035 = vmul.f32 %v1018, %v1030
    %v1036 = vmul.f32 %v1019, %v1030
    %v1037 = vmul.f32 %v1020, %v1030
    %v1038 = vmul.f32 %v1021, %v1030
    %v1039 = vmul.f32 %v1022, %v1030
    %v1040 = vmul.f32 %v1023, %v1030
    %v1041 = vmul.f32 %v1024, %v1030
    %v1042 = vmul.f32 %v1025, %v1030
    %v1043 = vmul.f32 %v1026, %v1030
    %v1044 = vmul.f32 %v1027, %v1030
    %v1045 = vmul.f32 %v1028, %v1030
    %v1046 = vmul.f32 %v1029, %v1030
    %v1047 = vpack.c.bf16 %v1031, %v1031
    %v1048 = vpack.c.bf16 %v1032, %v1032
    %v1049 = vpack.c.bf16 %v1033, %v1033
    %v1050 = vpack.c.bf16 %v1034, %v1034
    %v1051 = vpack.c.bf16 %v1035, %v1035
    %v1052 = vpack.c.bf16 %v1036, %v1036
    %v1053 = vpack.c.bf16 %v1037, %v1037
    %v1054 = vpack.c.bf16 %v1038, %v1038
    %v1055 = vpack.c.bf16 %v1039, %v1039
    %v1056 = vpack.c.bf16 %v1040, %v1040
    %v1057 = vpack.c.bf16 %v1041, %v1041
    %v1058 = vpack.c.bf16 %v1042, %v1042
    %v1059 = vpack.c.bf16 %v1043, %v1043
    %v1060 = vpack.c.bf16 %v1044, %v1044
    %v1061 = vpack.c.bf16 %v1045, %v1045
    %v1062 = vpack.c.bf16 %v1046, %v1046
    %v1063 = vunpack.c.l.bf16 %v855
    %v1064 = vunpack.c.l.bf16 %v856
    %v1065 = vunpack.c.l.bf16 %v857
    %v1066 = vunpack.c.l.bf16 %v858
    %v1067 = vunpack.c.l.bf16 %v859
    %v1068 = vunpack.c.l.bf16 %v860
    %v1069 = vunpack.c.l.bf16 %v861
    %v1070 = vunpack.c.l.bf16 %v862
    %v1071 = vunpack.c.l.bf16 %v863
    %v1072 = vunpack.c.l.bf16 %v864
    %v1073 = vunpack.c.l.bf16 %v865
    %v1074 = vunpack.c.l.bf16 %v866
    %v1075 = vunpack.c.l.bf16 %v867
    %v1076 = vunpack.c.l.bf16 %v868
    %v1077 = vunpack.c.l.bf16 %v869
    %v1078 = vunpack.c.l.bf16 %v870
    %v1079 = vunpack.c.l.bf16 %v1047
    %v1080 = vunpack.c.l.bf16 %v1048
    %v1081 = vunpack.c.l.bf16 %v1049
    %v1082 = vunpack.c.l.bf16 %v1050
    %v1083 = vunpack.c.l.bf16 %v1051
    %v1084 = vunpack.c.l.bf16 %v1052
    %v1085 = vunpack.c.l.bf16 %v1053
    %v1086 = vunpack.c.l.bf16 %v1054
    %v1087 = vunpack.c.l.bf16 %v1055
    %v1088 = vunpack.c.l.bf16 %v1056
    %v1089 = vunpack.c.l.bf16 %v1057
    %v1090 = vunpack.c.l.bf16 %v1058
    %v1091 = vunpack.c.l.bf16 %v1059
    %v1092 = vunpack.c.l.bf16 %v1060
    %v1093 = vunpack.c.l.bf16 %v1061
    %v1094 = vunpack.c.l.bf16 %v1062
    %v1095 = vadd.f32 %v1063, %v1079
    %v1096 = vadd.f32 %v1064, %v1080
    %v1097 = vadd.f32 %v1065, %v1081
    %v1098 = vadd.f32 %v1066, %v1082
    %v1099 = vadd.f32 %v1067, %v1083
    %v1100 = vadd.f32 %v1068, %v1084
    %v1101 = vadd.f32 %v1069, %v1085
    %v1102 = vadd.f32 %v1070, %v1086
    %v1103 = vadd.f32 %v1071, %v1087
    %v1104 = vadd.f32 %v1072, %v1088
    %v1105 = vadd.f32 %v1073, %v1089
    %v1106 = vadd.f32 %v1074, %v1090
    %v1107 = vadd.f32 %v1075, %v1091
    %v1108 = vadd.f32 %v1076, %v1092
    %v1109 = vadd.f32 %v1077, %v1093
    %v1110 = vadd.f32 %v1078, %v1094
    %v1111 = vpack.c.bf16 %v1095, %v1095
    %v1112 = vpack.c.bf16 %v1096, %v1096
    %v1113 = vpack.c.bf16 %v1097, %v1097
    %v1114 = vpack.c.bf16 %v1098, %v1098
    %v1115 = vpack.c.bf16 %v1099, %v1099
    %v1116 = vpack.c.bf16 %v1100, %v1100
    %v1117 = vpack.c.bf16 %v1101, %v1101
    %v1118 = vpack.c.bf16 %v1102, %v1102
    %v1119 = vpack.c.bf16 %v1103, %v1103
    %v1120 = vpack.c.bf16 %v1104, %v1104
    %v1121 = vpack.c.bf16 %v1105, %v1105
    %v1122 = vpack.c.bf16 %v1106, %v1106
    %v1123 = vpack.c.bf16 %v1107, %v1107
    %v1124 = vpack.c.bf16 %v1108, %v1108
    %v1125 = vpack.c.bf16 %v1109, %v1109
    %v1126 = vpack.c.bf16 %v1110, %v1110
    %v1127 = vld [vmem:[%s589] sm:$0xf]
    %v1128 = vld [vmem:[%s589 + $0x4] sm:$0xf]
    %v1129 = vld [vmem:[%s589 + $0x8] sm:$0xf]
    %v1130 = vld [vmem:[%s589 + $0xc] sm:$0xf]
    %v1131 = vld [vmem:[%s589 + $0x10] sm:$0xf]
    %v1132 = vld [vmem:[%s589 + $0x14] sm:$0xf]
    %v1133 = vld [vmem:[%s589 + $0x18] sm:$0xf]
    %v1134 = vld [vmem:[%s589 + $0x1c] sm:$0xf]
    %v1135 = vld [vmem:[%s589 + $0x20] sm:$0xf]
    %v1136 = vld [vmem:[%s589 + $0x24] sm:$0xf]
    %v1137 = vld [vmem:[%s589 + $0x28] sm:$0xf]
    %v1138 = vld [vmem:[%s589 + $0x2c] sm:$0xf]
    %v1139 = vld [vmem:[%s589 + $0x30] sm:$0xf]
    %v1140 = vld [vmem:[%s589 + $0x34] sm:$0xf]
    %v1141 = vld [vmem:[%s589 + $0x38] sm:$0xf]
    %v1142 = vld [vmem:[%s589 + $0x3c] sm:$0xf]
    %s1143 = sld [smem:[#allocation6 + $0x2]]
    %p1145 = scmp.ne.f32.partialorder %s1143, %s1143
    %s1146 = sshrl.u32 %s1143, 16
    %s1147 = sand.u32 %s1146, 1
    %s1148 = sadd.s32 32767, %s1147
    %s1149 = sadd.s32 %s1143, %s1148
    %s1150 = sand.u32 %s1149, 4294901760
    %s1151 = scalar_select %p1145, 2143289344, %s1150
    %s1153 = sshrl.u32 %s1151, 16
    %s1154 = sshll.u32 %s1153, 16
    %s1155 = sor.u32 %s1153, %s1154
    %v1156 = vstv %s1155
    %v1158 = vunpack.c.l.bf16 %v1127
    %v1159 = vunpack.c.l.bf16 %v1128
    %v1160 = vunpack.c.l.bf16 %v1129
    %v1161 = vunpack.c.l.bf16 %v1130
    %v1162 = vunpack.c.l.bf16 %v1131
    %v1163 = vunpack.c.l.bf16 %v1132
    %v1164 = vunpack.c.l.bf16 %v1133
    %v1165 = vunpack.c.l.bf16 %v1134
    %v1166 = vunpack.c.l.bf16 %v1135
    %v1167 = vunpack.c.l.bf16 %v1136
    %v1168 = vunpack.c.l.bf16 %v1137
    %v1169 = vunpack.c.l.bf16 %v1138
    %v1170 = vunpack.c.l.bf16 %v1139
    %v1171 = vunpack.c.l.bf16 %v1140
    %v1172 = vunpack.c.l.bf16 %v1141
    %v1173 = vunpack.c.l.bf16 %v1142
    %v1174 = vunpack.c.l.bf16 %v1156
    %v1175 = vsub.f32 %v1158, %v1174
    %v1176 = vsub.f32 %v1159, %v1174
    %v1177 = vsub.f32 %v1160, %v1174
    %v1178 = vsub.f32 %v1161, %v1174
    %v1179 = vsub.f32 %v1162, %v1174
    %v1180 = vsub.f32 %v1163, %v1174
    %v1181 = vsub.f32 %v1164, %v1174
    %v1182 = vsub.f32 %v1165, %v1174
    %v1183 = vsub.f32 %v1166, %v1174
    %v1184 = vsub.f32 %v1167, %v1174
    %v1185 = vsub.f32 %v1168, %v1174
    %v1186 = vsub.f32 %v1169, %v1174
    %v1187 = vsub.f32 %v1170, %v1174
    %v1188 = vsub.f32 %v1171, %v1174
    %v1189 = vsub.f32 %v1172, %v1174
    %v1190 = vsub.f32 %v1173, %v1174
    %v1191 = vpack.c.bf16 %v1175, %v1175
    %v1192 = vpack.c.bf16 %v1176, %v1176
    %v1193 = vpack.c.bf16 %v1177, %v1177
    %v1194 = vpack.c.bf16 %v1178, %v1178
    %v1195 = vpack.c.bf16 %v1179, %v1179
    %v1196 = vpack.c.bf16 %v1180, %v1180
    %v1197 = vpack.c.bf16 %v1181, %v1181
    %v1198 = vpack.c.bf16 %v1182, %v1182
    %v1199 = vpack.c.bf16 %v1183, %v1183
    %v1200 = vpack.c.bf16 %v1184, %v1184
    %v1201 = vpack.c.bf16 %v1185, %v1185
    %v1202 = vpack.c.bf16 %v1186, %v1186
    %v1203 = vpack.c.bf16 %v1187, %v1187
    %v1204 = vpack.c.bf16 %v1188, %v1188
    %v1205 = vpack.c.bf16 %v1189, %v1189
    %v1206 = vpack.c.bf16 %v1190, %v1190
    %v1207 = vunpack.c.l.bf16 %v1191
    %v1208 = vunpack.c.l.bf16 %v1192
    %v1209 = vunpack.c.l.bf16 %v1193
    %v1210 = vunpack.c.l.bf16 %v1194
    %v1211 = vunpack.c.l.bf16 %v1195
    %v1212 = vunpack.c.l.bf16 %v1196
    %v1213 = vunpack.c.l.bf16 %v1197
    %v1214 = vunpack.c.l.bf16 %v1198
    %v1215 = vunpack.c.l.bf16 %v1199
    %v1216 = vunpack.c.l.bf16 %v1200
    %v1217 = vunpack.c.l.bf16 %v1201
    %v1218 = vunpack.c.l.bf16 %v1202
    %v1219 = vunpack.c.l.bf16 %v1203
    %v1220 = vunpack.c.l.bf16 %v1204
    %v1221 = vunpack.c.l.bf16 %v1205
    %v1222 = vunpack.c.l.bf16 %v1206
    %v1223 = vmul.f32 %v1207, %v1207
    %v1224 = vmul.f32 %v1208, %v1208
    %v1225 = vmul.f32 %v1209, %v1209
    %v1226 = vmul.f32 %v1210, %v1210
    %v1227 = vmul.f32 %v1211, %v1211
    %v1228 = vmul.f32 %v1212, %v1212
    %v1229 = vmul.f32 %v1213, %v1213
    %v1230 = vmul.f32 %v1214, %v1214
    %v1231 = vmul.f32 %v1215, %v1215
    %v1232 = vmul.f32 %v1216, %v1216
    %v1233 = vmul.f32 %v1217, %v1217
    %v1234 = vmul.f32 %v1218, %v1218
    %v1235 = vmul.f32 %v1219, %v1219
    %v1236 = vmul.f32 %v1220, %v1220
    %v1237 = vmul.f32 %v1221, %v1221
    %v1238 = vmul.f32 %v1222, %v1222
    %v1239 = vpack.c.bf16 %v1223, %v1223
    %v1240 = vpack.c.bf16 %v1224, %v1224
    %v1241 = vpack.c.bf16 %v1225, %v1225
    %v1242 = vpack.c.bf16 %v1226, %v1226
    %v1243 = vpack.c.bf16 %v1227, %v1227
    %v1244 = vpack.c.bf16 %v1228, %v1228
    %v1245 = vpack.c.bf16 %v1229, %v1229
    %v1246 = vpack.c.bf16 %v1230, %v1230
    %v1247 = vpack.c.bf16 %v1231, %v1231
    %v1248 = vpack.c.bf16 %v1232, %v1232
    %v1249 = vpack.c.bf16 %v1233, %v1233
    %v1250 = vpack.c.bf16 %v1234, %v1234
    %v1251 = vpack.c.bf16 %v1235, %v1235
    %v1252 = vpack.c.bf16 %v1236, %v1236
    %v1253 = vpack.c.bf16 %v1237, %v1237
    %v1254 = vpack.c.bf16 %v1238, %v1238
    %s1255 = sld [smem:[#allocation8 + $0x2]]
    %p1257 = scmp.ne.f32.partialorder %s1255, %s1255
    %s1258 = sshrl.u32 %s1255, 16
    %s1259 = sand.u32 %s1258, 1
    %s1260 = sadd.s32 32767, %s1259
    %s1261 = sadd.s32 %s1255, %s1260
    %s1262 = sand.u32 %s1261, 4294901760
    %s1263 = scalar_select %p1257, 2143289344, %s1262
    %s1265 = sshrl.u32 %s1263, 16
    %s1266 = sshll.u32 %s1265, 16
    %s1267 = sor.u32 %s1265, %s1266
    %v1268 = vstv %s1267
    %v1270 = vunpack.c.l.bf16 %v1239
    %v1271 = vunpack.c.l.bf16 %v1240
    %v1272 = vunpack.c.l.bf16 %v1241
    %v1273 = vunpack.c.l.bf16 %v1242
    %v1274 = vunpack.c.l.bf16 %v1243
    %v1275 = vunpack.c.l.bf16 %v1244
    %v1276 = vunpack.c.l.bf16 %v1245
    %v1277 = vunpack.c.l.bf16 %v1246
    %v1278 = vunpack.c.l.bf16 %v1247
    %v1279 = vunpack.c.l.bf16 %v1248
    %v1280 = vunpack.c.l.bf16 %v1249
    %v1281 = vunpack.c.l.bf16 %v1250
    %v1282 = vunpack.c.l.bf16 %v1251
    %v1283 = vunpack.c.l.bf16 %v1252
    %v1284 = vunpack.c.l.bf16 %v1253
    %v1285 = vunpack.c.l.bf16 %v1254
    %v1286 = vunpack.c.l.bf16 %v1268
    %v1287 = vmul.f32 %v1270, %v1286
    %v1288 = vmul.f32 %v1271, %v1286
    %v1289 = vmul.f32 %v1272, %v1286
    %v1290 = vmul.f32 %v1273, %v1286
    %v1291 = vmul.f32 %v1274, %v1286
    %v1292 = vmul.f32 %v1275, %v1286
    %v1293 = vmul.f32 %v1276, %v1286
    %v1294 = vmul.f32 %v1277, %v1286
    %v1295 = vmul.f32 %v1278, %v1286
    %v1296 = vmul.f32 %v1279, %v1286
    %v1297 = vmul.f32 %v1280, %v1286
    %v1298 = vmul.f32 %v1281, %v1286
    %v1299 = vmul.f32 %v1282, %v1286
    %v1300 = vmul.f32 %v1283, %v1286
    %v1301 = vmul.f32 %v1284, %v1286
    %v1302 = vmul.f32 %v1285, %v1286
    %v1303 = vpack.c.bf16 %v1287, %v1287
    %v1304 = vpack.c.bf16 %v1288, %v1288
    %v1305 = vpack.c.bf16 %v1289, %v1289
    %v1306 = vpack.c.bf16 %v1290, %v1290
    %v1307 = vpack.c.bf16 %v1291, %v1291
    %v1308 = vpack.c.bf16 %v1292, %v1292
    %v1309 = vpack.c.bf16 %v1293, %v1293
    %v1310 = vpack.c.bf16 %v1294, %v1294
    %v1311 = vpack.c.bf16 %v1295, %v1295
    %v1312 = vpack.c.bf16 %v1296, %v1296
    %v1313 = vpack.c.bf16 %v1297, %v1297
    %v1314 = vpack.c.bf16 %v1298, %v1298
    %v1315 = vpack.c.bf16 %v1299, %v1299
    %v1316 = vpack.c.bf16 %v1300, %v1300
    %v1317 = vpack.c.bf16 %v1301, %v1301
    %v1318 = vpack.c.bf16 %v1302, %v1302
    %v1319 = vunpack.c.l.bf16 %v1111
    %v1320 = vunpack.c.l.bf16 %v1112
    %v1321 = vunpack.c.l.bf16 %v1113
    %v1322 = vunpack.c.l.bf16 %v1114
    %v1323 = vunpack.c.l.bf16 %v1115
    %v1324 = vunpack.c.l.bf16 %v1116
    %v1325 = vunpack.c.l.bf16 %v1117
    %v1326 = vunpack.c.l.bf16 %v1118
    %v1327 = vunpack.c.l.bf16 %v1119
    %v1328 = vunpack.c.l.bf16 %v1120
    %v1329 = vunpack.c.l.bf16 %v1121
    %v1330 = vunpack.c.l.bf16 %v1122
    %v1331 = vunpack.c.l.bf16 %v1123
    %v1332 = vunpack.c.l.bf16 %v1124
    %v1333 = vunpack.c.l.bf16 %v1125
    %v1334 = vunpack.c.l.bf16 %v1126
    %v1335 = vunpack.c.l.bf16 %v1303
    %v1336 = vunpack.c.l.bf16 %v1304
    %v1337 = vunpack.c.l.bf16 %v1305
    %v1338 = vunpack.c.l.bf16 %v1306
    %v1339 = vunpack.c.l.bf16 %v1307
    %v1340 = vunpack.c.l.bf16 %v1308
    %v1341 = vunpack.c.l.bf16 %v1309
    %v1342 = vunpack.c.l.bf16 %v1310
    %v1343 = vunpack.c.l.bf16 %v1311
    %v1344 = vunpack.c.l.bf16 %v1312
    %v1345 = vunpack.c.l.bf16 %v1313
    %v1346 = vunpack.c.l.bf16 %v1314
    %v1347 = vunpack.c.l.bf16 %v1315
    %v1348 = vunpack.c.l.bf16 %v1316
    %v1349 = vunpack.c.l.bf16 %v1317
    %v1350 = vunpack.c.l.bf16 %v1318
    %v1351 = vadd.f32 %v1319, %v1335
    %v1352 = vadd.f32 %v1320, %v1336
    %v1353 = vadd.f32 %v1321, %v1337
    %v1354 = vadd.f32 %v1322, %v1338
    %v1355 = vadd.f32 %v1323, %v1339
    %v1356 = vadd.f32 %v1324, %v1340
    %v1357 = vadd.f32 %v1325, %v1341
    %v1358 = vadd.f32 %v1326, %v1342
    %v1359 = vadd.f32 %v1327, %v1343
    %v1360 = vadd.f32 %v1328, %v1344
    %v1361 = vadd.f32 %v1329, %v1345
    %v1362 = vadd.f32 %v1330, %v1346
    %v1363 = vadd.f32 %v1331, %v1347
    %v1364 = vadd.f32 %v1332, %v1348
    %v1365 = vadd.f32 %v1333, %v1349
    %v1366 = vadd.f32 %v1334, %v1350
    %v1367 = vpack.c.bf16 %v1351, %v1351
    %v1368 = vpack.c.bf16 %v1352, %v1352
    %v1369 = vpack.c.bf16 %v1353, %v1353
    %v1370 = vpack.c.bf16 %v1354, %v1354
    %v1371 = vpack.c.bf16 %v1355, %v1355
    %v1372 = vpack.c.bf16 %v1356, %v1356
    %v1373 = vpack.c.bf16 %v1357, %v1357
    %v1374 = vpack.c.bf16 %v1358, %v1358
    %v1375 = vpack.c.bf16 %v1359, %v1359
    %v1376 = vpack.c.bf16 %v1360, %v1360
    %v1377 = vpack.c.bf16 %v1361, %v1361
    %v1378 = vpack.c.bf16 %v1362, %v1362
    %v1379 = vpack.c.bf16 %v1363, %v1363
    %v1380 = vpack.c.bf16 %v1364, %v1364
    %v1381 = vpack.c.bf16 %v1365, %v1365
    %v1382 = vpack.c.bf16 %v1366, %v1366
    %v1383 = vunpack.c.l.bf16 %v1367
    %v1384 = vunpack.c.l.bf16 %v1368
    %v1385 = vunpack.c.l.bf16 %v1369
    %v1386 = vunpack.c.l.bf16 %v1370
    %v1387 = vunpack.c.l.bf16 %v1371
    %v1388 = vunpack.c.l.bf16 %v1372
    %v1389 = vunpack.c.l.bf16 %v1373
    %v1390 = vunpack.c.l.bf16 %v1374
    %v1391 = vunpack.c.l.bf16 %v1375
    %v1392 = vunpack.c.l.bf16 %v1376
    %v1393 = vunpack.c.l.bf16 %v1377
    %v1394 = vunpack.c.l.bf16 %v1378
    %v1395 = vunpack.c.l.bf16 %v1379
    %v1396 = vunpack.c.l.bf16 %v1380
    %v1397 = vunpack.c.l.bf16 %v1381
    %v1398 = vunpack.c.l.bf16 %v1382
    %v1399 = vmul.f32 %v1383, 1.442695
    %v1400 = vpow.pop %v1399
    %v1401 = vmul.f32 %v1384, 1.442695
    %v1402 = vpow.pop %v1401
    %v1403 = vmul.f32 %v1385, 1.442695
    %v1404 = vpow.pop %v1403
    %v1405 = vmul.f32 %v1386, 1.442695
    %v1406 = vpow.pop %v1405
    %v1407 = vmul.f32 %v1387, 1.442695
    %v1408 = vpow.pop %v1407
    %v1409 = vmul.f32 %v1388, 1.442695
    %v1410 = vpow.pop %v1409
    %v1411 = vmul.f32 %v1389, 1.442695
    %v1412 = vpow.pop %v1411
    %v1413 = vmul.f32 %v1390, 1.442695
    %v1414 = vpow.pop %v1413
    %v1415 = vmul.f32 %v1391, 1.442695
    %v1416 = vpow.pop %v1415
    %v1417 = vmul.f32 %v1392, 1.442695
    %v1418 = vpow.pop %v1417
    %v1419 = vmul.f32 %v1393, 1.442695
    %v1420 = vpow.pop %v1419
    %v1421 = vmul.f32 %v1394, 1.442695
    %v1422 = vpow.pop %v1421
    %v1423 = vmul.f32 %v1395, 1.442695
    %v1424 = vpow.pop %v1423
    %v1425 = vmul.f32 %v1396, 1.442695
    %v1426 = vpow.pop %v1425
    %v1427 = vmul.f32 %v1397, 1.442695
    %v1428 = vpow.pop %v1427
    %v1429 = vmul.f32 %v1398, 1.442695
    %v1430 = vpow.pop %v1429
    %v1431 = vpack.c.bf16 %v1400, %v1400
    %v1432 = vpack.c.bf16 %v1402, %v1402
    %v1433 = vpack.c.bf16 %v1404, %v1404
    %v1434 = vpack.c.bf16 %v1406, %v1406
    %v1435 = vpack.c.bf16 %v1408, %v1408
    %v1436 = vpack.c.bf16 %v1410, %v1410
    %v1437 = vpack.c.bf16 %v1412, %v1412
    %v1438 = vpack.c.bf16 %v1414, %v1414
    %v1439 = vpack.c.bf16 %v1416, %v1416
    %v1440 = vpack.c.bf16 %v1418, %v1418
    %v1441 = vpack.c.bf16 %v1420, %v1420
    %v1442 = vpack.c.bf16 %v1422, %v1422
    %v1443 = vpack.c.bf16 %v1424, %v1424
    %v1444 = vpack.c.bf16 %v1426, %v1426
    %v1445 = vpack.c.bf16 %v1428, %v1428
    %v1446 = vpack.c.bf16 %v1430, %v1430
    %v1447 = vunpack.c.l.bf16 %v606
    %v1448 = vunpack.c.l.bf16 %v607
    %v1449 = vunpack.c.l.bf16 %v608
    %v1450 = vunpack.c.l.bf16 %v609
    %v1451 = vunpack.c.l.bf16 %v610
    %v1452 = vunpack.c.l.bf16 %v611
    %v1453 = vunpack.c.l.bf16 %v612
    %v1454 = vunpack.c.l.bf16 %v613
    %v1455 = vunpack.c.l.bf16 %v614
    %v1456 = vunpack.c.l.bf16 %v615
    %v1457 = vunpack.c.l.bf16 %v616
    %v1458 = vunpack.c.l.bf16 %v617
    %v1459 = vunpack.c.l.bf16 %v618
    %v1460 = vunpack.c.l.bf16 %v619
    %v1461 = vunpack.c.l.bf16 %v620
    %v1462 = vunpack.c.l.bf16 %v621
    %v1463 = vunpack.c.l.bf16 %v1431
    %v1464 = vunpack.c.l.bf16 %v1432
    %v1465 = vunpack.c.l.bf16 %v1433
    %v1466 = vunpack.c.l.bf16 %v1434
    %v1467 = vunpack.c.l.bf16 %v1435
    %v1468 = vunpack.c.l.bf16 %v1436
    %v1469 = vunpack.c.l.bf16 %v1437
    %v1470 = vunpack.c.l.bf16 %v1438
    %v1471 = vunpack.c.l.bf16 %v1439
    %v1472 = vunpack.c.l.bf16 %v1440
    %v1473 = vunpack.c.l.bf16 %v1441
    %v1474 = vunpack.c.l.bf16 %v1442
    %v1475 = vunpack.c.l.bf16 %v1443
    %v1476 = vunpack.c.l.bf16 %v1444
    %v1477 = vunpack.c.l.bf16 %v1445
    %v1478 = vunpack.c.l.bf16 %v1446
    %v1479 = vmul.f32 %v1447, %v1463
    %v1480 = vmul.f32 %v1448, %v1464
    %v1481 = vmul.f32 %v1449, %v1465
    %v1482 = vmul.f32 %v1450, %v1466
    %v1483 = vmul.f32 %v1451, %v1467
    %v1484 = vmul.f32 %v1452, %v1468
    %v1485 = vmul.f32 %v1453, %v1469
    %v1486 = vmul.f32 %v1454, %v1470
    %v1487 = vmul.f32 %v1455, %v1471
    %v1488 = vmul.f32 %v1456, %v1472
    %v1489 = vmul.f32 %v1457, %v1473
    %v1490 = vmul.f32 %v1458, %v1474
    %v1491 = vmul.f32 %v1459, %v1475
    %v1492 = vmul.f32 %v1460, %v1476
    %v1493 = vmul.f32 %v1461, %v1477
    %v1494 = vmul.f32 %v1462, %v1478
    %v1495 = vpack.c.bf16 %v1479, %v1479
    %v1496 = vpack.c.bf16 %v1480, %v1480
    %v1497 = vpack.c.bf16 %v1481, %v1481
    %v1498 = vpack.c.bf16 %v1482, %v1482
    %v1499 = vpack.c.bf16 %v1483, %v1483
    %v1500 = vpack.c.bf16 %v1484, %v1484
    %v1501 = vpack.c.bf16 %v1485, %v1485
    %v1502 = vpack.c.bf16 %v1486, %v1486
    %v1503 = vpack.c.bf16 %v1487, %v1487
    %v1504 = vpack.c.bf16 %v1488, %v1488
    %v1505 = vpack.c.bf16 %v1489, %v1489
    %v1506 = vpack.c.bf16 %v1490, %v1490
    %v1507 = vpack.c.bf16 %v1491, %v1491
    %v1508 = vpack.c.bf16 %v1492, %v1492
    %v1509 = vpack.c.bf16 %v1493, %v1493
    %v1510 = vpack.c.bf16 %v1494, %v1494
    %1511 = vst [vmem:[#allocation3] sm:$0xf] %v1495
    %1512 = vst [vmem:[#allocation3 + $0xc] sm:$0xf] %v1496
    %1513 = vst [vmem:[#allocation3 + $0x18] sm:$0xf] %v1497
    %1514 = vst [vmem:[#allocation3 + $0x24] sm:$0xf] %v1498
    %1515 = vst [vmem:[#allocation3 + $0x30] sm:$0xf] %v1499
    %1516 = vst [vmem:[#allocation3 + $0x3c] sm:$0xf] %v1500
    %1517 = vst [vmem:[#allocation3 + $0x48] sm:$0xf] %v1501
    %1518 = vst [vmem:[#allocation3 + $0x54] sm:$0xf] %v1502
    %1519 = vst [vmem:[#allocation3 + $0x60] sm:$0xf] %v1503
    %1520 = vst [vmem:[#allocation3 + $0x6c] sm:$0xf] %v1504
    %1521 = vst [vmem:[#allocation3 + $0x78] sm:$0xf] %v1505
    %1522 = vst [vmem:[#allocation3 + $0x84] sm:$0xf] %v1506
    %1523 = vst [vmem:[#allocation3 + $0x90] sm:$0xf] %v1507
    %1524 = vst [vmem:[#allocation3 + $0x9c] sm:$0xf] %v1508
    %1525 = vst [vmem:[#allocation3 + $0xa8] sm:$0xf] %v1509
    %1526 = vst [vmem:[#allocation3 + $0xb4] sm:$0xf] %v1510
    %v1527 = vld [vmem:[%s7] sm:$0x1]
    %vm1528 = vcmask 15360
    %v1530 = vsel %vm1528, %v671, 0
    %v1533 = vsel %vm1528, %v672, 0
    %v1536 = vsel %vm1528, %v673, 0
    %v1539 = vsel %vm1528, %v674, 0
    %v1542 = vsel %vm1528, %v675, 0
    %v1545 = vsel %vm1528, %v676, 0
    %v1548 = vsel %vm1528, %v677, 0
    %v1551 = vsel %vm1528, %v678, 0
    %vm1553 = vcmask 1040384
    %v1555 = vsel %vm1553, %v1527, 0
    %1557 = vmatpush.bf16.msra.mxu0 0
    %1558 = vmatpush.bf16.msra.mxu0 0
    %1559 = vmatpush.bf16.msra.mxu0 0
    %1560 = vmatpush.bf16.msra.mxu0 0
    %1561 = vmatpush.bf16.msra.mxu0 0
    %1562 = vmatpush.bf16.msra.mxu0 0
    %1563 = vmatpush.bf16.msra.mxu0 0
    %1564 = vmatpush.bf16.msra.mxu0 %v1555
    %1565 = vmatmul.bf16.gmra.mxu0 %v1530
    %v1566 = vpop.f32.mrf.mxu0
    %v1567 = vadd.f32 0.0, %v1566
    %v1568 = vpop.f32.mrf.mxu0
    %v1569 = vadd.f32 0.0, %v1568
    %1570 = vmatmul.bf16.gmra.mxu0 %v1533
    %v1571 = vpop.f32.mrf.mxu0
    %v1572 = vadd.f32 0.0, %v1571
    %v1573 = vpop.f32.mrf.mxu0
    %v1574 = vadd.f32 0.0, %v1573
    %1575 = vmatmul.bf16.gmra.mxu0 %v1536
    %v1576 = vpop.f32.mrf.mxu0
    %v1577 = vadd.f32 0.0, %v1576
    %v1578 = vpop.f32.mrf.mxu0
    %v1579 = vadd.f32 0.0, %v1578
    %1580 = vmatmul.bf16.gmra.mxu0 %v1539
    %v1581 = vpop.f32.mrf.mxu0
    %v1582 = vadd.f32 0.0, %v1581
    %v1583 = vpop.f32.mrf.mxu0
    %v1584 = vadd.f32 0.0, %v1583
    %1585 = vmatmul.bf16.gmra.mxu0 %v1542
    %v1586 = vpop.f32.mrf.mxu0
    %v1587 = vadd.f32 0.0, %v1586
    %v1588 = vpop.f32.mrf.mxu0
    %v1589 = vadd.f32 0.0, %v1588
    %1590 = vmatmul.bf16.gmra.mxu0 %v1545
    %v1591 = vpop.f32.mrf.mxu0
    %v1592 = vadd.f32 0.0, %v1591
    %v1593 = vpop.f32.mrf.mxu0
    %v1594 = vadd.f32 0.0, %v1593
    %1595 = vmatmul.bf16.gmra.mxu0 %v1548
    %v1596 = vpop.f32.mrf.mxu0
    %v1597 = vadd.f32 0.0, %v1596
    %v1598 = vpop.f32.mrf.mxu0
    %v1599 = vadd.f32 0.0, %v1598
    %1600 = vmatmul.bf16.gmra.mxu0 %v1551
    %v1601 = vpop.f32.mrf.mxu0
    %v1602 = vadd.f32 0.0, %v1601
    %v1603 = vpop.f32.mrf.mxu0
    %v1604 = vadd.f32 0.0, %v1603
    %1605 = vdwg.mxu0
    %v1606 = vpack.c.bf16 %v1567, %v1567
    %v1607 = vpack.c.bf16 %v1569, %v1569
    %v1608 = vpack.c.bf16 %v1572, %v1572
    %v1609 = vpack.c.bf16 %v1574, %v1574
    %v1610 = vpack.c.bf16 %v1577, %v1577
    %v1611 = vpack.c.bf16 %v1579, %v1579
    %v1612 = vpack.c.bf16 %v1582, %v1582
    %v1613 = vpack.c.bf16 %v1584, %v1584
    %v1614 = vpack.c.bf16 %v1587, %v1587
    %v1615 = vpack.c.bf16 %v1589, %v1589
    %v1616 = vpack.c.bf16 %v1592, %v1592
    %v1617 = vpack.c.bf16 %v1594, %v1594
    %v1618 = vpack.c.bf16 %v1597, %v1597
    %v1619 = vpack.c.bf16 %v1599, %v1599
    %v1620 = vpack.c.bf16 %v1602, %v1602
    %v1621 = vpack.c.bf16 %v1604, %v1604
    %vm1622 = vcmask 60416
    %1623 = vst.msk [vmem:[#allocation4] sm:$0xf] %vm1622, %v1606
    %1624 = vst.msk [vmem:[#allocation4 + $0x4] sm:$0xf] %vm1622, %v1607
    %1625 = vst.msk [vmem:[#allocation4 + $0x8] sm:$0xf] %vm1622, %v1608
    %1626 = vst.msk [vmem:[#allocation4 + $0xc] sm:$0xf] %vm1622, %v1609
    %1627 = vst.msk [vmem:[#allocation4 + $0x10] sm:$0xf] %vm1622, %v1610
    %1628 = vst.msk [vmem:[#allocation4 + $0x14] sm:$0xf] %vm1622, %v1611
    %1629 = vst.msk [vmem:[#allocation4 + $0x18] sm:$0xf] %vm1622, %v1612
    %1630 = vst.msk [vmem:[#allocation4 + $0x1c] sm:$0xf] %vm1622, %v1613
    %1631 = vst.msk [vmem:[#allocation4 + $0x20] sm:$0xf] %vm1622, %v1614
    %1632 = vst.msk [vmem:[#allocation4 + $0x24] sm:$0xf] %vm1622, %v1615
    %1633 = vst.msk [vmem:[#allocation4 + $0x28] sm:$0xf] %vm1622, %v1616
    %1634 = vst.msk [vmem:[#allocation4 + $0x2c] sm:$0xf] %vm1622, %v1617
    %1635 = vst.msk [vmem:[#allocation4 + $0x30] sm:$0xf] %vm1622, %v1618
    %1636 = vst.msk [vmem:[#allocation4 + $0x34] sm:$0xf] %vm1622, %v1619
    %1637 = vst.msk [vmem:[#allocation4 + $0x38] sm:$0xf] %vm1622, %v1620
    %1638 = vst.msk [vmem:[#allocation4 + $0x3c] sm:$0xf] %vm1622, %v1621
    %v1639 = vld [vmem:[#allocation2] sm:$0xf]
    %v1640 = vld [vmem:[#allocation2 + $0x4] sm:$0xf]
    %v1641 = vld [vmem:[#allocation2 + $0x8] sm:$0xf]
    %v1642 = vld [vmem:[#allocation2 + $0xc] sm:$0xf]
    %v1643 = vld [vmem:[#allocation2 + $0x10] sm:$0xf]
    %v1644 = vld [vmem:[#allocation2 + $0x14] sm:$0xf]
    %v1645 = vld [vmem:[#allocation2 + $0x18] sm:$0xf]
    %v1646 = vld [vmem:[#allocation2 + $0x1c] sm:$0xf]
    %v1647 = vld [vmem:[#allocation2 + $0x20] sm:$0xf]
    %v1648 = vld [vmem:[#allocation2 + $0x24] sm:$0xf]
    %v1649 = vld [vmem:[#allocation2 + $0x28] sm:$0xf]
    %v1650 = vld [vmem:[#allocation2 + $0x2c] sm:$0xf]
    %v1651 = vld [vmem:[#allocation2 + $0x30] sm:$0xf]
    %v1652 = vld [vmem:[#allocation2 + $0x34] sm:$0xf]
    %v1653 = vld [vmem:[#allocation2 + $0x38] sm:$0xf]
    %v1654 = vld [vmem:[#allocation2 + $0x3c] sm:$0xf]
    %s1655 = sld [smem:[#allocation6 + $0x80]]
    %p1657 = scmp.ne.f32.partialorder %s1655, %s1655
    %s1658 = sshrl.u32 %s1655, 16
    %s1659 = sand.u32 %s1658, 1
    %s1660 = sadd.s32 32767, %s1659
    %s1661 = sadd.s32 %s1655, %s1660
    %s1662 = sand.u32 %s1661, 4294901760
    %s1663 = scalar_select %p1657, 2143289344, %s1662
    %s1665 = sshrl.u32 %s1663, 16
    %s1666 = sshll.u32 %s1665, 16
    %s1667 = sor.u32 %s1665, %s1666
    %v1668 = vstv %s1667
    %v1670 = vunpack.c.l.bf16 %v1639
    %v1671 = vunpack.c.l.bf16 %v1640
    %v1672 = vunpack.c.l.bf16 %v1641
    %v1673 = vunpack.c.l.bf16 %v1642
    %v1674 = vunpack.c.l.bf16 %v1643
    %v1675 = vunpack.c.l.bf16 %v1644
    %v1676 = vunpack.c.l.bf16 %v1645
    %v1677 = vunpack.c.l.bf16 %v1646
    %v1678 = vunpack.c.l.bf16 %v1647
    %v1679 = vunpack.c.l.bf16 %v1648
    %v1680 = vunpack.c.l.bf16 %v1649
    %v1681 = vunpack.c.l.bf16 %v1650
    %v1682 = vunpack.c.l.bf16 %v1651
    %v1683 = vunpack.c.l.bf16 %v1652
    %v1684 = vunpack.c.l.bf16 %v1653
    %v1685 = vunpack.c.l.bf16 %v1654
    %v1686 = vunpack.c.l.bf16 %v1668
    %v1687 = vsub.f32 %v1670, %v1686
    %v1688 = vsub.f32 %v1671, %v1686
    %v1689 = vsub.f32 %v1672, %v1686
    %v1690 = vsub.f32 %v1673, %v1686
    %v1691 = vsub.f32 %v1674, %v1686
    %v1692 = vsub.f32 %v1675, %v1686
    %v1693 = vsub.f32 %v1676, %v1686
    %v1694 = vsub.f32 %v1677, %v1686
    %v1695 = vsub.f32 %v1678, %v1686
    %v1696 = vsub.f32 %v1679, %v1686
    %v1697 = vsub.f32 %v1680, %v1686
    %v1698 = vsub.f32 %v1681, %v1686
    %v1699 = vsub.f32 %v1682, %v1686
    %v1700 = vsub.f32 %v1683, %v1686
    %v1701 = vsub.f32 %v1684, %v1686
    %v1702 = vsub.f32 %v1685, %v1686
    %v1703 = vpack.c.bf16 %v1687, %v1687
    %v1704 = vpack.c.bf16 %v1688, %v1688
    %v1705 = vpack.c.bf16 %v1689, %v1689
    %v1706 = vpack.c.bf16 %v1690, %v1690
    %v1707 = vpack.c.bf16 %v1691, %v1691
    %v1708 = vpack.c.bf16 %v1692, %v1692
    %v1709 = vpack.c.bf16 %v1693, %v1693
    %v1710 = vpack.c.bf16 %v1694, %v1694
    %v1711 = vpack.c.bf16 %v1695, %v1695
    %v1712 = vpack.c.bf16 %v1696, %v1696
    %v1713 = vpack.c.bf16 %v1697, %v1697
    %v1714 = vpack.c.bf16 %v1698, %v1698
    %v1715 = vpack.c.bf16 %v1699, %v1699
    %v1716 = vpack.c.bf16 %v1700, %v1700
    %v1717 = vpack.c.bf16 %v1701, %v1701
    %v1718 = vpack.c.bf16 %v1702, %v1702
    %v1719 = vunpack.c.l.bf16 %v1703
    %v1720 = vunpack.c.l.bf16 %v1704
    %v1721 = vunpack.c.l.bf16 %v1705
    %v1722 = vunpack.c.l.bf16 %v1706
    %v1723 = vunpack.c.l.bf16 %v1707
    %v1724 = vunpack.c.l.bf16 %v1708
    %v1725 = vunpack.c.l.bf16 %v1709
    %v1726 = vunpack.c.l.bf16 %v1710
    %v1727 = vunpack.c.l.bf16 %v1711
    %v1728 = vunpack.c.l.bf16 %v1712
    %v1729 = vunpack.c.l.bf16 %v1713
    %v1730 = vunpack.c.l.bf16 %v1714
    %v1731 = vunpack.c.l.bf16 %v1715
    %v1732 = vunpack.c.l.bf16 %v1716
    %v1733 = vunpack.c.l.bf16 %v1717
    %v1734 = vunpack.c.l.bf16 %v1718
    %v1735 = vmul.f32 %v1719, %v1719
    %v1736 = vmul.f32 %v1720, %v1720
    %v1737 = vmul.f32 %v1721, %v1721
    %v1738 = vmul.f32 %v1722, %v1722
    %v1739 = vmul.f32 %v1723, %v1723
    %v1740 = vmul.f32 %v1724, %v1724
    %v1741 = vmul.f32 %v1725, %v1725
    %v1742 = vmul.f32 %v1726, %v1726
    %v1743 = vmul.f32 %v1727, %v1727
    %v1744 = vmul.f32 %v1728, %v1728
    %v1745 = vmul.f32 %v1729, %v1729
    %v1746 = vmul.f32 %v1730, %v1730
    %v1747 = vmul.f32 %v1731, %v1731
    %v1748 = vmul.f32 %v1732, %v1732
    %v1749 = vmul.f32 %v1733, %v1733
    %v1750 = vmul.f32 %v1734, %v1734
    %v1751 = vpack.c.bf16 %v1735, %v1735
    %v1752 = vpack.c.bf16 %v1736, %v1736
    %v1753 = vpack.c.bf16 %v1737, %v1737
    %v1754 = vpack.c.bf16 %v1738, %v1738
    %v1755 = vpack.c.bf16 %v1739, %v1739
    %v1756 = vpack.c.bf16 %v1740, %v1740
    %v1757 = vpack.c.bf16 %v1741, %v1741
    %v1758 = vpack.c.bf16 %v1742, %v1742
    %v1759 = vpack.c.bf16 %v1743, %v1743
    %v1760 = vpack.c.bf16 %v1744, %v1744
    %v1761 = vpack.c.bf16 %v1745, %v1745
    %v1762 = vpack.c.bf16 %v1746, %v1746
    %v1763 = vpack.c.bf16 %v1747, %v1747
    %v1764 = vpack.c.bf16 %v1748, %v1748
    %v1765 = vpack.c.bf16 %v1749, %v1749
    %v1766 = vpack.c.bf16 %v1750, %v1750
    %s1767 = sld [smem:[#allocation8 + $0x80]]
    %p1769 = scmp.ne.f32.partialorder %s1767, %s1767
    %s1770 = sshrl.u32 %s1767, 16
    %s1771 = sand.u32 %s1770, 1
    %s1772 = sadd.s32 32767, %s1771
    %s1773 = sadd.s32 %s1767, %s1772
    %s1774 = sand.u32 %s1773, 4294901760
    %s1775 = scalar_select %p1769, 2143289344, %s1774
    %s1777 = sshrl.u32 %s1775, 16
    %s1778 = sshll.u32 %s1777, 16
    %s1779 = sor.u32 %s1777, %s1778
    %v1780 = vstv %s1779
    %v1782 = vunpack.c.l.bf16 %v1751
    %v1783 = vunpack.c.l.bf16 %v1752
    %v1784 = vunpack.c.l.bf16 %v1753
    %v1785 = vunpack.c.l.bf16 %v1754
    %v1786 = vunpack.c.l.bf16 %v1755
    %v1787 = vunpack.c.l.bf16 %v1756
    %v1788 = vunpack.c.l.bf16 %v1757
    %v1789 = vunpack.c.l.bf16 %v1758
    %v1790 = vunpack.c.l.bf16 %v1759
    %v1791 = vunpack.c.l.bf16 %v1760
    %v1792 = vunpack.c.l.bf16 %v1761
    %v1793 = vunpack.c.l.bf16 %v1762
    %v1794 = vunpack.c.l.bf16 %v1763
    %v1795 = vunpack.c.l.bf16 %v1764
    %v1796 = vunpack.c.l.bf16 %v1765
    %v1797 = vunpack.c.l.bf16 %v1766
    %v1798 = vunpack.c.l.bf16 %v1780
    %v1799 = vmul.f32 %v1782, %v1798
    %v1800 = vmul.f32 %v1783, %v1798
    %v1801 = vmul.f32 %v1784, %v1798
    %v1802 = vmul.f32 %v1785, %v1798
    %v1803 = vmul.f32 %v1786, %v1798
    %v1804 = vmul.f32 %v1787, %v1798
    %v1805 = vmul.f32 %v1788, %v1798
    %v1806 = vmul.f32 %v1789, %v1798
    %v1807 = vmul.f32 %v1790, %v1798
    %v1808 = vmul.f32 %v1791, %v1798
    %v1809 = vmul.f32 %v1792, %v1798
    %v1810 = vmul.f32 %v1793, %v1798
    %v1811 = vmul.f32 %v1794, %v1798
    %v1812 = vmul.f32 %v1795, %v1798
    %v1813 = vmul.f32 %v1796, %v1798
    %v1814 = vmul.f32 %v1797, %v1798
    %v1815 = vpack.c.bf16 %v1799, %v1799
    %v1816 = vpack.c.bf16 %v1800, %v1800
    %v1817 = vpack.c.bf16 %v1801, %v1801
    %v1818 = vpack.c.bf16 %v1802, %v1802
    %v1819 = vpack.c.bf16 %v1803, %v1803
    %v1820 = vpack.c.bf16 %v1804, %v1804
    %v1821 = vpack.c.bf16 %v1805, %v1805
    %v1822 = vpack.c.bf16 %v1806, %v1806
    %v1823 = vpack.c.bf16 %v1807, %v1807
    %v1824 = vpack.c.bf16 %v1808, %v1808
    %v1825 = vpack.c.bf16 %v1809, %v1809
    %v1826 = vpack.c.bf16 %v1810, %v1810
    %v1827 = vpack.c.bf16 %v1811, %v1811
    %v1828 = vpack.c.bf16 %v1812, %v1812
    %v1829 = vpack.c.bf16 %v1813, %v1813
    %v1830 = vpack.c.bf16 %v1814, %v1814
    %v1831 = vld [vmem:[%s426] sm:$0xf]
    %v1832 = vld [vmem:[%s426 + $0x4] sm:$0xf]
    %v1833 = vld [vmem:[%s426 + $0x8] sm:$0xf]
    %v1834 = vld [vmem:[%s426 + $0xc] sm:$0xf]
    %v1835 = vld [vmem:[%s426 + $0x10] sm:$0xf]
    %v1836 = vld [vmem:[%s426 + $0x14] sm:$0xf]
    %v1837 = vld [vmem:[%s426 + $0x18] sm:$0xf]
    %v1838 = vld [vmem:[%s426 + $0x1c] sm:$0xf]
    %v1839 = vld [vmem:[%s426 + $0x20] sm:$0xf]
    %v1840 = vld [vmem:[%s426 + $0x24] sm:$0xf]
    %v1841 = vld [vmem:[%s426 + $0x28] sm:$0xf]
    %v1842 = vld [vmem:[%s426 + $0x2c] sm:$0xf]
    %v1843 = vld [vmem:[%s426 + $0x30] sm:$0xf]
    %v1844 = vld [vmem:[%s426 + $0x34] sm:$0xf]
    %v1845 = vld [vmem:[%s426 + $0x38] sm:$0xf]
    %v1846 = vld [vmem:[%s426 + $0x3c] sm:$0xf]
    %s1847 = sld [smem:[#allocation6 + $0x81]]
    %p1849 = scmp.ne.f32.partialorder %s1847, %s1847
    %s1850 = sshrl.u32 %s1847, 16
    %s1851 = sand.u32 %s1850, 1
    %s1852 = sadd.s32 32767, %s1851
    %s1853 = sadd.s32 %s1847, %s1852
    %s1854 = sand.u32 %s1853, 4294901760
    %s1855 = scalar_select %p1849, 2143289344, %s1854
    %s1857 = sshrl.u32 %s1855, 16
    %s1858 = sshll.u32 %s1857, 16
    %s1859 = sor.u32 %s1857, %s1858
    %v1860 = vstv %s1859
    %v1862 = vunpack.c.l.bf16 %v1831
    %v1863 = vunpack.c.l.bf16 %v1832
    %v1864 = vunpack.c.l.bf16 %v1833
    %v1865 = vunpack.c.l.bf16 %v1834
    %v1866 = vunpack.c.l.bf16 %v1835
    %v1867 = vunpack.c.l.bf16 %v1836
    %v1868 = vunpack.c.l.bf16 %v1837
    %v1869 = vunpack.c.l.bf16 %v1838
    %v1870 = vunpack.c.l.bf16 %v1839
    %v1871 = vunpack.c.l.bf16 %v1840
    %v1872 = vunpack.c.l.bf16 %v1841
    %v1873 = vunpack.c.l.bf16 %v1842
    %v1874 = vunpack.c.l.bf16 %v1843
    %v1875 = vunpack.c.l.bf16 %v1844
    %v1876 = vunpack.c.l.bf16 %v1845
    %v1877 = vunpack.c.l.bf16 %v1846
    %v1878 = vunpack.c.l.bf16 %v1860
    %v1879 = vsub.f32 %v1862, %v1878
    %v1880 = vsub.f32 %v1863, %v1878
    %v1881 = vsub.f32 %v1864, %v1878
    %v1882 = vsub.f32 %v1865, %v1878
    %v1883 = vsub.f32 %v1866, %v1878
    %v1884 = vsub.f32 %v1867, %v1878
    %v1885 = vsub.f32 %v1868, %v1878
    %v1886 = vsub.f32 %v1869, %v1878
    %v1887 = vsub.f32 %v1870, %v1878
    %v1888 = vsub.f32 %v1871, %v1878
    %v1889 = vsub.f32 %v1872, %v1878
    %v1890 = vsub.f32 %v1873, %v1878
    %v1891 = vsub.f32 %v1874, %v1878
    %v1892 = vsub.f32 %v1875, %v1878
    %v1893 = vsub.f32 %v1876, %v1878
    %v1894 = vsub.f32 %v1877, %v1878
    %v1895 = vpack.c.bf16 %v1879, %v1879
    %v1896 = vpack.c.bf16 %v1880, %v1880
    %v1897 = vpack.c.bf16 %v1881, %v1881
    %v1898 = vpack.c.bf16 %v1882, %v1882
    %v1899 = vpack.c.bf16 %v1883, %v1883
    %v1900 = vpack.c.bf16 %v1884, %v1884
    %v1901 = vpack.c.bf16 %v1885, %v1885
    %v1902 = vpack.c.bf16 %v1886, %v1886
    %v1903 = vpack.c.bf16 %v1887, %v1887
    %v1904 = vpack.c.bf16 %v1888, %v1888
    %v1905 = vpack.c.bf16 %v1889, %v1889
    %v1906 = vpack.c.bf16 %v1890, %v1890
    %v1907 = vpack.c.bf16 %v1891, %v1891
    %v1908 = vpack.c.bf16 %v1892, %v1892
    %v1909 = vpack.c.bf16 %v1893, %v1893
    %v1910 = vpack.c.bf16 %v1894, %v1894
    %v1911 = vunpack.c.l.bf16 %v1895
    %v1912 = vunpack.c.l.bf16 %v1896
    %v1913 = vunpack.c.l.bf16 %v1897
    %v1914 = vunpack.c.l.bf16 %v1898
    %v1915 = vunpack.c.l.bf16 %v1899
    %v1916 = vunpack.c.l.bf16 %v1900
    %v1917 = vunpack.c.l.bf16 %v1901
    %v1918 = vunpack.c.l.bf16 %v1902
    %v1919 = vunpack.c.l.bf16 %v1903
    %v1920 = vunpack.c.l.bf16 %v1904
    %v1921 = vunpack.c.l.bf16 %v1905
    %v1922 = vunpack.c.l.bf16 %v1906
    %v1923 = vunpack.c.l.bf16 %v1907
    %v1924 = vunpack.c.l.bf16 %v1908
    %v1925 = vunpack.c.l.bf16 %v1909
    %v1926 = vunpack.c.l.bf16 %v1910
    %v1927 = vmul.f32 %v1911, %v1911
    %v1928 = vmul.f32 %v1912, %v1912
    %v1929 = vmul.f32 %v1913, %v1913
    %v1930 = vmul.f32 %v1914, %v1914
    %v1931 = vmul.f32 %v1915, %v1915
    %v1932 = vmul.f32 %v1916, %v1916
    %v1933 = vmul.f32 %v1917, %v1917
    %v1934 = vmul.f32 %v1918, %v1918
    %v1935 = vmul.f32 %v1919, %v1919
    %v1936 = vmul.f32 %v1920, %v1920
    %v1937 = vmul.f32 %v1921, %v1921
    %v1938 = vmul.f32 %v1922, %v1922
    %v1939 = vmul.f32 %v1923, %v1923
    %v1940 = vmul.f32 %v1924, %v1924
    %v1941 = vmul.f32 %v1925, %v1925
    %v1942 = vmul.f32 %v1926, %v1926
    %v1943 = vpack.c.bf16 %v1927, %v1927
    %v1944 = vpack.c.bf16 %v1928, %v1928
    %v1945 = vpack.c.bf16 %v1929, %v1929
    %v1946 = vpack.c.bf16 %v1930, %v1930
    %v1947 = vpack.c.bf16 %v1931, %v1931
    %v1948 = vpack.c.bf16 %v1932, %v1932
    %v1949 = vpack.c.bf16 %v1933, %v1933
    %v1950 = vpack.c.bf16 %v1934, %v1934
    %v1951 = vpack.c.bf16 %v1935, %v1935
    %v1952 = vpack.c.bf16 %v1936, %v1936
    %v1953 = vpack.c.bf16 %v1937, %v1937
    %v1954 = vpack.c.bf16 %v1938, %v1938
    %v1955 = vpack.c.bf16 %v1939, %v1939
    %v1956 = vpack.c.bf16 %v1940, %v1940
    %v1957 = vpack.c.bf16 %v1941, %v1941
    %v1958 = vpack.c.bf16 %v1942, %v1942
    %s1959 = sld [smem:[#allocation8 + $0x81]]
    %p1961 = scmp.ne.f32.partialorder %s1959, %s1959
    %s1962 = sshrl.u32 %s1959, 16
    %s1963 = sand.u32 %s1962, 1
    %s1964 = sadd.s32 32767, %s1963
    %s1965 = sadd.s32 %s1959, %s1964
    %s1966 = sand.u32 %s1965, 4294901760
    %s1967 = scalar_select %p1961, 2143289344, %s1966
    %s1969 = sshrl.u32 %s1967, 16
    %s1970 = sshll.u32 %s1969, 16
    %s1971 = sor.u32 %s1969, %s1970
    %v1972 = vstv %s1971
    %v1974 = vunpack.c.l.bf16 %v1943
    %v1975 = vunpack.c.l.bf16 %v1944
    %v1976 = vunpack.c.l.bf16 %v1945
    %v1977 = vunpack.c.l.bf16 %v1946
    %v1978 = vunpack.c.l.bf16 %v1947
    %v1979 = vunpack.c.l.bf16 %v1948
    %v1980 = vunpack.c.l.bf16 %v1949
    %v1981 = vunpack.c.l.bf16 %v1950
    %v1982 = vunpack.c.l.bf16 %v1951
    %v1983 = vunpack.c.l.bf16 %v1952
    %v1984 = vunpack.c.l.bf16 %v1953
    %v1985 = vunpack.c.l.bf16 %v1954
    %v1986 = vunpack.c.l.bf16 %v1955
    %v1987 = vunpack.c.l.bf16 %v1956
    %v1988 = vunpack.c.l.bf16 %v1957
    %v1989 = vunpack.c.l.bf16 %v1958
    %v1990 = vunpack.c.l.bf16 %v1972
    %v1991 = vmul.f32 %v1974, %v1990
    %v1992 = vmul.f32 %v1975, %v1990
    %v1993 = vmul.f32 %v1976, %v1990
    %v1994 = vmul.f32 %v1977, %v1990
    %v1995 = vmul.f32 %v1978, %v1990
    %v1996 = vmul.f32 %v1979, %v1990
    %v1997 = vmul.f32 %v1980, %v1990
    %v1998 = vmul.f32 %v1981, %v1990
    %v1999 = vmul.f32 %v1982, %v1990
    %v2000 = vmul.f32 %v1983, %v1990
    %v2001 = vmul.f32 %v1984, %v1990
    %v2002 = vmul.f32 %v1985, %v1990
    %v2003 = vmul.f32 %v1986, %v1990
    %v2004 = vmul.f32 %v1987, %v1990
    %v2005 = vmul.f32 %v1988, %v1990
    %v2006 = vmul.f32 %v1989, %v1990
    %v2007 = vpack.c.bf16 %v1991, %v1991
    %v2008 = vpack.c.bf16 %v1992, %v1992
    %v2009 = vpack.c.bf16 %v1993, %v1993
    %v2010 = vpack.c.bf16 %v1994, %v1994
    %v2011 = vpack.c.bf16 %v1995, %v1995
    %v2012 = vpack.c.bf16 %v1996, %v1996
    %v2013 = vpack.c.bf16 %v1997, %v1997
    %v2014 = vpack.c.bf16 %v1998, %v1998
    %v2015 = vpack.c.bf16 %v1999, %v1999
    %v2016 = vpack.c.bf16 %v2000, %v2000
    %v2017 = vpack.c.bf16 %v2001, %v2001
    %v2018 = vpack.c.bf16 %v2002, %v2002
    %v2019 = vpack.c.bf16 %v2003, %v2003
    %v2020 = vpack.c.bf16 %v2004, %v2004
    %v2021 = vpack.c.bf16 %v2005, %v2005
    %v2022 = vpack.c.bf16 %v2006, %v2006
    %v2023 = vunpack.c.l.bf16 %v1815
    %v2024 = vunpack.c.l.bf16 %v1816
    %v2025 = vunpack.c.l.bf16 %v1817
    %v2026 = vunpack.c.l.bf16 %v1818
    %v2027 = vunpack.c.l.bf16 %v1819
    %v2028 = vunpack.c.l.bf16 %v1820
    %v2029 = vunpack.c.l.bf16 %v1821
    %v2030 = vunpack.c.l.bf16 %v1822
    %v2031 = vunpack.c.l.bf16 %v1823
    %v2032 = vunpack.c.l.bf16 %v1824
    %v2033 = vunpack.c.l.bf16 %v1825
    %v2034 = vunpack.c.l.bf16 %v1826
    %v2035 = vunpack.c.l.bf16 %v1827
    %v2036 = vunpack.c.l.bf16 %v1828
    %v2037 = vunpack.c.l.bf16 %v1829
    %v2038 = vunpack.c.l.bf16 %v1830
    %v2039 = vunpack.c.l.bf16 %v2007
    %v2040 = vunpack.c.l.bf16 %v2008
    %v2041 = vunpack.c.l.bf16 %v2009
    %v2042 = vunpack.c.l.bf16 %v2010
    %v2043 = vunpack.c.l.bf16 %v2011
    %v2044 = vunpack.c.l.bf16 %v2012
    %v2045 = vunpack.c.l.bf16 %v2013
    %v2046 = vunpack.c.l.bf16 %v2014
    %v2047 = vunpack.c.l.bf16 %v2015
    %v2048 = vunpack.c.l.bf16 %v2016
    %v2049 = vunpack.c.l.bf16 %v2017
    %v2050 = vunpack.c.l.bf16 %v2018
    %v2051 = vunpack.c.l.bf16 %v2019
    %v2052 = vunpack.c.l.bf16 %v2020
    %v2053 = vunpack.c.l.bf16 %v2021
    %v2054 = vunpack.c.l.bf16 %v2022
    %v2055 = vadd.f32 %v2023, %v2039
    %v2056 = vadd.f32 %v2024, %v2040
    %v2057 = vadd.f32 %v2025, %v2041
    %v2058 = vadd.f32 %v2026, %v2042
    %v2059 = vadd.f32 %v2027, %v2043
    %v2060 = vadd.f32 %v2028, %v2044
    %v2061 = vadd.f32 %v2029, %v2045
    %v2062 = vadd.f32 %v2030, %v2046
    %v2063 = vadd.f32 %v2031, %v2047
    %v2064 = vadd.f32 %v2032, %v2048
    %v2065 = vadd.f32 %v2033, %v2049
    %v2066 = vadd.f32 %v2034, %v2050
    %v2067 = vadd.f32 %v2035, %v2051
    %v2068 = vadd.f32 %v2036, %v2052
    %v2069 = vadd.f32 %v2037, %v2053
    %v2070 = vadd.f32 %v2038, %v2054
    %v2071 = vpack.c.bf16 %v2055, %v2055
    %v2072 = vpack.c.bf16 %v2056, %v2056
    %v2073 = vpack.c.bf16 %v2057, %v2057
    %v2074 = vpack.c.bf16 %v2058, %v2058
    %v2075 = vpack.c.bf16 %v2059, %v2059
    %v2076 = vpack.c.bf16 %v2060, %v2060
    %v2077 = vpack.c.bf16 %v2061, %v2061
    %v2078 = vpack.c.bf16 %v2062, %v2062
    %v2079 = vpack.c.bf16 %v2063, %v2063
    %v2080 = vpack.c.bf16 %v2064, %v2064
    %v2081 = vpack.c.bf16 %v2065, %v2065
    %v2082 = vpack.c.bf16 %v2066, %v2066
    %v2083 = vpack.c.bf16 %v2067, %v2067
    %v2084 = vpack.c.bf16 %v2068, %v2068
    %v2085 = vpack.c.bf16 %v2069, %v2069
    %v2086 = vpack.c.bf16 %v2070, %v2070
    %v2087 = vld [vmem:[%s589] sm:$0xf]
    %v2088 = vld [vmem:[%s589 + $0x4] sm:$0xf]
    %v2089 = vld [vmem:[%s589 + $0x8] sm:$0xf]
    %v2090 = vld [vmem:[%s589 + $0xc] sm:$0xf]
    %v2091 = vld [vmem:[%s589 + $0x10] sm:$0xf]
    %v2092 = vld [vmem:[%s589 + $0x14] sm:$0xf]
    %v2093 = vld [vmem:[%s589 + $0x18] sm:$0xf]
    %v2094 = vld [vmem:[%s589 + $0x1c] sm:$0xf]
    %v2095 = vld [vmem:[%s589 + $0x20] sm:$0xf]
    %v2096 = vld [vmem:[%s589 + $0x24] sm:$0xf]
    %v2097 = vld [vmem:[%s589 + $0x28] sm:$0xf]
    %v2098 = vld [vmem:[%s589 + $0x2c] sm:$0xf]
    %v2099 = vld [vmem:[%s589 + $0x30] sm:$0xf]
    %v2100 = vld [vmem:[%s589 + $0x34] sm:$0xf]
    %v2101 = vld [vmem:[%s589 + $0x38] sm:$0xf]
    %v2102 = vld [vmem:[%s589 + $0x3c] sm:$0xf]
    %s2103 = sld [smem:[#allocation6 + $0x82]]
    %p2105 = scmp.ne.f32.partialorder %s2103, %s2103
    %s2106 = sshrl.u32 %s2103, 16
    %s2107 = sand.u32 %s2106, 1
    %s2108 = sadd.s32 32767, %s2107
    %s2109 = sadd.s32 %s2103, %s2108
    %s2110 = sand.u32 %s2109, 4294901760
    %s2111 = scalar_select %p2105, 2143289344, %s2110
    %s2113 = sshrl.u32 %s2111, 16
    %s2114 = sshll.u32 %s2113, 16
    %s2115 = sor.u32 %s2113, %s2114
    %v2116 = vstv %s2115
    %v2118 = vunpack.c.l.bf16 %v2087
    %v2119 = vunpack.c.l.bf16 %v2088
    %v2120 = vunpack.c.l.bf16 %v2089
    %v2121 = vunpack.c.l.bf16 %v2090
    %v2122 = vunpack.c.l.bf16 %v2091
    %v2123 = vunpack.c.l.bf16 %v2092
    %v2124 = vunpack.c.l.bf16 %v2093
    %v2125 = vunpack.c.l.bf16 %v2094
    %v2126 = vunpack.c.l.bf16 %v2095
    %v2127 = vunpack.c.l.bf16 %v2096
    %v2128 = vunpack.c.l.bf16 %v2097
    %v2129 = vunpack.c.l.bf16 %v2098
    %v2130 = vunpack.c.l.bf16 %v2099
    %v2131 = vunpack.c.l.bf16 %v2100
    %v2132 = vunpack.c.l.bf16 %v2101
    %v2133 = vunpack.c.l.bf16 %v2102
    %v2134 = vunpack.c.l.bf16 %v2116
    %v2135 = vsub.f32 %v2118, %v2134
    %v2136 = vsub.f32 %v2119, %v2134
    %v2137 = vsub.f32 %v2120, %v2134
    %v2138 = vsub.f32 %v2121, %v2134
    %v2139 = vsub.f32 %v2122, %v2134
    %v2140 = vsub.f32 %v2123, %v2134
    %v2141 = vsub.f32 %v2124, %v2134
    %v2142 = vsub.f32 %v2125, %v2134
    %v2143 = vsub.f32 %v2126, %v2134
    %v2144 = vsub.f32 %v2127, %v2134
    %v2145 = vsub.f32 %v2128, %v2134
    %v2146 = vsub.f32 %v2129, %v2134
    %v2147 = vsub.f32 %v2130, %v2134
    %v2148 = vsub.f32 %v2131, %v2134
    %v2149 = vsub.f32 %v2132, %v2134
    %v2150 = vsub.f32 %v2133, %v2134
    %v2151 = vpack.c.bf16 %v2135, %v2135
    %v2152 = vpack.c.bf16 %v2136, %v2136
    %v2153 = vpack.c.bf16 %v2137, %v2137
    %v2154 = vpack.c.bf16 %v2138, %v2138
    %v2155 = vpack.c.bf16 %v2139, %v2139
    %v2156 = vpack.c.bf16 %v2140, %v2140
    %v2157 = vpack.c.bf16 %v2141, %v2141
    %v2158 = vpack.c.bf16 %v2142, %v2142
    %v2159 = vpack.c.bf16 %v2143, %v2143
    %v2160 = vpack.c.bf16 %v2144, %v2144
    %v2161 = vpack.c.bf16 %v2145, %v2145
    %v2162 = vpack.c.bf16 %v2146, %v2146
    %v2163 = vpack.c.bf16 %v2147, %v2147
    %v2164 = vpack.c.bf16 %v2148, %v2148
    %v2165 = vpack.c.bf16 %v2149, %v2149
    %v2166 = vpack.c.bf16 %v2150, %v2150
    %v2167 = vunpack.c.l.bf16 %v2151
    %v2168 = vunpack.c.l.bf16 %v2152
    %v2169 = vunpack.c.l.bf16 %v2153
    %v2170 = vunpack.c.l.bf16 %v2154
    %v2171 = vunpack.c.l.bf16 %v2155
    %v2172 = vunpack.c.l.bf16 %v2156
    %v2173 = vunpack.c.l.bf16 %v2157
    %v2174 = vunpack.c.l.bf16 %v2158
    %v2175 = vunpack.c.l.bf16 %v2159
    %v2176 = vunpack.c.l.bf16 %v2160
    %v2177 = vunpack.c.l.bf16 %v2161
    %v2178 = vunpack.c.l.bf16 %v2162
    %v2179 = vunpack.c.l.bf16 %v2163
    %v2180 = vunpack.c.l.bf16 %v2164
    %v2181 = vunpack.c.l.bf16 %v2165
    %v2182 = vunpack.c.l.bf16 %v2166
    %v2183 = vmul.f32 %v2167, %v2167
    %v2184 = vmul.f32 %v2168, %v2168
    %v2185 = vmul.f32 %v2169, %v2169
    %v2186 = vmul.f32 %v2170, %v2170
    %v2187 = vmul.f32 %v2171, %v2171
    %v2188 = vmul.f32 %v2172, %v2172
    %v2189 = vmul.f32 %v2173, %v2173
    %v2190 = vmul.f32 %v2174, %v2174
    %v2191 = vmul.f32 %v2175, %v2175
    %v2192 = vmul.f32 %v2176, %v2176
    %v2193 = vmul.f32 %v2177, %v2177
    %v2194 = vmul.f32 %v2178, %v2178
    %v2195 = vmul.f32 %v2179, %v2179
    %v2196 = vmul.f32 %v2180, %v2180
    %v2197 = vmul.f32 %v2181, %v2181
    %v2198 = vmul.f32 %v2182, %v2182
    %v2199 = vpack.c.bf16 %v2183, %v2183
    %v2200 = vpack.c.bf16 %v2184, %v2184
    %v2201 = vpack.c.bf16 %v2185, %v2185
    %v2202 = vpack.c.bf16 %v2186, %v2186
    %v2203 = vpack.c.bf16 %v2187, %v2187
    %v2204 = vpack.c.bf16 %v2188, %v2188
    %v2205 = vpack.c.bf16 %v2189, %v2189
    %v2206 = vpack.c.bf16 %v2190, %v2190
    %v2207 = vpack.c.bf16 %v2191, %v2191
    %v2208 = vpack.c.bf16 %v2192, %v2192
    %v2209 = vpack.c.bf16 %v2193, %v2193
    %v2210 = vpack.c.bf16 %v2194, %v2194
    %v2211 = vpack.c.bf16 %v2195, %v2195
    %v2212 = vpack.c.bf16 %v2196, %v2196
    %v2213 = vpack.c.bf16 %v2197, %v2197
    %v2214 = vpack.c.bf16 %v2198, %v2198
    %s2215 = sld [smem:[#allocation8 + $0x82]]
    %p2217 = scmp.ne.f32.partialorder %s2215, %s2215
    %s2218 = sshrl.u32 %s2215, 16
    %s2219 = sand.u32 %s2218, 1
    %s2220 = sadd.s32 32767, %s2219
    %s2221 = sadd.s32 %s2215, %s2220
    %s2222 = sand.u32 %s2221, 4294901760
    %s2223 = scalar_select %p2217, 2143289344, %s2222
    %s2225 = sshrl.u32 %s2223, 16
    %s2226 = sshll.u32 %s2225, 16
    %s2227 = sor.u32 %s2225, %s2226
    %v2228 = vstv %s2227
    %v2230 = vunpack.c.l.bf16 %v2199
    %v2231 = vunpack.c.l.bf16 %v2200
    %v2232 = vunpack.c.l.bf16 %v2201
    %v2233 = vunpack.c.l.bf16 %v2202
    %v2234 = vunpack.c.l.bf16 %v2203
    %v2235 = vunpack.c.l.bf16 %v2204
    %v2236 = vunpack.c.l.bf16 %v2205
    %v2237 = vunpack.c.l.bf16 %v2206
    %v2238 = vunpack.c.l.bf16 %v2207
    %v2239 = vunpack.c.l.bf16 %v2208
    %v2240 = vunpack.c.l.bf16 %v2209
    %v2241 = vunpack.c.l.bf16 %v2210
    %v2242 = vunpack.c.l.bf16 %v2211
    %v2243 = vunpack.c.l.bf16 %v2212
    %v2244 = vunpack.c.l.bf16 %v2213
    %v2245 = vunpack.c.l.bf16 %v2214
    %v2246 = vunpack.c.l.bf16 %v2228
    %v2247 = vmul.f32 %v2230, %v2246
    %v2248 = vmul.f32 %v2231, %v2246
    %v2249 = vmul.f32 %v2232, %v2246
    %v2250 = vmul.f32 %v2233, %v2246
    %v2251 = vmul.f32 %v2234, %v2246
    %v2252 = vmul.f32 %v2235, %v2246
    %v2253 = vmul.f32 %v2236, %v2246
    %v2254 = vmul.f32 %v2237, %v2246
    %v2255 = vmul.f32 %v2238, %v2246
    %v2256 = vmul.f32 %v2239, %v2246
    %v2257 = vmul.f32 %v2240, %v2246
    %v2258 = vmul.f32 %v2241, %v2246
    %v2259 = vmul.f32 %v2242, %v2246
    %v2260 = vmul.f32 %v2243, %v2246
    %v2261 = vmul.f32 %v2244, %v2246
    %v2262 = vmul.f32 %v2245, %v2246
    %v2263 = vpack.c.bf16 %v2247, %v2247
    %v2264 = vpack.c.bf16 %v2248, %v2248
    %v2265 = vpack.c.bf16 %v2249, %v2249
    %v2266 = vpack.c.bf16 %v2250, %v2250
    %v2267 = vpack.c.bf16 %v2251, %v2251
    %v2268 = vpack.c.bf16 %v2252, %v2252
    %v2269 = vpack.c.bf16 %v2253, %v2253
    %v2270 = vpack.c.bf16 %v2254, %v2254
    %v2271 = vpack.c.bf16 %v2255, %v2255
    %v2272 = vpack.c.bf16 %v2256, %v2256
    %v2273 = vpack.c.bf16 %v2257, %v2257
    %v2274 = vpack.c.bf16 %v2258, %v2258
    %v2275 = vpack.c.bf16 %v2259, %v2259
    %v2276 = vpack.c.bf16 %v2260, %v2260
    %v2277 = vpack.c.bf16 %v2261, %v2261
    %v2278 = vpack.c.bf16 %v2262, %v2262
    %v2279 = vunpack.c.l.bf16 %v2071
    %v2280 = vunpack.c.l.bf16 %v2072
    %v2281 = vunpack.c.l.bf16 %v2073
    %v2282 = vunpack.c.l.bf16 %v2074
    %v2283 = vunpack.c.l.bf16 %v2075
    %v2284 = vunpack.c.l.bf16 %v2076
    %v2285 = vunpack.c.l.bf16 %v2077
    %v2286 = vunpack.c.l.bf16 %v2078
    %v2287 = vunpack.c.l.bf16 %v2079
    %v2288 = vunpack.c.l.bf16 %v2080
    %v2289 = vunpack.c.l.bf16 %v2081
    %v2290 = vunpack.c.l.bf16 %v2082
    %v2291 = vunpack.c.l.bf16 %v2083
    %v2292 = vunpack.c.l.bf16 %v2084
    %v2293 = vunpack.c.l.bf16 %v2085
    %v2294 = vunpack.c.l.bf16 %v2086
    %v2295 = vunpack.c.l.bf16 %v2263
    %v2296 = vunpack.c.l.bf16 %v2264
    %v2297 = vunpack.c.l.bf16 %v2265
    %v2298 = vunpack.c.l.bf16 %v2266
    %v2299 = vunpack.c.l.bf16 %v2267
    %v2300 = vunpack.c.l.bf16 %v2268
    %v2301 = vunpack.c.l.bf16 %v2269
    %v2302 = vunpack.c.l.bf16 %v2270
    %v2303 = vunpack.c.l.bf16 %v2271
    %v2304 = vunpack.c.l.bf16 %v2272
    %v2305 = vunpack.c.l.bf16 %v2273
    %v2306 = vunpack.c.l.bf16 %v2274
    %v2307 = vunpack.c.l.bf16 %v2275
    %v2308 = vunpack.c.l.bf16 %v2276
    %v2309 = vunpack.c.l.bf16 %v2277
    %v2310 = vunpack.c.l.bf16 %v2278
    %v2311 = vadd.f32 %v2279, %v2295
    %v2312 = vadd.f32 %v2280, %v2296
    %v2313 = vadd.f32 %v2281, %v2297
    %v2314 = vadd.f32 %v2282, %v2298
    %v2315 = vadd.f32 %v2283, %v2299
    %v2316 = vadd.f32 %v2284, %v2300
    %v2317 = vadd.f32 %v2285, %v2301
    %v2318 = vadd.f32 %v2286, %v2302
    %v2319 = vadd.f32 %v2287, %v2303
    %v2320 = vadd.f32 %v2288, %v2304
    %v2321 = vadd.f32 %v2289, %v2305
    %v2322 = vadd.f32 %v2290, %v2306
    %v2323 = vadd.f32 %v2291, %v2307
    %v2324 = vadd.f32 %v2292, %v2308
    %v2325 = vadd.f32 %v2293, %v2309
    %v2326 = vadd.f32 %v2294, %v2310
    %v2327 = vpack.c.bf16 %v2311, %v2311
    %v2328 = vpack.c.bf16 %v2312, %v2312
    %v2329 = vpack.c.bf16 %v2313, %v2313
    %v2330 = vpack.c.bf16 %v2314, %v2314
    %v2331 = vpack.c.bf16 %v2315, %v2315
    %v2332 = vpack.c.bf16 %v2316, %v2316
    %v2333 = vpack.c.bf16 %v2317, %v2317
    %v2334 = vpack.c.bf16 %v2318, %v2318
    %v2335 = vpack.c.bf16 %v2319, %v2319
    %v2336 = vpack.c.bf16 %v2320, %v2320
    %v2337 = vpack.c.bf16 %v2321, %v2321
    %v2338 = vpack.c.bf16 %v2322, %v2322
    %v2339 = vpack.c.bf16 %v2323, %v2323
    %v2340 = vpack.c.bf16 %v2324, %v2324
    %v2341 = vpack.c.bf16 %v2325, %v2325
    %v2342 = vpack.c.bf16 %v2326, %v2326
    %v2343 = vunpack.c.l.bf16 %v2327
    %v2344 = vunpack.c.l.bf16 %v2328
    %v2345 = vunpack.c.l.bf16 %v2329
    %v2346 = vunpack.c.l.bf16 %v2330
    %v2347 = vunpack.c.l.bf16 %v2331
    %v2348 = vunpack.c.l.bf16 %v2332
    %v2349 = vunpack.c.l.bf16 %v2333
    %v2350 = vunpack.c.l.bf16 %v2334
    %v2351 = vunpack.c.l.bf16 %v2335
    %v2352 = vunpack.c.l.bf16 %v2336
    %v2353 = vunpack.c.l.bf16 %v2337
    %v2354 = vunpack.c.l.bf16 %v2338
    %v2355 = vunpack.c.l.bf16 %v2339
    %v2356 = vunpack.c.l.bf16 %v2340
    %v2357 = vunpack.c.l.bf16 %v2341
    %v2358 = vunpack.c.l.bf16 %v2342
    %v2359 = vmul.f32 %v2343, 1.442695
    %v2360 = vpow.pop %v2359
    %v2361 = vmul.f32 %v2344, 1.442695
    %v2362 = vpow.pop %v2361
    %v2363 = vmul.f32 %v2345, 1.442695
    %v2364 = vpow.pop %v2363
    %v2365 = vmul.f32 %v2346, 1.442695
    %v2366 = vpow.pop %v2365
    %v2367 = vmul.f32 %v2347, 1.442695
    %v2368 = vpow.pop %v2367
    %v2369 = vmul.f32 %v2348, 1.442695
    %v2370 = vpow.pop %v2369
    %v2371 = vmul.f32 %v2349, 1.442695
    %v2372 = vpow.pop %v2371
    %v2373 = vmul.f32 %v2350, 1.442695
    %v2374 = vpow.pop %v2373
    %v2375 = vmul.f32 %v2351, 1.442695
    %v2376 = vpow.pop %v2375
    %v2377 = vmul.f32 %v2352, 1.442695
    %v2378 = vpow.pop %v2377
    %v2379 = vmul.f32 %v2353, 1.442695
    %v2380 = vpow.pop %v2379
    %v2381 = vmul.f32 %v2354, 1.442695
    %v2382 = vpow.pop %v2381
    %v2383 = vmul.f32 %v2355, 1.442695
    %v2384 = vpow.pop %v2383
    %v2385 = vmul.f32 %v2356, 1.442695
    %v2386 = vpow.pop %v2385
    %v2387 = vmul.f32 %v2357, 1.442695
    %v2388 = vpow.pop %v2387
    %v2389 = vmul.f32 %v2358, 1.442695
    %v2390 = vpow.pop %v2389
    %v2391 = vpack.c.bf16 %v2360, %v2360
    %v2392 = vpack.c.bf16 %v2362, %v2362
    %v2393 = vpack.c.bf16 %v2364, %v2364
    %v2394 = vpack.c.bf16 %v2366, %v2366
    %v2395 = vpack.c.bf16 %v2368, %v2368
    %v2396 = vpack.c.bf16 %v2370, %v2370
    %v2397 = vpack.c.bf16 %v2372, %v2372
    %v2398 = vpack.c.bf16 %v2374, %v2374
    %v2399 = vpack.c.bf16 %v2376, %v2376
    %v2400 = vpack.c.bf16 %v2378, %v2378
    %v2401 = vpack.c.bf16 %v2380, %v2380
    %v2402 = vpack.c.bf16 %v2382, %v2382
    %v2403 = vpack.c.bf16 %v2384, %v2384
    %v2404 = vpack.c.bf16 %v2386, %v2386
    %v2405 = vpack.c.bf16 %v2388, %v2388
    %v2406 = vpack.c.bf16 %v2390, %v2390
    %v2407 = vunpack.c.l.bf16 %v2391
    %v2408 = vunpack.c.l.bf16 %v2392
    %v2409 = vunpack.c.l.bf16 %v2393
    %v2410 = vunpack.c.l.bf16 %v2394
    %v2411 = vunpack.c.l.bf16 %v2395
    %v2412 = vunpack.c.l.bf16 %v2396
    %v2413 = vunpack.c.l.bf16 %v2397
    %v2414 = vunpack.c.l.bf16 %v2398
    %v2415 = vunpack.c.l.bf16 %v2399
    %v2416 = vunpack.c.l.bf16 %v2400
    %v2417 = vunpack.c.l.bf16 %v2401
    %v2418 = vunpack.c.l.bf16 %v2402
    %v2419 = vunpack.c.l.bf16 %v2403
    %v2420 = vunpack.c.l.bf16 %v2404
    %v2421 = vunpack.c.l.bf16 %v2405
    %v2422 = vunpack.c.l.bf16 %v2406
    %v2423 = vmul.f32 %v1447, %v2407
    %v2424 = vmul.f32 %v1448, %v2408
    %v2425 = vmul.f32 %v1449, %v2409
    %v2426 = vmul.f32 %v1450, %v2410
    %v2427 = vmul.f32 %v1451, %v2411
    %v2428 = vmul.f32 %v1452, %v2412
    %v2429 = vmul.f32 %v1453, %v2413
    %v2430 = vmul.f32 %v1454, %v2414
    %v2431 = vmul.f32 %v1455, %v2415
    %v2432 = vmul.f32 %v1456, %v2416
    %v2433 = vmul.f32 %v1457, %v2417
    %v2434 = vmul.f32 %v1458, %v2418
    %v2435 = vmul.f32 %v1459, %v2419
    %v2436 = vmul.f32 %v1460, %v2420
    %v2437 = vmul.f32 %v1461, %v2421
    %v2438 = vmul.f32 %v1462, %v2422
    %v2439 = vpack.c.bf16 %v2423, %v2423
    %v2440 = vpack.c.bf16 %v2424, %v2424
    %v2441 = vpack.c.bf16 %v2425, %v2425
    %v2442 = vpack.c.bf16 %v2426, %v2426
    %v2443 = vpack.c.bf16 %v2427, %v2427
    %v2444 = vpack.c.bf16 %v2428, %v2428
    %v2445 = vpack.c.bf16 %v2429, %v2429
    %v2446 = vpack.c.bf16 %v2430, %v2430
    %v2447 = vpack.c.bf16 %v2431, %v2431
    %v2448 = vpack.c.bf16 %v2432, %v2432
    %v2449 = vpack.c.bf16 %v2433, %v2433
    %v2450 = vpack.c.bf16 %v2434, %v2434
    %v2451 = vpack.c.bf16 %v2435, %v2435
    %v2452 = vpack.c.bf16 %v2436, %v2436
    %v2453 = vpack.c.bf16 %v2437, %v2437
    %v2454 = vpack.c.bf16 %v2438, %v2438
    %2455 = vst [vmem:[#allocation3 + $0x4] sm:$0xf] %v2439
    %2456 = vst [vmem:[#allocation3 + $0x10] sm:$0xf] %v2440
    %2457 = vst [vmem:[#allocation3 + $0x1c] sm:$0xf] %v2441
    %2458 = vst [vmem:[#allocation3 + $0x28] sm:$0xf] %v2442
    %2459 = vst [vmem:[#allocation3 + $0x34] sm:$0xf] %v2443
    %2460 = vst [vmem:[#allocation3 + $0x40] sm:$0xf] %v2444
    %2461 = vst [vmem:[#allocation3 + $0x4c] sm:$0xf] %v2445
    %2462 = vst [vmem:[#allocation3 + $0x58] sm:$0xf] %v2446
    %2463 = vst [vmem:[#allocation3 + $0x64] sm:$0xf] %v2447
    %2464 = vst [vmem:[#allocation3 + $0x70] sm:$0xf] %v2448
    %2465 = vst [vmem:[#allocation3 + $0x7c] sm:$0xf] %v2449
    %2466 = vst [vmem:[#allocation3 + $0x88] sm:$0xf] %v2450
    %2467 = vst [vmem:[#allocation3 + $0x94] sm:$0xf] %v2451
    %2468 = vst [vmem:[#allocation3 + $0xa0] sm:$0xf] %v2452
    %2469 = vst [vmem:[#allocation3 + $0xac] sm:$0xf] %v2453
    %2470 = vst [vmem:[#allocation3 + $0xb8] sm:$0xf] %v2454
    %s2471 = scalar_lea.vmem %s7, 1
    %v2472 = vld [vmem:[%s2471] sm:$0x1]
    %v2474 = vsel %vm1553, %v2472, 0
    %2476 = vmatpush.bf16.msra.mxu0 0
    %2477 = vmatpush.bf16.msra.mxu0 0
    %2478 = vmatpush.bf16.msra.mxu0 0
    %2479 = vmatpush.bf16.msra.mxu0 0
    %2480 = vmatpush.bf16.msra.mxu0 0
    %2481 = vmatpush.bf16.msra.mxu0 0
    %2482 = vmatpush.bf16.msra.mxu0 0
    %2483 = vmatpush.bf16.msra.mxu0 %v2474
    %2484 = vmatmul.bf16.gmra.mxu0 %v1530
    %v2485 = vpop.f32.mrf.mxu0
    %v2486 = vadd.f32 0.0, %v2485
    %v2487 = vpop.f32.mrf.mxu0
    %v2488 = vadd.f32 0.0, %v2487
    %2489 = vmatmul.bf16.gmra.mxu0 %v1533
    %v2490 = vpop.f32.mrf.mxu0
    %v2491 = vadd.f32 0.0, %v2490
    %v2492 = vpop.f32.mrf.mxu0
    %v2493 = vadd.f32 0.0, %v2492
    %2494 = vmatmul.bf16.gmra.mxu0 %v1536
    %v2495 = vpop.f32.mrf.mxu0
    %v2496 = vadd.f32 0.0, %v2495
    %v2497 = vpop.f32.mrf.mxu0
    %v2498 = vadd.f32 0.0, %v2497
    %2499 = vmatmul.bf16.gmra.mxu0 %v1539
    %v2500 = vpop.f32.mrf.mxu0
    %v2501 = vadd.f32 0.0, %v2500
    %v2502 = vpop.f32.mrf.mxu0
    %v2503 = vadd.f32 0.0, %v2502
    %2504 = vmatmul.bf16.gmra.mxu0 %v1542
    %v2505 = vpop.f32.mrf.mxu0
    %v2506 = vadd.f32 0.0, %v2505
    %v2507 = vpop.f32.mrf.mxu0
    %v2508 = vadd.f32 0.0, %v2507
    %2509 = vmatmul.bf16.gmra.mxu0 %v1545
    %v2510 = vpop.f32.mrf.mxu0
    %v2511 = vadd.f32 0.0, %v2510
    %v2512 = vpop.f32.mrf.mxu0
    %v2513 = vadd.f32 0.0, %v2512
    %2514 = vmatmul.bf16.gmra.mxu0 %v1548
    %v2515 = vpop.f32.mrf.mxu0
    %v2516 = vadd.f32 0.0, %v2515
    %v2517 = vpop.f32.mrf.mxu0
    %v2518 = vadd.f32 0.0, %v2517
    %2519 = vmatmul.bf16.gmra.mxu0 %v1551
    %v2520 = vpop.f32.mrf.mxu0
    %v2521 = vadd.f32 0.0, %v2520
    %v2522 = vpop.f32.mrf.mxu0
    %v2523 = vadd.f32 0.0, %v2522
    %2524 = vdwg.mxu0
    %v2525 = vpack.c.bf16 %v2486, %v2486
    %v2526 = vpack.c.bf16 %v2488, %v2488
    %v2527 = vpack.c.bf16 %v2491, %v2491
    %v2528 = vpack.c.bf16 %v2493, %v2493
    %v2529 = vpack.c.bf16 %v2496, %v2496
    %v2530 = vpack.c.bf16 %v2498, %v2498
    %v2531 = vpack.c.bf16 %v2501, %v2501
    %v2532 = vpack.c.bf16 %v2503, %v2503
    %v2533 = vpack.c.bf16 %v2506, %v2506
    %v2534 = vpack.c.bf16 %v2508, %v2508
    %v2535 = vpack.c.bf16 %v2511, %v2511
    %v2536 = vpack.c.bf16 %v2513, %v2513
    %v2537 = vpack.c.bf16 %v2516, %v2516
    %v2538 = vpack.c.bf16 %v2518, %v2518
    %v2539 = vpack.c.bf16 %v2521, %v2521
    %v2540 = vpack.c.bf16 %v2523, %v2523
    %2541 = vst.msk [vmem:[#allocation4 + $0x40] sm:$0xf] %vm1622, %v2525
    %2542 = vst.msk [vmem:[#allocation4 + $0x44] sm:$0xf] %vm1622, %v2526
    %2543 = vst.msk [vmem:[#allocation4 + $0x48] sm:$0xf] %vm1622, %v2527
    %2544 = vst.msk [vmem:[#allocation4 + $0x4c] sm:$0xf] %vm1622, %v2528
    %2545 = vst.msk [vmem:[#allocation4 + $0x50] sm:$0xf] %vm1622, %v2529
    %2546 = vst.msk [vmem:[#allocation4 + $0x54] sm:$0xf] %vm1622, %v2530
    %2547 = vst.msk [vmem:[#allocation4 + $0x58] sm:$0xf] %vm1622, %v2531
    %2548 = vst.msk [vmem:[#allocation4 + $0x5c] sm:$0xf] %vm1622, %v2532
    %2549 = vst.msk [vmem:[#allocation4 + $0x60] sm:$0xf] %vm1622, %v2533
    %2550 = vst.msk [vmem:[#allocation4 + $0x64] sm:$0xf] %vm1622, %v2534
    %2551 = vst.msk [vmem:[#allocation4 + $0x68] sm:$0xf] %vm1622, %v2535
    %2552 = vst.msk [vmem:[#allocation4 + $0x6c] sm:$0xf] %vm1622, %v2536
    %2553 = vst.msk [vmem:[#allocation4 + $0x70] sm:$0xf] %vm1622, %v2537
    %2554 = vst.msk [vmem:[#allocation4 + $0x74] sm:$0xf] %vm1622, %v2538
    %2555 = vst.msk [vmem:[#allocation4 + $0x78] sm:$0xf] %vm1622, %v2539
    %2556 = vst.msk [vmem:[#allocation4 + $0x7c] sm:$0xf] %vm1622, %v2540
    %v2557 = vld [vmem:[#allocation2] sm:$0xf]
    %v2558 = vld [vmem:[#allocation2 + $0x4] sm:$0xf]
    %v2559 = vld [vmem:[#allocation2 + $0x8] sm:$0xf]
    %v2560 = vld [vmem:[#allocation2 + $0xc] sm:$0xf]
    %v2561 = vld [vmem:[#allocation2 + $0x10] sm:$0xf]
    %v2562 = vld [vmem:[#allocation2 + $0x14] sm:$0xf]
    %v2563 = vld [vmem:[#allocation2 + $0x18] sm:$0xf]
    %v2564 = vld [vmem:[#allocation2 + $0x1c] sm:$0xf]
    %v2565 = vld [vmem:[#allocation2 + $0x20] sm:$0xf]
    %v2566 = vld [vmem:[#allocation2 + $0x24] sm:$0xf]
    %v2567 = vld [vmem:[#allocation2 + $0x28] sm:$0xf]
    %v2568 = vld [vmem:[#allocation2 + $0x2c] sm:$0xf]
    %v2569 = vld [vmem:[#allocation2 + $0x30] sm:$0xf]
    %v2570 = vld [vmem:[#allocation2 + $0x34] sm:$0xf]
    %v2571 = vld [vmem:[#allocation2 + $0x38] sm:$0xf]
    %v2572 = vld [vmem:[#allocation2 + $0x3c] sm:$0xf]
    %s2573 = sld [smem:[#allocation6 + $0x100]]
    %p2575 = scmp.ne.f32.partialorder %s2573, %s2573
    %s2576 = sshrl.u32 %s2573, 16
    %s2577 = sand.u32 %s2576, 1
    %s2578 = sadd.s32 32767, %s2577
    %s2579 = sadd.s32 %s2573, %s2578
    %s2580 = sand.u32 %s2579, 4294901760
    %s2581 = scalar_select %p2575, 2143289344, %s2580
    %s2583 = sshrl.u32 %s2581, 16
    %s2584 = sshll.u32 %s2583, 16
    %s2585 = sor.u32 %s2583, %s2584
    %v2586 = vstv %s2585
    %v2588 = vunpack.c.l.bf16 %v2557
    %v2589 = vunpack.c.l.bf16 %v2558
    %v2590 = vunpack.c.l.bf16 %v2559
    %v2591 = vunpack.c.l.bf16 %v2560
    %v2592 = vunpack.c.l.bf16 %v2561
    %v2593 = vunpack.c.l.bf16 %v2562
    %v2594 = vunpack.c.l.bf16 %v2563
    %v2595 = vunpack.c.l.bf16 %v2564
    %v2596 = vunpack.c.l.bf16 %v2565
    %v2597 = vunpack.c.l.bf16 %v2566
    %v2598 = vunpack.c.l.bf16 %v2567
    %v2599 = vunpack.c.l.bf16 %v2568
    %v2600 = vunpack.c.l.bf16 %v2569
    %v2601 = vunpack.c.l.bf16 %v2570
    %v2602 = vunpack.c.l.bf16 %v2571
    %v2603 = vunpack.c.l.bf16 %v2572
    %v2604 = vunpack.c.l.bf16 %v2586
    %v2605 = vsub.f32 %v2588, %v2604
    %v2606 = vsub.f32 %v2589, %v2604
    %v2607 = vsub.f32 %v2590, %v2604
    %v2608 = vsub.f32 %v2591, %v2604
    %v2609 = vsub.f32 %v2592, %v2604
    %v2610 = vsub.f32 %v2593, %v2604
    %v2611 = vsub.f32 %v2594, %v2604
    %v2612 = vsub.f32 %v2595, %v2604
    %v2613 = vsub.f32 %v2596, %v2604
    %v2614 = vsub.f32 %v2597, %v2604
    %v2615 = vsub.f32 %v2598, %v2604
    %v2616 = vsub.f32 %v2599, %v2604
    %v2617 = vsub.f32 %v2600, %v2604
    %v2618 = vsub.f32 %v2601, %v2604
    %v2619 = vsub.f32 %v2602, %v2604
    %v2620 = vsub.f32 %v2603, %v2604
    %v2621 = vpack.c.bf16 %v2605, %v2605
    %v2622 = vpack.c.bf16 %v2606, %v2606
    %v2623 = vpack.c.bf16 %v2607, %v2607
    %v2624 = vpack.c.bf16 %v2608, %v2608
    %v2625 = vpack.c.bf16 %v2609, %v2609
    %v2626 = vpack.c.bf16 %v2610, %v2610
    %v2627 = vpack.c.bf16 %v2611, %v2611
    %v2628 = vpack.c.bf16 %v2612, %v2612
    %v2629 = vpack.c.bf16 %v2613, %v2613
    %v2630 = vpack.c.bf16 %v2614, %v2614
    %v2631 = vpack.c.bf16 %v2615, %v2615
    %v2632 = vpack.c.bf16 %v2616, %v2616
    %v2633 = vpack.c.bf16 %v2617, %v2617
    %v2634 = vpack.c.bf16 %v2618, %v2618
    %v2635 = vpack.c.bf16 %v2619, %v2619
    %v2636 = vpack.c.bf16 %v2620, %v2620
    %v2637 = vunpack.c.l.bf16 %v2621
    %v2638 = vunpack.c.l.bf16 %v2622
    %v2639 = vunpack.c.l.bf16 %v2623
    %v2640 = vunpack.c.l.bf16 %v2624
    %v2641 = vunpack.c.l.bf16 %v2625
    %v2642 = vunpack.c.l.bf16 %v2626
    %v2643 = vunpack.c.l.bf16 %v2627
    %v2644 = vunpack.c.l.bf16 %v2628
    %v2645 = vunpack.c.l.bf16 %v2629
    %v2646 = vunpack.c.l.bf16 %v2630
    %v2647 = vunpack.c.l.bf16 %v2631
    %v2648 = vunpack.c.l.bf16 %v2632
    %v2649 = vunpack.c.l.bf16 %v2633
    %v2650 = vunpack.c.l.bf16 %v2634
    %v2651 = vunpack.c.l.bf16 %v2635
    %v2652 = vunpack.c.l.bf16 %v2636
    %v2653 = vmul.f32 %v2637, %v2637
    %v2654 = vmul.f32 %v2638, %v2638
    %v2655 = vmul.f32 %v2639, %v2639
    %v2656 = vmul.f32 %v2640, %v2640
    %v2657 = vmul.f32 %v2641, %v2641
    %v2658 = vmul.f32 %v2642, %v2642
    %v2659 = vmul.f32 %v2643, %v2643
    %v2660 = vmul.f32 %v2644, %v2644
    %v2661 = vmul.f32 %v2645, %v2645
    %v2662 = vmul.f32 %v2646, %v2646
    %v2663 = vmul.f32 %v2647, %v2647
    %v2664 = vmul.f32 %v2648, %v2648
    %v2665 = vmul.f32 %v2649, %v2649
    %v2666 = vmul.f32 %v2650, %v2650
    %v2667 = vmul.f32 %v2651, %v2651
    %v2668 = vmul.f32 %v2652, %v2652
    %v2669 = vpack.c.bf16 %v2653, %v2653
    %v2670 = vpack.c.bf16 %v2654, %v2654
    %v2671 = vpack.c.bf16 %v2655, %v2655
    %v2672 = vpack.c.bf16 %v2656, %v2656
    %v2673 = vpack.c.bf16 %v2657, %v2657
    %v2674 = vpack.c.bf16 %v2658, %v2658
    %v2675 = vpack.c.bf16 %v2659, %v2659
    %v2676 = vpack.c.bf16 %v2660, %v2660
    %v2677 = vpack.c.bf16 %v2661, %v2661
    %v2678 = vpack.c.bf16 %v2662, %v2662
    %v2679 = vpack.c.bf16 %v2663, %v2663
    %v2680 = vpack.c.bf16 %v2664, %v2664
    %v2681 = vpack.c.bf16 %v2665, %v2665
    %v2682 = vpack.c.bf16 %v2666, %v2666
    %v2683 = vpack.c.bf16 %v2667, %v2667
    %v2684 = vpack.c.bf16 %v2668, %v2668
    %s2685 = sld [smem:[#allocation8 + $0x100]]
    %p2687 = scmp.ne.f32.partialorder %s2685, %s2685
    %s2688 = sshrl.u32 %s2685, 16
    %s2689 = sand.u32 %s2688, 1
    %s2690 = sadd.s32 32767, %s2689
    %s2691 = sadd.s32 %s2685, %s2690
    %s2692 = sand.u32 %s2691, 4294901760
    %s2693 = scalar_select %p2687, 2143289344, %s2692
    %s2695 = sshrl.u32 %s2693, 16
    %s2696 = sshll.u32 %s2695, 16
    %s2697 = sor.u32 %s2695, %s2696
    %v2698 = vstv %s2697
    %v2700 = vunpack.c.l.bf16 %v2669
    %v2701 = vunpack.c.l.bf16 %v2670
    %v2702 = vunpack.c.l.bf16 %v2671
    %v2703 = vunpack.c.l.bf16 %v2672
    %v2704 = vunpack.c.l.bf16 %v2673
    %v2705 = vunpack.c.l.bf16 %v2674
    %v2706 = vunpack.c.l.bf16 %v2675
    %v2707 = vunpack.c.l.bf16 %v2676
    %v2708 = vunpack.c.l.bf16 %v2677
    %v2709 = vunpack.c.l.bf16 %v2678
    %v2710 = vunpack.c.l.bf16 %v2679
    %v2711 = vunpack.c.l.bf16 %v2680
    %v2712 = vunpack.c.l.bf16 %v2681
    %v2713 = vunpack.c.l.bf16 %v2682
    %v2714 = vunpack.c.l.bf16 %v2683
    %v2715 = vunpack.c.l.bf16 %v2684
    %v2716 = vunpack.c.l.bf16 %v2698
    %v2717 = vmul.f32 %v2700, %v2716
    %v2718 = vmul.f32 %v2701, %v2716
    %v2719 = vmul.f32 %v2702, %v2716
    %v2720 = vmul.f32 %v2703, %v2716
    %v2721 = vmul.f32 %v2704, %v2716
    %v2722 = vmul.f32 %v2705, %v2716
    %v2723 = vmul.f32 %v2706, %v2716
    %v2724 = vmul.f32 %v2707, %v2716
    %v2725 = vmul.f32 %v2708, %v2716
    %v2726 = vmul.f32 %v2709, %v2716
    %v2727 = vmul.f32 %v2710, %v2716
    %v2728 = vmul.f32 %v2711, %v2716
    %v2729 = vmul.f32 %v2712, %v2716
    %v2730 = vmul.f32 %v2713, %v2716
    %v2731 = vmul.f32 %v2714, %v2716
    %v2732 = vmul.f32 %v2715, %v2716
    %v2733 = vpack.c.bf16 %v2717, %v2717
    %v2734 = vpack.c.bf16 %v2718, %v2718
    %v2735 = vpack.c.bf16 %v2719, %v2719
    %v2736 = vpack.c.bf16 %v2720, %v2720
    %v2737 = vpack.c.bf16 %v2721, %v2721
    %v2738 = vpack.c.bf16 %v2722, %v2722
    %v2739 = vpack.c.bf16 %v2723, %v2723
    %v2740 = vpack.c.bf16 %v2724, %v2724
    %v2741 = vpack.c.bf16 %v2725, %v2725
    %v2742 = vpack.c.bf16 %v2726, %v2726
    %v2743 = vpack.c.bf16 %v2727, %v2727
    %v2744 = vpack.c.bf16 %v2728, %v2728
    %v2745 = vpack.c.bf16 %v2729, %v2729
    %v2746 = vpack.c.bf16 %v2730, %v2730
    %v2747 = vpack.c.bf16 %v2731, %v2731
    %v2748 = vpack.c.bf16 %v2732, %v2732
    %v2749 = vld [vmem:[%s426] sm:$0xf]
    %v2750 = vld [vmem:[%s426 + $0x4] sm:$0xf]
    %v2751 = vld [vmem:[%s426 + $0x8] sm:$0xf]
    %v2752 = vld [vmem:[%s426 + $0xc] sm:$0xf]
    %v2753 = vld [vmem:[%s426 + $0x10] sm:$0xf]
    %v2754 = vld [vmem:[%s426 + $0x14] sm:$0xf]
    %v2755 = vld [vmem:[%s426 + $0x18] sm:$0xf]
    %v2756 = vld [vmem:[%s426 + $0x1c] sm:$0xf]
    %v2757 = vld [vmem:[%s426 + $0x20] sm:$0xf]
    %v2758 = vld [vmem:[%s426 + $0x24] sm:$0xf]
    %v2759 = vld [vmem:[%s426 + $0x28] sm:$0xf]
    %v2760 = vld [vmem:[%s426 + $0x2c] sm:$0xf]
    %v2761 = vld [vmem:[%s426 + $0x30] sm:$0xf]
    %v2762 = vld [vmem:[%s426 + $0x34] sm:$0xf]
    %v2763 = vld [vmem:[%s426 + $0x38] sm:$0xf]
    %v2764 = vld [vmem:[%s426 + $0x3c] sm:$0xf]
    %s2765 = sld [smem:[#allocation6 + $0x101]]
    %p2767 = scmp.ne.f32.partialorder %s2765, %s2765
    %s2768 = sshrl.u32 %s2765, 16
    %s2769 = sand.u32 %s2768, 1
    %s2770 = sadd.s32 32767, %s2769
    %s2771 = sadd.s32 %s2765, %s2770
    %s2772 = sand.u32 %s2771, 4294901760
    %s2773 = scalar_select %p2767, 2143289344, %s2772
    %s2775 = sshrl.u32 %s2773, 16
    %s2776 = sshll.u32 %s2775, 16
    %s2777 = sor.u32 %s2775, %s2776
    %v2778 = vstv %s2777
    %v2780 = vunpack.c.l.bf16 %v2749
    %v2781 = vunpack.c.l.bf16 %v2750
    %v2782 = vunpack.c.l.bf16 %v2751
    %v2783 = vunpack.c.l.bf16 %v2752
    %v2784 = vunpack.c.l.bf16 %v2753
    %v2785 = vunpack.c.l.bf16 %v2754
    %v2786 = vunpack.c.l.bf16 %v2755
    %v2787 = vunpack.c.l.bf16 %v2756
    %v2788 = vunpack.c.l.bf16 %v2757
    %v2789 = vunpack.c.l.bf16 %v2758
    %v2790 = vunpack.c.l.bf16 %v2759
    %v2791 = vunpack.c.l.bf16 %v2760
    %v2792 = vunpack.c.l.bf16 %v2761
    %v2793 = vunpack.c.l.bf16 %v2762
    %v2794 = vunpack.c.l.bf16 %v2763
    %v2795 = vunpack.c.l.bf16 %v2764
    %v2796 = vunpack.c.l.bf16 %v2778
    %v2797 = vsub.f32 %v2780, %v2796
    %v2798 = vsub.f32 %v2781, %v2796
    %v2799 = vsub.f32 %v2782, %v2796
    %v2800 = vsub.f32 %v2783, %v2796
    %v2801 = vsub.f32 %v2784, %v2796
    %v2802 = vsub.f32 %v2785, %v2796
    %v2803 = vsub.f32 %v2786, %v2796
    %v2804 = vsub.f32 %v2787, %v2796
    %v2805 = vsub.f32 %v2788, %v2796
    %v2806 = vsub.f32 %v2789, %v2796
    %v2807 = vsub.f32 %v2790, %v2796
    %v2808 = vsub.f32 %v2791, %v2796
    %v2809 = vsub.f32 %v2792, %v2796
    %v2810 = vsub.f32 %v2793, %v2796
    %v2811 = vsub.f32 %v2794, %v2796
    %v2812 = vsub.f32 %v2795, %v2796
    %v2813 = vpack.c.bf16 %v2797, %v2797
    %v2814 = vpack.c.bf16 %v2798, %v2798
    %v2815 = vpack.c.bf16 %v2799, %v2799
    %v2816 = vpack.c.bf16 %v2800, %v2800
    %v2817 = vpack.c.bf16 %v2801, %v2801
    %v2818 = vpack.c.bf16 %v2802, %v2802
    %v2819 = vpack.c.bf16 %v2803, %v2803
    %v2820 = vpack.c.bf16 %v2804, %v2804
    %v2821 = vpack.c.bf16 %v2805, %v2805
    %v2822 = vpack.c.bf16 %v2806, %v2806
    %v2823 = vpack.c.bf16 %v2807, %v2807
    %v2824 = vpack.c.bf16 %v2808, %v2808
    %v2825 = vpack.c.bf16 %v2809, %v2809
    %v2826 = vpack.c.bf16 %v2810, %v2810
    %v2827 = vpack.c.bf16 %v2811, %v2811
    %v2828 = vpack.c.bf16 %v2812, %v2812
    %v2829 = vunpack.c.l.bf16 %v2813
    %v2830 = vunpack.c.l.bf16 %v2814
    %v2831 = vunpack.c.l.bf16 %v2815
    %v2832 = vunpack.c.l.bf16 %v2816
    %v2833 = vunpack.c.l.bf16 %v2817
    %v2834 = vunpack.c.l.bf16 %v2818
    %v2835 = vunpack.c.l.bf16 %v2819
    %v2836 = vunpack.c.l.bf16 %v2820
    %v2837 = vunpack.c.l.bf16 %v2821
    %v2838 = vunpack.c.l.bf16 %v2822
    %v2839 = vunpack.c.l.bf16 %v2823
    %v2840 = vunpack.c.l.bf16 %v2824
    %v2841 = vunpack.c.l.bf16 %v2825
    %v2842 = vunpack.c.l.bf16 %v2826
    %v2843 = vunpack.c.l.bf16 %v2827
    %v2844 = vunpack.c.l.bf16 %v2828
    %v2845 = vmul.f32 %v2829, %v2829
    %v2846 = vmul.f32 %v2830, %v2830
    %v2847 = vmul.f32 %v2831, %v2831
    %v2848 = vmul.f32 %v2832, %v2832
    %v2849 = vmul.f32 %v2833, %v2833
    %v2850 = vmul.f32 %v2834, %v2834
    %v2851 = vmul.f32 %v2835, %v2835
    %v2852 = vmul.f32 %v2836, %v2836
    %v2853 = vmul.f32 %v2837, %v2837
    %v2854 = vmul.f32 %v2838, %v2838
    %v2855 = vmul.f32 %v2839, %v2839
    %v2856 = vmul.f32 %v2840, %v2840
    %v2857 = vmul.f32 %v2841, %v2841
    %v2858 = vmul.f32 %v2842, %v2842
    %v2859 = vmul.f32 %v2843, %v2843
    %v2860 = vmul.f32 %v2844, %v2844
    %v2861 = vpack.c.bf16 %v2845, %v2845
    %v2862 = vpack.c.bf16 %v2846, %v2846
    %v2863 = vpack.c.bf16 %v2847, %v2847
    %v2864 = vpack.c.bf16 %v2848, %v2848
    %v2865 = vpack.c.bf16 %v2849, %v2849
    %v2866 = vpack.c.bf16 %v2850, %v2850
    %v2867 = vpack.c.bf16 %v2851, %v2851
    %v2868 = vpack.c.bf16 %v2852, %v2852
    %v2869 = vpack.c.bf16 %v2853, %v2853
    %v2870 = vpack.c.bf16 %v2854, %v2854
    %v2871 = vpack.c.bf16 %v2855, %v2855
    %v2872 = vpack.c.bf16 %v2856, %v2856
    %v2873 = vpack.c.bf16 %v2857, %v2857
    %v2874 = vpack.c.bf16 %v2858, %v2858
    %v2875 = vpack.c.bf16 %v2859, %v2859
    %v2876 = vpack.c.bf16 %v2860, %v2860
    %s2877 = sld [smem:[#allocation8 + $0x101]]
    %p2879 = scmp.ne.f32.partialorder %s2877, %s2877
    %s2880 = sshrl.u32 %s2877, 16
    %s2881 = sand.u32 %s2880, 1
    %s2882 = sadd.s32 32767, %s2881
    %s2883 = sadd.s32 %s2877, %s2882
    %s2884 = sand.u32 %s2883, 4294901760
    %s2885 = scalar_select %p2879, 2143289344, %s2884
    %s2887 = sshrl.u32 %s2885, 16
    %s2888 = sshll.u32 %s2887, 16
    %s2889 = sor.u32 %s2887, %s2888
    %v2890 = vstv %s2889
    %v2892 = vunpack.c.l.bf16 %v2861
    %v2893 = vunpack.c.l.bf16 %v2862
    %v2894 = vunpack.c.l.bf16 %v2863
    %v2895 = vunpack.c.l.bf16 %v2864
    %v2896 = vunpack.c.l.bf16 %v2865
    %v2897 = vunpack.c.l.bf16 %v2866
    %v2898 = vunpack.c.l.bf16 %v2867
    %v2899 = vunpack.c.l.bf16 %v2868
    %v2900 = vunpack.c.l.bf16 %v2869
    %v2901 = vunpack.c.l.bf16 %v2870
    %v2902 = vunpack.c.l.bf16 %v2871
    %v2903 = vunpack.c.l.bf16 %v2872
    %v2904 = vunpack.c.l.bf16 %v2873
    %v2905 = vunpack.c.l.bf16 %v2874
    %v2906 = vunpack.c.l.bf16 %v2875
    %v2907 = vunpack.c.l.bf16 %v2876
    %v2908 = vunpack.c.l.bf16 %v2890
    %v2909 = vmul.f32 %v2892, %v2908
    %v2910 = vmul.f32 %v2893, %v2908
    %v2911 = vmul.f32 %v2894, %v2908
    %v2912 = vmul.f32 %v2895, %v2908
    %v2913 = vmul.f32 %v2896, %v2908
    %v2914 = vmul.f32 %v2897, %v2908
    %v2915 = vmul.f32 %v2898, %v2908
    %v2916 = vmul.f32 %v2899, %v2908
    %v2917 = vmul.f32 %v2900, %v2908
    %v2918 = vmul.f32 %v2901, %v2908
    %v2919 = vmul.f32 %v2902, %v2908
    %v2920 = vmul.f32 %v2903, %v2908
    %v2921 = vmul.f32 %v2904, %v2908
    %v2922 = vmul.f32 %v2905, %v2908
    %v2923 = vmul.f32 %v2906, %v2908
    %v2924 = vmul.f32 %v2907, %v2908
    %v2925 = vpack.c.bf16 %v2909, %v2909
    %v2926 = vpack.c.bf16 %v2910, %v2910
    %v2927 = vpack.c.bf16 %v2911, %v2911
    %v2928 = vpack.c.bf16 %v2912, %v2912
    %v2929 = vpack.c.bf16 %v2913, %v2913
    %v2930 = vpack.c.bf16 %v2914, %v2914
    %v2931 = vpack.c.bf16 %v2915, %v2915
    %v2932 = vpack.c.bf16 %v2916, %v2916
    %v2933 = vpack.c.bf16 %v2917, %v2917
    %v2934 = vpack.c.bf16 %v2918, %v2918
    %v2935 = vpack.c.bf16 %v2919, %v2919
    %v2936 = vpack.c.bf16 %v2920, %v2920
    %v2937 = vpack.c.bf16 %v2921, %v2921
    %v2938 = vpack.c.bf16 %v2922, %v2922
    %v2939 = vpack.c.bf16 %v2923, %v2923
    %v2940 = vpack.c.bf16 %v2924, %v2924
    %v2941 = vunpack.c.l.bf16 %v2733
    %v2942 = vunpack.c.l.bf16 %v2734
    %v2943 = vunpack.c.l.bf16 %v2735
    %v2944 = vunpack.c.l.bf16 %v2736
    %v2945 = vunpack.c.l.bf16 %v2737
    %v2946 = vunpack.c.l.bf16 %v2738
    %v2947 = vunpack.c.l.bf16 %v2739
    %v2948 = vunpack.c.l.bf16 %v2740
    %v2949 = vunpack.c.l.bf16 %v2741
    %v2950 = vunpack.c.l.bf16 %v2742
    %v2951 = vunpack.c.l.bf16 %v2743
    %v2952 = vunpack.c.l.bf16 %v2744
    %v2953 = vunpack.c.l.bf16 %v2745
    %v2954 = vunpack.c.l.bf16 %v2746
    %v2955 = vunpack.c.l.bf16 %v2747
    %v2956 = vunpack.c.l.bf16 %v2748
    %v2957 = vunpack.c.l.bf16 %v2925
    %v2958 = vunpack.c.l.bf16 %v2926
    %v2959 = vunpack.c.l.bf16 %v2927
    %v2960 = vunpack.c.l.bf16 %v2928
    %v2961 = vunpack.c.l.bf16 %v2929
    %v2962 = vunpack.c.l.bf16 %v2930
    %v2963 = vunpack.c.l.bf16 %v2931
    %v2964 = vunpack.c.l.bf16 %v2932
    %v2965 = vunpack.c.l.bf16 %v2933
    %v2966 = vunpack.c.l.bf16 %v2934
    %v2967 = vunpack.c.l.bf16 %v2935
    %v2968 = vunpack.c.l.bf16 %v2936
    %v2969 = vunpack.c.l.bf16 %v2937
    %v2970 = vunpack.c.l.bf16 %v2938
    %v2971 = vunpack.c.l.bf16 %v2939
    %v2972 = vunpack.c.l.bf16 %v2940
    %v2973 = vadd.f32 %v2941, %v2957
    %v2974 = vadd.f32 %v2942, %v2958
    %v2975 = vadd.f32 %v2943, %v2959
    %v2976 = vadd.f32 %v2944, %v2960
    %v2977 = vadd.f32 %v2945, %v2961
    %v2978 = vadd.f32 %v2946, %v2962
    %v2979 = vadd.f32 %v2947, %v2963
    %v2980 = vadd.f32 %v2948, %v2964
    %v2981 = vadd.f32 %v2949, %v2965
    %v2982 = vadd.f32 %v2950, %v2966
    %v2983 = vadd.f32 %v2951, %v2967
    %v2984 = vadd.f32 %v2952, %v2968
    %v2985 = vadd.f32 %v2953, %v2969
    %v2986 = vadd.f32 %v2954, %v2970
    %v2987 = vadd.f32 %v2955, %v2971
    %v2988 = vadd.f32 %v2956, %v2972
    %v2989 = vpack.c.bf16 %v2973, %v2973
    %v2990 = vpack.c.bf16 %v2974, %v2974
    %v2991 = vpack.c.bf16 %v2975, %v2975
    %v2992 = vpack.c.bf16 %v2976, %v2976
    %v2993 = vpack.c.bf16 %v2977, %v2977
    %v2994 = vpack.c.bf16 %v2978, %v2978
    %v2995 = vpack.c.bf16 %v2979, %v2979
    %v2996 = vpack.c.bf16 %v2980, %v2980
    %v2997 = vpack.c.bf16 %v2981, %v2981
    %v2998 = vpack.c.bf16 %v2982, %v2982
    %v2999 = vpack.c.bf16 %v2983, %v2983
    %v3000 = vpack.c.bf16 %v2984, %v2984
    %v3001 = vpack.c.bf16 %v2985, %v2985
    %v3002 = vpack.c.bf16 %v2986, %v2986
    %v3003 = vpack.c.bf16 %v2987, %v2987
    %v3004 = vpack.c.bf16 %v2988, %v2988
    %v3005 = vld [vmem:[%s589] sm:$0xf]
    %v3006 = vld [vmem:[%s589 + $0x4] sm:$0xf]
    %v3007 = vld [vmem:[%s589 + $0x8] sm:$0xf]
    %v3008 = vld [vmem:[%s589 + $0xc] sm:$0xf]
    %v3009 = vld [vmem:[%s589 + $0x10] sm:$0xf]
    %v3010 = vld [vmem:[%s589 + $0x14] sm:$0xf]
    %v3011 = vld [vmem:[%s589 + $0x18] sm:$0xf]
    %v3012 = vld [vmem:[%s589 + $0x1c] sm:$0xf]
    %v3013 = vld [vmem:[%s589 + $0x20] sm:$0xf]
    %v3014 = vld [vmem:[%s589 + $0x24] sm:$0xf]
    %v3015 = vld [vmem:[%s589 + $0x28] sm:$0xf]
    %v3016 = vld [vmem:[%s589 + $0x2c] sm:$0xf]
    %v3017 = vld [vmem:[%s589 + $0x30] sm:$0xf]
    %v3018 = vld [vmem:[%s589 + $0x34] sm:$0xf]
    %v3019 = vld [vmem:[%s589 + $0x38] sm:$0xf]
    %v3020 = vld [vmem:[%s589 + $0x3c] sm:$0xf]
    %s3021 = sld [smem:[#allocation6 + $0x102]]
    %p3023 = scmp.ne.f32.partialorder %s3021, %s3021
    %s3024 = sshrl.u32 %s3021, 16
    %s3025 = sand.u32 %s3024, 1
    %s3026 = sadd.s32 32767, %s3025
    %s3027 = sadd.s32 %s3021, %s3026
    %s3028 = sand.u32 %s3027, 4294901760
    %s3029 = scalar_select %p3023, 2143289344, %s3028
    %s3031 = sshrl.u32 %s3029, 16
    %s3032 = sshll.u32 %s3031, 16
    %s3033 = sor.u32 %s3031, %s3032
    %v3034 = vstv %s3033
    %v3036 = vunpack.c.l.bf16 %v3005
    %v3037 = vunpack.c.l.bf16 %v3006
    %v3038 = vunpack.c.l.bf16 %v3007
    %v3039 = vunpack.c.l.bf16 %v3008
    %v3040 = vunpack.c.l.bf16 %v3009
    %v3041 = vunpack.c.l.bf16 %v3010
    %v3042 = vunpack.c.l.bf16 %v3011
    %v3043 = vunpack.c.l.bf16 %v3012
    %v3044 = vunpack.c.l.bf16 %v3013
    %v3045 = vunpack.c.l.bf16 %v3014
    %v3046 = vunpack.c.l.bf16 %v3015
    %v3047 = vunpack.c.l.bf16 %v3016
    %v3048 = vunpack.c.l.bf16 %v3017
    %v3049 = vunpack.c.l.bf16 %v3018
    %v3050 = vunpack.c.l.bf16 %v3019
    %v3051 = vunpack.c.l.bf16 %v3020
    %v3052 = vunpack.c.l.bf16 %v3034
    %v3053 = vsub.f32 %v3036, %v3052
    %v3054 = vsub.f32 %v3037, %v3052
    %v3055 = vsub.f32 %v3038, %v3052
    %v3056 = vsub.f32 %v3039, %v3052
    %v3057 = vsub.f32 %v3040, %v3052
    %v3058 = vsub.f32 %v3041, %v3052
    %v3059 = vsub.f32 %v3042, %v3052
    %v3060 = vsub.f32 %v3043, %v3052
    %v3061 = vsub.f32 %v3044, %v3052
    %v3062 = vsub.f32 %v3045, %v3052
    %v3063 = vsub.f32 %v3046, %v3052
    %v3064 = vsub.f32 %v3047, %v3052
    %v3065 = vsub.f32 %v3048, %v3052
    %v3066 = vsub.f32 %v3049, %v3052
    %v3067 = vsub.f32 %v3050, %v3052
    %v3068 = vsub.f32 %v3051, %v3052
    %v3069 = vpack.c.bf16 %v3053, %v3053
    %v3070 = vpack.c.bf16 %v3054, %v3054
    %v3071 = vpack.c.bf16 %v3055, %v3055
    %v3072 = vpack.c.bf16 %v3056, %v3056
    %v3073 = vpack.c.bf16 %v3057, %v3057
    %v3074 = vpack.c.bf16 %v3058, %v3058
    %v3075 = vpack.c.bf16 %v3059, %v3059
    %v3076 = vpack.c.bf16 %v3060, %v3060
    %v3077 = vpack.c.bf16 %v3061, %v3061
    %v3078 = vpack.c.bf16 %v3062, %v3062
    %v3079 = vpack.c.bf16 %v3063, %v3063
    %v3080 = vpack.c.bf16 %v3064, %v3064
    %v3081 = vpack.c.bf16 %v3065, %v3065
    %v3082 = vpack.c.bf16 %v3066, %v3066
    %v3083 = vpack.c.bf16 %v3067, %v3067
    %v3084 = vpack.c.bf16 %v3068, %v3068
    %v3085 = vunpack.c.l.bf16 %v3069
    %v3086 = vunpack.c.l.bf16 %v3070
    %v3087 = vunpack.c.l.bf16 %v3071
    %v3088 = vunpack.c.l.bf16 %v3072
    %v3089 = vunpack.c.l.bf16 %v3073
    %v3090 = vunpack.c.l.bf16 %v3074
    %v3091 = vunpack.c.l.bf16 %v3075
    %v3092 = vunpack.c.l.bf16 %v3076
    %v3093 = vunpack.c.l.bf16 %v3077
    %v3094 = vunpack.c.l.bf16 %v3078
    %v3095 = vunpack.c.l.bf16 %v3079
    %v3096 = vunpack.c.l.bf16 %v3080
    %v3097 = vunpack.c.l.bf16 %v3081
    %v3098 = vunpack.c.l.bf16 %v3082
    %v3099 = vunpack.c.l.bf16 %v3083
    %v3100 = vunpack.c.l.bf16 %v3084
    %v3101 = vmul.f32 %v3085, %v3085
    %v3102 = vmul.f32 %v3086, %v3086
    %v3103 = vmul.f32 %v3087, %v3087
    %v3104 = vmul.f32 %v3088, %v3088
    %v3105 = vmul.f32 %v3089, %v3089
    %v3106 = vmul.f32 %v3090, %v3090
    %v3107 = vmul.f32 %v3091, %v3091
    %v3108 = vmul.f32 %v3092, %v3092
    %v3109 = vmul.f32 %v3093, %v3093
    %v3110 = vmul.f32 %v3094, %v3094
    %v3111 = vmul.f32 %v3095, %v3095
    %v3112 = vmul.f32 %v3096, %v3096
    %v3113 = vmul.f32 %v3097, %v3097
    %v3114 = vmul.f32 %v3098, %v3098
    %v3115 = vmul.f32 %v3099, %v3099
    %v3116 = vmul.f32 %v3100, %v3100
    %v3117 = vpack.c.bf16 %v3101, %v3101
    %v3118 = vpack.c.bf16 %v3102, %v3102
    %v3119 = vpack.c.bf16 %v3103, %v3103
    %v3120 = vpack.c.bf16 %v3104, %v3104
    %v3121 = vpack.c.bf16 %v3105, %v3105
    %v3122 = vpack.c.bf16 %v3106, %v3106
    %v3123 = vpack.c.bf16 %v3107, %v3107
    %v3124 = vpack.c.bf16 %v3108, %v3108
    %v3125 = vpack.c.bf16 %v3109, %v3109
    %v3126 = vpack.c.bf16 %v3110, %v3110
    %v3127 = vpack.c.bf16 %v3111, %v3111
    %v3128 = vpack.c.bf16 %v3112, %v3112
    %v3129 = vpack.c.bf16 %v3113, %v3113
    %v3130 = vpack.c.bf16 %v3114, %v3114
    %v3131 = vpack.c.bf16 %v3115, %v3115
    %v3132 = vpack.c.bf16 %v3116, %v3116
    %s3133 = sld [smem:[#allocation8 + $0x102]]
    %p3135 = scmp.ne.f32.partialorder %s3133, %s3133
    %s3136 = sshrl.u32 %s3133, 16
    %s3137 = sand.u32 %s3136, 1
    %s3138 = sadd.s32 32767, %s3137
    %s3139 = sadd.s32 %s3133, %s3138
    %s3140 = sand.u32 %s3139, 4294901760
    %s3141 = scalar_select %p3135, 2143289344, %s3140
    %s3143 = sshrl.u32 %s3141, 16
    %s3144 = sshll.u32 %s3143, 16
    %s3145 = sor.u32 %s3143, %s3144
    %v3146 = vstv %s3145
    %v3148 = vunpack.c.l.bf16 %v3117
    %v3149 = vunpack.c.l.bf16 %v3118
    %v3150 = vunpack.c.l.bf16 %v3119
    %v3151 = vunpack.c.l.bf16 %v3120
    %v3152 = vunpack.c.l.bf16 %v3121
    %v3153 = vunpack.c.l.bf16 %v3122
    %v3154 = vunpack.c.l.bf16 %v3123
    %v3155 = vunpack.c.l.bf16 %v3124
    %v3156 = vunpack.c.l.bf16 %v3125
    %v3157 = vunpack.c.l.bf16 %v3126
    %v3158 = vunpack.c.l.bf16 %v3127
    %v3159 = vunpack.c.l.bf16 %v3128
    %v3160 = vunpack.c.l.bf16 %v3129
    %v3161 = vunpack.c.l.bf16 %v3130
    %v3162 = vunpack.c.l.bf16 %v3131
    %v3163 = vunpack.c.l.bf16 %v3132
    %v3164 = vunpack.c.l.bf16 %v3146
    %v3165 = vmul.f32 %v3148, %v3164
    %v3166 = vmul.f32 %v3149, %v3164
    %v3167 = vmul.f32 %v3150, %v3164
    %v3168 = vmul.f32 %v3151, %v3164
    %v3169 = vmul.f32 %v3152, %v3164
    %v3170 = vmul.f32 %v3153, %v3164
    %v3171 = vmul.f32 %v3154, %v3164
    %v3172 = vmul.f32 %v3155, %v3164
    %v3173 = vmul.f32 %v3156, %v3164
    %v3174 = vmul.f32 %v3157, %v3164
    %v3175 = vmul.f32 %v3158, %v3164
    %v3176 = vmul.f32 %v3159, %v3164
    %v3177 = vmul.f32 %v3160, %v3164
    %v3178 = vmul.f32 %v3161, %v3164
    %v3179 = vmul.f32 %v3162, %v3164
    %v3180 = vmul.f32 %v3163, %v3164
    %v3181 = vpack.c.bf16 %v3165, %v3165
    %v3182 = vpack.c.bf16 %v3166, %v3166
    %v3183 = vpack.c.bf16 %v3167, %v3167
    %v3184 = vpack.c.bf16 %v3168, %v3168
    %v3185 = vpack.c.bf16 %v3169, %v3169
    %v3186 = vpack.c.bf16 %v3170, %v3170
    %v3187 = vpack.c.bf16 %v3171, %v3171
    %v3188 = vpack.c.bf16 %v3172, %v3172
    %v3189 = vpack.c.bf16 %v3173, %v3173
    %v3190 = vpack.c.bf16 %v3174, %v3174
    %v3191 = vpack.c.bf16 %v3175, %v3175
    %v3192 = vpack.c.bf16 %v3176, %v3176
    %v3193 = vpack.c.bf16 %v3177, %v3177
    %v3194 = vpack.c.bf16 %v3178, %v3178
    %v3195 = vpack.c.bf16 %v3179, %v3179
    %v3196 = vpack.c.bf16 %v3180, %v3180
    %v3197 = vunpack.c.l.bf16 %v2989
    %v3198 = vunpack.c.l.bf16 %v2990
    %v3199 = vunpack.c.l.bf16 %v2991
    %v3200 = vunpack.c.l.bf16 %v2992
    %v3201 = vunpack.c.l.bf16 %v2993
    %v3202 = vunpack.c.l.bf16 %v2994
    %v3203 = vunpack.c.l.bf16 %v2995
    %v3204 = vunpack.c.l.bf16 %v2996
    %v3205 = vunpack.c.l.bf16 %v2997
    %v3206 = vunpack.c.l.bf16 %v2998
    %v3207 = vunpack.c.l.bf16 %v2999
    %v3208 = vunpack.c.l.bf16 %v3000
    %v3209 = vunpack.c.l.bf16 %v3001
    %v3210 = vunpack.c.l.bf16 %v3002
    %v3211 = vunpack.c.l.bf16 %v3003
    %v3212 = vunpack.c.l.bf16 %v3004
    %v3213 = vunpack.c.l.bf16 %v3181
    %v3214 = vunpack.c.l.bf16 %v3182
    %v3215 = vunpack.c.l.bf16 %v3183
    %v3216 = vunpack.c.l.bf16 %v3184
    %v3217 = vunpack.c.l.bf16 %v3185
    %v3218 = vunpack.c.l.bf16 %v3186
    %v3219 = vunpack.c.l.bf16 %v3187
    %v3220 = vunpack.c.l.bf16 %v3188
    %v3221 = vunpack.c.l.bf16 %v3189
    %v3222 = vunpack.c.l.bf16 %v3190
    %v3223 = vunpack.c.l.bf16 %v3191
    %v3224 = vunpack.c.l.bf16 %v3192
    %v3225 = vunpack.c.l.bf16 %v3193
    %v3226 = vunpack.c.l.bf16 %v3194
    %v3227 = vunpack.c.l.bf16 %v3195
    %v3228 = vunpack.c.l.bf16 %v3196
    %v3229 = vadd.f32 %v3197, %v3213
    %v3230 = vadd.f32 %v3198, %v3214
    %v3231 = vadd.f32 %v3199, %v3215
    %v3232 = vadd.f32 %v3200, %v3216
    %v3233 = vadd.f32 %v3201, %v3217
    %v3234 = vadd.f32 %v3202, %v3218
    %v3235 = vadd.f32 %v3203, %v3219
    %v3236 = vadd.f32 %v3204, %v3220
    %v3237 = vadd.f32 %v3205, %v3221
    %v3238 = vadd.f32 %v3206, %v3222
    %v3239 = vadd.f32 %v3207, %v3223
    %v3240 = vadd.f32 %v3208, %v3224
    %v3241 = vadd.f32 %v3209, %v3225
    %v3242 = vadd.f32 %v3210, %v3226
    %v3243 = vadd.f32 %v3211, %v3227
    %v3244 = vadd.f32 %v3212, %v3228
    %v3245 = vpack.c.bf16 %v3229, %v3229
    %v3246 = vpack.c.bf16 %v3230, %v3230
    %v3247 = vpack.c.bf16 %v3231, %v3231
    %v3248 = vpack.c.bf16 %v3232, %v3232
    %v3249 = vpack.c.bf16 %v3233, %v3233
    %v3250 = vpack.c.bf16 %v3234, %v3234
    %v3251 = vpack.c.bf16 %v3235, %v3235
    %v3252 = vpack.c.bf16 %v3236, %v3236
    %v3253 = vpack.c.bf16 %v3237, %v3237
    %v3254 = vpack.c.bf16 %v3238, %v3238
    %v3255 = vpack.c.bf16 %v3239, %v3239
    %v3256 = vpack.c.bf16 %v3240, %v3240
    %v3257 = vpack.c.bf16 %v3241, %v3241
    %v3258 = vpack.c.bf16 %v3242, %v3242
    %v3259 = vpack.c.bf16 %v3243, %v3243
    %v3260 = vpack.c.bf16 %v3244, %v3244
    %v3261 = vunpack.c.l.bf16 %v3245
    %v3262 = vunpack.c.l.bf16 %v3246
    %v3263 = vunpack.c.l.bf16 %v3247
    %v3264 = vunpack.c.l.bf16 %v3248
    %v3265 = vunpack.c.l.bf16 %v3249
    %v3266 = vunpack.c.l.bf16 %v3250
    %v3267 = vunpack.c.l.bf16 %v3251
    %v3268 = vunpack.c.l.bf16 %v3252
    %v3269 = vunpack.c.l.bf16 %v3253
    %v3270 = vunpack.c.l.bf16 %v3254
    %v3271 = vunpack.c.l.bf16 %v3255
    %v3272 = vunpack.c.l.bf16 %v3256
    %v3273 = vunpack.c.l.bf16 %v3257
    %v3274 = vunpack.c.l.bf16 %v3258
    %v3275 = vunpack.c.l.bf16 %v3259
    %v3276 = vunpack.c.l.bf16 %v3260
    %v3277 = vmul.f32 %v3261, 1.442695
    %v3278 = vpow.pop %v3277
    %v3279 = vmul.f32 %v3262, 1.442695
    %v3280 = vpow.pop %v3279
    %v3281 = vmul.f32 %v3263, 1.442695
    %v3282 = vpow.pop %v3281
    %v3283 = vmul.f32 %v3264, 1.442695
    %v3284 = vpow.pop %v3283
    %v3285 = vmul.f32 %v3265, 1.442695
    %v3286 = vpow.pop %v3285
    %v3287 = vmul.f32 %v3266, 1.442695
    %v3288 = vpow.pop %v3287
    %v3289 = vmul.f32 %v3267, 1.442695
    %v3290 = vpow.pop %v3289
    %v3291 = vmul.f32 %v3268, 1.442695
    %v3292 = vpow.pop %v3291
    %v3293 = vmul.f32 %v3269, 1.442695
    %v3294 = vpow.pop %v3293
    %v3295 = vmul.f32 %v3270, 1.442695
    %v3296 = vpow.pop %v3295
    %v3297 = vmul.f32 %v3271, 1.442695
    %v3298 = vpow.pop %v3297
    %v3299 = vmul.f32 %v3272, 1.442695
    %v3300 = vpow.pop %v3299
    %v3301 = vmul.f32 %v3273, 1.442695
    %v3302 = vpow.pop %v3301
    %v3303 = vmul.f32 %v3274, 1.442695
    %v3304 = vpow.pop %v3303
    %v3305 = vmul.f32 %v3275, 1.442695
    %v3306 = vpow.pop %v3305
    %v3307 = vmul.f32 %v3276, 1.442695
    %v3308 = vpow.pop %v3307
    %v3309 = vpack.c.bf16 %v3278, %v3278
    %v3310 = vpack.c.bf16 %v3280, %v3280
    %v3311 = vpack.c.bf16 %v3282, %v3282
    %v3312 = vpack.c.bf16 %v3284, %v3284
    %v3313 = vpack.c.bf16 %v3286, %v3286
    %v3314 = vpack.c.bf16 %v3288, %v3288
    %v3315 = vpack.c.bf16 %v3290, %v3290
    %v3316 = vpack.c.bf16 %v3292, %v3292
    %v3317 = vpack.c.bf16 %v3294, %v3294
    %v3318 = vpack.c.bf16 %v3296, %v3296
    %v3319 = vpack.c.bf16 %v3298, %v3298
    %v3320 = vpack.c.bf16 %v3300, %v3300
    %v3321 = vpack.c.bf16 %v3302, %v3302
    %v3322 = vpack.c.bf16 %v3304, %v3304
    %v3323 = vpack.c.bf16 %v3306, %v3306
    %v3324 = vpack.c.bf16 %v3308, %v3308
    %v3325 = vunpack.c.l.bf16 %v3309
    %v3326 = vunpack.c.l.bf16 %v3310
    %v3327 = vunpack.c.l.bf16 %v3311
    %v3328 = vunpack.c.l.bf16 %v3312
    %v3329 = vunpack.c.l.bf16 %v3313
    %v3330 = vunpack.c.l.bf16 %v3314
    %v3331 = vunpack.c.l.bf16 %v3315
    %v3332 = vunpack.c.l.bf16 %v3316
    %v3333 = vunpack.c.l.bf16 %v3317
    %v3334 = vunpack.c.l.bf16 %v3318
    %v3335 = vunpack.c.l.bf16 %v3319
    %v3336 = vunpack.c.l.bf16 %v3320
    %v3337 = vunpack.c.l.bf16 %v3321
    %v3338 = vunpack.c.l.bf16 %v3322
    %v3339 = vunpack.c.l.bf16 %v3323
    %v3340 = vunpack.c.l.bf16 %v3324
    %v3341 = vmul.f32 %v1447, %v3325
    %v3342 = vmul.f32 %v1448, %v3326
    %v3343 = vmul.f32 %v1449, %v3327
    %v3344 = vmul.f32 %v1450, %v3328
    %v3345 = vmul.f32 %v1451, %v3329
    %v3346 = vmul.f32 %v1452, %v3330
    %v3347 = vmul.f32 %v1453, %v3331
    %v3348 = vmul.f32 %v1454, %v3332
    %v3349 = vmul.f32 %v1455, %v3333
    %v3350 = vmul.f32 %v1456, %v3334
    %v3351 = vmul.f32 %v1457, %v3335
    %v3352 = vmul.f32 %v1458, %v3336
    %v3353 = vmul.f32 %v1459, %v3337
    %v3354 = vmul.f32 %v1460, %v3338
    %v3355 = vmul.f32 %v1461, %v3339
    %v3356 = vmul.f32 %v1462, %v3340
    %v3357 = vpack.c.bf16 %v3341, %v3341
    %v3358 = vpack.c.bf16 %v3342, %v3342
    %v3359 = vpack.c.bf16 %v3343, %v3343
    %v3360 = vpack.c.bf16 %v3344, %v3344
    %v3361 = vpack.c.bf16 %v3345, %v3345
    %v3362 = vpack.c.bf16 %v3346, %v3346
    %v3363 = vpack.c.bf16 %v3347, %v3347
    %v3364 = vpack.c.bf16 %v3348, %v3348
    %v3365 = vpack.c.bf16 %v3349, %v3349
    %v3366 = vpack.c.bf16 %v3350, %v3350
    %v3367 = vpack.c.bf16 %v3351, %v3351
    %v3368 = vpack.c.bf16 %v3352, %v3352
    %v3369 = vpack.c.bf16 %v3353, %v3353
    %v3370 = vpack.c.bf16 %v3354, %v3354
    %v3371 = vpack.c.bf16 %v3355, %v3355
    %v3372 = vpack.c.bf16 %v3356, %v3356
    %3373 = vst [vmem:[#allocation3 + $0x8] sm:$0xf] %v3357
    %3374 = vst [vmem:[#allocation3 + $0x14] sm:$0xf] %v3358
    %3375 = vst [vmem:[#allocation3 + $0x20] sm:$0xf] %v3359
    %3376 = vst [vmem:[#allocation3 + $0x2c] sm:$0xf] %v3360
    %3377 = vst [vmem:[#allocation3 + $0x38] sm:$0xf] %v3361
    %3378 = vst [vmem:[#allocation3 + $0x44] sm:$0xf] %v3362
    %3379 = vst [vmem:[#allocation3 + $0x50] sm:$0xf] %v3363
    %3380 = vst [vmem:[#allocation3 + $0x5c] sm:$0xf] %v3364
    %3381 = vst [vmem:[#allocation3 + $0x68] sm:$0xf] %v3365
    %3382 = vst [vmem:[#allocation3 + $0x74] sm:$0xf] %v3366
    %3383 = vst [vmem:[#allocation3 + $0x80] sm:$0xf] %v3367
    %3384 = vst [vmem:[#allocation3 + $0x8c] sm:$0xf] %v3368
    %3385 = vst [vmem:[#allocation3 + $0x98] sm:$0xf] %v3369
    %3386 = vst [vmem:[#allocation3 + $0xa4] sm:$0xf] %v3370
    %3387 = vst [vmem:[#allocation3 + $0xb0] sm:$0xf] %v3371
    %3388 = vst [vmem:[#allocation3 + $0xbc] sm:$0xf] %v3372
    %s3389 = scalar_lea.vmem %s7, 2
    %v3390 = vld [vmem:[%s3389] sm:$0x1]
    %v3392 = vsel %vm1553, %v3390, 0
    %3394 = vmatpush.bf16.msra.mxu0 0
    %3395 = vmatpush.bf16.msra.mxu0 0
    %3396 = vmatpush.bf16.msra.mxu0 0
    %3397 = vmatpush.bf16.msra.mxu0 0
    %3398 = vmatpush.bf16.msra.mxu0 0
    %3399 = vmatpush.bf16.msra.mxu0 0
    %3400 = vmatpush.bf16.msra.mxu0 0
    %3401 = vmatpush.bf16.msra.mxu0 %v3392
    %3402 = vmatmul.bf16.gmra.mxu0 %v1530
    %v3403 = vpop.f32.mrf.mxu0
    %v3404 = vadd.f32 0.0, %v3403
    %v3405 = vpop.f32.mrf.mxu0
    %v3406 = vadd.f32 0.0, %v3405
    %3407 = vmatmul.bf16.gmra.mxu0 %v1533
    %v3408 = vpop.f32.mrf.mxu0
    %v3409 = vadd.f32 0.0, %v3408
    %v3410 = vpop.f32.mrf.mxu0
    %v3411 = vadd.f32 0.0, %v3410
    %3412 = vmatmul.bf16.gmra.mxu0 %v1536
    %v3413 = vpop.f32.mrf.mxu0
    %v3414 = vadd.f32 0.0, %v3413
    %v3415 = vpop.f32.mrf.mxu0
    %v3416 = vadd.f32 0.0, %v3415
    %3417 = vmatmul.bf16.gmra.mxu0 %v1539
    %v3418 = vpop.f32.mrf.mxu0
    %v3419 = vadd.f32 0.0, %v3418
    %v3420 = vpop.f32.mrf.mxu0
    %v3421 = vadd.f32 0.0, %v3420
    %3422 = vmatmul.bf16.gmra.mxu0 %v1542
    %v3423 = vpop.f32.mrf.mxu0
    %v3424 = vadd.f32 0.0, %v3423
    %v3425 = vpop.f32.mrf.mxu0
    %v3426 = vadd.f32 0.0, %v3425
    %3427 = vmatmul.bf16.gmra.mxu0 %v1545
    %v3428 = vpop.f32.mrf.mxu0
    %v3429 = vadd.f32 0.0, %v3428
    %v3430 = vpop.f32.mrf.mxu0
    %v3431 = vadd.f32 0.0, %v3430
    %3432 = vmatmul.bf16.gmra.mxu0 %v1548
    %v3433 = vpop.f32.mrf.mxu0
    %v3434 = vadd.f32 0.0, %v3433
    %v3435 = vpop.f32.mrf.mxu0
    %v3436 = vadd.f32 0.0, %v3435
    %3437 = vmatmul.bf16.gmra.mxu0 %v1551
    %v3438 = vpop.f32.mrf.mxu0
    %v3439 = vadd.f32 0.0, %v3438
    %v3440 = vpop.f32.mrf.mxu0
    %v3441 = vadd.f32 0.0, %v3440
    %3442 = vdwg.mxu0
    %v3443 = vpack.c.bf16 %v3404, %v3404
    %v3444 = vpack.c.bf16 %v3406, %v3406
    %v3445 = vpack.c.bf16 %v3409, %v3409
    %v3446 = vpack.c.bf16 %v3411, %v3411
    %v3447 = vpack.c.bf16 %v3414, %v3414
    %v3448 = vpack.c.bf16 %v3416, %v3416
    %v3449 = vpack.c.bf16 %v3419, %v3419
    %v3450 = vpack.c.bf16 %v3421, %v3421
    %v3451 = vpack.c.bf16 %v3424, %v3424
    %v3452 = vpack.c.bf16 %v3426, %v3426
    %v3453 = vpack.c.bf16 %v3429, %v3429
    %v3454 = vpack.c.bf16 %v3431, %v3431
    %v3455 = vpack.c.bf16 %v3434, %v3434
    %v3456 = vpack.c.bf16 %v3436, %v3436
    %v3457 = vpack.c.bf16 %v3439, %v3439
    %v3458 = vpack.c.bf16 %v3441, %v3441
    %3459 = vst.msk [vmem:[#allocation4 + $0x80] sm:$0xf] %vm1622, %v3443
    %3460 = vst.msk [vmem:[#allocation4 + $0x84] sm:$0xf] %vm1622, %v3444
    %3461 = vst.msk [vmem:[#allocation4 + $0x88] sm:$0xf] %vm1622, %v3445
    %3462 = vst.msk [vmem:[#allocation4 + $0x8c] sm:$0xf] %vm1622, %v3446
    %3463 = vst.msk [vmem:[#allocation4 + $0x90] sm:$0xf] %vm1622, %v3447
    %3464 = vst.msk [vmem:[#allocation4 + $0x94] sm:$0xf] %vm1622, %v3448
    %3465 = vst.msk [vmem:[#allocation4 + $0x98] sm:$0xf] %vm1622, %v3449
    %3466 = vst.msk [vmem:[#allocation4 + $0x9c] sm:$0xf] %vm1622, %v3450
    %3467 = vst.msk [vmem:[#allocation4 + $0xa0] sm:$0xf] %vm1622, %v3451
    %3468 = vst.msk [vmem:[#allocation4 + $0xa4] sm:$0xf] %vm1622, %v3452
    %3469 = vst.msk [vmem:[#allocation4 + $0xa8] sm:$0xf] %vm1622, %v3453
    %3470 = vst.msk [vmem:[#allocation4 + $0xac] sm:$0xf] %vm1622, %v3454
    %3471 = vst.msk [vmem:[#allocation4 + $0xb0] sm:$0xf] %vm1622, %v3455
    %3472 = vst.msk [vmem:[#allocation4 + $0xb4] sm:$0xf] %vm1622, %v3456
    %3473 = vst.msk [vmem:[#allocation4 + $0xb8] sm:$0xf] %vm1622, %v3457
    %3474 = vst.msk [vmem:[#allocation4 + $0xbc] sm:$0xf] %vm1622, %v3458
    %v3475 = vld [vmem:[#allocation3] sm:$0xff]
    %v3476 = vld [vmem:[#allocation3 + $0x8] sm:$0xf]
    %v3477 = vld [vmem:[#allocation3 + $0xc] sm:$0xff]
    %v3478 = vld [vmem:[#allocation3 + $0x14] sm:$0xf]
    %v3479 = vld [vmem:[#allocation3 + $0x18] sm:$0xff]
    %v3480 = vld [vmem:[#allocation3 + $0x20] sm:$0xf]
    %v3481 = vld [vmem:[#allocation3 + $0x24] sm:$0xff]
    %v3482 = vld [vmem:[#allocation3 + $0x2c] sm:$0xf]
    %v3483 = vld [vmem:[#allocation3 + $0x30] sm:$0xff]
    %v3484 = vld [vmem:[#allocation3 + $0x38] sm:$0xf]
    %v3485 = vld [vmem:[#allocation3 + $0x3c] sm:$0xff]
    %v3486 = vld [vmem:[#allocation3 + $0x44] sm:$0xf]
    %v3487 = vld [vmem:[#allocation3 + $0x48] sm:$0xff]
    %v3488 = vld [vmem:[#allocation3 + $0x50] sm:$0xf]
    %v3489 = vld [vmem:[#allocation3 + $0x54] sm:$0xff]
    %v3490 = vld [vmem:[#allocation3 + $0x5c] sm:$0xf]
    %v3491 = vld [vmem:[#allocation3 + $0x60] sm:$0xff]
    %v3492 = vld [vmem:[#allocation3 + $0x68] sm:$0xf]
    %v3493 = vld [vmem:[#allocation3 + $0x6c] sm:$0xff]
    %v3494 = vld [vmem:[#allocation3 + $0x74] sm:$0xf]
    %v3495 = vld [vmem:[#allocation3 + $0x78] sm:$0xff]
    %v3496 = vld [vmem:[#allocation3 + $0x80] sm:$0xf]
    %v3497 = vld [vmem:[#allocation3 + $0x84] sm:$0xff]
    %v3498 = vld [vmem:[#allocation3 + $0x8c] sm:$0xf]
    %v3499 = vld [vmem:[#allocation3 + $0x90] sm:$0xff]
    %v3500 = vld [vmem:[#allocation3 + $0x98] sm:$0xf]
    %v3501 = vld [vmem:[#allocation3 + $0x9c] sm:$0xff]
    %v3502 = vld [vmem:[#allocation3 + $0xa4] sm:$0xf]
    %v3503 = vld [vmem:[#allocation3 + $0xa8] sm:$0xff]
    %v3504 = vld [vmem:[#allocation3 + $0xb0] sm:$0xf]
    %v3505 = vld [vmem:[#allocation3 + $0xb4] sm:$0xff]
    %v3506 = vld [vmem:[#allocation3 + $0xbc] sm:$0xf]
    %v3507 = vld [vmem:[#allocation4] sm:$0xf]
    %v3508 = vld [vmem:[#allocation4 + $0x4] sm:$0xf]
    %v3509 = vld [vmem:[#allocation4 + $0x8] sm:$0xf]
    %v3510 = vld [vmem:[#allocation4 + $0xc] sm:$0xf]
    %v3511 = vld [vmem:[#allocation4 + $0x10] sm:$0xf]
    %v3512 = vld [vmem:[#allocation4 + $0x14] sm:$0xf]
    %v3513 = vld [vmem:[#allocation4 + $0x18] sm:$0xf]
    %v3514 = vld [vmem:[#allocation4 + $0x1c] sm:$0xf]
    %v3515 = vld [vmem:[#allocation4 + $0x20] sm:$0xf]
    %v3516 = vld [vmem:[#allocation4 + $0x24] sm:$0xf]
    %v3517 = vld [vmem:[#allocation4 + $0x28] sm:$0xf]
    %v3518 = vld [vmem:[#allocation4 + $0x2c] sm:$0xf]
    %v3519 = vld [vmem:[#allocation4 + $0x30] sm:$0xf]
    %v3520 = vld [vmem:[#allocation4 + $0x34] sm:$0xf]
    %v3521 = vld [vmem:[#allocation4 + $0x38] sm:$0xf]
    %v3522 = vld [vmem:[#allocation4 + $0x3c] sm:$0xf]
    %v3523 = vld [vmem:[#allocation4 + $0x40] sm:$0xf]
    %v3524 = vld [vmem:[#allocation4 + $0x44] sm:$0xf]
    %v3525 = vld [vmem:[#allocation4 + $0x48] sm:$0xf]
    %v3526 = vld [vmem:[#allocation4 + $0x4c] sm:$0xf]
    %v3527 = vld [vmem:[#allocation4 + $0x50] sm:$0xf]
    %v3528 = vld [vmem:[#allocation4 + $0x54] sm:$0xf]
    %v3529 = vld [vmem:[#allocation4 + $0x58] sm:$0xf]
    %v3530 = vld [vmem:[#allocation4 + $0x5c] sm:$0xf]
    %v3531 = vld [vmem:[#allocation4 + $0x60] sm:$0xf]
    %v3532 = vld [vmem:[#allocation4 + $0x64] sm:$0xf]
    %v3533 = vld [vmem:[#allocation4 + $0x68] sm:$0xf]
    %v3534 = vld [vmem:[#allocation4 + $0x6c] sm:$0xf]
    %v3535 = vld [vmem:[#allocation4 + $0x70] sm:$0xf]
    %v3536 = vld [vmem:[#allocation4 + $0x74] sm:$0xf]
    %v3537 = vld [vmem:[#allocation4 + $0x78] sm:$0xf]
    %v3538 = vld [vmem:[#allocation4 + $0x7c] sm:$0xf]
    %v3539 = vld [vmem:[#allocation4 + $0x80] sm:$0xf]
    %v3540 = vld [vmem:[#allocation4 + $0x84] sm:$0xf]
    %v3541 = vld [vmem:[#allocation4 + $0x88] sm:$0xf]
    %v3542 = vld [vmem:[#allocation4 + $0x8c] sm:$0xf]
    %v3543 = vld [vmem:[#allocation4 + $0x90] sm:$0xf]
    %v3544 = vld [vmem:[#allocation4 + $0x94] sm:$0xf]
    %v3545 = vld [vmem:[#allocation4 + $0x98] sm:$0xf]
    %v3546 = vld [vmem:[#allocation4 + $0x9c] sm:$0xf]
    %v3547 = vld [vmem:[#allocation4 + $0xa0] sm:$0xf]
    %v3548 = vld [vmem:[#allocation4 + $0xa4] sm:$0xf]
    %v3549 = vld [vmem:[#allocation4 + $0xa8] sm:$0xf]
    %v3550 = vld [vmem:[#allocation4 + $0xac] sm:$0xf]
    %v3551 = vld [vmem:[#allocation4 + $0xb0] sm:$0xf]
    %v3552 = vld [vmem:[#allocation4 + $0xb4] sm:$0xf]
    %v3553 = vld [vmem:[#allocation4 + $0xb8] sm:$0xf]
    %v3554 = vld [vmem:[#allocation4 + $0xbc] sm:$0xf]
    %v3587 = vunpack.c.l.b16 %v3475
    %v3588 = vunpack.c.h.b16 %v3475
    %v3589 = vunpack.c.l.b16 %v3476
    %v3590 = vunpack.c.l.b16 %v3477
    %v3591 = vunpack.c.h.b16 %v3477
    %v3592 = vunpack.c.l.b16 %v3478
    %v3593 = vunpack.c.l.b16 %v3479
    %v3594 = vunpack.c.h.b16 %v3479
    %v3595 = vunpack.c.l.b16 %v3480
    %v3596 = vunpack.c.l.b16 %v3481
    %v3597 = vunpack.c.h.b16 %v3481
    %v3598 = vunpack.c.l.b16 %v3482
    %v3599 = vunpack.c.l.b16 %v3483
    %v3600 = vunpack.c.h.b16 %v3483
    %v3601 = vunpack.c.l.b16 %v3484
    %v3602 = vunpack.c.l.b16 %v3485
    %v3603 = vunpack.c.h.b16 %v3485
    %v3604 = vunpack.c.l.b16 %v3486
    %v3605 = vunpack.c.l.b16 %v3487
    %v3606 = vunpack.c.h.b16 %v3487
    %v3607 = vunpack.c.l.b16 %v3488
    %v3608 = vunpack.c.l.b16 %v3489
    %v3609 = vunpack.c.h.b16 %v3489
    %v3610 = vunpack.c.l.b16 %v3490
    %v3611 = vunpack.c.l.b16 %v3491
    %v3612 = vunpack.c.h.b16 %v3491
    %v3613 = vunpack.c.l.b16 %v3492
    %v3614 = vunpack.c.l.b16 %v3493
    %v3615 = vunpack.c.h.b16 %v3493
    %v3616 = vunpack.c.l.b16 %v3494
    %v3617 = vunpack.c.l.b16 %v3495
    %v3618 = vunpack.c.h.b16 %v3495
    %v3619 = vunpack.c.l.b16 %v3496
    %v3620 = vunpack.c.l.b16 %v3497
    %v3621 = vunpack.c.h.b16 %v3497
    %v3622 = vunpack.c.l.b16 %v3498
    %v3623 = vunpack.c.l.b16 %v3499
    %v3624 = vunpack.c.h.b16 %v3499
    %v3625 = vunpack.c.l.b16 %v3500
    %v3626 = vunpack.c.l.b16 %v3501
    %v3627 = vunpack.c.h.b16 %v3501
    %v3628 = vunpack.c.l.b16 %v3502
    %v3629 = vunpack.c.l.b16 %v3503
    %v3630 = vunpack.c.h.b16 %v3503
    %v3631 = vunpack.c.l.b16 %v3504
    %v3632 = vunpack.c.l.b16 %v3505
    %v3633 = vunpack.c.h.b16 %v3505
    %v3634 = vunpack.c.l.b16 %v3506
    %v3635 = vpack.c.b16 %v3590, %v3587
    %v3636 = vpack.c.b16 %v3591, %v3588
    %v3637 = vpack.c.b16 %v3592, %v3589
    %v3638 = vpack.c.b16 %v3596, %v3593
    %v3639 = vpack.c.b16 %v3597, %v3594
    %v3640 = vpack.c.b16 %v3598, %v3595
    %v3641 = vpack.c.b16 %v3602, %v3599
    %v3642 = vpack.c.b16 %v3603, %v3600
    %v3643 = vpack.c.b16 %v3604, %v3601
    %v3644 = vpack.c.b16 %v3608, %v3605
    %v3645 = vpack.c.b16 %v3609, %v3606
    %v3646 = vpack.c.b16 %v3610, %v3607
    %v3647 = vpack.c.b16 %v3614, %v3611
    %v3648 = vpack.c.b16 %v3615, %v3612
    %v3649 = vpack.c.b16 %v3616, %v3613
    %v3650 = vpack.c.b16 %v3620, %v3617
    %v3651 = vpack.c.b16 %v3621, %v3618
    %v3652 = vpack.c.b16 %v3622, %v3619
    %v3653 = vpack.c.b16 %v3626, %v3623
    %v3654 = vpack.c.b16 %v3627, %v3624
    %v3655 = vpack.c.b16 %v3628, %v3625
    %v3656 = vpack.c.b16 %v3632, %v3629
    %v3657 = vpack.c.b16 %v3633, %v3630
    %v3658 = vpack.c.b16 %v3634, %v3631
    %v3731 = vunpack.c.l.b16 %v3507
    %v3732 = vunpack.c.l.b16 %v3508
    %v3733 = vunpack.c.l.b16 %v3509
    %v3734 = vunpack.c.l.b16 %v3510
    %v3735 = vunpack.c.l.b16 %v3511
    %v3736 = vunpack.c.l.b16 %v3512
    %v3737 = vunpack.c.l.b16 %v3513
    %v3738 = vunpack.c.l.b16 %v3514
    %v3739 = vunpack.c.l.b16 %v3515
    %v3740 = vunpack.c.l.b16 %v3516
    %v3741 = vunpack.c.l.b16 %v3517
    %v3742 = vunpack.c.l.b16 %v3518
    %v3743 = vunpack.c.l.b16 %v3519
    %v3744 = vunpack.c.l.b16 %v3520
    %v3745 = vunpack.c.l.b16 %v3521
    %v3746 = vunpack.c.l.b16 %v3522
    %v3747 = vunpack.c.l.b16 %v3523
    %v3748 = vunpack.c.l.b16 %v3524
    %v3749 = vunpack.c.l.b16 %v3525
    %v3750 = vunpack.c.l.b16 %v3526
    %v3751 = vunpack.c.l.b16 %v3527
    %v3752 = vunpack.c.l.b16 %v3528
    %v3753 = vunpack.c.l.b16 %v3529
    %v3754 = vunpack.c.l.b16 %v3530
    %v3755 = vunpack.c.l.b16 %v3531
    %v3756 = vunpack.c.l.b16 %v3532
    %v3757 = vunpack.c.l.b16 %v3533
    %v3758 = vunpack.c.l.b16 %v3534
    %v3759 = vunpack.c.l.b16 %v3535
    %v3760 = vunpack.c.l.b16 %v3536
    %v3761 = vunpack.c.l.b16 %v3537
    %v3762 = vunpack.c.l.b16 %v3538
    %v3763 = vunpack.c.l.b16 %v3539
    %v3764 = vunpack.c.l.b16 %v3540
    %v3765 = vunpack.c.l.b16 %v3541
    %v3766 = vunpack.c.l.b16 %v3542
    %v3767 = vunpack.c.l.b16 %v3543
    %v3768 = vunpack.c.l.b16 %v3544
    %v3769 = vunpack.c.l.b16 %v3545
    %v3770 = vunpack.c.l.b16 %v3546
    %v3771 = vunpack.c.l.b16 %v3547
    %v3772 = vunpack.c.l.b16 %v3548
    %v3773 = vunpack.c.l.b16 %v3549
    %v3774 = vunpack.c.l.b16 %v3550
    %v3775 = vunpack.c.l.b16 %v3551
    %v3776 = vunpack.c.l.b16 %v3552
    %v3777 = vunpack.c.l.b16 %v3553
    %v3778 = vunpack.c.l.b16 %v3554
    %v3779 = vpack.c.b16 %v3732, %v3731
    %v3780 = vpack.c.b16 %v3734, %v3733
    %v3781 = vpack.c.b16 %v3736, %v3735
    %v3782 = vpack.c.b16 %v3738, %v3737
    %v3783 = vpack.c.b16 %v3740, %v3739
    %v3784 = vpack.c.b16 %v3742, %v3741
    %v3785 = vpack.c.b16 %v3744, %v3743
    %v3786 = vpack.c.b16 %v3746, %v3745
    %v3787 = vpack.c.b16 %v3748, %v3747
    %v3788 = vpack.c.b16 %v3750, %v3749
    %v3789 = vpack.c.b16 %v3752, %v3751
    %v3790 = vpack.c.b16 %v3754, %v3753
    %v3791 = vpack.c.b16 %v3756, %v3755
    %v3792 = vpack.c.b16 %v3758, %v3757
    %v3793 = vpack.c.b16 %v3760, %v3759
    %v3794 = vpack.c.b16 %v3762, %v3761
    %v3795 = vpack.c.b16 %v3764, %v3763
    %v3796 = vpack.c.b16 %v3766, %v3765
    %v3797 = vpack.c.b16 %v3768, %v3767
    %v3798 = vpack.c.b16 %v3770, %v3769
    %v3799 = vpack.c.b16 %v3772, %v3771
    %v3800 = vpack.c.b16 %v3774, %v3773
    %v3801 = vpack.c.b16 %v3776, %v3775
    %v3802 = vpack.c.b16 %v3778, %v3777
    %3827 = vmatpush.bf16.msra.mxu0 %v3786
    %3828 = vmatpush.bf16.msra.mxu0 %v3785
    %3829 = vmatpush.bf16.msra.mxu0 %v3784
    %3830 = vmatpush.bf16.msra.mxu0 %v3783
    %3831 = vmatpush.bf16.msra.mxu0 %v3782
    %3832 = vmatpush.bf16.msra.mxu0 %v3781
    %3833 = vmatpush.bf16.msra.mxu0 %v3780
    %3834 = vmatpush.bf16.msra.mxu0 %v3779
    %3835 = vmatmul.bf16.gmra.mxu0 %v3635
    %v3836 = vpop.f32.mrf.mxu0
    %v3837 = vadd.f32 0.0, %v3836
    %v3838 = vpop.f32.mrf.mxu0
    %v3839 = vadd.f32 0.0, %v3838
    %3840 = vmatmul.bf16.gmra.mxu0 %v3638
    %v3841 = vpop.f32.mrf.mxu0
    %v3842 = vadd.f32 0.0, %v3841
    %v3843 = vpop.f32.mrf.mxu0
    %v3844 = vadd.f32 0.0, %v3843
    %3845 = vmatmul.bf16.gmra.mxu0 %v3641
    %v3846 = vpop.f32.mrf.mxu0
    %v3847 = vadd.f32 0.0, %v3846
    %v3848 = vpop.f32.mrf.mxu0
    %v3849 = vadd.f32 0.0, %v3848
    %3850 = vmatmul.bf16.gmra.mxu0 %v3644
    %v3851 = vpop.f32.mrf.mxu0
    %v3852 = vadd.f32 0.0, %v3851
    %v3853 = vpop.f32.mrf.mxu0
    %v3854 = vadd.f32 0.0, %v3853
    %3855 = vmatmul.bf16.gmra.mxu0 %v3647
    %v3856 = vpop.f32.mrf.mxu0
    %v3857 = vadd.f32 0.0, %v3856
    %v3858 = vpop.f32.mrf.mxu0
    %v3859 = vadd.f32 0.0, %v3858
    %3860 = vmatmul.bf16.gmra.mxu0 %v3650
    %v3861 = vpop.f32.mrf.mxu0
    %v3862 = vadd.f32 0.0, %v3861
    %v3863 = vpop.f32.mrf.mxu0
    %v3864 = vadd.f32 0.0, %v3863
    %3865 = vmatmul.bf16.gmra.mxu0 %v3653
    %v3866 = vpop.f32.mrf.mxu0
    %v3867 = vadd.f32 0.0, %v3866
    %v3868 = vpop.f32.mrf.mxu0
    %v3869 = vadd.f32 0.0, %v3868
    %3870 = vmatmul.bf16.gmra.mxu0 %v3656
    %v3871 = vpop.f32.mrf.mxu0
    %v3872 = vadd.f32 0.0, %v3871
    %v3873 = vpop.f32.mrf.mxu0
    %v3874 = vadd.f32 0.0, %v3873
    %3875 = vdwg.mxu0
    %3876 = vmatpush.bf16.msra.mxu0 %v3794
    %3877 = vmatpush.bf16.msra.mxu0 %v3793
    %3878 = vmatpush.bf16.msra.mxu0 %v3792
    %3879 = vmatpush.bf16.msra.mxu0 %v3791
    %3880 = vmatpush.bf16.msra.mxu0 %v3790
    %3881 = vmatpush.bf16.msra.mxu0 %v3789
    %3882 = vmatpush.bf16.msra.mxu0 %v3788
    %3883 = vmatpush.bf16.msra.mxu0 %v3787
    %3884 = vmatmul.bf16.gmra.mxu0 %v3636
    %v3885 = vpop.f32.mrf.mxu0
    %v3886 = vadd.f32 %v3837, %v3885
    %v3887 = vpop.f32.mrf.mxu0
    %v3888 = vadd.f32 %v3839, %v3887
    %3889 = vmatmul.bf16.gmra.mxu0 %v3639
    %v3890 = vpop.f32.mrf.mxu0
    %v3891 = vadd.f32 %v3842, %v3890
    %v3892 = vpop.f32.mrf.mxu0
    %v3893 = vadd.f32 %v3844, %v3892
    %3894 = vmatmul.bf16.gmra.mxu0 %v3642
    %v3895 = vpop.f32.mrf.mxu0
    %v3896 = vadd.f32 %v3847, %v3895
    %v3897 = vpop.f32.mrf.mxu0
    %v3898 = vadd.f32 %v3849, %v3897
    %3899 = vmatmul.bf16.gmra.mxu0 %v3645
    %v3900 = vpop.f32.mrf.mxu0
    %v3901 = vadd.f32 %v3852, %v3900
    %v3902 = vpop.f32.mrf.mxu0
    %v3903 = vadd.f32 %v3854, %v3902
    %3904 = vmatmul.bf16.gmra.mxu0 %v3648
    %v3905 = vpop.f32.mrf.mxu0
    %v3906 = vadd.f32 %v3857, %v3905
    %v3907 = vpop.f32.mrf.mxu0
    %v3908 = vadd.f32 %v3859, %v3907
    %3909 = vmatmul.bf16.gmra.mxu0 %v3651
    %v3910 = vpop.f32.mrf.mxu0
    %v3911 = vadd.f32 %v3862, %v3910
    %v3912 = vpop.f32.mrf.mxu0
    %v3913 = vadd.f32 %v3864, %v3912
    %3914 = vmatmul.bf16.gmra.mxu0 %v3654
    %v3915 = vpop.f32.mrf.mxu0
    %v3916 = vadd.f32 %v3867, %v3915
    %v3917 = vpop.f32.mrf.mxu0
    %v3918 = vadd.f32 %v3869, %v3917
    %3919 = vmatmul.bf16.gmra.mxu0 %v3657
    %v3920 = vpop.f32.mrf.mxu0
    %v3921 = vadd.f32 %v3872, %v3920
    %v3922 = vpop.f32.mrf.mxu0
    %v3923 = vadd.f32 %v3874, %v3922
    %3924 = vdwg.mxu0
    %3925 = vmatpush.bf16.msra.mxu0 %v3802
    %3926 = vmatpush.bf16.msra.mxu0 %v3801
    %3927 = vmatpush.bf16.msra.mxu0 %v3800
    %3928 = vmatpush.bf16.msra.mxu0 %v3799
    %3929 = vmatpush.bf16.msra.mxu0 %v3798
    %3930 = vmatpush.bf16.msra.mxu0 %v3797
    %3931 = vmatpush.bf16.msra.mxu0 %v3796
    %3932 = vmatpush.bf16.msra.mxu0 %v3795
    %3933 = vmatmul.bf16.gmra.mxu0 %v3637
    %v3934 = vpop.f32.mrf.mxu0
    %v3935 = vadd.f32 %v3886, %v3934
    %v3936 = vpop.f32.mrf.mxu0
    %v3937 = vadd.f32 %v3888, %v3936
    %3938 = vmatmul.bf16.gmra.mxu0 %v3640
    %v3939 = vpop.f32.mrf.mxu0
    %v3940 = vadd.f32 %v3891, %v3939
    %v3941 = vpop.f32.mrf.mxu0
    %v3942 = vadd.f32 %v3893, %v3941
    %3943 = vmatmul.bf16.gmra.mxu0 %v3643
    %v3944 = vpop.f32.mrf.mxu0
    %v3945 = vadd.f32 %v3896, %v3944
    %v3946 = vpop.f32.mrf.mxu0
    %v3947 = vadd.f32 %v3898, %v3946
    %3948 = vmatmul.bf16.gmra.mxu0 %v3646
    %v3949 = vpop.f32.mrf.mxu0
    %v3950 = vadd.f32 %v3901, %v3949
    %v3951 = vpop.f32.mrf.mxu0
    %v3952 = vadd.f32 %v3903, %v3951
    %3953 = vmatmul.bf16.gmra.mxu0 %v3649
    %v3954 = vpop.f32.mrf.mxu0
    %v3955 = vadd.f32 %v3906, %v3954
    %v3956 = vpop.f32.mrf.mxu0
    %v3957 = vadd.f32 %v3908, %v3956
    %3958 = vmatmul.bf16.gmra.mxu0 %v3652
    %v3959 = vpop.f32.mrf.mxu0
    %v3960 = vadd.f32 %v3911, %v3959
    %v3961 = vpop.f32.mrf.mxu0
    %v3962 = vadd.f32 %v3913, %v3961
    %3963 = vmatmul.bf16.gmra.mxu0 %v3655
    %v3964 = vpop.f32.mrf.mxu0
    %v3965 = vadd.f32 %v3916, %v3964
    %v3966 = vpop.f32.mrf.mxu0
    %v3967 = vadd.f32 %v3918, %v3966
    %3968 = vmatmul.bf16.gmra.mxu0 %v3658
    %v3969 = vpop.f32.mrf.mxu0
    %v3970 = vadd.f32 %v3921, %v3969
    %v3971 = vpop.f32.mrf.mxu0
    %v3972 = vadd.f32 %v3923, %v3971
    %3973 = vdwg.mxu0
    %3975 = vset.pattern.permute.xlu0 0
    %3976 = vperm.xlu0 %3975, %v622
    %v3977 = vpop.permute.xlu0 %3976
    %3980 = vset.pattern.permute.xlu0 0
    %3981 = vperm.xlu0 %3980, %v623
    %v3982 = vpop.permute.xlu0 %3981
    %3985 = vset.pattern.permute.xlu0 0
    %3986 = vperm.xlu0 %3985, %v624
    %v3987 = vpop.permute.xlu0 %3986
    %3990 = vset.pattern.permute.xlu0 0
    %3991 = vperm.xlu0 %3990, %v625
    %v3992 = vpop.permute.xlu0 %3991
    %3995 = vset.pattern.permute.xlu0 0
    %3996 = vperm.xlu0 %3995, %v626
    %v3997 = vpop.permute.xlu0 %3996
    %4000 = vset.pattern.permute.xlu0 0
    %4001 = vperm.xlu0 %4000, %v627
    %v4002 = vpop.permute.xlu0 %4001
    %4005 = vset.pattern.permute.xlu0 0
    %4006 = vperm.xlu0 %4005, %v628
    %v4007 = vpop.permute.xlu0 %4006
    %4010 = vset.pattern.permute.xlu0 0
    %4011 = vperm.xlu0 %4010, %v629
    %v4012 = vpop.permute.xlu0 %4011
    %4015 = vset.pattern.permute.xlu0 0
    %4016 = vperm.xlu0 %4015, %v630
    %v4017 = vpop.permute.xlu0 %4016
    %4020 = vset.pattern.permute.xlu0 0
    %4021 = vperm.xlu0 %4020, %v631
    %v4022 = vpop.permute.xlu0 %4021
    %4025 = vset.pattern.permute.xlu0 0
    %4026 = vperm.xlu0 %4025, %v632
    %v4027 = vpop.permute.xlu0 %4026
    %4030 = vset.pattern.permute.xlu0 0
    %4031 = vperm.xlu0 %4030, %v633
    %v4032 = vpop.permute.xlu0 %4031
    %4035 = vset.pattern.permute.xlu0 0
    %4036 = vperm.xlu0 %4035, %v634
    %v4037 = vpop.permute.xlu0 %4036
    %4040 = vset.pattern.permute.xlu0 0
    %4041 = vperm.xlu0 %4040, %v635
    %v4042 = vpop.permute.xlu0 %4041
    %4045 = vset.pattern.permute.xlu0 0
    %4046 = vperm.xlu0 %4045, %v636
    %v4047 = vpop.permute.xlu0 %4046
    %4050 = vset.pattern.permute.xlu0 0
    %4051 = vperm.xlu0 %4050, %v637
    %v4052 = vpop.permute.xlu0 %4051
    %v4054 = vmul.f32 %v3935, %v3977
    %v4055 = vmul.f32 %v3937, %v3982
    %v4056 = vmul.f32 %v3940, %v3987
    %v4057 = vmul.f32 %v3942, %v3992
    %v4058 = vmul.f32 %v3945, %v3997
    %v4059 = vmul.f32 %v3947, %v4002
    %v4060 = vmul.f32 %v3950, %v4007
    %v4061 = vmul.f32 %v3952, %v4012
    %v4062 = vmul.f32 %v3955, %v4017
    %v4063 = vmul.f32 %v3957, %v4022
    %v4064 = vmul.f32 %v3960, %v4027
    %v4065 = vmul.f32 %v3962, %v4032
    %v4066 = vmul.f32 %v3965, %v4037
    %v4067 = vmul.f32 %v3967, %v4042
    %v4068 = vmul.f32 %v3970, %v4047
    %v4069 = vmul.f32 %v3972, %v4052
    %v4070 = vld [vmem:[%s8] sm:$0x1]
    %v4072 = vsel %vm1553, %v4070, 0
    %4074 = vmatpush.bf16.msra.mxu0 0
    %4075 = vmatpush.bf16.msra.mxu0 0
    %4076 = vmatpush.bf16.msra.mxu0 0
    %4077 = vmatpush.bf16.msra.mxu0 0
    %4078 = vmatpush.bf16.msra.mxu0 0
    %4079 = vmatpush.bf16.msra.mxu0 0
    %4080 = vmatpush.bf16.msra.mxu0 0
    %4081 = vmatpush.bf16.msra.mxu0 %v4072
    %4082 = vmatmul.bf16.gmra.mxu0 %v1530
    %v4083 = vpop.f32.mrf.mxu0
    %v4084 = vadd.f32 0.0, %v4083
    %v4085 = vpop.f32.mrf.mxu0
    %v4086 = vadd.f32 0.0, %v4085
    %4087 = vmatmul.bf16.gmra.mxu0 %v1533
    %v4088 = vpop.f32.mrf.mxu0
    %v4089 = vadd.f32 0.0, %v4088
    %v4090 = vpop.f32.mrf.mxu0
    %v4091 = vadd.f32 0.0, %v4090
    %4092 = vmatmul.bf16.gmra.mxu0 %v1536
    %v4093 = vpop.f32.mrf.mxu0
    %v4094 = vadd.f32 0.0, %v4093
    %v4095 = vpop.f32.mrf.mxu0
    %v4096 = vadd.f32 0.0, %v4095
    %4097 = vmatmul.bf16.gmra.mxu0 %v1539
    %v4098 = vpop.f32.mrf.mxu0
    %v4099 = vadd.f32 0.0, %v4098
    %v4100 = vpop.f32.mrf.mxu0
    %v4101 = vadd.f32 0.0, %v4100
    %4102 = vmatmul.bf16.gmra.mxu0 %v1542
    %v4103 = vpop.f32.mrf.mxu0
    %v4104 = vadd.f32 0.0, %v4103
    %v4105 = vpop.f32.mrf.mxu0
    %v4106 = vadd.f32 0.0, %v4105
    %4107 = vmatmul.bf16.gmra.mxu0 %v1545
    %v4108 = vpop.f32.mrf.mxu0
    %v4109 = vadd.f32 0.0, %v4108
    %v4110 = vpop.f32.mrf.mxu0
    %v4111 = vadd.f32 0.0, %v4110
    %4112 = vmatmul.bf16.gmra.mxu0 %v1548
    %v4113 = vpop.f32.mrf.mxu0
    %v4114 = vadd.f32 0.0, %v4113
    %v4115 = vpop.f32.mrf.mxu0
    %v4116 = vadd.f32 0.0, %v4115
    %4117 = vmatmul.bf16.gmra.mxu0 %v1551
    %v4118 = vpop.f32.mrf.mxu0
    %v4119 = vadd.f32 0.0, %v4118
    %v4120 = vpop.f32.mrf.mxu0
    %v4121 = vadd.f32 0.0, %v4120
    %4122 = vdwg.mxu0
    %v4123 = vadd.f32 %v4054, %v4084
    %v4124 = vadd.f32 %v4055, %v4086
    %v4125 = vadd.f32 %v4056, %v4089
    %v4126 = vadd.f32 %v4057, %v4091
    %v4127 = vadd.f32 %v4058, %v4094
    %v4128 = vadd.f32 %v4059, %v4096
    %v4129 = vadd.f32 %v4060, %v4099
    %v4130 = vadd.f32 %v4061, %v4101
    %v4131 = vadd.f32 %v4062, %v4104
    %v4132 = vadd.f32 %v4063, %v4106
    %v4133 = vadd.f32 %v4064, %v4109
    %v4134 = vadd.f32 %v4065, %v4111
    %v4135 = vadd.f32 %v4066, %v4114
    %v4136 = vadd.f32 %v4067, %v4116
    %v4137 = vadd.f32 %v4068, %v4119
    %v4138 = vadd.f32 %v4069, %v4121
    %v4139 = vld [vmem:[%s9] sm:$0x1]
    %v4141 = vperm.slane %v4139, 0
    %v4143 = vadd.f32 %v4123, %v4141
    %v4144 = vadd.f32 %v4124, %v4141
    %v4145 = vadd.f32 %v4125, %v4141
    %v4146 = vadd.f32 %v4126, %v4141
    %v4147 = vadd.f32 %v4127, %v4141
    %v4148 = vadd.f32 %v4128, %v4141
    %v4149 = vadd.f32 %v4129, %v4141
    %v4150 = vadd.f32 %v4130, %v4141
    %v4151 = vadd.f32 %v4131, %v4141
    %v4152 = vadd.f32 %v4132, %v4141
    %v4153 = vadd.f32 %v4133, %v4141
    %v4154 = vadd.f32 %v4134, %v4141
    %v4155 = vadd.f32 %v4135, %v4141
    %v4156 = vadd.f32 %v4136, %v4141
    %v4157 = vadd.f32 %v4137, %v4141
    %v4158 = vadd.f32 %v4138, %v4141
    %4160 = vset.pattern.permute.xlu0 0
    %4161 = vperm.xlu0 %4160, %v638
    %v4162 = vpop.permute.xlu0 %4161
    %4165 = vset.pattern.permute.xlu0 0
    %4166 = vperm.xlu0 %4165, %v639
    %v4167 = vpop.permute.xlu0 %4166
    %4170 = vset.pattern.permute.xlu0 0
    %4171 = vperm.xlu0 %4170, %v640
    %v4172 = vpop.permute.xlu0 %4171
    %4175 = vset.pattern.permute.xlu0 0
    %4176 = vperm.xlu0 %4175, %v641
    %v4177 = vpop.permute.xlu0 %4176
    %4180 = vset.pattern.permute.xlu0 0
    %4181 = vperm.xlu0 %4180, %v642
    %v4182 = vpop.permute.xlu0 %4181
    %4185 = vset.pattern.permute.xlu0 0
    %4186 = vperm.xlu0 %4185, %v643
    %v4187 = vpop.permute.xlu0 %4186
    %4190 = vset.pattern.permute.xlu0 0
    %4191 = vperm.xlu0 %4190, %v644
    %v4192 = vpop.permute.xlu0 %4191
    %4195 = vset.pattern.permute.xlu0 0
    %4196 = vperm.xlu0 %4195, %v645
    %v4197 = vpop.permute.xlu0 %4196
    %4200 = vset.pattern.permute.xlu0 0
    %4201 = vperm.xlu0 %4200, %v646
    %v4202 = vpop.permute.xlu0 %4201
    %4205 = vset.pattern.permute.xlu0 0
    %4206 = vperm.xlu0 %4205, %v647
    %v4207 = vpop.permute.xlu0 %4206
    %4210 = vset.pattern.permute.xlu0 0
    %4211 = vperm.xlu0 %4210, %v648
    %v4212 = vpop.permute.xlu0 %4211
    %4215 = vset.pattern.permute.xlu0 0
    %4216 = vperm.xlu0 %4215, %v649
    %v4217 = vpop.permute.xlu0 %4216
    %4220 = vset.pattern.permute.xlu0 0
    %4221 = vperm.xlu0 %4220, %v650
    %v4222 = vpop.permute.xlu0 %4221
    %4225 = vset.pattern.permute.xlu0 0
    %4226 = vperm.xlu0 %4225, %v651
    %v4227 = vpop.permute.xlu0 %4226
    %4230 = vset.pattern.permute.xlu0 0
    %4231 = vperm.xlu0 %4230, %v652
    %v4232 = vpop.permute.xlu0 %4231
    %4235 = vset.pattern.permute.xlu0 0
    %4236 = vperm.xlu0 %4235, %v653
    %v4237 = vpop.permute.xlu0 %4236
    %v4239 = vmul.f32 %v4143, %v4162
    %v4240 = vmul.f32 %v4144, %v4167
    %v4241 = vmul.f32 %v4145, %v4172
    %v4242 = vmul.f32 %v4146, %v4177
    %v4243 = vmul.f32 %v4147, %v4182
    %v4244 = vmul.f32 %v4148, %v4187
    %v4245 = vmul.f32 %v4149, %v4192
    %v4246 = vmul.f32 %v4150, %v4197
    %v4247 = vmul.f32 %v4151, %v4202
    %v4248 = vmul.f32 %v4152, %v4207
    %v4249 = vmul.f32 %v4153, %v4212
    %v4250 = vmul.f32 %v4154, %v4217
    %v4251 = vmul.f32 %v4155, %v4222
    %v4252 = vmul.f32 %v4156, %v4227
    %v4253 = vmul.f32 %v4157, %v4232
    %v4254 = vmul.f32 %v4158, %v4237
    %vm4255 = vcmask 64512
    %v4256 = vsel %vm4255, %v4239, 0.0
    %v4257 = vsel %vm4255, %v4240, 0.0
    %v4258 = vadd.f32 %v4256, %v4257
    %v4259 = vsel %vm4255, %v4241, 0.0
    %v4260 = vadd.f32 %v4258, %v4259
    %v4261 = vsel %vm4255, %v4242, 0.0
    %v4262 = vadd.f32 %v4260, %v4261
    %v4263 = vsel %vm4255, %v4243, 0.0
    %v4264 = vadd.f32 %v4262, %v4263
    %v4265 = vsel %vm4255, %v4244, 0.0
    %v4266 = vadd.f32 %v4264, %v4265
    %v4267 = vsel %vm4255, %v4245, 0.0
    %v4268 = vadd.f32 %v4266, %v4267
    %v4269 = vsel %vm4255, %v4246, 0.0
    %v4270 = vadd.f32 %v4268, %v4269
    %v4271 = vsel %vm4255, %v4247, 0.0
    %v4272 = vadd.f32 %v4270, %v4271
    %v4273 = vsel %vm4255, %v4248, 0.0
    %v4274 = vadd.f32 %v4272, %v4273
    %v4275 = vsel %vm4255, %v4249, 0.0
    %v4276 = vadd.f32 %v4274, %v4275
    %v4277 = vsel %vm4255, %v4250, 0.0
    %v4278 = vadd.f32 %v4276, %v4277
    %v4279 = vsel %vm4255, %v4251, 0.0
    %v4280 = vadd.f32 %v4278, %v4279
    %v4281 = vsel %vm4255, %v4252, 0.0
    %v4282 = vadd.f32 %v4280, %v4281
    %v4283 = vsel %vm4255, %v4253, 0.0
    %v4284 = vadd.f32 %v4282, %v4283
    %v4285 = vsel %vm4255, %v4254, 0.0
    %v4286 = vadd.f32 %v4284, %v4285
    %v4287 = vrot.slane %v4286, 4
    %v4288 = vadd.f32 %v4286, %v4287
    %v4289 = vrot.slane %v4288, 2
    %v4290 = vadd.f32 %v4288, %v4289
    %v4291 = vrot.slane %v4290, 1
    %v4292 = vadd.f32 %v4290, %v4291
    %v4293 = vstv %s654
    %v4294 = vmul.f32 %v4292, %v4293
    %v4295 = vsub.f32 %v4143, %v4294
    %v4296 = vsub.f32 %v4144, %v4294
    %v4297 = vsub.f32 %v4145, %v4294
    %v4298 = vsub.f32 %v4146, %v4294
    %v4299 = vsub.f32 %v4147, %v4294
    %v4300 = vsub.f32 %v4148, %v4294
    %v4301 = vsub.f32 %v4149, %v4294
    %v4302 = vsub.f32 %v4150, %v4294
    %v4303 = vsub.f32 %v4151, %v4294
    %v4304 = vsub.f32 %v4152, %v4294
    %v4305 = vsub.f32 %v4153, %v4294
    %v4306 = vsub.f32 %v4154, %v4294
    %v4307 = vsub.f32 %v4155, %v4294
    %v4308 = vsub.f32 %v4156, %v4294
    %v4309 = vsub.f32 %v4157, %v4294
    %v4310 = vsub.f32 %v4158, %v4294
    %v4311 = vmul.f32 %v4295, %v4162
    %v4312 = vmul.f32 %v4296, %v4167
    %v4313 = vmul.f32 %v4297, %v4172
    %v4314 = vmul.f32 %v4298, %v4177
    %v4315 = vmul.f32 %v4299, %v4182
    %v4316 = vmul.f32 %v4300, %v4187
    %v4317 = vmul.f32 %v4301, %v4192
    %v4318 = vmul.f32 %v4302, %v4197
    %v4319 = vmul.f32 %v4303, %v4202
    %v4320 = vmul.f32 %v4304, %v4207
    %v4321 = vmul.f32 %v4305, %v4212
    %v4322 = vmul.f32 %v4306, %v4217
    %v4323 = vmul.f32 %v4307, %v4222
    %v4324 = vmul.f32 %v4308, %v4227
    %v4325 = vmul.f32 %v4309, %v4232
    %v4326 = vmul.f32 %v4310, %v4237
    %v4327 = vmul.f32 %v4311, %v4311
    %v4328 = vmul.f32 %v4312, %v4312
    %v4329 = vmul.f32 %v4313, %v4313
    %v4330 = vmul.f32 %v4314, %v4314
    %v4331 = vmul.f32 %v4315, %v4315
    %v4332 = vmul.f32 %v4316, %v4316
    %v4333 = vmul.f32 %v4317, %v4317
    %v4334 = vmul.f32 %v4318, %v4318
    %v4335 = vmul.f32 %v4319, %v4319
    %v4336 = vmul.f32 %v4320, %v4320
    %v4337 = vmul.f32 %v4321, %v4321
    %v4338 = vmul.f32 %v4322, %v4322
    %v4339 = vmul.f32 %v4323, %v4323
    %v4340 = vmul.f32 %v4324, %v4324
    %v4341 = vmul.f32 %v4325, %v4325
    %v4342 = vmul.f32 %v4326, %v4326
    %v4343 = vsel %vm4255, %v4327, 0.0
    %v4344 = vsel %vm4255, %v4328, 0.0
    %v4345 = vadd.f32 %v4343, %v4344
    %v4346 = vsel %vm4255, %v4329, 0.0
    %v4347 = vadd.f32 %v4345, %v4346
    %v4348 = vsel %vm4255, %v4330, 0.0
    %v4349 = vadd.f32 %v4347, %v4348
    %v4350 = vsel %vm4255, %v4331, 0.0
    %v4351 = vadd.f32 %v4349, %v4350
    %v4352 = vsel %vm4255, %v4332, 0.0
    %v4353 = vadd.f32 %v4351, %v4352
    %v4354 = vsel %vm4255, %v4333, 0.0
    %v4355 = vadd.f32 %v4353, %v4354
    %v4356 = vsel %vm4255, %v4334, 0.0
    %v4357 = vadd.f32 %v4355, %v4356
    %v4358 = vsel %vm4255, %v4335, 0.0
    %v4359 = vadd.f32 %v4357, %v4358
    %v4360 = vsel %vm4255, %v4336, 0.0
    %v4361 = vadd.f32 %v4359, %v4360
    %v4362 = vsel %vm4255, %v4337, 0.0
    %v4363 = vadd.f32 %v4361, %v4362
    %v4364 = vsel %vm4255, %v4338, 0.0
    %v4365 = vadd.f32 %v4363, %v4364
    %v4366 = vsel %vm4255, %v4339, 0.0
    %v4367 = vadd.f32 %v4365, %v4366
    %v4368 = vsel %vm4255, %v4340, 0.0
    %v4369 = vadd.f32 %v4367, %v4368
    %v4370 = vsel %vm4255, %v4341, 0.0
    %v4371 = vadd.f32 %v4369, %v4370
    %v4372 = vsel %vm4255, %v4342, 0.0
    %v4373 = vadd.f32 %v4371, %v4372
    %v4374 = vrot.slane %v4373, 4
    %v4375 = vadd.f32 %v4373, %v4374
    %v4376 = vrot.slane %v4375, 2
    %v4377 = vadd.f32 %v4375, %v4376
    %v4378 = vrot.slane %v4377, 1
    %v4379 = vadd.f32 %v4377, %v4378
    %v4380 = vmul.f32 %v4379, %v4293
    %v4381 = vld [vmem:[%s10] sm:$0x1]
    %v4382 = vadd.f32 %v4380, 1e-05
    %v4383 = vrsqrt.pop %v4382
    %v4384 = vmul.f32 %v4383, %v4382
    %v4385 = vmul.f32 %v4384, %v4383
    %v4386 = vmul.f32 0.5, %v4385
    %v4387 = vsub.f32 1.5, %v4386
    %v4388 = vmul.f32 %v4383, %v4387
    %vm4389 = vweird.f32 %v4382
    %vm4390 = vweird.f32 %v4383
    %vm4391 = vmor %vm4389, %vm4390
    %v4392 = vsel %vm4391, %v4383, %v4388
    %v4393 = vmul.f32 %v4295, %v4392
    %v4394 = vmul.f32 %v4296, %v4392
    %v4395 = vmul.f32 %v4297, %v4392
    %v4396 = vmul.f32 %v4298, %v4392
    %v4397 = vmul.f32 %v4299, %v4392
    %v4398 = vmul.f32 %v4300, %v4392
    %v4399 = vmul.f32 %v4301, %v4392
    %v4400 = vmul.f32 %v4302, %v4392
    %v4401 = vmul.f32 %v4303, %v4392
    %v4402 = vmul.f32 %v4304, %v4392
    %v4403 = vmul.f32 %v4305, %v4392
    %v4404 = vmul.f32 %v4306, %v4392
    %v4405 = vmul.f32 %v4307, %v4392
    %v4406 = vmul.f32 %v4308, %v4392
    %v4407 = vmul.f32 %v4309, %v4392
    %v4408 = vmul.f32 %v4310, %v4392
    %v4410 = vperm.slane %v4381, 0
    %v4412 = vmul.f32 %v4410, %v4393
    %v4413 = vmul.f32 %v4410, %v4394
    %v4414 = vmul.f32 %v4410, %v4395
    %v4415 = vmul.f32 %v4410, %v4396
    %v4416 = vmul.f32 %v4410, %v4397
    %v4417 = vmul.f32 %v4410, %v4398
    %v4418 = vmul.f32 %v4410, %v4399
    %v4419 = vmul.f32 %v4410, %v4400
    %v4420 = vmul.f32 %v4410, %v4401
    %v4421 = vmul.f32 %v4410, %v4402
    %v4422 = vmul.f32 %v4410, %v4403
    %v4423 = vmul.f32 %v4410, %v4404
    %v4424 = vmul.f32 %v4410, %v4405
    %v4425 = vmul.f32 %v4410, %v4406
    %v4426 = vmul.f32 %v4410, %v4407
    %v4427 = vmul.f32 %v4410, %v4408
    %v4428 = vld [vmem:[%s11] sm:$0x1]
    %v4430 = vperm.slane %v4428, 0
    %v4432 = vadd.f32 %v4412, %v4430
    %v4433 = vadd.f32 %v4413, %v4430
    %v4434 = vadd.f32 %v4414, %v4430
    %v4435 = vadd.f32 %v4415, %v4430
    %v4436 = vadd.f32 %v4416, %v4430
    %v4437 = vadd.f32 %v4417, %v4430
    %v4438 = vadd.f32 %v4418, %v4430
    %v4439 = vadd.f32 %v4419, %v4430
    %v4440 = vadd.f32 %v4420, %v4430
    %v4441 = vadd.f32 %v4421, %v4430
    %v4442 = vadd.f32 %v4422, %v4430
    %v4443 = vadd.f32 %v4423, %v4430
    %v4444 = vadd.f32 %v4424, %v4430
    %v4445 = vadd.f32 %v4425, %v4430
    %v4446 = vadd.f32 %v4426, %v4430
    %v4447 = vadd.f32 %v4427, %v4430
    %v4448 = vmax.f32 %v4432, 0.0
    %v4449 = vmax.f32 %v4433, 0.0
    %v4450 = vmax.f32 %v4434, 0.0
    %v4451 = vmax.f32 %v4435, 0.0
    %v4452 = vmax.f32 %v4436, 0.0
    %v4453 = vmax.f32 %v4437, 0.0
    %v4454 = vmax.f32 %v4438, 0.0
    %v4455 = vmax.f32 %v4439, 0.0
    %v4456 = vmax.f32 %v4440, 0.0
    %v4457 = vmax.f32 %v4441, 0.0
    %v4458 = vmax.f32 %v4442, 0.0
    %v4459 = vmax.f32 %v4443, 0.0
    %v4460 = vmax.f32 %v4444, 0.0
    %v4461 = vmax.f32 %v4445, 0.0
    %v4462 = vmax.f32 %v4446, 0.0
    %v4463 = vmax.f32 %v4447, 0.0
    %v4464 = vmul.f32 %v4448, %v4162
    %v4465 = vmul.f32 %v4449, %v4167
    %v4466 = vmul.f32 %v4450, %v4172
    %v4467 = vmul.f32 %v4451, %v4177
    %v4468 = vmul.f32 %v4452, %v4182
    %v4469 = vmul.f32 %v4453, %v4187
    %v4470 = vmul.f32 %v4454, %v4192
    %v4471 = vmul.f32 %v4455, %v4197
    %v4472 = vmul.f32 %v4456, %v4202
    %v4473 = vmul.f32 %v4457, %v4207
    %v4474 = vmul.f32 %v4458, %v4212
    %v4475 = vmul.f32 %v4459, %v4217
    %v4476 = vmul.f32 %v4460, %v4222
    %v4477 = vmul.f32 %v4461, %v4227
    %v4478 = vmul.f32 %v4462, %v4232
    %v4479 = vmul.f32 %v4463, %v4237
    %v4480 = vpack.c.bf16 %v4465, %v4464
    %v4481 = vpack.c.bf16 %v4467, %v4466
    %v4482 = vpack.c.bf16 %v4469, %v4468
    %v4483 = vpack.c.bf16 %v4471, %v4470
    %v4484 = vpack.c.bf16 %v4473, %v4472
    %v4485 = vpack.c.bf16 %v4475, %v4474
    %v4486 = vpack.c.bf16 %v4477, %v4476
    %v4487 = vpack.c.bf16 %v4479, %v4478
    %v4488 = vld [vmem:[#allocation2] sm:$0xf]
    %v4489 = vld [vmem:[#allocation2 + $0x4] sm:$0xf]
    %v4490 = vld [vmem:[#allocation2 + $0x8] sm:$0xf]
    %v4491 = vld [vmem:[#allocation2 + $0xc] sm:$0xf]
    %v4492 = vld [vmem:[#allocation2 + $0x10] sm:$0xf]
    %v4493 = vld [vmem:[#allocation2 + $0x14] sm:$0xf]
    %v4494 = vld [vmem:[#allocation2 + $0x18] sm:$0xf]
    %v4495 = vld [vmem:[#allocation2 + $0x1c] sm:$0xf]
    %v4496 = vld [vmem:[#allocation2 + $0x20] sm:$0xf]
    %v4497 = vld [vmem:[#allocation2 + $0x24] sm:$0xf]
    %v4498 = vld [vmem:[#allocation2 + $0x28] sm:$0xf]
    %v4499 = vld [vmem:[#allocation2 + $0x2c] sm:$0xf]
    %v4500 = vld [vmem:[#allocation2 + $0x30] sm:$0xf]
    %v4501 = vld [vmem:[#allocation2 + $0x34] sm:$0xf]
    %v4502 = vld [vmem:[#allocation2 + $0x38] sm:$0xf]
    %v4503 = vld [vmem:[#allocation2 + $0x3c] sm:$0xf]
    %s4504 = sld [smem:[#allocation10]]
    %p4506 = scmp.ne.f32.partialorder %s4504, %s4504
    %s4507 = sshrl.u32 %s4504, 16
    %s4508 = sand.u32 %s4507, 1
    %s4509 = sadd.s32 32767, %s4508
    %s4510 = sadd.s32 %s4504, %s4509
    %s4511 = sand.u32 %s4510, 4294901760
    %s4512 = scalar_select %p4506, 2143289344, %s4511
    %s4514 = sshrl.u32 %s4512, 16
    %s4515 = sshll.u32 %s4514, 16
    %s4516 = sor.u32 %s4514, %s4515
    %v4517 = vstv %s4516
    %v4519 = vunpack.c.l.bf16 %v4488
    %v4520 = vunpack.c.l.bf16 %v4489
    %v4521 = vunpack.c.l.bf16 %v4490
    %v4522 = vunpack.c.l.bf16 %v4491
    %v4523 = vunpack.c.l.bf16 %v4492
    %v4524 = vunpack.c.l.bf16 %v4493
    %v4525 = vunpack.c.l.bf16 %v4494
    %v4526 = vunpack.c.l.bf16 %v4495
    %v4527 = vunpack.c.l.bf16 %v4496
    %v4528 = vunpack.c.l.bf16 %v4497
    %v4529 = vunpack.c.l.bf16 %v4498
    %v4530 = vunpack.c.l.bf16 %v4499
    %v4531 = vunpack.c.l.bf16 %v4500
    %v4532 = vunpack.c.l.bf16 %v4501
    %v4533 = vunpack.c.l.bf16 %v4502
    %v4534 = vunpack.c.l.bf16 %v4503
    %v4535 = vunpack.c.l.bf16 %v4517
    %v4536 = vsub.f32 %v4519, %v4535
    %v4537 = vsub.f32 %v4520, %v4535
    %v4538 = vsub.f32 %v4521, %v4535
    %v4539 = vsub.f32 %v4522, %v4535
    %v4540 = vsub.f32 %v4523, %v4535
    %v4541 = vsub.f32 %v4524, %v4535
    %v4542 = vsub.f32 %v4525, %v4535
    %v4543 = vsub.f32 %v4526, %v4535
    %v4544 = vsub.f32 %v4527, %v4535
    %v4545 = vsub.f32 %v4528, %v4535
    %v4546 = vsub.f32 %v4529, %v4535
    %v4547 = vsub.f32 %v4530, %v4535
    %v4548 = vsub.f32 %v4531, %v4535
    %v4549 = vsub.f32 %v4532, %v4535
    %v4550 = vsub.f32 %v4533, %v4535
    %v4551 = vsub.f32 %v4534, %v4535
    %v4552 = vpack.c.bf16 %v4536, %v4536
    %v4553 = vpack.c.bf16 %v4537, %v4537
    %v4554 = vpack.c.bf16 %v4538, %v4538
    %v4555 = vpack.c.bf16 %v4539, %v4539
    %v4556 = vpack.c.bf16 %v4540, %v4540
    %v4557 = vpack.c.bf16 %v4541, %v4541
    %v4558 = vpack.c.bf16 %v4542, %v4542
    %v4559 = vpack.c.bf16 %v4543, %v4543
    %v4560 = vpack.c.bf16 %v4544, %v4544
    %v4561 = vpack.c.bf16 %v4545, %v4545
    %v4562 = vpack.c.bf16 %v4546, %v4546
    %v4563 = vpack.c.bf16 %v4547, %v4547
    %v4564 = vpack.c.bf16 %v4548, %v4548
    %v4565 = vpack.c.bf16 %v4549, %v4549
    %v4566 = vpack.c.bf16 %v4550, %v4550
    %v4567 = vpack.c.bf16 %v4551, %v4551
    %v4568 = vunpack.c.l.bf16 %v4552
    %v4569 = vunpack.c.l.bf16 %v4553
    %v4570 = vunpack.c.l.bf16 %v4554
    %v4571 = vunpack.c.l.bf16 %v4555
    %v4572 = vunpack.c.l.bf16 %v4556
    %v4573 = vunpack.c.l.bf16 %v4557
    %v4574 = vunpack.c.l.bf16 %v4558
    %v4575 = vunpack.c.l.bf16 %v4559
    %v4576 = vunpack.c.l.bf16 %v4560
    %v4577 = vunpack.c.l.bf16 %v4561
    %v4578 = vunpack.c.l.bf16 %v4562
    %v4579 = vunpack.c.l.bf16 %v4563
    %v4580 = vunpack.c.l.bf16 %v4564
    %v4581 = vunpack.c.l.bf16 %v4565
    %v4582 = vunpack.c.l.bf16 %v4566
    %v4583 = vunpack.c.l.bf16 %v4567
    %v4584 = vmul.f32 %v4568, %v4568
    %v4585 = vmul.f32 %v4569, %v4569
    %v4586 = vmul.f32 %v4570, %v4570
    %v4587 = vmul.f32 %v4571, %v4571
    %v4588 = vmul.f32 %v4572, %v4572
    %v4589 = vmul.f32 %v4573, %v4573
    %v4590 = vmul.f32 %v4574, %v4574
    %v4591 = vmul.f32 %v4575, %v4575
    %v4592 = vmul.f32 %v4576, %v4576
    %v4593 = vmul.f32 %v4577, %v4577
    %v4594 = vmul.f32 %v4578, %v4578
    %v4595 = vmul.f32 %v4579, %v4579
    %v4596 = vmul.f32 %v4580, %v4580
    %v4597 = vmul.f32 %v4581, %v4581
    %v4598 = vmul.f32 %v4582, %v4582
    %v4599 = vmul.f32 %v4583, %v4583
    %v4600 = vpack.c.bf16 %v4584, %v4584
    %v4601 = vpack.c.bf16 %v4585, %v4585
    %v4602 = vpack.c.bf16 %v4586, %v4586
    %v4603 = vpack.c.bf16 %v4587, %v4587
    %v4604 = vpack.c.bf16 %v4588, %v4588
    %v4605 = vpack.c.bf16 %v4589, %v4589
    %v4606 = vpack.c.bf16 %v4590, %v4590
    %v4607 = vpack.c.bf16 %v4591, %v4591
    %v4608 = vpack.c.bf16 %v4592, %v4592
    %v4609 = vpack.c.bf16 %v4593, %v4593
    %v4610 = vpack.c.bf16 %v4594, %v4594
    %v4611 = vpack.c.bf16 %v4595, %v4595
    %v4612 = vpack.c.bf16 %v4596, %v4596
    %v4613 = vpack.c.bf16 %v4597, %v4597
    %v4614 = vpack.c.bf16 %v4598, %v4598
    %v4615 = vpack.c.bf16 %v4599, %v4599
    %s4616 = sld [smem:[#allocation11]]
    %p4618 = scmp.ne.f32.partialorder %s4616, %s4616
    %s4619 = sshrl.u32 %s4616, 16
    %s4620 = sand.u32 %s4619, 1
    %s4621 = sadd.s32 32767, %s4620
    %s4622 = sadd.s32 %s4616, %s4621
    %s4623 = sand.u32 %s4622, 4294901760
    %s4624 = scalar_select %p4618, 2143289344, %s4623
    %s4626 = sshrl.u32 %s4624, 16
    %s4627 = sshll.u32 %s4626, 16
    %s4628 = sor.u32 %s4626, %s4627
    %v4629 = vstv %s4628
    %v4631 = vunpack.c.l.bf16 %v4600
    %v4632 = vunpack.c.l.bf16 %v4601
    %v4633 = vunpack.c.l.bf16 %v4602
    %v4634 = vunpack.c.l.bf16 %v4603
    %v4635 = vunpack.c.l.bf16 %v4604
    %v4636 = vunpack.c.l.bf16 %v4605
    %v4637 = vunpack.c.l.bf16 %v4606
    %v4638 = vunpack.c.l.bf16 %v4607
    %v4639 = vunpack.c.l.bf16 %v4608
    %v4640 = vunpack.c.l.bf16 %v4609
    %v4641 = vunpack.c.l.bf16 %v4610
    %v4642 = vunpack.c.l.bf16 %v4611
    %v4643 = vunpack.c.l.bf16 %v4612
    %v4644 = vunpack.c.l.bf16 %v4613
    %v4645 = vunpack.c.l.bf16 %v4614
    %v4646 = vunpack.c.l.bf16 %v4615
    %v4647 = vunpack.c.l.bf16 %v4629
    %v4648 = vmul.f32 %v4631, %v4647
    %v4649 = vmul.f32 %v4632, %v4647
    %v4650 = vmul.f32 %v4633, %v4647
    %v4651 = vmul.f32 %v4634, %v4647
    %v4652 = vmul.f32 %v4635, %v4647
    %v4653 = vmul.f32 %v4636, %v4647
    %v4654 = vmul.f32 %v4637, %v4647
    %v4655 = vmul.f32 %v4638, %v4647
    %v4656 = vmul.f32 %v4639, %v4647
    %v4657 = vmul.f32 %v4640, %v4647
    %v4658 = vmul.f32 %v4641, %v4647
    %v4659 = vmul.f32 %v4642, %v4647
    %v4660 = vmul.f32 %v4643, %v4647
    %v4661 = vmul.f32 %v4644, %v4647
    %v4662 = vmul.f32 %v4645, %v4647
    %v4663 = vmul.f32 %v4646, %v4647
    %v4664 = vpack.c.bf16 %v4648, %v4648
    %v4665 = vpack.c.bf16 %v4649, %v4649
    %v4666 = vpack.c.bf16 %v4650, %v4650
    %v4667 = vpack.c.bf16 %v4651, %v4651
    %v4668 = vpack.c.bf16 %v4652, %v4652
    %v4669 = vpack.c.bf16 %v4653, %v4653
    %v4670 = vpack.c.bf16 %v4654, %v4654
    %v4671 = vpack.c.bf16 %v4655, %v4655
    %v4672 = vpack.c.bf16 %v4656, %v4656
    %v4673 = vpack.c.bf16 %v4657, %v4657
    %v4674 = vpack.c.bf16 %v4658, %v4658
    %v4675 = vpack.c.bf16 %v4659, %v4659
    %v4676 = vpack.c.bf16 %v4660, %v4660
    %v4677 = vpack.c.bf16 %v4661, %v4661
    %v4678 = vpack.c.bf16 %v4662, %v4662
    %v4679 = vpack.c.bf16 %v4663, %v4663
    %v4680 = vld [vmem:[%s426] sm:$0xf]
    %v4681 = vld [vmem:[%s426 + $0x4] sm:$0xf]
    %v4682 = vld [vmem:[%s426 + $0x8] sm:$0xf]
    %v4683 = vld [vmem:[%s426 + $0xc] sm:$0xf]
    %v4684 = vld [vmem:[%s426 + $0x10] sm:$0xf]
    %v4685 = vld [vmem:[%s426 + $0x14] sm:$0xf]
    %v4686 = vld [vmem:[%s426 + $0x18] sm:$0xf]
    %v4687 = vld [vmem:[%s426 + $0x1c] sm:$0xf]
    %v4688 = vld [vmem:[%s426 + $0x20] sm:$0xf]
    %v4689 = vld [vmem:[%s426 + $0x24] sm:$0xf]
    %v4690 = vld [vmem:[%s426 + $0x28] sm:$0xf]
    %v4691 = vld [vmem:[%s426 + $0x2c] sm:$0xf]
    %v4692 = vld [vmem:[%s426 + $0x30] sm:$0xf]
    %v4693 = vld [vmem:[%s426 + $0x34] sm:$0xf]
    %v4694 = vld [vmem:[%s426 + $0x38] sm:$0xf]
    %v4695 = vld [vmem:[%s426 + $0x3c] sm:$0xf]
    %s4696 = sld [smem:[#allocation10 + $0x1]]
    %p4698 = scmp.ne.f32.partialorder %s4696, %s4696
    %s4699 = sshrl.u32 %s4696, 16
    %s4700 = sand.u32 %s4699, 1
    %s4701 = sadd.s32 32767, %s4700
    %s4702 = sadd.s32 %s4696, %s4701
    %s4703 = sand.u32 %s4702, 4294901760
    %s4704 = scalar_select %p4698, 2143289344, %s4703
    %s4706 = sshrl.u32 %s4704, 16
    %s4707 = sshll.u32 %s4706, 16
    %s4708 = sor.u32 %s4706, %s4707
    %v4709 = vstv %s4708
    %v4711 = vunpack.c.l.bf16 %v4680
    %v4712 = vunpack.c.l.bf16 %v4681
    %v4713 = vunpack.c.l.bf16 %v4682
    %v4714 = vunpack.c.l.bf16 %v4683
    %v4715 = vunpack.c.l.bf16 %v4684
    %v4716 = vunpack.c.l.bf16 %v4685
    %v4717 = vunpack.c.l.bf16 %v4686
    %v4718 = vunpack.c.l.bf16 %v4687
    %v4719 = vunpack.c.l.bf16 %v4688
    %v4720 = vunpack.c.l.bf16 %v4689
    %v4721 = vunpack.c.l.bf16 %v4690
    %v4722 = vunpack.c.l.bf16 %v4691
    %v4723 = vunpack.c.l.bf16 %v4692
    %v4724 = vunpack.c.l.bf16 %v4693
    %v4725 = vunpack.c.l.bf16 %v4694
    %v4726 = vunpack.c.l.bf16 %v4695
    %v4727 = vunpack.c.l.bf16 %v4709
    %v4728 = vsub.f32 %v4711, %v4727
    %v4729 = vsub.f32 %v4712, %v4727
    %v4730 = vsub.f32 %v4713, %v4727
    %v4731 = vsub.f32 %v4714, %v4727
    %v4732 = vsub.f32 %v4715, %v4727
    %v4733 = vsub.f32 %v4716, %v4727
    %v4734 = vsub.f32 %v4717, %v4727
    %v4735 = vsub.f32 %v4718, %v4727
    %v4736 = vsub.f32 %v4719, %v4727
    %v4737 = vsub.f32 %v4720, %v4727
    %v4738 = vsub.f32 %v4721, %v4727
    %v4739 = vsub.f32 %v4722, %v4727
    %v4740 = vsub.f32 %v4723, %v4727
    %v4741 = vsub.f32 %v4724, %v4727
    %v4742 = vsub.f32 %v4725, %v4727
    %v4743 = vsub.f32 %v4726, %v4727
    %v4744 = vpack.c.bf16 %v4728, %v4728
    %v4745 = vpack.c.bf16 %v4729, %v4729
    %v4746 = vpack.c.bf16 %v4730, %v4730
    %v4747 = vpack.c.bf16 %v4731, %v4731
    %v4748 = vpack.c.bf16 %v4732, %v4732
    %v4749 = vpack.c.bf16 %v4733, %v4733
    %v4750 = vpack.c.bf16 %v4734, %v4734
    %v4751 = vpack.c.bf16 %v4735, %v4735
    %v4752 = vpack.c.bf16 %v4736, %v4736
    %v4753 = vpack.c.bf16 %v4737, %v4737
    %v4754 = vpack.c.bf16 %v4738, %v4738
    %v4755 = vpack.c.bf16 %v4739, %v4739
    %v4756 = vpack.c.bf16 %v4740, %v4740
    %v4757 = vpack.c.bf16 %v4741, %v4741
    %v4758 = vpack.c.bf16 %v4742, %v4742
    %v4759 = vpack.c.bf16 %v4743, %v4743
    %v4760 = vunpack.c.l.bf16 %v4744
    %v4761 = vunpack.c.l.bf16 %v4745
    %v4762 = vunpack.c.l.bf16 %v4746
    %v4763 = vunpack.c.l.bf16 %v4747
    %v4764 = vunpack.c.l.bf16 %v4748
    %v4765 = vunpack.c.l.bf16 %v4749
    %v4766 = vunpack.c.l.bf16 %v4750
    %v4767 = vunpack.c.l.bf16 %v4751
    %v4768 = vunpack.c.l.bf16 %v4752
    %v4769 = vunpack.c.l.bf16 %v4753
    %v4770 = vunpack.c.l.bf16 %v4754
    %v4771 = vunpack.c.l.bf16 %v4755
    %v4772 = vunpack.c.l.bf16 %v4756
    %v4773 = vunpack.c.l.bf16 %v4757
    %v4774 = vunpack.c.l.bf16 %v4758
    %v4775 = vunpack.c.l.bf16 %v4759
    %v4776 = vmul.f32 %v4760, %v4760
    %v4777 = vmul.f32 %v4761, %v4761
    %v4778 = vmul.f32 %v4762, %v4762
    %v4779 = vmul.f32 %v4763, %v4763
    %v4780 = vmul.f32 %v4764, %v4764
    %v4781 = vmul.f32 %v4765, %v4765
    %v4782 = vmul.f32 %v4766, %v4766
    %v4783 = vmul.f32 %v4767, %v4767
    %v4784 = vmul.f32 %v4768, %v4768
    %v4785 = vmul.f32 %v4769, %v4769
    %v4786 = vmul.f32 %v4770, %v4770
    %v4787 = vmul.f32 %v4771, %v4771
    %v4788 = vmul.f32 %v4772, %v4772
    %v4789 = vmul.f32 %v4773, %v4773
    %v4790 = vmul.f32 %v4774, %v4774
    %v4791 = vmul.f32 %v4775, %v4775
    %v4792 = vpack.c.bf16 %v4776, %v4776
    %v4793 = vpack.c.bf16 %v4777, %v4777
    %v4794 = vpack.c.bf16 %v4778, %v4778
    %v4795 = vpack.c.bf16 %v4779, %v4779
    %v4796 = vpack.c.bf16 %v4780, %v4780
    %v4797 = vpack.c.bf16 %v4781, %v4781
    %v4798 = vpack.c.bf16 %v4782, %v4782
    %v4799 = vpack.c.bf16 %v4783, %v4783
    %v4800 = vpack.c.bf16 %v4784, %v4784
    %v4801 = vpack.c.bf16 %v4785, %v4785
    %v4802 = vpack.c.bf16 %v4786, %v4786
    %v4803 = vpack.c.bf16 %v4787, %v4787
    %v4804 = vpack.c.bf16 %v4788, %v4788
    %v4805 = vpack.c.bf16 %v4789, %v4789
    %v4806 = vpack.c.bf16 %v4790, %v4790
    %v4807 = vpack.c.bf16 %v4791, %v4791
    %s4808 = sld [smem:[#allocation11 + $0x1]]
    %p4810 = scmp.ne.f32.partialorder %s4808, %s4808
    %s4811 = sshrl.u32 %s4808, 16
    %s4812 = sand.u32 %s4811, 1
    %s4813 = sadd.s32 32767, %s4812
    %s4814 = sadd.s32 %s4808, %s4813
    %s4815 = sand.u32 %s4814, 4294901760
    %s4816 = scalar_select %p4810, 2143289344, %s4815
    %s4818 = sshrl.u32 %s4816, 16
    %s4819 = sshll.u32 %s4818, 16
    %s4820 = sor.u32 %s4818, %s4819
    %v4821 = vstv %s4820
    %v4823 = vunpack.c.l.bf16 %v4792
    %v4824 = vunpack.c.l.bf16 %v4793
    %v4825 = vunpack.c.l.bf16 %v4794
    %v4826 = vunpack.c.l.bf16 %v4795
    %v4827 = vunpack.c.l.bf16 %v4796
    %v4828 = vunpack.c.l.bf16 %v4797
    %v4829 = vunpack.c.l.bf16 %v4798
    %v4830 = vunpack.c.l.bf16 %v4799
    %v4831 = vunpack.c.l.bf16 %v4800
    %v4832 = vunpack.c.l.bf16 %v4801
    %v4833 = vunpack.c.l.bf16 %v4802
    %v4834 = vunpack.c.l.bf16 %v4803
    %v4835 = vunpack.c.l.bf16 %v4804
    %v4836 = vunpack.c.l.bf16 %v4805
    %v4837 = vunpack.c.l.bf16 %v4806
    %v4838 = vunpack.c.l.bf16 %v4807
    %v4839 = vunpack.c.l.bf16 %v4821
    %v4840 = vmul.f32 %v4823, %v4839
    %v4841 = vmul.f32 %v4824, %v4839
    %v4842 = vmul.f32 %v4825, %v4839
    %v4843 = vmul.f32 %v4826, %v4839
    %v4844 = vmul.f32 %v4827, %v4839
    %v4845 = vmul.f32 %v4828, %v4839
    %v4846 = vmul.f32 %v4829, %v4839
    %v4847 = vmul.f32 %v4830, %v4839
    %v4848 = vmul.f32 %v4831, %v4839
    %v4849 = vmul.f32 %v4832, %v4839
    %v4850 = vmul.f32 %v4833, %v4839
    %v4851 = vmul.f32 %v4834, %v4839
    %v4852 = vmul.f32 %v4835, %v4839
    %v4853 = vmul.f32 %v4836, %v4839
    %v4854 = vmul.f32 %v4837, %v4839
    %v4855 = vmul.f32 %v4838, %v4839
    %v4856 = vpack.c.bf16 %v4840, %v4840
    %v4857 = vpack.c.bf16 %v4841, %v4841
    %v4858 = vpack.c.bf16 %v4842, %v4842
    %v4859 = vpack.c.bf16 %v4843, %v4843
    %v4860 = vpack.c.bf16 %v4844, %v4844
    %v4861 = vpack.c.bf16 %v4845, %v4845
    %v4862 = vpack.c.bf16 %v4846, %v4846
    %v4863 = vpack.c.bf16 %v4847, %v4847
    %v4864 = vpack.c.bf16 %v4848, %v4848
    %v4865 = vpack.c.bf16 %v4849, %v4849
    %v4866 = vpack.c.bf16 %v4850, %v4850
    %v4867 = vpack.c.bf16 %v4851, %v4851
    %v4868 = vpack.c.bf16 %v4852, %v4852
    %v4869 = vpack.c.bf16 %v4853, %v4853
    %v4870 = vpack.c.bf16 %v4854, %v4854
    %v4871 = vpack.c.bf16 %v4855, %v4855
    %v4872 = vunpack.c.l.bf16 %v4664
    %v4873 = vunpack.c.l.bf16 %v4665
    %v4874 = vunpack.c.l.bf16 %v4666
    %v4875 = vunpack.c.l.bf16 %v4667
    %v4876 = vunpack.c.l.bf16 %v4668
    %v4877 = vunpack.c.l.bf16 %v4669
    %v4878 = vunpack.c.l.bf16 %v4670
    %v4879 = vunpack.c.l.bf16 %v4671
    %v4880 = vunpack.c.l.bf16 %v4672
    %v4881 = vunpack.c.l.bf16 %v4673
    %v4882 = vunpack.c.l.bf16 %v4674
    %v4883 = vunpack.c.l.bf16 %v4675
    %v4884 = vunpack.c.l.bf16 %v4676
    %v4885 = vunpack.c.l.bf16 %v4677
    %v4886 = vunpack.c.l.bf16 %v4678
    %v4887 = vunpack.c.l.bf16 %v4679
    %v4888 = vunpack.c.l.bf16 %v4856
    %v4889 = vunpack.c.l.bf16 %v4857
    %v4890 = vunpack.c.l.bf16 %v4858
    %v4891 = vunpack.c.l.bf16 %v4859
    %v4892 = vunpack.c.l.bf16 %v4860
    %v4893 = vunpack.c.l.bf16 %v4861
    %v4894 = vunpack.c.l.bf16 %v4862
    %v4895 = vunpack.c.l.bf16 %v4863
    %v4896 = vunpack.c.l.bf16 %v4864
    %v4897 = vunpack.c.l.bf16 %v4865
    %v4898 = vunpack.c.l.bf16 %v4866
    %v4899 = vunpack.c.l.bf16 %v4867
    %v4900 = vunpack.c.l.bf16 %v4868
    %v4901 = vunpack.c.l.bf16 %v4869
    %v4902 = vunpack.c.l.bf16 %v4870
    %v4903 = vunpack.c.l.bf16 %v4871
    %v4904 = vadd.f32 %v4872, %v4888
    %v4905 = vadd.f32 %v4873, %v4889
    %v4906 = vadd.f32 %v4874, %v4890
    %v4907 = vadd.f32 %v4875, %v4891
    %v4908 = vadd.f32 %v4876, %v4892
    %v4909 = vadd.f32 %v4877, %v4893
    %v4910 = vadd.f32 %v4878, %v4894
    %v4911 = vadd.f32 %v4879, %v4895
    %v4912 = vadd.f32 %v4880, %v4896
    %v4913 = vadd.f32 %v4881, %v4897
    %v4914 = vadd.f32 %v4882, %v4898
    %v4915 = vadd.f32 %v4883, %v4899
    %v4916 = vadd.f32 %v4884, %v4900
    %v4917 = vadd.f32 %v4885, %v4901
    %v4918 = vadd.f32 %v4886, %v4902
    %v4919 = vadd.f32 %v4887, %v4903
    %v4920 = vpack.c.bf16 %v4904, %v4904
    %v4921 = vpack.c.bf16 %v4905, %v4905
    %v4922 = vpack.c.bf16 %v4906, %v4906
    %v4923 = vpack.c.bf16 %v4907, %v4907
    %v4924 = vpack.c.bf16 %v4908, %v4908
    %v4925 = vpack.c.bf16 %v4909, %v4909
    %v4926 = vpack.c.bf16 %v4910, %v4910
    %v4927 = vpack.c.bf16 %v4911, %v4911
    %v4928 = vpack.c.bf16 %v4912, %v4912
    %v4929 = vpack.c.bf16 %v4913, %v4913
    %v4930 = vpack.c.bf16 %v4914, %v4914
    %v4931 = vpack.c.bf16 %v4915, %v4915
    %v4932 = vpack.c.bf16 %v4916, %v4916
    %v4933 = vpack.c.bf16 %v4917, %v4917
    %v4934 = vpack.c.bf16 %v4918, %v4918
    %v4935 = vpack.c.bf16 %v4919, %v4919
    %v4936 = vld [vmem:[%s589] sm:$0xf]
    %v4937 = vld [vmem:[%s589 + $0x4] sm:$0xf]
    %v4938 = vld [vmem:[%s589 + $0x8] sm:$0xf]
    %v4939 = vld [vmem:[%s589 + $0xc] sm:$0xf]
    %v4940 = vld [vmem:[%s589 + $0x10] sm:$0xf]
    %v4941 = vld [vmem:[%s589 + $0x14] sm:$0xf]
    %v4942 = vld [vmem:[%s589 + $0x18] sm:$0xf]
    %v4943 = vld [vmem:[%s589 + $0x1c] sm:$0xf]
    %v4944 = vld [vmem:[%s589 + $0x20] sm:$0xf]
    %v4945 = vld [vmem:[%s589 + $0x24] sm:$0xf]
    %v4946 = vld [vmem:[%s589 + $0x28] sm:$0xf]
    %v4947 = vld [vmem:[%s589 + $0x2c] sm:$0xf]
    %v4948 = vld [vmem:[%s589 + $0x30] sm:$0xf]
    %v4949 = vld [vmem:[%s589 + $0x34] sm:$0xf]
    %v4950 = vld [vmem:[%s589 + $0x38] sm:$0xf]
    %v4951 = vld [vmem:[%s589 + $0x3c] sm:$0xf]
    %s4952 = sld [smem:[#allocation10 + $0x2]]
    %p4954 = scmp.ne.f32.partialorder %s4952, %s4952
    %s4955 = sshrl.u32 %s4952, 16
    %s4956 = sand.u32 %s4955, 1
    %s4957 = sadd.s32 32767, %s4956
    %s4958 = sadd.s32 %s4952, %s4957
    %s4959 = sand.u32 %s4958, 4294901760
    %s4960 = scalar_select %p4954, 2143289344, %s4959
    %s4962 = sshrl.u32 %s4960, 16
    %s4963 = sshll.u32 %s4962, 16
    %s4964 = sor.u32 %s4962, %s4963
    %v4965 = vstv %s4964
    %v4967 = vunpack.c.l.bf16 %v4936
    %v4968 = vunpack.c.l.bf16 %v4937
    %v4969 = vunpack.c.l.bf16 %v4938
    %v4970 = vunpack.c.l.bf16 %v4939
    %v4971 = vunpack.c.l.bf16 %v4940
    %v4972 = vunpack.c.l.bf16 %v4941
    %v4973 = vunpack.c.l.bf16 %v4942
    %v4974 = vunpack.c.l.bf16 %v4943
    %v4975 = vunpack.c.l.bf16 %v4944
    %v4976 = vunpack.c.l.bf16 %v4945
    %v4977 = vunpack.c.l.bf16 %v4946
    %v4978 = vunpack.c.l.bf16 %v4947
    %v4979 = vunpack.c.l.bf16 %v4948
    %v4980 = vunpack.c.l.bf16 %v4949
    %v4981 = vunpack.c.l.bf16 %v4950
    %v4982 = vunpack.c.l.bf16 %v4951
    %v4983 = vunpack.c.l.bf16 %v4965
    %v4984 = vsub.f32 %v4967, %v4983
    %v4985 = vsub.f32 %v4968, %v4983
    %v4986 = vsub.f32 %v4969, %v4983
    %v4987 = vsub.f32 %v4970, %v4983
    %v4988 = vsub.f32 %v4971, %v4983
    %v4989 = vsub.f32 %v4972, %v4983
    %v4990 = vsub.f32 %v4973, %v4983
    %v4991 = vsub.f32 %v4974, %v4983
    %v4992 = vsub.f32 %v4975, %v4983
    %v4993 = vsub.f32 %v4976, %v4983
    %v4994 = vsub.f32 %v4977, %v4983
    %v4995 = vsub.f32 %v4978, %v4983
    %v4996 = vsub.f32 %v4979, %v4983
    %v4997 = vsub.f32 %v4980, %v4983
    %v4998 = vsub.f32 %v4981, %v4983
    %v4999 = vsub.f32 %v4982, %v4983
    %v5000 = vpack.c.bf16 %v4984, %v4984
    %v5001 = vpack.c.bf16 %v4985, %v4985
    %v5002 = vpack.c.bf16 %v4986, %v4986
    %v5003 = vpack.c.bf16 %v4987, %v4987
    %v5004 = vpack.c.bf16 %v4988, %v4988
    %v5005 = vpack.c.bf16 %v4989, %v4989
    %v5006 = vpack.c.bf16 %v4990, %v4990
    %v5007 = vpack.c.bf16 %v4991, %v4991
    %v5008 = vpack.c.bf16 %v4992, %v4992
    %v5009 = vpack.c.bf16 %v4993, %v4993
    %v5010 = vpack.c.bf16 %v4994, %v4994
    %v5011 = vpack.c.bf16 %v4995, %v4995
    %v5012 = vpack.c.bf16 %v4996, %v4996
    %v5013 = vpack.c.bf16 %v4997, %v4997
    %v5014 = vpack.c.bf16 %v4998, %v4998
    %v5015 = vpack.c.bf16 %v4999, %v4999
    %v5016 = vunpack.c.l.bf16 %v5000
    %v5017 = vunpack.c.l.bf16 %v5001
    %v5018 = vunpack.c.l.bf16 %v5002
    %v5019 = vunpack.c.l.bf16 %v5003
    %v5020 = vunpack.c.l.bf16 %v5004
    %v5021 = vunpack.c.l.bf16 %v5005
    %v5022 = vunpack.c.l.bf16 %v5006
    %v5023 = vunpack.c.l.bf16 %v5007
    %v5024 = vunpack.c.l.bf16 %v5008
    %v5025 = vunpack.c.l.bf16 %v5009
    %v5026 = vunpack.c.l.bf16 %v5010
    %v5027 = vunpack.c.l.bf16 %v5011
    %v5028 = vunpack.c.l.bf16 %v5012
    %v5029 = vunpack.c.l.bf16 %v5013
    %v5030 = vunpack.c.l.bf16 %v5014
    %v5031 = vunpack.c.l.bf16 %v5015
    %v5032 = vmul.f32 %v5016, %v5016
    %v5033 = vmul.f32 %v5017, %v5017
    %v5034 = vmul.f32 %v5018, %v5018
    %v5035 = vmul.f32 %v5019, %v5019
    %v5036 = vmul.f32 %v5020, %v5020
    %v5037 = vmul.f32 %v5021, %v5021
    %v5038 = vmul.f32 %v5022, %v5022
    %v5039 = vmul.f32 %v5023, %v5023
    %v5040 = vmul.f32 %v5024, %v5024
    %v5041 = vmul.f32 %v5025, %v5025
    %v5042 = vmul.f32 %v5026, %v5026
    %v5043 = vmul.f32 %v5027, %v5027
    %v5044 = vmul.f32 %v5028, %v5028
    %v5045 = vmul.f32 %v5029, %v5029
    %v5046 = vmul.f32 %v5030, %v5030
    %v5047 = vmul.f32 %v5031, %v5031
    %v5048 = vpack.c.bf16 %v5032, %v5032
    %v5049 = vpack.c.bf16 %v5033, %v5033
    %v5050 = vpack.c.bf16 %v5034, %v5034
    %v5051 = vpack.c.bf16 %v5035, %v5035
    %v5052 = vpack.c.bf16 %v5036, %v5036
    %v5053 = vpack.c.bf16 %v5037, %v5037
    %v5054 = vpack.c.bf16 %v5038, %v5038
    %v5055 = vpack.c.bf16 %v5039, %v5039
    %v5056 = vpack.c.bf16 %v5040, %v5040
    %v5057 = vpack.c.bf16 %v5041, %v5041
    %v5058 = vpack.c.bf16 %v5042, %v5042
    %v5059 = vpack.c.bf16 %v5043, %v5043
    %v5060 = vpack.c.bf16 %v5044, %v5044
    %v5061 = vpack.c.bf16 %v5045, %v5045
    %v5062 = vpack.c.bf16 %v5046, %v5046
    %v5063 = vpack.c.bf16 %v5047, %v5047
    %s5064 = sld [smem:[#allocation11 + $0x2]]
    %p5066 = scmp.ne.f32.partialorder %s5064, %s5064
    %s5067 = sshrl.u32 %s5064, 16
    %s5068 = sand.u32 %s5067, 1
    %s5069 = sadd.s32 32767, %s5068
    %s5070 = sadd.s32 %s5064, %s5069
    %s5071 = sand.u32 %s5070, 4294901760
    %s5072 = scalar_select %p5066, 2143289344, %s5071
    %s5074 = sshrl.u32 %s5072, 16
    %s5075 = sshll.u32 %s5074, 16
    %s5076 = sor.u32 %s5074, %s5075
    %v5077 = vstv %s5076
    %v5079 = vunpack.c.l.bf16 %v5048
    %v5080 = vunpack.c.l.bf16 %v5049
    %v5081 = vunpack.c.l.bf16 %v5050
    %v5082 = vunpack.c.l.bf16 %v5051
    %v5083 = vunpack.c.l.bf16 %v5052
    %v5084 = vunpack.c.l.bf16 %v5053
    %v5085 = vunpack.c.l.bf16 %v5054
    %v5086 = vunpack.c.l.bf16 %v5055
    %v5087 = vunpack.c.l.bf16 %v5056
    %v5088 = vunpack.c.l.bf16 %v5057
    %v5089 = vunpack.c.l.bf16 %v5058
    %v5090 = vunpack.c.l.bf16 %v5059
    %v5091 = vunpack.c.l.bf16 %v5060
    %v5092 = vunpack.c.l.bf16 %v5061
    %v5093 = vunpack.c.l.bf16 %v5062
    %v5094 = vunpack.c.l.bf16 %v5063
    %v5095 = vunpack.c.l.bf16 %v5077
    %v5096 = vmul.f32 %v5079, %v5095
    %v5097 = vmul.f32 %v5080, %v5095
    %v5098 = vmul.f32 %v5081, %v5095
    %v5099 = vmul.f32 %v5082, %v5095
    %v5100 = vmul.f32 %v5083, %v5095
    %v5101 = vmul.f32 %v5084, %v5095
    %v5102 = vmul.f32 %v5085, %v5095
    %v5103 = vmul.f32 %v5086, %v5095
    %v5104 = vmul.f32 %v5087, %v5095
    %v5105 = vmul.f32 %v5088, %v5095
    %v5106 = vmul.f32 %v5089, %v5095
    %v5107 = vmul.f32 %v5090, %v5095
    %v5108 = vmul.f32 %v5091, %v5095
    %v5109 = vmul.f32 %v5092, %v5095
    %v5110 = vmul.f32 %v5093, %v5095
    %v5111 = vmul.f32 %v5094, %v5095
    %v5112 = vpack.c.bf16 %v5096, %v5096
    %v5113 = vpack.c.bf16 %v5097, %v5097
    %v5114 = vpack.c.bf16 %v5098, %v5098
    %v5115 = vpack.c.bf16 %v5099, %v5099
    %v5116 = vpack.c.bf16 %v5100, %v5100
    %v5117 = vpack.c.bf16 %v5101, %v5101
    %v5118 = vpack.c.bf16 %v5102, %v5102
    %v5119 = vpack.c.bf16 %v5103, %v5103
    %v5120 = vpack.c.bf16 %v5104, %v5104
    %v5121 = vpack.c.bf16 %v5105, %v5105
    %v5122 = vpack.c.bf16 %v5106, %v5106
    %v5123 = vpack.c.bf16 %v5107, %v5107
    %v5124 = vpack.c.bf16 %v5108, %v5108
    %v5125 = vpack.c.bf16 %v5109, %v5109
    %v5126 = vpack.c.bf16 %v5110, %v5110
    %v5127 = vpack.c.bf16 %v5111, %v5111
    %v5128 = vunpack.c.l.bf16 %v4920
    %v5129 = vunpack.c.l.bf16 %v4921
    %v5130 = vunpack.c.l.bf16 %v4922
    %v5131 = vunpack.c.l.bf16 %v4923
    %v5132 = vunpack.c.l.bf16 %v4924
    %v5133 = vunpack.c.l.bf16 %v4925
    %v5134 = vunpack.c.l.bf16 %v4926
    %v5135 = vunpack.c.l.bf16 %v4927
    %v5136 = vunpack.c.l.bf16 %v4928
    %v5137 = vunpack.c.l.bf16 %v4929
    %v5138 = vunpack.c.l.bf16 %v4930
    %v5139 = vunpack.c.l.bf16 %v4931
    %v5140 = vunpack.c.l.bf16 %v4932
    %v5141 = vunpack.c.l.bf16 %v4933
    %v5142 = vunpack.c.l.bf16 %v4934
    %v5143 = vunpack.c.l.bf16 %v4935
    %v5144 = vunpack.c.l.bf16 %v5112
    %v5145 = vunpack.c.l.bf16 %v5113
    %v5146 = vunpack.c.l.bf16 %v5114
    %v5147 = vunpack.c.l.bf16 %v5115
    %v5148 = vunpack.c.l.bf16 %v5116
    %v5149 = vunpack.c.l.bf16 %v5117
    %v5150 = vunpack.c.l.bf16 %v5118
    %v5151 = vunpack.c.l.bf16 %v5119
    %v5152 = vunpack.c.l.bf16 %v5120
    %v5153 = vunpack.c.l.bf16 %v5121
    %v5154 = vunpack.c.l.bf16 %v5122
    %v5155 = vunpack.c.l.bf16 %v5123
    %v5156 = vunpack.c.l.bf16 %v5124
    %v5157 = vunpack.c.l.bf16 %v5125
    %v5158 = vunpack.c.l.bf16 %v5126
    %v5159 = vunpack.c.l.bf16 %v5127
    %v5160 = vadd.f32 %v5128, %v5144
    %v5161 = vadd.f32 %v5129, %v5145
    %v5162 = vadd.f32 %v5130, %v5146
    %v5163 = vadd.f32 %v5131, %v5147
    %v5164 = vadd.f32 %v5132, %v5148
    %v5165 = vadd.f32 %v5133, %v5149
    %v5166 = vadd.f32 %v5134, %v5150
    %v5167 = vadd.f32 %v5135, %v5151
    %v5168 = vadd.f32 %v5136, %v5152
    %v5169 = vadd.f32 %v5137, %v5153
    %v5170 = vadd.f32 %v5138, %v5154
    %v5171 = vadd.f32 %v5139, %v5155
    %v5172 = vadd.f32 %v5140, %v5156
    %v5173 = vadd.f32 %v5141, %v5157
    %v5174 = vadd.f32 %v5142, %v5158
    %v5175 = vadd.f32 %v5143, %v5159
    %v5176 = vpack.c.bf16 %v5160, %v5160
    %v5177 = vpack.c.bf16 %v5161, %v5161
    %v5178 = vpack.c.bf16 %v5162, %v5162
    %v5179 = vpack.c.bf16 %v5163, %v5163
    %v5180 = vpack.c.bf16 %v5164, %v5164
    %v5181 = vpack.c.bf16 %v5165, %v5165
    %v5182 = vpack.c.bf16 %v5166, %v5166
    %v5183 = vpack.c.bf16 %v5167, %v5167
    %v5184 = vpack.c.bf16 %v5168, %v5168
    %v5185 = vpack.c.bf16 %v5169, %v5169
    %v5186 = vpack.c.bf16 %v5170, %v5170
    %v5187 = vpack.c.bf16 %v5171, %v5171
    %v5188 = vpack.c.bf16 %v5172, %v5172
    %v5189 = vpack.c.bf16 %v5173, %v5173
    %v5190 = vpack.c.bf16 %v5174, %v5174
    %v5191 = vpack.c.bf16 %v5175, %v5175
    %v5192 = vunpack.c.l.bf16 %v5176
    %v5193 = vunpack.c.l.bf16 %v5177
    %v5194 = vunpack.c.l.bf16 %v5178
    %v5195 = vunpack.c.l.bf16 %v5179
    %v5196 = vunpack.c.l.bf16 %v5180
    %v5197 = vunpack.c.l.bf16 %v5181
    %v5198 = vunpack.c.l.bf16 %v5182
    %v5199 = vunpack.c.l.bf16 %v5183
    %v5200 = vunpack.c.l.bf16 %v5184
    %v5201 = vunpack.c.l.bf16 %v5185
    %v5202 = vunpack.c.l.bf16 %v5186
    %v5203 = vunpack.c.l.bf16 %v5187
    %v5204 = vunpack.c.l.bf16 %v5188
    %v5205 = vunpack.c.l.bf16 %v5189
    %v5206 = vunpack.c.l.bf16 %v5190
    %v5207 = vunpack.c.l.bf16 %v5191
    %v5208 = vmul.f32 %v5192, 1.442695
    %v5209 = vpow.pop %v5208
    %v5210 = vmul.f32 %v5193, 1.442695
    %v5211 = vpow.pop %v5210
    %v5212 = vmul.f32 %v5194, 1.442695
    %v5213 = vpow.pop %v5212
    %v5214 = vmul.f32 %v5195, 1.442695
    %v5215 = vpow.pop %v5214
    %v5216 = vmul.f32 %v5196, 1.442695
    %v5217 = vpow.pop %v5216
    %v5218 = vmul.f32 %v5197, 1.442695
    %v5219 = vpow.pop %v5218
    %v5220 = vmul.f32 %v5198, 1.442695
    %v5221 = vpow.pop %v5220
    %v5222 = vmul.f32 %v5199, 1.442695
    %v5223 = vpow.pop %v5222
    %v5224 = vmul.f32 %v5200, 1.442695
    %v5225 = vpow.pop %v5224
    %v5226 = vmul.f32 %v5201, 1.442695
    %v5227 = vpow.pop %v5226
    %v5228 = vmul.f32 %v5202, 1.442695
    %v5229 = vpow.pop %v5228
    %v5230 = vmul.f32 %v5203, 1.442695
    %v5231 = vpow.pop %v5230
    %v5232 = vmul.f32 %v5204, 1.442695
    %v5233 = vpow.pop %v5232
    %v5234 = vmul.f32 %v5205, 1.442695
    %v5235 = vpow.pop %v5234
    %v5236 = vmul.f32 %v5206, 1.442695
    %v5237 = vpow.pop %v5236
    %v5238 = vmul.f32 %v5207, 1.442695
    %v5239 = vpow.pop %v5238
    %v5240 = vpack.c.bf16 %v5209, %v5209
    %v5241 = vpack.c.bf16 %v5211, %v5211
    %v5242 = vpack.c.bf16 %v5213, %v5213
    %v5243 = vpack.c.bf16 %v5215, %v5215
    %v5244 = vpack.c.bf16 %v5217, %v5217
    %v5245 = vpack.c.bf16 %v5219, %v5219
    %v5246 = vpack.c.bf16 %v5221, %v5221
    %v5247 = vpack.c.bf16 %v5223, %v5223
    %v5248 = vpack.c.bf16 %v5225, %v5225
    %v5249 = vpack.c.bf16 %v5227, %v5227
    %v5250 = vpack.c.bf16 %v5229, %v5229
    %v5251 = vpack.c.bf16 %v5231, %v5231
    %v5252 = vpack.c.bf16 %v5233, %v5233
    %v5253 = vpack.c.bf16 %v5235, %v5235
    %v5254 = vpack.c.bf16 %v5237, %v5237
    %v5255 = vpack.c.bf16 %v5239, %v5239
    %v5256 = vunpack.c.l.bf16 %v5240
    %v5257 = vunpack.c.l.bf16 %v5241
    %v5258 = vunpack.c.l.bf16 %v5242
    %v5259 = vunpack.c.l.bf16 %v5243
    %v5260 = vunpack.c.l.bf16 %v5244
    %v5261 = vunpack.c.l.bf16 %v5245
    %v5262 = vunpack.c.l.bf16 %v5246
    %v5263 = vunpack.c.l.bf16 %v5247
    %v5264 = vunpack.c.l.bf16 %v5248
    %v5265 = vunpack.c.l.bf16 %v5249
    %v5266 = vunpack.c.l.bf16 %v5250
    %v5267 = vunpack.c.l.bf16 %v5251
    %v5268 = vunpack.c.l.bf16 %v5252
    %v5269 = vunpack.c.l.bf16 %v5253
    %v5270 = vunpack.c.l.bf16 %v5254
    %v5271 = vunpack.c.l.bf16 %v5255
    %v5272 = vmul.f32 %v1447, %v5256
    %v5273 = vmul.f32 %v1448, %v5257
    %v5274 = vmul.f32 %v1449, %v5258
    %v5275 = vmul.f32 %v1450, %v5259
    %v5276 = vmul.f32 %v1451, %v5260
    %v5277 = vmul.f32 %v1452, %v5261
    %v5278 = vmul.f32 %v1453, %v5262
    %v5279 = vmul.f32 %v1454, %v5263
    %v5280 = vmul.f32 %v1455, %v5264
    %v5281 = vmul.f32 %v1456, %v5265
    %v5282 = vmul.f32 %v1457, %v5266
    %v5283 = vmul.f32 %v1458, %v5267
    %v5284 = vmul.f32 %v1459, %v5268
    %v5285 = vmul.f32 %v1460, %v5269
    %v5286 = vmul.f32 %v1461, %v5270
    %v5287 = vmul.f32 %v1462, %v5271
    %v5288 = vpack.c.bf16 %v5272, %v5272
    %v5289 = vpack.c.bf16 %v5273, %v5273
    %v5290 = vpack.c.bf16 %v5274, %v5274
    %v5291 = vpack.c.bf16 %v5275, %v5275
    %v5292 = vpack.c.bf16 %v5276, %v5276
    %v5293 = vpack.c.bf16 %v5277, %v5277
    %v5294 = vpack.c.bf16 %v5278, %v5278
    %v5295 = vpack.c.bf16 %v5279, %v5279
    %v5296 = vpack.c.bf16 %v5280, %v5280
    %v5297 = vpack.c.bf16 %v5281, %v5281
    %v5298 = vpack.c.bf16 %v5282, %v5282
    %v5299 = vpack.c.bf16 %v5283, %v5283
    %v5300 = vpack.c.bf16 %v5284, %v5284
    %v5301 = vpack.c.bf16 %v5285, %v5285
    %v5302 = vpack.c.bf16 %v5286, %v5286
    %v5303 = vpack.c.bf16 %v5287, %v5287
    %5304 = vst [vmem:[#allocation3] sm:$0xf] %v5288
    %5305 = vst [vmem:[#allocation3 + $0xc] sm:$0xf] %v5289
    %5306 = vst [vmem:[#allocation3 + $0x18] sm:$0xf] %v5290
    %5307 = vst [vmem:[#allocation3 + $0x24] sm:$0xf] %v5291
    %5308 = vst [vmem:[#allocation3 + $0x30] sm:$0xf] %v5292
    %5309 = vst [vmem:[#allocation3 + $0x3c] sm:$0xf] %v5293
    %5310 = vst [vmem:[#allocation3 + $0x48] sm:$0xf] %v5294
    %5311 = vst [vmem:[#allocation3 + $0x54] sm:$0xf] %v5295
    %5312 = vst [vmem:[#allocation3 + $0x60] sm:$0xf] %v5296
    %5313 = vst [vmem:[#allocation3 + $0x6c] sm:$0xf] %v5297
    %5314 = vst [vmem:[#allocation3 + $0x78] sm:$0xf] %v5298
    %5315 = vst [vmem:[#allocation3 + $0x84] sm:$0xf] %v5299
    %5316 = vst [vmem:[#allocation3 + $0x90] sm:$0xf] %v5300
    %5317 = vst [vmem:[#allocation3 + $0x9c] sm:$0xf] %v5301
    %5318 = vst [vmem:[#allocation3 + $0xa8] sm:$0xf] %v5302
    %5319 = vst [vmem:[#allocation3 + $0xb4] sm:$0xf] %v5303
    %v5320 = vld [vmem:[%s14] sm:$0xf]
    %v5322 = vsel %vm4255, %v4480, 0
    %v5325 = vsel %vm4255, %v4481, 0
    %v5328 = vsel %vm4255, %v4482, 0
    %v5331 = vsel %vm4255, %v4483, 0
    %v5334 = vsel %vm4255, %v4484, 0
    %v5337 = vsel %vm4255, %v4485, 0
    %v5340 = vsel %vm4255, %v4486, 0
    %v5343 = vsel %vm4255, %v4487, 0
    %vm5345 = vcmask 1043456
    %v5347 = vsel %vm5345, %v5320, 0
    %5349 = vmatpush.bf16.msra.mxu0 0
    %5350 = vmatpush.bf16.msra.mxu0 0
    %5351 = vmatpush.bf16.msra.mxu0 0
    %5352 = vmatpush.bf16.msra.mxu0 0
    %5353 = vmatpush.bf16.msra.mxu0 0
    %5354 = vmatpush.bf16.msra.mxu0 0
    %5355 = vmatpush.bf16.msra.mxu0 0
    %5356 = vmatpush.bf16.msra.mxu0 %v5347
    %5357 = vmatmul.bf16.gmra.mxu0 %v5322
    %v5358 = vpop.f32.mrf.mxu0
    %v5359 = vadd.f32 0.0, %v5358
    %v5360 = vpop.f32.mrf.mxu0
    %v5361 = vadd.f32 0.0, %v5360
    %5362 = vmatmul.bf16.gmra.mxu0 %v5325
    %v5363 = vpop.f32.mrf.mxu0
    %v5364 = vadd.f32 0.0, %v5363
    %v5365 = vpop.f32.mrf.mxu0
    %v5366 = vadd.f32 0.0, %v5365
    %5367 = vmatmul.bf16.gmra.mxu0 %v5328
    %v5368 = vpop.f32.mrf.mxu0
    %v5369 = vadd.f32 0.0, %v5368
    %v5370 = vpop.f32.mrf.mxu0
    %v5371 = vadd.f32 0.0, %v5370
    %5372 = vmatmul.bf16.gmra.mxu0 %v5331
    %v5373 = vpop.f32.mrf.mxu0
    %v5374 = vadd.f32 0.0, %v5373
    %v5375 = vpop.f32.mrf.mxu0
    %v5376 = vadd.f32 0.0, %v5375
    %5377 = vmatmul.bf16.gmra.mxu0 %v5334
    %v5378 = vpop.f32.mrf.mxu0
    %v5379 = vadd.f32 0.0, %v5378
    %v5380 = vpop.f32.mrf.mxu0
    %v5381 = vadd.f32 0.0, %v5380
    %5382 = vmatmul.bf16.gmra.mxu0 %v5337
    %v5383 = vpop.f32.mrf.mxu0
    %v5384 = vadd.f32 0.0, %v5383
    %v5385 = vpop.f32.mrf.mxu0
    %v5386 = vadd.f32 0.0, %v5385
    %5387 = vmatmul.bf16.gmra.mxu0 %v5340
    %v5388 = vpop.f32.mrf.mxu0
    %v5389 = vadd.f32 0.0, %v5388
    %v5390 = vpop.f32.mrf.mxu0
    %v5391 = vadd.f32 0.0, %v5390
    %5392 = vmatmul.bf16.gmra.mxu0 %v5343
    %v5393 = vpop.f32.mrf.mxu0
    %v5394 = vadd.f32 0.0, %v5393
    %v5395 = vpop.f32.mrf.mxu0
    %v5396 = vadd.f32 0.0, %v5395
    %5397 = vdwg.mxu0
    %v5398 = vpack.c.bf16 %v5359, %v5359
    %v5399 = vpack.c.bf16 %v5361, %v5361
    %v5400 = vpack.c.bf16 %v5364, %v5364
    %v5401 = vpack.c.bf16 %v5366, %v5366
    %v5402 = vpack.c.bf16 %v5369, %v5369
    %v5403 = vpack.c.bf16 %v5371, %v5371
    %v5404 = vpack.c.bf16 %v5374, %v5374
    %v5405 = vpack.c.bf16 %v5376, %v5376
    %v5406 = vpack.c.bf16 %v5379, %v5379
    %v5407 = vpack.c.bf16 %v5381, %v5381
    %v5408 = vpack.c.bf16 %v5384, %v5384
    %v5409 = vpack.c.bf16 %v5386, %v5386
    %v5410 = vpack.c.bf16 %v5389, %v5389
    %v5411 = vpack.c.bf16 %v5391, %v5391
    %v5412 = vpack.c.bf16 %v5394, %v5394
    %v5413 = vpack.c.bf16 %v5396, %v5396
    %vm5414 = vcmask 76800
    %5415 = vst.msk [vmem:[#allocation4] sm:$0xf] %vm5414, %v5398
    %5416 = vst.msk [vmem:[#allocation4 + $0x4] sm:$0xf] %vm5414, %v5399
    %5417 = vst.msk [vmem:[#allocation4 + $0x8] sm:$0xf] %vm5414, %v5400
    %5418 = vst.msk [vmem:[#allocation4 + $0xc] sm:$0xf] %vm5414, %v5401
    %5419 = vst.msk [vmem:[#allocation4 + $0x10] sm:$0xf] %vm5414, %v5402
    %5420 = vst.msk [vmem:[#allocation4 + $0x14] sm:$0xf] %vm5414, %v5403
    %5421 = vst.msk [vmem:[#allocation4 + $0x18] sm:$0xf] %vm5414, %v5404
    %5422 = vst.msk [vmem:[#allocation4 + $0x1c] sm:$0xf] %vm5414, %v5405
    %5423 = vst.msk [vmem:[#allocation4 + $0x20] sm:$0xf] %vm5414, %v5406
    %5424 = vst.msk [vmem:[#allocation4 + $0x24] sm:$0xf] %vm5414, %v5407
    %5425 = vst.msk [vmem:[#allocation4 + $0x28] sm:$0xf] %vm5414, %v5408
    %5426 = vst.msk [vmem:[#allocation4 + $0x2c] sm:$0xf] %vm5414, %v5409
    %5427 = vst.msk [vmem:[#allocation4 + $0x30] sm:$0xf] %vm5414, %v5410
    %5428 = vst.msk [vmem:[#allocation4 + $0x34] sm:$0xf] %vm5414, %v5411
    %5429 = vst.msk [vmem:[#allocation4 + $0x38] sm:$0xf] %vm5414, %v5412
    %5430 = vst.msk [vmem:[#allocation4 + $0x3c] sm:$0xf] %vm5414, %v5413
    %v5431 = vld [vmem:[#allocation2] sm:$0xf]
    %v5432 = vld [vmem:[#allocation2 + $0x4] sm:$0xf]
    %v5433 = vld [vmem:[#allocation2 + $0x8] sm:$0xf]
    %v5434 = vld [vmem:[#allocation2 + $0xc] sm:$0xf]
    %v5435 = vld [vmem:[#allocation2 + $0x10] sm:$0xf]
    %v5436 = vld [vmem:[#allocation2 + $0x14] sm:$0xf]
    %v5437 = vld [vmem:[#allocation2 + $0x18] sm:$0xf]
    %v5438 = vld [vmem:[#allocation2 + $0x1c] sm:$0xf]
    %v5439 = vld [vmem:[#allocation2 + $0x20] sm:$0xf]
    %v5440 = vld [vmem:[#allocation2 + $0x24] sm:$0xf]
    %v5441 = vld [vmem:[#allocation2 + $0x28] sm:$0xf]
    %v5442 = vld [vmem:[#allocation2 + $0x2c] sm:$0xf]
    %v5443 = vld [vmem:[#allocation2 + $0x30] sm:$0xf]
    %v5444 = vld [vmem:[#allocation2 + $0x34] sm:$0xf]
    %v5445 = vld [vmem:[#allocation2 + $0x38] sm:$0xf]
    %v5446 = vld [vmem:[#allocation2 + $0x3c] sm:$0xf]
    %s5447 = sld [smem:[#allocation10 + $0x80]]
    %p5449 = scmp.ne.f32.partialorder %s5447, %s5447
    %s5450 = sshrl.u32 %s5447, 16
    %s5451 = sand.u32 %s5450, 1
    %s5452 = sadd.s32 32767, %s5451
    %s5453 = sadd.s32 %s5447, %s5452
    %s5454 = sand.u32 %s5453, 4294901760
    %s5455 = scalar_select %p5449, 2143289344, %s5454
    %s5457 = sshrl.u32 %s5455, 16
    %s5458 = sshll.u32 %s5457, 16
    %s5459 = sor.u32 %s5457, %s5458
    %v5460 = vstv %s5459
    %v5462 = vunpack.c.l.bf16 %v5431
    %v5463 = vunpack.c.l.bf16 %v5432
    %v5464 = vunpack.c.l.bf16 %v5433
    %v5465 = vunpack.c.l.bf16 %v5434
    %v5466 = vunpack.c.l.bf16 %v5435
    %v5467 = vunpack.c.l.bf16 %v5436
    %v5468 = vunpack.c.l.bf16 %v5437
    %v5469 = vunpack.c.l.bf16 %v5438
    %v5470 = vunpack.c.l.bf16 %v5439
    %v5471 = vunpack.c.l.bf16 %v5440
    %v5472 = vunpack.c.l.bf16 %v5441
    %v5473 = vunpack.c.l.bf16 %v5442
    %v5474 = vunpack.c.l.bf16 %v5443
    %v5475 = vunpack.c.l.bf16 %v5444
    %v5476 = vunpack.c.l.bf16 %v5445
    %v5477 = vunpack.c.l.bf16 %v5446
    %v5478 = vunpack.c.l.bf16 %v5460
    %v5479 = vsub.f32 %v5462, %v5478
    %v5480 = vsub.f32 %v5463, %v5478
    %v5481 = vsub.f32 %v5464, %v5478
    %v5482 = vsub.f32 %v5465, %v5478
    %v5483 = vsub.f32 %v5466, %v5478
    %v5484 = vsub.f32 %v5467, %v5478
    %v5485 = vsub.f32 %v5468, %v5478
    %v5486 = vsub.f32 %v5469, %v5478
    %v5487 = vsub.f32 %v5470, %v5478
    %v5488 = vsub.f32 %v5471, %v5478
    %v5489 = vsub.f32 %v5472, %v5478
    %v5490 = vsub.f32 %v5473, %v5478
    %v5491 = vsub.f32 %v5474, %v5478
    %v5492 = vsub.f32 %v5475, %v5478
    %v5493 = vsub.f32 %v5476, %v5478
    %v5494 = vsub.f32 %v5477, %v5478
    %v5495 = vpack.c.bf16 %v5479, %v5479
    %v5496 = vpack.c.bf16 %v5480, %v5480
    %v5497 = vpack.c.bf16 %v5481, %v5481
    %v5498 = vpack.c.bf16 %v5482, %v5482
    %v5499 = vpack.c.bf16 %v5483, %v5483
    %v5500 = vpack.c.bf16 %v5484, %v5484
    %v5501 = vpack.c.bf16 %v5485, %v5485
    %v5502 = vpack.c.bf16 %v5486, %v5486
    %v5503 = vpack.c.bf16 %v5487, %v5487
    %v5504 = vpack.c.bf16 %v5488, %v5488
    %v5505 = vpack.c.bf16 %v5489, %v5489
    %v5506 = vpack.c.bf16 %v5490, %v5490
    %v5507 = vpack.c.bf16 %v5491, %v5491
    %v5508 = vpack.c.bf16 %v5492, %v5492
    %v5509 = vpack.c.bf16 %v5493, %v5493
    %v5510 = vpack.c.bf16 %v5494, %v5494
    %v5511 = vunpack.c.l.bf16 %v5495
    %v5512 = vunpack.c.l.bf16 %v5496
    %v5513 = vunpack.c.l.bf16 %v5497
    %v5514 = vunpack.c.l.bf16 %v5498
    %v5515 = vunpack.c.l.bf16 %v5499
    %v5516 = vunpack.c.l.bf16 %v5500
    %v5517 = vunpack.c.l.bf16 %v5501
    %v5518 = vunpack.c.l.bf16 %v5502
    %v5519 = vunpack.c.l.bf16 %v5503
    %v5520 = vunpack.c.l.bf16 %v5504
    %v5521 = vunpack.c.l.bf16 %v5505
    %v5522 = vunpack.c.l.bf16 %v5506
    %v5523 = vunpack.c.l.bf16 %v5507
    %v5524 = vunpack.c.l.bf16 %v5508
    %v5525 = vunpack.c.l.bf16 %v5509
    %v5526 = vunpack.c.l.bf16 %v5510
    %v5527 = vmul.f32 %v5511, %v5511
    %v5528 = vmul.f32 %v5512, %v5512
    %v5529 = vmul.f32 %v5513, %v5513
    %v5530 = vmul.f32 %v5514, %v5514
    %v5531 = vmul.f32 %v5515, %v5515
    %v5532 = vmul.f32 %v5516, %v5516
    %v5533 = vmul.f32 %v5517, %v5517
    %v5534 = vmul.f32 %v5518, %v5518
    %v5535 = vmul.f32 %v5519, %v5519
    %v5536 = vmul.f32 %v5520, %v5520
    %v5537 = vmul.f32 %v5521, %v5521
    %v5538 = vmul.f32 %v5522, %v5522
    %v5539 = vmul.f32 %v5523, %v5523
    %v5540 = vmul.f32 %v5524, %v5524
    %v5541 = vmul.f32 %v5525, %v5525
    %v5542 = vmul.f32 %v5526, %v5526
    %v5543 = vpack.c.bf16 %v5527, %v5527
    %v5544 = vpack.c.bf16 %v5528, %v5528
    %v5545 = vpack.c.bf16 %v5529, %v5529
    %v5546 = vpack.c.bf16 %v5530, %v5530
    %v5547 = vpack.c.bf16 %v5531, %v5531
    %v5548 = vpack.c.bf16 %v5532, %v5532
    %v5549 = vpack.c.bf16 %v5533, %v5533
    %v5550 = vpack.c.bf16 %v5534, %v5534
    %v5551 = vpack.c.bf16 %v5535, %v5535
    %v5552 = vpack.c.bf16 %v5536, %v5536
    %v5553 = vpack.c.bf16 %v5537, %v5537
    %v5554 = vpack.c.bf16 %v5538, %v5538
    %v5555 = vpack.c.bf16 %v5539, %v5539
    %v5556 = vpack.c.bf16 %v5540, %v5540
    %v5557 = vpack.c.bf16 %v5541, %v5541
    %v5558 = vpack.c.bf16 %v5542, %v5542
    %s5559 = sld [smem:[#allocation11 + $0x80]]
    %p5561 = scmp.ne.f32.partialorder %s5559, %s5559
    %s5562 = sshrl.u32 %s5559, 16
    %s5563 = sand.u32 %s5562, 1
    %s5564 = sadd.s32 32767, %s5563
    %s5565 = sadd.s32 %s5559, %s5564
    %s5566 = sand.u32 %s5565, 4294901760
    %s5567 = scalar_select %p5561, 2143289344, %s5566
    %s5569 = sshrl.u32 %s5567, 16
    %s5570 = sshll.u32 %s5569, 16
    %s5571 = sor.u32 %s5569, %s5570
    %v5572 = vstv %s5571
    %v5574 = vunpack.c.l.bf16 %v5543
    %v5575 = vunpack.c.l.bf16 %v5544
    %v5576 = vunpack.c.l.bf16 %v5545
    %v5577 = vunpack.c.l.bf16 %v5546
    %v5578 = vunpack.c.l.bf16 %v5547
    %v5579 = vunpack.c.l.bf16 %v5548
    %v5580 = vunpack.c.l.bf16 %v5549
    %v5581 = vunpack.c.l.bf16 %v5550
    %v5582 = vunpack.c.l.bf16 %v5551
    %v5583 = vunpack.c.l.bf16 %v5552
    %v5584 = vunpack.c.l.bf16 %v5553
    %v5585 = vunpack.c.l.bf16 %v5554
    %v5586 = vunpack.c.l.bf16 %v5555
    %v5587 = vunpack.c.l.bf16 %v5556
    %v5588 = vunpack.c.l.bf16 %v5557
    %v5589 = vunpack.c.l.bf16 %v5558
    %v5590 = vunpack.c.l.bf16 %v5572
    %v5591 = vmul.f32 %v5574, %v5590
    %v5592 = vmul.f32 %v5575, %v5590
    %v5593 = vmul.f32 %v5576, %v5590
    %v5594 = vmul.f32 %v5577, %v5590
    %v5595 = vmul.f32 %v5578, %v5590
    %v5596 = vmul.f32 %v5579, %v5590
    %v5597 = vmul.f32 %v5580, %v5590
    %v5598 = vmul.f32 %v5581, %v5590
    %v5599 = vmul.f32 %v5582, %v5590
    %v5600 = vmul.f32 %v5583, %v5590
    %v5601 = vmul.f32 %v5584, %v5590
    %v5602 = vmul.f32 %v5585, %v5590
    %v5603 = vmul.f32 %v5586, %v5590
    %v5604 = vmul.f32 %v5587, %v5590
    %v5605 = vmul.f32 %v5588, %v5590
    %v5606 = vmul.f32 %v5589, %v5590
    %v5607 = vpack.c.bf16 %v5591, %v5591
    %v5608 = vpack.c.bf16 %v5592, %v5592
    %v5609 = vpack.c.bf16 %v5593, %v5593
    %v5610 = vpack.c.bf16 %v5594, %v5594
    %v5611 = vpack.c.bf16 %v5595, %v5595
    %v5612 = vpack.c.bf16 %v5596, %v5596
    %v5613 = vpack.c.bf16 %v5597, %v5597
    %v5614 = vpack.c.bf16 %v5598, %v5598
    %v5615 = vpack.c.bf16 %v5599, %v5599
    %v5616 = vpack.c.bf16 %v5600, %v5600
    %v5617 = vpack.c.bf16 %v5601, %v5601
    %v5618 = vpack.c.bf16 %v5602, %v5602
    %v5619 = vpack.c.bf16 %v5603, %v5603
    %v5620 = vpack.c.bf16 %v5604, %v5604
    %v5621 = vpack.c.bf16 %v5605, %v5605
    %v5622 = vpack.c.bf16 %v5606, %v5606
    %v5623 = vld [vmem:[%s426] sm:$0xf]
    %v5624 = vld [vmem:[%s426 + $0x4] sm:$0xf]
    %v5625 = vld [vmem:[%s426 + $0x8] sm:$0xf]
    %v5626 = vld [vmem:[%s426 + $0xc] sm:$0xf]
    %v5627 = vld [vmem:[%s426 + $0x10] sm:$0xf]
    %v5628 = vld [vmem:[%s426 + $0x14] sm:$0xf]
    %v5629 = vld [vmem:[%s426 + $0x18] sm:$0xf]
    %v5630 = vld [vmem:[%s426 + $0x1c] sm:$0xf]
    %v5631 = vld [vmem:[%s426 + $0x20] sm:$0xf]
    %v5632 = vld [vmem:[%s426 + $0x24] sm:$0xf]
    %v5633 = vld [vmem:[%s426 + $0x28] sm:$0xf]
    %v5634 = vld [vmem:[%s426 + $0x2c] sm:$0xf]
    %v5635 = vld [vmem:[%s426 + $0x30] sm:$0xf]
    %v5636 = vld [vmem:[%s426 + $0x34] sm:$0xf]
    %v5637 = vld [vmem:[%s426 + $0x38] sm:$0xf]
    %v5638 = vld [vmem:[%s426 + $0x3c] sm:$0xf]
    %s5639 = sld [smem:[#allocation10 + $0x81]]
    %p5641 = scmp.ne.f32.partialorder %s5639, %s5639
    %s5642 = sshrl.u32 %s5639, 16
    %s5643 = sand.u32 %s5642, 1
    %s5644 = sadd.s32 32767, %s5643
    %s5645 = sadd.s32 %s5639, %s5644
    %s5646 = sand.u32 %s5645, 4294901760
    %s5647 = scalar_select %p5641, 2143289344, %s5646
    %s5649 = sshrl.u32 %s5647, 16
    %s5650 = sshll.u32 %s5649, 16
    %s5651 = sor.u32 %s5649, %s5650
    %v5652 = vstv %s5651
    %v5654 = vunpack.c.l.bf16 %v5623
    %v5655 = vunpack.c.l.bf16 %v5624
    %v5656 = vunpack.c.l.bf16 %v5625
    %v5657 = vunpack.c.l.bf16 %v5626
    %v5658 = vunpack.c.l.bf16 %v5627
    %v5659 = vunpack.c.l.bf16 %v5628
    %v5660 = vunpack.c.l.bf16 %v5629
    %v5661 = vunpack.c.l.bf16 %v5630
    %v5662 = vunpack.c.l.bf16 %v5631
    %v5663 = vunpack.c.l.bf16 %v5632
    %v5664 = vunpack.c.l.bf16 %v5633
    %v5665 = vunpack.c.l.bf16 %v5634
    %v5666 = vunpack.c.l.bf16 %v5635
    %v5667 = vunpack.c.l.bf16 %v5636
    %v5668 = vunpack.c.l.bf16 %v5637
    %v5669 = vunpack.c.l.bf16 %v5638
    %v5670 = vunpack.c.l.bf16 %v5652
    %v5671 = vsub.f32 %v5654, %v5670
    %v5672 = vsub.f32 %v5655, %v5670
    %v5673 = vsub.f32 %v5656, %v5670
    %v5674 = vsub.f32 %v5657, %v5670
    %v5675 = vsub.f32 %v5658, %v5670
    %v5676 = vsub.f32 %v5659, %v5670
    %v5677 = vsub.f32 %v5660, %v5670
    %v5678 = vsub.f32 %v5661, %v5670
    %v5679 = vsub.f32 %v5662, %v5670
    %v5680 = vsub.f32 %v5663, %v5670
    %v5681 = vsub.f32 %v5664, %v5670
    %v5682 = vsub.f32 %v5665, %v5670
    %v5683 = vsub.f32 %v5666, %v5670
    %v5684 = vsub.f32 %v5667, %v5670
    %v5685 = vsub.f32 %v5668, %v5670
    %v5686 = vsub.f32 %v5669, %v5670
    %v5687 = vpack.c.bf16 %v5671, %v5671
    %v5688 = vpack.c.bf16 %v5672, %v5672
    %v5689 = vpack.c.bf16 %v5673, %v5673
    %v5690 = vpack.c.bf16 %v5674, %v5674
    %v5691 = vpack.c.bf16 %v5675, %v5675
    %v5692 = vpack.c.bf16 %v5676, %v5676
    %v5693 = vpack.c.bf16 %v5677, %v5677
    %v5694 = vpack.c.bf16 %v5678, %v5678
    %v5695 = vpack.c.bf16 %v5679, %v5679
    %v5696 = vpack.c.bf16 %v5680, %v5680
    %v5697 = vpack.c.bf16 %v5681, %v5681
    %v5698 = vpack.c.bf16 %v5682, %v5682
    %v5699 = vpack.c.bf16 %v5683, %v5683
    %v5700 = vpack.c.bf16 %v5684, %v5684
    %v5701 = vpack.c.bf16 %v5685, %v5685
    %v5702 = vpack.c.bf16 %v5686, %v5686
    %v5703 = vunpack.c.l.bf16 %v5687
    %v5704 = vunpack.c.l.bf16 %v5688
    %v5705 = vunpack.c.l.bf16 %v5689
    %v5706 = vunpack.c.l.bf16 %v5690
    %v5707 = vunpack.c.l.bf16 %v5691
    %v5708 = vunpack.c.l.bf16 %v5692
    %v5709 = vunpack.c.l.bf16 %v5693
    %v5710 = vunpack.c.l.bf16 %v5694
    %v5711 = vunpack.c.l.bf16 %v5695
    %v5712 = vunpack.c.l.bf16 %v5696
    %v5713 = vunpack.c.l.bf16 %v5697
    %v5714 = vunpack.c.l.bf16 %v5698
    %v5715 = vunpack.c.l.bf16 %v5699
    %v5716 = vunpack.c.l.bf16 %v5700
    %v5717 = vunpack.c.l.bf16 %v5701
    %v5718 = vunpack.c.l.bf16 %v5702
    %v5719 = vmul.f32 %v5703, %v5703
    %v5720 = vmul.f32 %v5704, %v5704
    %v5721 = vmul.f32 %v5705, %v5705
    %v5722 = vmul.f32 %v5706, %v5706
    %v5723 = vmul.f32 %v5707, %v5707
    %v5724 = vmul.f32 %v5708, %v5708
    %v5725 = vmul.f32 %v5709, %v5709
    %v5726 = vmul.f32 %v5710, %v5710
    %v5727 = vmul.f32 %v5711, %v5711
    %v5728 = vmul.f32 %v5712, %v5712
    %v5729 = vmul.f32 %v5713, %v5713
    %v5730 = vmul.f32 %v5714, %v5714
    %v5731 = vmul.f32 %v5715, %v5715
    %v5732 = vmul.f32 %v5716, %v5716
    %v5733 = vmul.f32 %v5717, %v5717
    %v5734 = vmul.f32 %v5718, %v5718
    %v5735 = vpack.c.bf16 %v5719, %v5719
    %v5736 = vpack.c.bf16 %v5720, %v5720
    %v5737 = vpack.c.bf16 %v5721, %v5721
    %v5738 = vpack.c.bf16 %v5722, %v5722
    %v5739 = vpack.c.bf16 %v5723, %v5723
    %v5740 = vpack.c.bf16 %v5724, %v5724
    %v5741 = vpack.c.bf16 %v5725, %v5725
    %v5742 = vpack.c.bf16 %v5726, %v5726
    %v5743 = vpack.c.bf16 %v5727, %v5727
    %v5744 = vpack.c.bf16 %v5728, %v5728
    %v5745 = vpack.c.bf16 %v5729, %v5729
    %v5746 = vpack.c.bf16 %v5730, %v5730
    %v5747 = vpack.c.bf16 %v5731, %v5731
    %v5748 = vpack.c.bf16 %v5732, %v5732
    %v5749 = vpack.c.bf16 %v5733, %v5733
    %v5750 = vpack.c.bf16 %v5734, %v5734
    %s5751 = sld [smem:[#allocation11 + $0x81]]
    %p5753 = scmp.ne.f32.partialorder %s5751, %s5751
    %s5754 = sshrl.u32 %s5751, 16
    %s5755 = sand.u32 %s5754, 1
    %s5756 = sadd.s32 32767, %s5755
    %s5757 = sadd.s32 %s5751, %s5756
    %s5758 = sand.u32 %s5757, 4294901760
    %s5759 = scalar_select %p5753, 2143289344, %s5758
    %s5761 = sshrl.u32 %s5759, 16
    %s5762 = sshll.u32 %s5761, 16
    %s5763 = sor.u32 %s5761, %s5762
    %v5764 = vstv %s5763
    %v5766 = vunpack.c.l.bf16 %v5735
    %v5767 = vunpack.c.l.bf16 %v5736
    %v5768 = vunpack.c.l.bf16 %v5737
    %v5769 = vunpack.c.l.bf16 %v5738
    %v5770 = vunpack.c.l.bf16 %v5739
    %v5771 = vunpack.c.l.bf16 %v5740
    %v5772 = vunpack.c.l.bf16 %v5741
    %v5773 = vunpack.c.l.bf16 %v5742
    %v5774 = vunpack.c.l.bf16 %v5743
    %v5775 = vunpack.c.l.bf16 %v5744
    %v5776 = vunpack.c.l.bf16 %v5745
    %v5777 = vunpack.c.l.bf16 %v5746
    %v5778 = vunpack.c.l.bf16 %v5747
    %v5779 = vunpack.c.l.bf16 %v5748
    %v5780 = vunpack.c.l.bf16 %v5749
    %v5781 = vunpack.c.l.bf16 %v5750
    %v5782 = vunpack.c.l.bf16 %v5764
    %v5783 = vmul.f32 %v5766, %v5782
    %v5784 = vmul.f32 %v5767, %v5782
    %v5785 = vmul.f32 %v5768, %v5782
    %v5786 = vmul.f32 %v5769, %v5782
    %v5787 = vmul.f32 %v5770, %v5782
    %v5788 = vmul.f32 %v5771, %v5782
    %v5789 = vmul.f32 %v5772, %v5782
    %v5790 = vmul.f32 %v5773, %v5782
    %v5791 = vmul.f32 %v5774, %v5782
    %v5792 = vmul.f32 %v5775, %v5782
    %v5793 = vmul.f32 %v5776, %v5782
    %v5794 = vmul.f32 %v5777, %v5782
    %v5795 = vmul.f32 %v5778, %v5782
    %v5796 = vmul.f32 %v5779, %v5782
    %v5797 = vmul.f32 %v5780, %v5782
    %v5798 = vmul.f32 %v5781, %v5782
    %v5799 = vpack.c.bf16 %v5783, %v5783
    %v5800 = vpack.c.bf16 %v5784, %v5784
    %v5801 = vpack.c.bf16 %v5785, %v5785
    %v5802 = vpack.c.bf16 %v5786, %v5786
    %v5803 = vpack.c.bf16 %v5787, %v5787
    %v5804 = vpack.c.bf16 %v5788, %v5788
    %v5805 = vpack.c.bf16 %v5789, %v5789
    %v5806 = vpack.c.bf16 %v5790, %v5790
    %v5807 = vpack.c.bf16 %v5791, %v5791
    %v5808 = vpack.c.bf16 %v5792, %v5792
    %v5809 = vpack.c.bf16 %v5793, %v5793
    %v5810 = vpack.c.bf16 %v5794, %v5794
    %v5811 = vpack.c.bf16 %v5795, %v5795
    %v5812 = vpack.c.bf16 %v5796, %v5796
    %v5813 = vpack.c.bf16 %v5797, %v5797
    %v5814 = vpack.c.bf16 %v5798, %v5798
    %v5815 = vunpack.c.l.bf16 %v5607
    %v5816 = vunpack.c.l.bf16 %v5608
    %v5817 = vunpack.c.l.bf16 %v5609
    %v5818 = vunpack.c.l.bf16 %v5610
    %v5819 = vunpack.c.l.bf16 %v5611
    %v5820 = vunpack.c.l.bf16 %v5612
    %v5821 = vunpack.c.l.bf16 %v5613
    %v5822 = vunpack.c.l.bf16 %v5614
    %v5823 = vunpack.c.l.bf16 %v5615
    %v5824 = vunpack.c.l.bf16 %v5616
    %v5825 = vunpack.c.l.bf16 %v5617
    %v5826 = vunpack.c.l.bf16 %v5618
    %v5827 = vunpack.c.l.bf16 %v5619
    %v5828 = vunpack.c.l.bf16 %v5620
    %v5829 = vunpack.c.l.bf16 %v5621
    %v5830 = vunpack.c.l.bf16 %v5622
    %v5831 = vunpack.c.l.bf16 %v5799
    %v5832 = vunpack.c.l.bf16 %v5800
    %v5833 = vunpack.c.l.bf16 %v5801
    %v5834 = vunpack.c.l.bf16 %v5802
    %v5835 = vunpack.c.l.bf16 %v5803
    %v5836 = vunpack.c.l.bf16 %v5804
    %v5837 = vunpack.c.l.bf16 %v5805
    %v5838 = vunpack.c.l.bf16 %v5806
    %v5839 = vunpack.c.l.bf16 %v5807
    %v5840 = vunpack.c.l.bf16 %v5808
    %v5841 = vunpack.c.l.bf16 %v5809
    %v5842 = vunpack.c.l.bf16 %v5810
    %v5843 = vunpack.c.l.bf16 %v5811
    %v5844 = vunpack.c.l.bf16 %v5812
    %v5845 = vunpack.c.l.bf16 %v5813
    %v5846 = vunpack.c.l.bf16 %v5814
    %v5847 = vadd.f32 %v5815, %v5831
    %v5848 = vadd.f32 %v5816, %v5832
    %v5849 = vadd.f32 %v5817, %v5833
    %v5850 = vadd.f32 %v5818, %v5834
    %v5851 = vadd.f32 %v5819, %v5835
    %v5852 = vadd.f32 %v5820, %v5836
    %v5853 = vadd.f32 %v5821, %v5837
    %v5854 = vadd.f32 %v5822, %v5838
    %v5855 = vadd.f32 %v5823, %v5839
    %v5856 = vadd.f32 %v5824, %v5840
    %v5857 = vadd.f32 %v5825, %v5841
    %v5858 = vadd.f32 %v5826, %v5842
    %v5859 = vadd.f32 %v5827, %v5843
    %v5860 = vadd.f32 %v5828, %v5844
    %v5861 = vadd.f32 %v5829, %v5845
    %v5862 = vadd.f32 %v5830, %v5846
    %v5863 = vpack.c.bf16 %v5847, %v5847
    %v5864 = vpack.c.bf16 %v5848, %v5848
    %v5865 = vpack.c.bf16 %v5849, %v5849
    %v5866 = vpack.c.bf16 %v5850, %v5850
    %v5867 = vpack.c.bf16 %v5851, %v5851
    %v5868 = vpack.c.bf16 %v5852, %v5852
    %v5869 = vpack.c.bf16 %v5853, %v5853
    %v5870 = vpack.c.bf16 %v5854, %v5854
    %v5871 = vpack.c.bf16 %v5855, %v5855
    %v5872 = vpack.c.bf16 %v5856, %v5856
    %v5873 = vpack.c.bf16 %v5857, %v5857
    %v5874 = vpack.c.bf16 %v5858, %v5858
    %v5875 = vpack.c.bf16 %v5859, %v5859
    %v5876 = vpack.c.bf16 %v5860, %v5860
    %v5877 = vpack.c.bf16 %v5861, %v5861
    %v5878 = vpack.c.bf16 %v5862, %v5862
    %v5879 = vld [vmem:[%s589] sm:$0xf]
    %v5880 = vld [vmem:[%s589 + $0x4] sm:$0xf]
    %v5881 = vld [vmem:[%s589 + $0x8] sm:$0xf]
    %v5882 = vld [vmem:[%s589 + $0xc] sm:$0xf]
    %v5883 = vld [vmem:[%s589 + $0x10] sm:$0xf]
    %v5884 = vld [vmem:[%s589 + $0x14] sm:$0xf]
    %v5885 = vld [vmem:[%s589 + $0x18] sm:$0xf]
    %v5886 = vld [vmem:[%s589 + $0x1c] sm:$0xf]
    %v5887 = vld [vmem:[%s589 + $0x20] sm:$0xf]
    %v5888 = vld [vmem:[%s589 + $0x24] sm:$0xf]
    %v5889 = vld [vmem:[%s589 + $0x28] sm:$0xf]
    %v5890 = vld [vmem:[%s589 + $0x2c] sm:$0xf]
    %v5891 = vld [vmem:[%s589 + $0x30] sm:$0xf]
    %v5892 = vld [vmem:[%s589 + $0x34] sm:$0xf]
    %v5893 = vld [vmem:[%s589 + $0x38] sm:$0xf]
    %v5894 = vld [vmem:[%s589 + $0x3c] sm:$0xf]
    %s5895 = sld [smem:[#allocation10 + $0x82]]
    %p5897 = scmp.ne.f32.partialorder %s5895, %s5895
    %s5898 = sshrl.u32 %s5895, 16
    %s5899 = sand.u32 %s5898, 1
    %s5900 = sadd.s32 32767, %s5899
    %s5901 = sadd.s32 %s5895, %s5900
    %s5902 = sand.u32 %s5901, 4294901760
    %s5903 = scalar_select %p5897, 2143289344, %s5902
    %s5905 = sshrl.u32 %s5903, 16
    %s5906 = sshll.u32 %s5905, 16
    %s5907 = sor.u32 %s5905, %s5906
    %v5908 = vstv %s5907
    %v5910 = vunpack.c.l.bf16 %v5879
    %v5911 = vunpack.c.l.bf16 %v5880
    %v5912 = vunpack.c.l.bf16 %v5881
    %v5913 = vunpack.c.l.bf16 %v5882
    %v5914 = vunpack.c.l.bf16 %v5883
    %v5915 = vunpack.c.l.bf16 %v5884
    %v5916 = vunpack.c.l.bf16 %v5885
    %v5917 = vunpack.c.l.bf16 %v5886
    %v5918 = vunpack.c.l.bf16 %v5887
    %v5919 = vunpack.c.l.bf16 %v5888
    %v5920 = vunpack.c.l.bf16 %v5889
    %v5921 = vunpack.c.l.bf16 %v5890
    %v5922 = vunpack.c.l.bf16 %v5891
    %v5923 = vunpack.c.l.bf16 %v5892
    %v5924 = vunpack.c.l.bf16 %v5893
    %v5925 = vunpack.c.l.bf16 %v5894
    %v5926 = vunpack.c.l.bf16 %v5908
    %v5927 = vsub.f32 %v5910, %v5926
    %v5928 = vsub.f32 %v5911, %v5926
    %v5929 = vsub.f32 %v5912, %v5926
    %v5930 = vsub.f32 %v5913, %v5926
    %v5931 = vsub.f32 %v5914, %v5926
    %v5932 = vsub.f32 %v5915, %v5926
    %v5933 = vsub.f32 %v5916, %v5926
    %v5934 = vsub.f32 %v5917, %v5926
    %v5935 = vsub.f32 %v5918, %v5926
    %v5936 = vsub.f32 %v5919, %v5926
    %v5937 = vsub.f32 %v5920, %v5926
    %v5938 = vsub.f32 %v5921, %v5926
    %v5939 = vsub.f32 %v5922, %v5926
    %v5940 = vsub.f32 %v5923, %v5926
    %v5941 = vsub.f32 %v5924, %v5926
    %v5942 = vsub.f32 %v5925, %v5926
    %v5943 = vpack.c.bf16 %v5927, %v5927
    %v5944 = vpack.c.bf16 %v5928, %v5928
    %v5945 = vpack.c.bf16 %v5929, %v5929
    %v5946 = vpack.c.bf16 %v5930, %v5930
    %v5947 = vpack.c.bf16 %v5931, %v5931
    %v5948 = vpack.c.bf16 %v5932, %v5932
    %v5949 = vpack.c.bf16 %v5933, %v5933
    %v5950 = vpack.c.bf16 %v5934, %v5934
    %v5951 = vpack.c.bf16 %v5935, %v5935
    %v5952 = vpack.c.bf16 %v5936, %v5936
    %v5953 = vpack.c.bf16 %v5937, %v5937
    %v5954 = vpack.c.bf16 %v5938, %v5938
    %v5955 = vpack.c.bf16 %v5939, %v5939
    %v5956 = vpack.c.bf16 %v5940, %v5940
    %v5957 = vpack.c.bf16 %v5941, %v5941
    %v5958 = vpack.c.bf16 %v5942, %v5942
    %v5959 = vunpack.c.l.bf16 %v5943
    %v5960 = vunpack.c.l.bf16 %v5944
    %v5961 = vunpack.c.l.bf16 %v5945
    %v5962 = vunpack.c.l.bf16 %v5946
    %v5963 = vunpack.c.l.bf16 %v5947
    %v5964 = vunpack.c.l.bf16 %v5948
    %v5965 = vunpack.c.l.bf16 %v5949
    %v5966 = vunpack.c.l.bf16 %v5950
    %v5967 = vunpack.c.l.bf16 %v5951
    %v5968 = vunpack.c.l.bf16 %v5952
    %v5969 = vunpack.c.l.bf16 %v5953
    %v5970 = vunpack.c.l.bf16 %v5954
    %v5971 = vunpack.c.l.bf16 %v5955
    %v5972 = vunpack.c.l.bf16 %v5956
    %v5973 = vunpack.c.l.bf16 %v5957
    %v5974 = vunpack.c.l.bf16 %v5958
    %v5975 = vmul.f32 %v5959, %v5959
    %v5976 = vmul.f32 %v5960, %v5960
    %v5977 = vmul.f32 %v5961, %v5961
    %v5978 = vmul.f32 %v5962, %v5962
    %v5979 = vmul.f32 %v5963, %v5963
    %v5980 = vmul.f32 %v5964, %v5964
    %v5981 = vmul.f32 %v5965, %v5965
    %v5982 = vmul.f32 %v5966, %v5966
    %v5983 = vmul.f32 %v5967, %v5967
    %v5984 = vmul.f32 %v5968, %v5968
    %v5985 = vmul.f32 %v5969, %v5969
    %v5986 = vmul.f32 %v5970, %v5970
    %v5987 = vmul.f32 %v5971, %v5971
    %v5988 = vmul.f32 %v5972, %v5972
    %v5989 = vmul.f32 %v5973, %v5973
    %v5990 = vmul.f32 %v5974, %v5974
    %v5991 = vpack.c.bf16 %v5975, %v5975
    %v5992 = vpack.c.bf16 %v5976, %v5976
    %v5993 = vpack.c.bf16 %v5977, %v5977
    %v5994 = vpack.c.bf16 %v5978, %v5978
    %v5995 = vpack.c.bf16 %v5979, %v5979
    %v5996 = vpack.c.bf16 %v5980, %v5980
    %v5997 = vpack.c.bf16 %v5981, %v5981
    %v5998 = vpack.c.bf16 %v5982, %v5982
    %v5999 = vpack.c.bf16 %v5983, %v5983
    %v6000 = vpack.c.bf16 %v5984, %v5984
    %v6001 = vpack.c.bf16 %v5985, %v5985
    %v6002 = vpack.c.bf16 %v5986, %v5986
    %v6003 = vpack.c.bf16 %v5987, %v5987
    %v6004 = vpack.c.bf16 %v5988, %v5988
    %v6005 = vpack.c.bf16 %v5989, %v5989
    %v6006 = vpack.c.bf16 %v5990, %v5990
    %s6007 = sld [smem:[#allocation11 + $0x82]]
    %p6009 = scmp.ne.f32.partialorder %s6007, %s6007
    %s6010 = sshrl.u32 %s6007, 16
    %s6011 = sand.u32 %s6010, 1
    %s6012 = sadd.s32 32767, %s6011
    %s6013 = sadd.s32 %s6007, %s6012
    %s6014 = sand.u32 %s6013, 4294901760
    %s6015 = scalar_select %p6009, 2143289344, %s6014
    %s6017 = sshrl.u32 %s6015, 16
    %s6018 = sshll.u32 %s6017, 16
    %s6019 = sor.u32 %s6017, %s6018
    %v6020 = vstv %s6019
    %v6022 = vunpack.c.l.bf16 %v5991
    %v6023 = vunpack.c.l.bf16 %v5992
    %v6024 = vunpack.c.l.bf16 %v5993
    %v6025 = vunpack.c.l.bf16 %v5994
    %v6026 = vunpack.c.l.bf16 %v5995
    %v6027 = vunpack.c.l.bf16 %v5996
    %v6028 = vunpack.c.l.bf16 %v5997
    %v6029 = vunpack.c.l.bf16 %v5998
    %v6030 = vunpack.c.l.bf16 %v5999
    %v6031 = vunpack.c.l.bf16 %v6000
    %v6032 = vunpack.c.l.bf16 %v6001
    %v6033 = vunpack.c.l.bf16 %v6002
    %v6034 = vunpack.c.l.bf16 %v6003
    %v6035 = vunpack.c.l.bf16 %v6004
    %v6036 = vunpack.c.l.bf16 %v6005
    %v6037 = vunpack.c.l.bf16 %v6006
    %v6038 = vunpack.c.l.bf16 %v6020
    %v6039 = vmul.f32 %v6022, %v6038
    %v6040 = vmul.f32 %v6023, %v6038
    %v6041 = vmul.f32 %v6024, %v6038
    %v6042 = vmul.f32 %v6025, %v6038
    %v6043 = vmul.f32 %v6026, %v6038
    %v6044 = vmul.f32 %v6027, %v6038
    %v6045 = vmul.f32 %v6028, %v6038
    %v6046 = vmul.f32 %v6029, %v6038
    %v6047 = vmul.f32 %v6030, %v6038
    %v6048 = vmul.f32 %v6031, %v6038
    %v6049 = vmul.f32 %v6032, %v6038
    %v6050 = vmul.f32 %v6033, %v6038
    %v6051 = vmul.f32 %v6034, %v6038
    %v6052 = vmul.f32 %v6035, %v6038
    %v6053 = vmul.f32 %v6036, %v6038
    %v6054 = vmul.f32 %v6037, %v6038
    %v6055 = vpack.c.bf16 %v6039, %v6039
    %v6056 = vpack.c.bf16 %v6040, %v6040
    %v6057 = vpack.c.bf16 %v6041, %v6041
    %v6058 = vpack.c.bf16 %v6042, %v6042
    %v6059 = vpack.c.bf16 %v6043, %v6043
    %v6060 = vpack.c.bf16 %v6044, %v6044
    %v6061 = vpack.c.bf16 %v6045, %v6045
    %v6062 = vpack.c.bf16 %v6046, %v6046
    %v6063 = vpack.c.bf16 %v6047, %v6047
    %v6064 = vpack.c.bf16 %v6048, %v6048
    %v6065 = vpack.c.bf16 %v6049, %v6049
    %v6066 = vpack.c.bf16 %v6050, %v6050
    %v6067 = vpack.c.bf16 %v6051, %v6051
    %v6068 = vpack.c.bf16 %v6052, %v6052
    %v6069 = vpack.c.bf16 %v6053, %v6053
    %v6070 = vpack.c.bf16 %v6054, %v6054
    %v6071 = vunpack.c.l.bf16 %v5863
    %v6072 = vunpack.c.l.bf16 %v5864
    %v6073 = vunpack.c.l.bf16 %v5865
    %v6074 = vunpack.c.l.bf16 %v5866
    %v6075 = vunpack.c.l.bf16 %v5867
    %v6076 = vunpack.c.l.bf16 %v5868
    %v6077 = vunpack.c.l.bf16 %v5869
    %v6078 = vunpack.c.l.bf16 %v5870
    %v6079 = vunpack.c.l.bf16 %v5871
    %v6080 = vunpack.c.l.bf16 %v5872
    %v6081 = vunpack.c.l.bf16 %v5873
    %v6082 = vunpack.c.l.bf16 %v5874
    %v6083 = vunpack.c.l.bf16 %v5875
    %v6084 = vunpack.c.l.bf16 %v5876
    %v6085 = vunpack.c.l.bf16 %v5877
    %v6086 = vunpack.c.l.bf16 %v5878
    %v6087 = vunpack.c.l.bf16 %v6055
    %v6088 = vunpack.c.l.bf16 %v6056
    %v6089 = vunpack.c.l.bf16 %v6057
    %v6090 = vunpack.c.l.bf16 %v6058
    %v6091 = vunpack.c.l.bf16 %v6059
    %v6092 = vunpack.c.l.bf16 %v6060
    %v6093 = vunpack.c.l.bf16 %v6061
    %v6094 = vunpack.c.l.bf16 %v6062
    %v6095 = vunpack.c.l.bf16 %v6063
    %v6096 = vunpack.c.l.bf16 %v6064
    %v6097 = vunpack.c.l.bf16 %v6065
    %v6098 = vunpack.c.l.bf16 %v6066
    %v6099 = vunpack.c.l.bf16 %v6067
    %v6100 = vunpack.c.l.bf16 %v6068
    %v6101 = vunpack.c.l.bf16 %v6069
    %v6102 = vunpack.c.l.bf16 %v6070
    %v6103 = vadd.f32 %v6071, %v6087
    %v6104 = vadd.f32 %v6072, %v6088
    %v6105 = vadd.f32 %v6073, %v6089
    %v6106 = vadd.f32 %v6074, %v6090
    %v6107 = vadd.f32 %v6075, %v6091
    %v6108 = vadd.f32 %v6076, %v6092
    %v6109 = vadd.f32 %v6077, %v6093
    %v6110 = vadd.f32 %v6078, %v6094
    %v6111 = vadd.f32 %v6079, %v6095
    %v6112 = vadd.f32 %v6080, %v6096
    %v6113 = vadd.f32 %v6081, %v6097
    %v6114 = vadd.f32 %v6082, %v6098
    %v6115 = vadd.f32 %v6083, %v6099
    %v6116 = vadd.f32 %v6084, %v6100
    %v6117 = vadd.f32 %v6085, %v6101
    %v6118 = vadd.f32 %v6086, %v6102
    %v6119 = vpack.c.bf16 %v6103, %v6103
    %v6120 = vpack.c.bf16 %v6104, %v6104
    %v6121 = vpack.c.bf16 %v6105, %v6105
    %v6122 = vpack.c.bf16 %v6106, %v6106
    %v6123 = vpack.c.bf16 %v6107, %v6107
    %v6124 = vpack.c.bf16 %v6108, %v6108
    %v6125 = vpack.c.bf16 %v6109, %v6109
    %v6126 = vpack.c.bf16 %v6110, %v6110
    %v6127 = vpack.c.bf16 %v6111, %v6111
    %v6128 = vpack.c.bf16 %v6112, %v6112
    %v6129 = vpack.c.bf16 %v6113, %v6113
    %v6130 = vpack.c.bf16 %v6114, %v6114
    %v6131 = vpack.c.bf16 %v6115, %v6115
    %v6132 = vpack.c.bf16 %v6116, %v6116
    %v6133 = vpack.c.bf16 %v6117, %v6117
    %v6134 = vpack.c.bf16 %v6118, %v6118
    %v6135 = vunpack.c.l.bf16 %v6119
    %v6136 = vunpack.c.l.bf16 %v6120
    %v6137 = vunpack.c.l.bf16 %v6121
    %v6138 = vunpack.c.l.bf16 %v6122
    %v6139 = vunpack.c.l.bf16 %v6123
    %v6140 = vunpack.c.l.bf16 %v6124
    %v6141 = vunpack.c.l.bf16 %v6125
    %v6142 = vunpack.c.l.bf16 %v6126
    %v6143 = vunpack.c.l.bf16 %v6127
    %v6144 = vunpack.c.l.bf16 %v6128
    %v6145 = vunpack.c.l.bf16 %v6129
    %v6146 = vunpack.c.l.bf16 %v6130
    %v6147 = vunpack.c.l.bf16 %v6131
    %v6148 = vunpack.c.l.bf16 %v6132
    %v6149 = vunpack.c.l.bf16 %v6133
    %v6150 = vunpack.c.l.bf16 %v6134
    %v6151 = vmul.f32 %v6135, 1.442695
    %v6152 = vpow.pop %v6151
    %v6153 = vmul.f32 %v6136, 1.442695
    %v6154 = vpow.pop %v6153
    %v6155 = vmul.f32 %v6137, 1.442695
    %v6156 = vpow.pop %v6155
    %v6157 = vmul.f32 %v6138, 1.442695
    %v6158 = vpow.pop %v6157
    %v6159 = vmul.f32 %v6139, 1.442695
    %v6160 = vpow.pop %v6159
    %v6161 = vmul.f32 %v6140, 1.442695
    %v6162 = vpow.pop %v6161
    %v6163 = vmul.f32 %v6141, 1.442695
    %v6164 = vpow.pop %v6163
    %v6165 = vmul.f32 %v6142, 1.442695
    %v6166 = vpow.pop %v6165
    %v6167 = vmul.f32 %v6143, 1.442695
    %v6168 = vpow.pop %v6167
    %v6169 = vmul.f32 %v6144, 1.442695
    %v6170 = vpow.pop %v6169
    %v6171 = vmul.f32 %v6145, 1.442695
    %v6172 = vpow.pop %v6171
    %v6173 = vmul.f32 %v6146, 1.442695
    %v6174 = vpow.pop %v6173
    %v6175 = vmul.f32 %v6147, 1.442695
    %v6176 = vpow.pop %v6175
    %v6177 = vmul.f32 %v6148, 1.442695
    %v6178 = vpow.pop %v6177
    %v6179 = vmul.f32 %v6149, 1.442695
    %v6180 = vpow.pop %v6179
    %v6181 = vmul.f32 %v6150, 1.442695
    %v6182 = vpow.pop %v6181
    %v6183 = vpack.c.bf16 %v6152, %v6152
    %v6184 = vpack.c.bf16 %v6154, %v6154
    %v6185 = vpack.c.bf16 %v6156, %v6156
    %v6186 = vpack.c.bf16 %v6158, %v6158
    %v6187 = vpack.c.bf16 %v6160, %v6160
    %v6188 = vpack.c.bf16 %v6162, %v6162
    %v6189 = vpack.c.bf16 %v6164, %v6164
    %v6190 = vpack.c.bf16 %v6166, %v6166
    %v6191 = vpack.c.bf16 %v6168, %v6168
    %v6192 = vpack.c.bf16 %v6170, %v6170
    %v6193 = vpack.c.bf16 %v6172, %v6172
    %v6194 = vpack.c.bf16 %v6174, %v6174
    %v6195 = vpack.c.bf16 %v6176, %v6176
    %v6196 = vpack.c.bf16 %v6178, %v6178
    %v6197 = vpack.c.bf16 %v6180, %v6180
    %v6198 = vpack.c.bf16 %v6182, %v6182
    %v6199 = vunpack.c.l.bf16 %v6183
    %v6200 = vunpack.c.l.bf16 %v6184
    %v6201 = vunpack.c.l.bf16 %v6185
    %v6202 = vunpack.c.l.bf16 %v6186
    %v6203 = vunpack.c.l.bf16 %v6187
    %v6204 = vunpack.c.l.bf16 %v6188
    %v6205 = vunpack.c.l.bf16 %v6189
    %v6206 = vunpack.c.l.bf16 %v6190
    %v6207 = vunpack.c.l.bf16 %v6191
    %v6208 = vunpack.c.l.bf16 %v6192
    %v6209 = vunpack.c.l.bf16 %v6193
    %v6210 = vunpack.c.l.bf16 %v6194
    %v6211 = vunpack.c.l.bf16 %v6195
    %v6212 = vunpack.c.l.bf16 %v6196
    %v6213 = vunpack.c.l.bf16 %v6197
    %v6214 = vunpack.c.l.bf16 %v6198
    %v6215 = vmul.f32 %v1447, %v6199
    %v6216 = vmul.f32 %v1448, %v6200
    %v6217 = vmul.f32 %v1449, %v6201
    %v6218 = vmul.f32 %v1450, %v6202
    %v6219 = vmul.f32 %v1451, %v6203
    %v6220 = vmul.f32 %v1452, %v6204
    %v6221 = vmul.f32 %v1453, %v6205
    %v6222 = vmul.f32 %v1454, %v6206
    %v6223 = vmul.f32 %v1455, %v6207
    %v6224 = vmul.f32 %v1456, %v6208
    %v6225 = vmul.f32 %v1457, %v6209
    %v6226 = vmul.f32 %v1458, %v6210
    %v6227 = vmul.f32 %v1459, %v6211
    %v6228 = vmul.f32 %v1460, %v6212
    %v6229 = vmul.f32 %v1461, %v6213
    %v6230 = vmul.f32 %v1462, %v6214
    %v6231 = vpack.c.bf16 %v6215, %v6215
    %v6232 = vpack.c.bf16 %v6216, %v6216
    %v6233 = vpack.c.bf16 %v6217, %v6217
    %v6234 = vpack.c.bf16 %v6218, %v6218
    %v6235 = vpack.c.bf16 %v6219, %v6219
    %v6236 = vpack.c.bf16 %v6220, %v6220
    %v6237 = vpack.c.bf16 %v6221, %v6221
    %v6238 = vpack.c.bf16 %v6222, %v6222
    %v6239 = vpack.c.bf16 %v6223, %v6223
    %v6240 = vpack.c.bf16 %v6224, %v6224
    %v6241 = vpack.c.bf16 %v6225, %v6225
    %v6242 = vpack.c.bf16 %v6226, %v6226
    %v6243 = vpack.c.bf16 %v6227, %v6227
    %v6244 = vpack.c.bf16 %v6228, %v6228
    %v6245 = vpack.c.bf16 %v6229, %v6229
    %v6246 = vpack.c.bf16 %v6230, %v6230
    %6247 = vst [vmem:[#allocation3 + $0x4] sm:$0xf] %v6231
    %6248 = vst [vmem:[#allocation3 + $0x10] sm:$0xf] %v6232
    %6249 = vst [vmem:[#allocation3 + $0x1c] sm:$0xf] %v6233
    %6250 = vst [vmem:[#allocation3 + $0x28] sm:$0xf] %v6234
    %6251 = vst [vmem:[#allocation3 + $0x34] sm:$0xf] %v6235
    %6252 = vst [vmem:[#allocation3 + $0x40] sm:$0xf] %v6236
    %6253 = vst [vmem:[#allocation3 + $0x4c] sm:$0xf] %v6237
    %6254 = vst [vmem:[#allocation3 + $0x58] sm:$0xf] %v6238
    %6255 = vst [vmem:[#allocation3 + $0x64] sm:$0xf] %v6239
    %6256 = vst [vmem:[#allocation3 + $0x70] sm:$0xf] %v6240
    %6257 = vst [vmem:[#allocation3 + $0x7c] sm:$0xf] %v6241
    %6258 = vst [vmem:[#allocation3 + $0x88] sm:$0xf] %v6242
    %6259 = vst [vmem:[#allocation3 + $0x94] sm:$0xf] %v6243
    %6260 = vst [vmem:[#allocation3 + $0xa0] sm:$0xf] %v6244
    %6261 = vst [vmem:[#allocation3 + $0xac] sm:$0xf] %v6245
    %6262 = vst [vmem:[#allocation3 + $0xb8] sm:$0xf] %v6246
    %s6263 = scalar_lea.vmem %s14, 4
    %v6264 = vld [vmem:[%s6263] sm:$0xf]
    %v6266 = vsel %vm5345, %v6264, 0
    %6268 = vmatpush.bf16.msra.mxu0 0
    %6269 = vmatpush.bf16.msra.mxu0 0
    %6270 = vmatpush.bf16.msra.mxu0 0
    %6271 = vmatpush.bf16.msra.mxu0 0
    %6272 = vmatpush.bf16.msra.mxu0 0
    %6273 = vmatpush.bf16.msra.mxu0 0
    %6274 = vmatpush.bf16.msra.mxu0 0
    %6275 = vmatpush.bf16.msra.mxu0 %v6266
    %6276 = vmatmul.bf16.gmra.mxu0 %v5322
    %v6277 = vpop.f32.mrf.mxu0
    %v6278 = vadd.f32 0.0, %v6277
    %v6279 = vpop.f32.mrf.mxu0
    %v6280 = vadd.f32 0.0, %v6279
    %6281 = vmatmul.bf16.gmra.mxu0 %v5325
    %v6282 = vpop.f32.mrf.mxu0
    %v6283 = vadd.f32 0.0, %v6282
    %v6284 = vpop.f32.mrf.mxu0
    %v6285 = vadd.f32 0.0, %v6284
    %6286 = vmatmul.bf16.gmra.mxu0 %v5328
    %v6287 = vpop.f32.mrf.mxu0
    %v6288 = vadd.f32 0.0, %v6287
    %v6289 = vpop.f32.mrf.mxu0
    %v6290 = vadd.f32 0.0, %v6289
    %6291 = vmatmul.bf16.gmra.mxu0 %v5331
    %v6292 = vpop.f32.mrf.mxu0
    %v6293 = vadd.f32 0.0, %v6292
    %v6294 = vpop.f32.mrf.mxu0
    %v6295 = vadd.f32 0.0, %v6294
    %6296 = vmatmul.bf16.gmra.mxu0 %v5334
    %v6297 = vpop.f32.mrf.mxu0
    %v6298 = vadd.f32 0.0, %v6297
    %v6299 = vpop.f32.mrf.mxu0
    %v6300 = vadd.f32 0.0, %v6299
    %6301 = vmatmul.bf16.gmra.mxu0 %v5337
    %v6302 = vpop.f32.mrf.mxu0
    %v6303 = vadd.f32 0.0, %v6302
    %v6304 = vpop.f32.mrf.mxu0
    %v6305 = vadd.f32 0.0, %v6304
    %6306 = vmatmul.bf16.gmra.mxu0 %v5340
    %v6307 = vpop.f32.mrf.mxu0
    %v6308 = vadd.f32 0.0, %v6307
    %v6309 = vpop.f32.mrf.mxu0
    %v6310 = vadd.f32 0.0, %v6309
    %6311 = vmatmul.bf16.gmra.mxu0 %v5343
    %v6312 = vpop.f32.mrf.mxu0
    %v6313 = vadd.f32 0.0, %v6312
    %v6314 = vpop.f32.mrf.mxu0
    %v6315 = vadd.f32 0.0, %v6314
    %6316 = vdwg.mxu0
    %v6317 = vpack.c.bf16 %v6278, %v6278
    %v6318 = vpack.c.bf16 %v6280, %v6280
    %v6319 = vpack.c.bf16 %v6283, %v6283
    %v6320 = vpack.c.bf16 %v6285, %v6285
    %v6321 = vpack.c.bf16 %v6288, %v6288
    %v6322 = vpack.c.bf16 %v6290, %v6290
    %v6323 = vpack.c.bf16 %v6293, %v6293
    %v6324 = vpack.c.bf16 %v6295, %v6295
    %v6325 = vpack.c.bf16 %v6298, %v6298
    %v6326 = vpack.c.bf16 %v6300, %v6300
    %v6327 = vpack.c.bf16 %v6303, %v6303
    %v6328 = vpack.c.bf16 %v6305, %v6305
    %v6329 = vpack.c.bf16 %v6308, %v6308
    %v6330 = vpack.c.bf16 %v6310, %v6310
    %v6331 = vpack.c.bf16 %v6313, %v6313
    %v6332 = vpack.c.bf16 %v6315, %v6315
    %6333 = vst.msk [vmem:[#allocation4 + $0x40] sm:$0xf] %vm5414, %v6317
    %6334 = vst.msk [vmem:[#allocation4 + $0x44] sm:$0xf] %vm5414, %v6318
    %6335 = vst.msk [vmem:[#allocation4 + $0x48] sm:$0xf] %vm5414, %v6319
    %6336 = vst.msk [vmem:[#allocation4 + $0x4c] sm:$0xf] %vm5414, %v6320
    %6337 = vst.msk [vmem:[#allocation4 + $0x50] sm:$0xf] %vm5414, %v6321
    %6338 = vst.msk [vmem:[#allocation4 + $0x54] sm:$0xf] %vm5414, %v6322
    %6339 = vst.msk [vmem:[#allocation4 + $0x58] sm:$0xf] %vm5414, %v6323
    %6340 = vst.msk [vmem:[#allocation4 + $0x5c] sm:$0xf] %vm5414, %v6324
    %6341 = vst.msk [vmem:[#allocation4 + $0x60] sm:$0xf] %vm5414, %v6325
    %6342 = vst.msk [vmem:[#allocation4 + $0x64] sm:$0xf] %vm5414, %v6326
    %6343 = vst.msk [vmem:[#allocation4 + $0x68] sm:$0xf] %vm5414, %v6327
    %6344 = vst.msk [vmem:[#allocation4 + $0x6c] sm:$0xf] %vm5414, %v6328
    %6345 = vst.msk [vmem:[#allocation4 + $0x70] sm:$0xf] %vm5414, %v6329
    %6346 = vst.msk [vmem:[#allocation4 + $0x74] sm:$0xf] %vm5414, %v6330
    %6347 = vst.msk [vmem:[#allocation4 + $0x78] sm:$0xf] %vm5414, %v6331
    %6348 = vst.msk [vmem:[#allocation4 + $0x7c] sm:$0xf] %vm5414, %v6332
    %v6349 = vld [vmem:[#allocation2] sm:$0xf]
    %v6350 = vld [vmem:[#allocation2 + $0x4] sm:$0xf]
    %v6351 = vld [vmem:[#allocation2 + $0x8] sm:$0xf]
    %v6352 = vld [vmem:[#allocation2 + $0xc] sm:$0xf]
    %v6353 = vld [vmem:[#allocation2 + $0x10] sm:$0xf]
    %v6354 = vld [vmem:[#allocation2 + $0x14] sm:$0xf]
    %v6355 = vld [vmem:[#allocation2 + $0x18] sm:$0xf]
    %v6356 = vld [vmem:[#allocation2 + $0x1c] sm:$0xf]
    %v6357 = vld [vmem:[#allocation2 + $0x20] sm:$0xf]
    %v6358 = vld [vmem:[#allocation2 + $0x24] sm:$0xf]
    %v6359 = vld [vmem:[#allocation2 + $0x28] sm:$0xf]
    %v6360 = vld [vmem:[#allocation2 + $0x2c] sm:$0xf]
    %v6361 = vld [vmem:[#allocation2 + $0x30] sm:$0xf]
    %v6362 = vld [vmem:[#allocation2 + $0x34] sm:$0xf]
    %v6363 = vld [vmem:[#allocation2 + $0x38] sm:$0xf]
    %v6364 = vld [vmem:[#allocation2 + $0x3c] sm:$0xf]
    %s6365 = sld [smem:[#allocation10 + $0x100]]
    %p6367 = scmp.ne.f32.partialorder %s6365, %s6365
    %s6368 = sshrl.u32 %s6365, 16
    %s6369 = sand.u32 %s6368, 1
    %s6370 = sadd.s32 32767, %s6369
    %s6371 = sadd.s32 %s6365, %s6370
    %s6372 = sand.u32 %s6371, 4294901760
    %s6373 = scalar_select %p6367, 2143289344, %s6372
    %s6375 = sshrl.u32 %s6373, 16
    %s6376 = sshll.u32 %s6375, 16
    %s6377 = sor.u32 %s6375, %s6376
    %v6378 = vstv %s6377
    %v6380 = vunpack.c.l.bf16 %v6349
    %v6381 = vunpack.c.l.bf16 %v6350
    %v6382 = vunpack.c.l.bf16 %v6351
    %v6383 = vunpack.c.l.bf16 %v6352
    %v6384 = vunpack.c.l.bf16 %v6353
    %v6385 = vunpack.c.l.bf16 %v6354
    %v6386 = vunpack.c.l.bf16 %v6355
    %v6387 = vunpack.c.l.bf16 %v6356
    %v6388 = vunpack.c.l.bf16 %v6357
    %v6389 = vunpack.c.l.bf16 %v6358
    %v6390 = vunpack.c.l.bf16 %v6359
    %v6391 = vunpack.c.l.bf16 %v6360
    %v6392 = vunpack.c.l.bf16 %v6361
    %v6393 = vunpack.c.l.bf16 %v6362
    %v6394 = vunpack.c.l.bf16 %v6363
    %v6395 = vunpack.c.l.bf16 %v6364
    %v6396 = vunpack.c.l.bf16 %v6378
    %v6397 = vsub.f32 %v6380, %v6396
    %v6398 = vsub.f32 %v6381, %v6396
    %v6399 = vsub.f32 %v6382, %v6396
    %v6400 = vsub.f32 %v6383, %v6396
    %v6401 = vsub.f32 %v6384, %v6396
    %v6402 = vsub.f32 %v6385, %v6396
    %v6403 = vsub.f32 %v6386, %v6396
    %v6404 = vsub.f32 %v6387, %v6396
    %v6405 = vsub.f32 %v6388, %v6396
    %v6406 = vsub.f32 %v6389, %v6396
    %v6407 = vsub.f32 %v6390, %v6396
    %v6408 = vsub.f32 %v6391, %v6396
    %v6409 = vsub.f32 %v6392, %v6396
    %v6410 = vsub.f32 %v6393, %v6396
    %v6411 = vsub.f32 %v6394, %v6396
    %v6412 = vsub.f32 %v6395, %v6396
    %v6413 = vpack.c.bf16 %v6397, %v6397
    %v6414 = vpack.c.bf16 %v6398, %v6398
    %v6415 = vpack.c.bf16 %v6399, %v6399
    %v6416 = vpack.c.bf16 %v6400, %v6400
    %v6417 = vpack.c.bf16 %v6401, %v6401
    %v6418 = vpack.c.bf16 %v6402, %v6402
    %v6419 = vpack.c.bf16 %v6403, %v6403
    %v6420 = vpack.c.bf16 %v6404, %v6404
    %v6421 = vpack.c.bf16 %v6405, %v6405
    %v6422 = vpack.c.bf16 %v6406, %v6406
    %v6423 = vpack.c.bf16 %v6407, %v6407
    %v6424 = vpack.c.bf16 %v6408, %v6408
    %v6425 = vpack.c.bf16 %v6409, %v6409
    %v6426 = vpack.c.bf16 %v6410, %v6410
    %v6427 = vpack.c.bf16 %v6411, %v6411
    %v6428 = vpack.c.bf16 %v6412, %v6412
    %v6429 = vunpack.c.l.bf16 %v6413
    %v6430 = vunpack.c.l.bf16 %v6414
    %v6431 = vunpack.c.l.bf16 %v6415
    %v6432 = vunpack.c.l.bf16 %v6416
    %v6433 = vunpack.c.l.bf16 %v6417
    %v6434 = vunpack.c.l.bf16 %v6418
    %v6435 = vunpack.c.l.bf16 %v6419
    %v6436 = vunpack.c.l.bf16 %v6420
    %v6437 = vunpack.c.l.bf16 %v6421
    %v6438 = vunpack.c.l.bf16 %v6422
    %v6439 = vunpack.c.l.bf16 %v6423
    %v6440 = vunpack.c.l.bf16 %v6424
    %v6441 = vunpack.c.l.bf16 %v6425
    %v6442 = vunpack.c.l.bf16 %v6426
    %v6443 = vunpack.c.l.bf16 %v6427
    %v6444 = vunpack.c.l.bf16 %v6428
    %v6445 = vmul.f32 %v6429, %v6429
    %v6446 = vmul.f32 %v6430, %v6430
    %v6447 = vmul.f32 %v6431, %v6431
    %v6448 = vmul.f32 %v6432, %v6432
    %v6449 = vmul.f32 %v6433, %v6433
    %v6450 = vmul.f32 %v6434, %v6434
    %v6451 = vmul.f32 %v6435, %v6435
    %v6452 = vmul.f32 %v6436, %v6436
    %v6453 = vmul.f32 %v6437, %v6437
    %v6454 = vmul.f32 %v6438, %v6438
    %v6455 = vmul.f32 %v6439, %v6439
    %v6456 = vmul.f32 %v6440, %v6440
    %v6457 = vmul.f32 %v6441, %v6441
    %v6458 = vmul.f32 %v6442, %v6442
    %v6459 = vmul.f32 %v6443, %v6443
    %v6460 = vmul.f32 %v6444, %v6444
    %v6461 = vpack.c.bf16 %v6445, %v6445
    %v6462 = vpack.c.bf16 %v6446, %v6446
    %v6463 = vpack.c.bf16 %v6447, %v6447
    %v6464 = vpack.c.bf16 %v6448, %v6448
    %v6465 = vpack.c.bf16 %v6449, %v6449
    %v6466 = vpack.c.bf16 %v6450, %v6450
    %v6467 = vpack.c.bf16 %v6451, %v6451
    %v6468 = vpack.c.bf16 %v6452, %v6452
    %v6469 = vpack.c.bf16 %v6453, %v6453
    %v6470 = vpack.c.bf16 %v6454, %v6454
    %v6471 = vpack.c.bf16 %v6455, %v6455
    %v6472 = vpack.c.bf16 %v6456, %v6456
    %v6473 = vpack.c.bf16 %v6457, %v6457
    %v6474 = vpack.c.bf16 %v6458, %v6458
    %v6475 = vpack.c.bf16 %v6459, %v6459
    %v6476 = vpack.c.bf16 %v6460, %v6460
    %s6477 = sld [smem:[#allocation11 + $0x100]]
    %p6479 = scmp.ne.f32.partialorder %s6477, %s6477
    %s6480 = sshrl.u32 %s6477, 16
    %s6481 = sand.u32 %s6480, 1
    %s6482 = sadd.s32 32767, %s6481
    %s6483 = sadd.s32 %s6477, %s6482
    %s6484 = sand.u32 %s6483, 4294901760
    %s6485 = scalar_select %p6479, 2143289344, %s6484
    %s6487 = sshrl.u32 %s6485, 16
    %s6488 = sshll.u32 %s6487, 16
    %s6489 = sor.u32 %s6487, %s6488
    %v6490 = vstv %s6489
    %v6492 = vunpack.c.l.bf16 %v6461
    %v6493 = vunpack.c.l.bf16 %v6462
    %v6494 = vunpack.c.l.bf16 %v6463
    %v6495 = vunpack.c.l.bf16 %v6464
    %v6496 = vunpack.c.l.bf16 %v6465
    %v6497 = vunpack.c.l.bf16 %v6466
    %v6498 = vunpack.c.l.bf16 %v6467
    %v6499 = vunpack.c.l.bf16 %v6468
    %v6500 = vunpack.c.l.bf16 %v6469
    %v6501 = vunpack.c.l.bf16 %v6470
    %v6502 = vunpack.c.l.bf16 %v6471
    %v6503 = vunpack.c.l.bf16 %v6472
    %v6504 = vunpack.c.l.bf16 %v6473
    %v6505 = vunpack.c.l.bf16 %v6474
    %v6506 = vunpack.c.l.bf16 %v6475
    %v6507 = vunpack.c.l.bf16 %v6476
    %v6508 = vunpack.c.l.bf16 %v6490
    %v6509 = vmul.f32 %v6492, %v6508
    %v6510 = vmul.f32 %v6493, %v6508
    %v6511 = vmul.f32 %v6494, %v6508
    %v6512 = vmul.f32 %v6495, %v6508
    %v6513 = vmul.f32 %v6496, %v6508
    %v6514 = vmul.f32 %v6497, %v6508
    %v6515 = vmul.f32 %v6498, %v6508
    %v6516 = vmul.f32 %v6499, %v6508
    %v6517 = vmul.f32 %v6500, %v6508
    %v6518 = vmul.f32 %v6501, %v6508
    %v6519 = vmul.f32 %v6502, %v6508
    %v6520 = vmul.f32 %v6503, %v6508
    %v6521 = vmul.f32 %v6504, %v6508
    %v6522 = vmul.f32 %v6505, %v6508
    %v6523 = vmul.f32 %v6506, %v6508
    %v6524 = vmul.f32 %v6507, %v6508
    %v6525 = vpack.c.bf16 %v6509, %v6509
    %v6526 = vpack.c.bf16 %v6510, %v6510
    %v6527 = vpack.c.bf16 %v6511, %v6511
    %v6528 = vpack.c.bf16 %v6512, %v6512
    %v6529 = vpack.c.bf16 %v6513, %v6513
    %v6530 = vpack.c.bf16 %v6514, %v6514
    %v6531 = vpack.c.bf16 %v6515, %v6515
    %v6532 = vpack.c.bf16 %v6516, %v6516
    %v6533 = vpack.c.bf16 %v6517, %v6517
    %v6534 = vpack.c.bf16 %v6518, %v6518
    %v6535 = vpack.c.bf16 %v6519, %v6519
    %v6536 = vpack.c.bf16 %v6520, %v6520
    %v6537 = vpack.c.bf16 %v6521, %v6521
    %v6538 = vpack.c.bf16 %v6522, %v6522
    %v6539 = vpack.c.bf16 %v6523, %v6523
    %v6540 = vpack.c.bf16 %v6524, %v6524
    %v6541 = vld [vmem:[%s426] sm:$0xf]
    %v6542 = vld [vmem:[%s426 + $0x4] sm:$0xf]
    %v6543 = vld [vmem:[%s426 + $0x8] sm:$0xf]
    %v6544 = vld [vmem:[%s426 + $0xc] sm:$0xf]
    %v6545 = vld [vmem:[%s426 + $0x10] sm:$0xf]
    %v6546 = vld [vmem:[%s426 + $0x14] sm:$0xf]
    %v6547 = vld [vmem:[%s426 + $0x18] sm:$0xf]
    %v6548 = vld [vmem:[%s426 + $0x1c] sm:$0xf]
    %v6549 = vld [vmem:[%s426 + $0x20] sm:$0xf]
    %v6550 = vld [vmem:[%s426 + $0x24] sm:$0xf]
    %v6551 = vld [vmem:[%s426 + $0x28] sm:$0xf]
    %v6552 = vld [vmem:[%s426 + $0x2c] sm:$0xf]
    %v6553 = vld [vmem:[%s426 + $0x30] sm:$0xf]
    %v6554 = vld [vmem:[%s426 + $0x34] sm:$0xf]
    %v6555 = vld [vmem:[%s426 + $0x38] sm:$0xf]
    %v6556 = vld [vmem:[%s426 + $0x3c] sm:$0xf]
    %s6557 = sld [smem:[#allocation10 + $0x101]]
    %p6559 = scmp.ne.f32.partialorder %s6557, %s6557
    %s6560 = sshrl.u32 %s6557, 16
    %s6561 = sand.u32 %s6560, 1
    %s6562 = sadd.s32 32767, %s6561
    %s6563 = sadd.s32 %s6557, %s6562
    %s6564 = sand.u32 %s6563, 4294901760
    %s6565 = scalar_select %p6559, 2143289344, %s6564
    %s6567 = sshrl.u32 %s6565, 16
    %s6568 = sshll.u32 %s6567, 16
    %s6569 = sor.u32 %s6567, %s6568
    %v6570 = vstv %s6569
    %v6572 = vunpack.c.l.bf16 %v6541
    %v6573 = vunpack.c.l.bf16 %v6542
    %v6574 = vunpack.c.l.bf16 %v6543
    %v6575 = vunpack.c.l.bf16 %v6544
    %v6576 = vunpack.c.l.bf16 %v6545
    %v6577 = vunpack.c.l.bf16 %v6546
    %v6578 = vunpack.c.l.bf16 %v6547
    %v6579 = vunpack.c.l.bf16 %v6548
    %v6580 = vunpack.c.l.bf16 %v6549
    %v6581 = vunpack.c.l.bf16 %v6550
    %v6582 = vunpack.c.l.bf16 %v6551
    %v6583 = vunpack.c.l.bf16 %v6552
    %v6584 = vunpack.c.l.bf16 %v6553
    %v6585 = vunpack.c.l.bf16 %v6554
    %v6586 = vunpack.c.l.bf16 %v6555
    %v6587 = vunpack.c.l.bf16 %v6556
    %v6588 = vunpack.c.l.bf16 %v6570
    %v6589 = vsub.f32 %v6572, %v6588
    %v6590 = vsub.f32 %v6573, %v6588
    %v6591 = vsub.f32 %v6574, %v6588
    %v6592 = vsub.f32 %v6575, %v6588
    %v6593 = vsub.f32 %v6576, %v6588
    %v6594 = vsub.f32 %v6577, %v6588
    %v6595 = vsub.f32 %v6578, %v6588
    %v6596 = vsub.f32 %v6579, %v6588
    %v6597 = vsub.f32 %v6580, %v6588
    %v6598 = vsub.f32 %v6581, %v6588
    %v6599 = vsub.f32 %v6582, %v6588
    %v6600 = vsub.f32 %v6583, %v6588
    %v6601 = vsub.f32 %v6584, %v6588
    %v6602 = vsub.f32 %v6585, %v6588
    %v6603 = vsub.f32 %v6586, %v6588
    %v6604 = vsub.f32 %v6587, %v6588
    %v6605 = vpack.c.bf16 %v6589, %v6589
    %v6606 = vpack.c.bf16 %v6590, %v6590
    %v6607 = vpack.c.bf16 %v6591, %v6591
    %v6608 = vpack.c.bf16 %v6592, %v6592
    %v6609 = vpack.c.bf16 %v6593, %v6593
    %v6610 = vpack.c.bf16 %v6594, %v6594
    %v6611 = vpack.c.bf16 %v6595, %v6595
    %v6612 = vpack.c.bf16 %v6596, %v6596
    %v6613 = vpack.c.bf16 %v6597, %v6597
    %v6614 = vpack.c.bf16 %v6598, %v6598
    %v6615 = vpack.c.bf16 %v6599, %v6599
    %v6616 = vpack.c.bf16 %v6600, %v6600
    %v6617 = vpack.c.bf16 %v6601, %v6601
    %v6618 = vpack.c.bf16 %v6602, %v6602
    %v6619 = vpack.c.bf16 %v6603, %v6603
    %v6620 = vpack.c.bf16 %v6604, %v6604
    %v6621 = vunpack.c.l.bf16 %v6605
    %v6622 = vunpack.c.l.bf16 %v6606
    %v6623 = vunpack.c.l.bf16 %v6607
    %v6624 = vunpack.c.l.bf16 %v6608
    %v6625 = vunpack.c.l.bf16 %v6609
    %v6626 = vunpack.c.l.bf16 %v6610
    %v6627 = vunpack.c.l.bf16 %v6611
    %v6628 = vunpack.c.l.bf16 %v6612
    %v6629 = vunpack.c.l.bf16 %v6613
    %v6630 = vunpack.c.l.bf16 %v6614
    %v6631 = vunpack.c.l.bf16 %v6615
    %v6632 = vunpack.c.l.bf16 %v6616
    %v6633 = vunpack.c.l.bf16 %v6617
    %v6634 = vunpack.c.l.bf16 %v6618
    %v6635 = vunpack.c.l.bf16 %v6619
    %v6636 = vunpack.c.l.bf16 %v6620
    %v6637 = vmul.f32 %v6621, %v6621
    %v6638 = vmul.f32 %v6622, %v6622
    %v6639 = vmul.f32 %v6623, %v6623
    %v6640 = vmul.f32 %v6624, %v6624
    %v6641 = vmul.f32 %v6625, %v6625
    %v6642 = vmul.f32 %v6626, %v6626
    %v6643 = vmul.f32 %v6627, %v6627
    %v6644 = vmul.f32 %v6628, %v6628
    %v6645 = vmul.f32 %v6629, %v6629
    %v6646 = vmul.f32 %v6630, %v6630
    %v6647 = vmul.f32 %v6631, %v6631
    %v6648 = vmul.f32 %v6632, %v6632
    %v6649 = vmul.f32 %v6633, %v6633
    %v6650 = vmul.f32 %v6634, %v6634
    %v6651 = vmul.f32 %v6635, %v6635
    %v6652 = vmul.f32 %v6636, %v6636
    %v6653 = vpack.c.bf16 %v6637, %v6637
    %v6654 = vpack.c.bf16 %v6638, %v6638
    %v6655 = vpack.c.bf16 %v6639, %v6639
    %v6656 = vpack.c.bf16 %v6640, %v6640
    %v6657 = vpack.c.bf16 %v6641, %v6641
    %v6658 = vpack.c.bf16 %v6642, %v6642
    %v6659 = vpack.c.bf16 %v6643, %v6643
    %v6660 = vpack.c.bf16 %v6644, %v6644
    %v6661 = vpack.c.bf16 %v6645, %v6645
    %v6662 = vpack.c.bf16 %v6646, %v6646
    %v6663 = vpack.c.bf16 %v6647, %v6647
    %v6664 = vpack.c.bf16 %v6648, %v6648
    %v6665 = vpack.c.bf16 %v6649, %v6649
    %v6666 = vpack.c.bf16 %v6650, %v6650
    %v6667 = vpack.c.bf16 %v6651, %v6651
    %v6668 = vpack.c.bf16 %v6652, %v6652
    %s6669 = sld [smem:[#allocation11 + $0x101]]
    %p6671 = scmp.ne.f32.partialorder %s6669, %s6669
    %s6672 = sshrl.u32 %s6669, 16
    %s6673 = sand.u32 %s6672, 1
    %s6674 = sadd.s32 32767, %s6673
    %s6675 = sadd.s32 %s6669, %s6674
    %s6676 = sand.u32 %s6675, 4294901760
    %s6677 = scalar_select %p6671, 2143289344, %s6676
    %s6679 = sshrl.u32 %s6677, 16
    %s6680 = sshll.u32 %s6679, 16
    %s6681 = sor.u32 %s6679, %s6680
    %v6682 = vstv %s6681
    %v6684 = vunpack.c.l.bf16 %v6653
    %v6685 = vunpack.c.l.bf16 %v6654
    %v6686 = vunpack.c.l.bf16 %v6655
    %v6687 = vunpack.c.l.bf16 %v6656
    %v6688 = vunpack.c.l.bf16 %v6657
    %v6689 = vunpack.c.l.bf16 %v6658
    %v6690 = vunpack.c.l.bf16 %v6659
    %v6691 = vunpack.c.l.bf16 %v6660
    %v6692 = vunpack.c.l.bf16 %v6661
    %v6693 = vunpack.c.l.bf16 %v6662
    %v6694 = vunpack.c.l.bf16 %v6663
    %v6695 = vunpack.c.l.bf16 %v6664
    %v6696 = vunpack.c.l.bf16 %v6665
    %v6697 = vunpack.c.l.bf16 %v6666
    %v6698 = vunpack.c.l.bf16 %v6667
    %v6699 = vunpack.c.l.bf16 %v6668
    %v6700 = vunpack.c.l.bf16 %v6682
    %v6701 = vmul.f32 %v6684, %v6700
    %v6702 = vmul.f32 %v6685, %v6700
    %v6703 = vmul.f32 %v6686, %v6700
    %v6704 = vmul.f32 %v6687, %v6700
    %v6705 = vmul.f32 %v6688, %v6700
    %v6706 = vmul.f32 %v6689, %v6700
    %v6707 = vmul.f32 %v6690, %v6700
    %v6708 = vmul.f32 %v6691, %v6700
    %v6709 = vmul.f32 %v6692, %v6700
    %v6710 = vmul.f32 %v6693, %v6700
    %v6711 = vmul.f32 %v6694, %v6700
    %v6712 = vmul.f32 %v6695, %v6700
    %v6713 = vmul.f32 %v6696, %v6700
    %v6714 = vmul.f32 %v6697, %v6700
    %v6715 = vmul.f32 %v6698, %v6700
    %v6716 = vmul.f32 %v6699, %v6700
    %v6717 = vpack.c.bf16 %v6701, %v6701
    %v6718 = vpack.c.bf16 %v6702, %v6702
    %v6719 = vpack.c.bf16 %v6703, %v6703
    %v6720 = vpack.c.bf16 %v6704, %v6704
    %v6721 = vpack.c.bf16 %v6705, %v6705
    %v6722 = vpack.c.bf16 %v6706, %v6706
    %v6723 = vpack.c.bf16 %v6707, %v6707
    %v6724 = vpack.c.bf16 %v6708, %v6708
    %v6725 = vpack.c.bf16 %v6709, %v6709
    %v6726 = vpack.c.bf16 %v6710, %v6710
    %v6727 = vpack.c.bf16 %v6711, %v6711
    %v6728 = vpack.c.bf16 %v6712, %v6712
    %v6729 = vpack.c.bf16 %v6713, %v6713
    %v6730 = vpack.c.bf16 %v6714, %v6714
    %v6731 = vpack.c.bf16 %v6715, %v6715
    %v6732 = vpack.c.bf16 %v6716, %v6716
    %v6733 = vunpack.c.l.bf16 %v6525
    %v6734 = vunpack.c.l.bf16 %v6526
    %v6735 = vunpack.c.l.bf16 %v6527
    %v6736 = vunpack.c.l.bf16 %v6528
    %v6737 = vunpack.c.l.bf16 %v6529
    %v6738 = vunpack.c.l.bf16 %v6530
    %v6739 = vunpack.c.l.bf16 %v6531
    %v6740 = vunpack.c.l.bf16 %v6532
    %v6741 = vunpack.c.l.bf16 %v6533
    %v6742 = vunpack.c.l.bf16 %v6534
    %v6743 = vunpack.c.l.bf16 %v6535
    %v6744 = vunpack.c.l.bf16 %v6536
    %v6745 = vunpack.c.l.bf16 %v6537
    %v6746 = vunpack.c.l.bf16 %v6538
    %v6747 = vunpack.c.l.bf16 %v6539
    %v6748 = vunpack.c.l.bf16 %v6540
    %v6749 = vunpack.c.l.bf16 %v6717
    %v6750 = vunpack.c.l.bf16 %v6718
    %v6751 = vunpack.c.l.bf16 %v6719
    %v6752 = vunpack.c.l.bf16 %v6720
    %v6753 = vunpack.c.l.bf16 %v6721
    %v6754 = vunpack.c.l.bf16 %v6722
    %v6755 = vunpack.c.l.bf16 %v6723
    %v6756 = vunpack.c.l.bf16 %v6724
    %v6757 = vunpack.c.l.bf16 %v6725
    %v6758 = vunpack.c.l.bf16 %v6726
    %v6759 = vunpack.c.l.bf16 %v6727
    %v6760 = vunpack.c.l.bf16 %v6728
    %v6761 = vunpack.c.l.bf16 %v6729
    %v6762 = vunpack.c.l.bf16 %v6730
    %v6763 = vunpack.c.l.bf16 %v6731
    %v6764 = vunpack.c.l.bf16 %v6732
    %v6765 = vadd.f32 %v6733, %v6749
    %v6766 = vadd.f32 %v6734, %v6750
    %v6767 = vadd.f32 %v6735, %v6751
    %v6768 = vadd.f32 %v6736, %v6752
    %v6769 = vadd.f32 %v6737, %v6753
    %v6770 = vadd.f32 %v6738, %v6754
    %v6771 = vadd.f32 %v6739, %v6755
    %v6772 = vadd.f32 %v6740, %v6756
    %v6773 = vadd.f32 %v6741, %v6757
    %v6774 = vadd.f32 %v6742, %v6758
    %v6775 = vadd.f32 %v6743, %v6759
    %v6776 = vadd.f32 %v6744, %v6760
    %v6777 = vadd.f32 %v6745, %v6761
    %v6778 = vadd.f32 %v6746, %v6762
    %v6779 = vadd.f32 %v6747, %v6763
    %v6780 = vadd.f32 %v6748, %v6764
    %v6781 = vpack.c.bf16 %v6765, %v6765
    %v6782 = vpack.c.bf16 %v6766, %v6766
    %v6783 = vpack.c.bf16 %v6767, %v6767
    %v6784 = vpack.c.bf16 %v6768, %v6768
    %v6785 = vpack.c.bf16 %v6769, %v6769
    %v6786 = vpack.c.bf16 %v6770, %v6770
    %v6787 = vpack.c.bf16 %v6771, %v6771
    %v6788 = vpack.c.bf16 %v6772, %v6772
    %v6789 = vpack.c.bf16 %v6773, %v6773
    %v6790 = vpack.c.bf16 %v6774, %v6774
    %v6791 = vpack.c.bf16 %v6775, %v6775
    %v6792 = vpack.c.bf16 %v6776, %v6776
    %v6793 = vpack.c.bf16 %v6777, %v6777
    %v6794 = vpack.c.bf16 %v6778, %v6778
    %v6795 = vpack.c.bf16 %v6779, %v6779
    %v6796 = vpack.c.bf16 %v6780, %v6780
    %v6797 = vld [vmem:[%s589] sm:$0xf]
    %v6798 = vld [vmem:[%s589 + $0x4] sm:$0xf]
    %v6799 = vld [vmem:[%s589 + $0x8] sm:$0xf]
    %v6800 = vld [vmem:[%s589 + $0xc] sm:$0xf]
    %v6801 = vld [vmem:[%s589 + $0x10] sm:$0xf]
    %v6802 = vld [vmem:[%s589 + $0x14] sm:$0xf]
    %v6803 = vld [vmem:[%s589 + $0x18] sm:$0xf]
    %v6804 = vld [vmem:[%s589 + $0x1c] sm:$0xf]
    %v6805 = vld [vmem:[%s589 + $0x20] sm:$0xf]
    %v6806 = vld [vmem:[%s589 + $0x24] sm:$0xf]
    %v6807 = vld [vmem:[%s589 + $0x28] sm:$0xf]
    %v6808 = vld [vmem:[%s589 + $0x2c] sm:$0xf]
    %v6809 = vld [vmem:[%s589 + $0x30] sm:$0xf]
    %v6810 = vld [vmem:[%s589 + $0x34] sm:$0xf]
    %v6811 = vld [vmem:[%s589 + $0x38] sm:$0xf]
    %v6812 = vld [vmem:[%s589 + $0x3c] sm:$0xf]
    %s6813 = sld [smem:[#allocation10 + $0x102]]
    %p6815 = scmp.ne.f32.partialorder %s6813, %s6813
    %s6816 = sshrl.u32 %s6813, 16
    %s6817 = sand.u32 %s6816, 1
    %s6818 = sadd.s32 32767, %s6817
    %s6819 = sadd.s32 %s6813, %s6818
    %s6820 = sand.u32 %s6819, 4294901760
    %s6821 = scalar_select %p6815, 2143289344, %s6820
    %s6823 = sshrl.u32 %s6821, 16
    %s6824 = sshll.u32 %s6823, 16
    %s6825 = sor.u32 %s6823, %s6824
    %v6826 = vstv %s6825
    %v6828 = vunpack.c.l.bf16 %v6797
    %v6829 = vunpack.c.l.bf16 %v6798
    %v6830 = vunpack.c.l.bf16 %v6799
    %v6831 = vunpack.c.l.bf16 %v6800
    %v6832 = vunpack.c.l.bf16 %v6801
    %v6833 = vunpack.c.l.bf16 %v6802
    %v6834 = vunpack.c.l.bf16 %v6803
    %v6835 = vunpack.c.l.bf16 %v6804
    %v6836 = vunpack.c.l.bf16 %v6805
    %v6837 = vunpack.c.l.bf16 %v6806
    %v6838 = vunpack.c.l.bf16 %v6807
    %v6839 = vunpack.c.l.bf16 %v6808
    %v6840 = vunpack.c.l.bf16 %v6809
    %v6841 = vunpack.c.l.bf16 %v6810
    %v6842 = vunpack.c.l.bf16 %v6811
    %v6843 = vunpack.c.l.bf16 %v6812
    %v6844 = vunpack.c.l.bf16 %v6826
    %v6845 = vsub.f32 %v6828, %v6844
    %v6846 = vsub.f32 %v6829, %v6844
    %v6847 = vsub.f32 %v6830, %v6844
    %v6848 = vsub.f32 %v6831, %v6844
    %v6849 = vsub.f32 %v6832, %v6844
    %v6850 = vsub.f32 %v6833, %v6844
    %v6851 = vsub.f32 %v6834, %v6844
    %v6852 = vsub.f32 %v6835, %v6844
    %v6853 = vsub.f32 %v6836, %v6844
    %v6854 = vsub.f32 %v6837, %v6844
    %v6855 = vsub.f32 %v6838, %v6844
    %v6856 = vsub.f32 %v6839, %v6844
    %v6857 = vsub.f32 %v6840, %v6844
    %v6858 = vsub.f32 %v6841, %v6844
    %v6859 = vsub.f32 %v6842, %v6844
    %v6860 = vsub.f32 %v6843, %v6844
    %v6861 = vpack.c.bf16 %v6845, %v6845
    %v6862 = vpack.c.bf16 %v6846, %v6846
    %v6863 = vpack.c.bf16 %v6847, %v6847
    %v6864 = vpack.c.bf16 %v6848, %v6848
    %v6865 = vpack.c.bf16 %v6849, %v6849
    %v6866 = vpack.c.bf16 %v6850, %v6850
    %v6867 = vpack.c.bf16 %v6851, %v6851
    %v6868 = vpack.c.bf16 %v6852, %v6852
    %v6869 = vpack.c.bf16 %v6853, %v6853
    %v6870 = vpack.c.bf16 %v6854, %v6854
    %v6871 = vpack.c.bf16 %v6855, %v6855
    %v6872 = vpack.c.bf16 %v6856, %v6856
    %v6873 = vpack.c.bf16 %v6857, %v6857
    %v6874 = vpack.c.bf16 %v6858, %v6858
    %v6875 = vpack.c.bf16 %v6859, %v6859
    %v6876 = vpack.c.bf16 %v6860, %v6860
    %v6877 = vunpack.c.l.bf16 %v6861
    %v6878 = vunpack.c.l.bf16 %v6862
    %v6879 = vunpack.c.l.bf16 %v6863
    %v6880 = vunpack.c.l.bf16 %v6864
    %v6881 = vunpack.c.l.bf16 %v6865
    %v6882 = vunpack.c.l.bf16 %v6866
    %v6883 = vunpack.c.l.bf16 %v6867
    %v6884 = vunpack.c.l.bf16 %v6868
    %v6885 = vunpack.c.l.bf16 %v6869
    %v6886 = vunpack.c.l.bf16 %v6870
    %v6887 = vunpack.c.l.bf16 %v6871
    %v6888 = vunpack.c.l.bf16 %v6872
    %v6889 = vunpack.c.l.bf16 %v6873
    %v6890 = vunpack.c.l.bf16 %v6874
    %v6891 = vunpack.c.l.bf16 %v6875
    %v6892 = vunpack.c.l.bf16 %v6876
    %v6893 = vmul.f32 %v6877, %v6877
    %v6894 = vmul.f32 %v6878, %v6878
    %v6895 = vmul.f32 %v6879, %v6879
    %v6896 = vmul.f32 %v6880, %v6880
    %v6897 = vmul.f32 %v6881, %v6881
    %v6898 = vmul.f32 %v6882, %v6882
    %v6899 = vmul.f32 %v6883, %v6883
    %v6900 = vmul.f32 %v6884, %v6884
    %v6901 = vmul.f32 %v6885, %v6885
    %v6902 = vmul.f32 %v6886, %v6886
    %v6903 = vmul.f32 %v6887, %v6887
    %v6904 = vmul.f32 %v6888, %v6888
    %v6905 = vmul.f32 %v6889, %v6889
    %v6906 = vmul.f32 %v6890, %v6890
    %v6907 = vmul.f32 %v6891, %v6891
    %v6908 = vmul.f32 %v6892, %v6892
    %v6909 = vpack.c.bf16 %v6893, %v6893
    %v6910 = vpack.c.bf16 %v6894, %v6894
    %v6911 = vpack.c.bf16 %v6895, %v6895
    %v6912 = vpack.c.bf16 %v6896, %v6896
    %v6913 = vpack.c.bf16 %v6897, %v6897
    %v6914 = vpack.c.bf16 %v6898, %v6898
    %v6915 = vpack.c.bf16 %v6899, %v6899
    %v6916 = vpack.c.bf16 %v6900, %v6900
    %v6917 = vpack.c.bf16 %v6901, %v6901
    %v6918 = vpack.c.bf16 %v6902, %v6902
    %v6919 = vpack.c.bf16 %v6903, %v6903
    %v6920 = vpack.c.bf16 %v6904, %v6904
    %v6921 = vpack.c.bf16 %v6905, %v6905
    %v6922 = vpack.c.bf16 %v6906, %v6906
    %v6923 = vpack.c.bf16 %v6907, %v6907
    %v6924 = vpack.c.bf16 %v6908, %v6908
    %s6925 = sld [smem:[#allocation11 + $0x102]]
    %p6927 = scmp.ne.f32.partialorder %s6925, %s6925
    %s6928 = sshrl.u32 %s6925, 16
    %s6929 = sand.u32 %s6928, 1
    %s6930 = sadd.s32 32767, %s6929
    %s6931 = sadd.s32 %s6925, %s6930
    %s6932 = sand.u32 %s6931, 4294901760
    %s6933 = scalar_select %p6927, 2143289344, %s6932
    %s6935 = sshrl.u32 %s6933, 16
    %s6936 = sshll.u32 %s6935, 16
    %s6937 = sor.u32 %s6935, %s6936
    %v6938 = vstv %s6937
    %v6940 = vunpack.c.l.bf16 %v6909
    %v6941 = vunpack.c.l.bf16 %v6910
    %v6942 = vunpack.c.l.bf16 %v6911
    %v6943 = vunpack.c.l.bf16 %v6912
    %v6944 = vunpack.c.l.bf16 %v6913
    %v6945 = vunpack.c.l.bf16 %v6914
    %v6946 = vunpack.c.l.bf16 %v6915
    %v6947 = vunpack.c.l.bf16 %v6916
    %v6948 = vunpack.c.l.bf16 %v6917
    %v6949 = vunpack.c.l.bf16 %v6918
    %v6950 = vunpack.c.l.bf16 %v6919
    %v6951 = vunpack.c.l.bf16 %v6920
    %v6952 = vunpack.c.l.bf16 %v6921
    %v6953 = vunpack.c.l.bf16 %v6922
    %v6954 = vunpack.c.l.bf16 %v6923
    %v6955 = vunpack.c.l.bf16 %v6924
    %v6956 = vunpack.c.l.bf16 %v6938
    %v6957 = vmul.f32 %v6940, %v6956
    %v6958 = vmul.f32 %v6941, %v6956
    %v6959 = vmul.f32 %v6942, %v6956
    %v6960 = vmul.f32 %v6943, %v6956
    %v6961 = vmul.f32 %v6944, %v6956
    %v6962 = vmul.f32 %v6945, %v6956
    %v6963 = vmul.f32 %v6946, %v6956
    %v6964 = vmul.f32 %v6947, %v6956
    %v6965 = vmul.f32 %v6948, %v6956
    %v6966 = vmul.f32 %v6949, %v6956
    %v6967 = vmul.f32 %v6950, %v6956
    %v6968 = vmul.f32 %v6951, %v6956
    %v6969 = vmul.f32 %v6952, %v6956
    %v6970 = vmul.f32 %v6953, %v6956
    %v6971 = vmul.f32 %v6954, %v6956
    %v6972 = vmul.f32 %v6955, %v6956
    %v6973 = vpack.c.bf16 %v6957, %v6957
    %v6974 = vpack.c.bf16 %v6958, %v6958
    %v6975 = vpack.c.bf16 %v6959, %v6959
    %v6976 = vpack.c.bf16 %v6960, %v6960
    %v6977 = vpack.c.bf16 %v6961, %v6961
    %v6978 = vpack.c.bf16 %v6962, %v6962
    %v6979 = vpack.c.bf16 %v6963, %v6963
    %v6980 = vpack.c.bf16 %v6964, %v6964
    %v6981 = vpack.c.bf16 %v6965, %v6965
    %v6982 = vpack.c.bf16 %v6966, %v6966
    %v6983 = vpack.c.bf16 %v6967, %v6967
    %v6984 = vpack.c.bf16 %v6968, %v6968
    %v6985 = vpack.c.bf16 %v6969, %v6969
    %v6986 = vpack.c.bf16 %v6970, %v6970
    %v6987 = vpack.c.bf16 %v6971, %v6971
    %v6988 = vpack.c.bf16 %v6972, %v6972
    %v6989 = vunpack.c.l.bf16 %v6781
    %v6990 = vunpack.c.l.bf16 %v6782
    %v6991 = vunpack.c.l.bf16 %v6783
    %v6992 = vunpack.c.l.bf16 %v6784
    %v6993 = vunpack.c.l.bf16 %v6785
    %v6994 = vunpack.c.l.bf16 %v6786
    %v6995 = vunpack.c.l.bf16 %v6787
    %v6996 = vunpack.c.l.bf16 %v6788
    %v6997 = vunpack.c.l.bf16 %v6789
    %v6998 = vunpack.c.l.bf16 %v6790
    %v6999 = vunpack.c.l.bf16 %v6791
    %v7000 = vunpack.c.l.bf16 %v6792
    %v7001 = vunpack.c.l.bf16 %v6793
    %v7002 = vunpack.c.l.bf16 %v6794
    %v7003 = vunpack.c.l.bf16 %v6795
    %v7004 = vunpack.c.l.bf16 %v6796
    %v7005 = vunpack.c.l.bf16 %v6973
    %v7006 = vunpack.c.l.bf16 %v6974
    %v7007 = vunpack.c.l.bf16 %v6975
    %v7008 = vunpack.c.l.bf16 %v6976
    %v7009 = vunpack.c.l.bf16 %v6977
    %v7010 = vunpack.c.l.bf16 %v6978
    %v7011 = vunpack.c.l.bf16 %v6979
    %v7012 = vunpack.c.l.bf16 %v6980
    %v7013 = vunpack.c.l.bf16 %v6981
    %v7014 = vunpack.c.l.bf16 %v6982
    %v7015 = vunpack.c.l.bf16 %v6983
    %v7016 = vunpack.c.l.bf16 %v6984
    %v7017 = vunpack.c.l.bf16 %v6985
    %v7018 = vunpack.c.l.bf16 %v6986
    %v7019 = vunpack.c.l.bf16 %v6987
    %v7020 = vunpack.c.l.bf16 %v6988
    %v7021 = vadd.f32 %v6989, %v7005
    %v7022 = vadd.f32 %v6990, %v7006
    %v7023 = vadd.f32 %v6991, %v7007
    %v7024 = vadd.f32 %v6992, %v7008
    %v7025 = vadd.f32 %v6993, %v7009
    %v7026 = vadd.f32 %v6994, %v7010
    %v7027 = vadd.f32 %v6995, %v7011
    %v7028 = vadd.f32 %v6996, %v7012
    %v7029 = vadd.f32 %v6997, %v7013
    %v7030 = vadd.f32 %v6998, %v7014
    %v7031 = vadd.f32 %v6999, %v7015
    %v7032 = vadd.f32 %v7000, %v7016
    %v7033 = vadd.f32 %v7001, %v7017
    %v7034 = vadd.f32 %v7002, %v7018
    %v7035 = vadd.f32 %v7003, %v7019
    %v7036 = vadd.f32 %v7004, %v7020
    %v7037 = vpack.c.bf16 %v7021, %v7021
    %v7038 = vpack.c.bf16 %v7022, %v7022
    %v7039 = vpack.c.bf16 %v7023, %v7023
    %v7040 = vpack.c.bf16 %v7024, %v7024
    %v7041 = vpack.c.bf16 %v7025, %v7025
    %v7042 = vpack.c.bf16 %v7026, %v7026
    %v7043 = vpack.c.bf16 %v7027, %v7027
    %v7044 = vpack.c.bf16 %v7028, %v7028
    %v7045 = vpack.c.bf16 %v7029, %v7029
    %v7046 = vpack.c.bf16 %v7030, %v7030
    %v7047 = vpack.c.bf16 %v7031, %v7031
    %v7048 = vpack.c.bf16 %v7032, %v7032
    %v7049 = vpack.c.bf16 %v7033, %v7033
    %v7050 = vpack.c.bf16 %v7034, %v7034
    %v7051 = vpack.c.bf16 %v7035, %v7035
    %v7052 = vpack.c.bf16 %v7036, %v7036
    %v7053 = vunpack.c.l.bf16 %v7037
    %v7054 = vunpack.c.l.bf16 %v7038
    %v7055 = vunpack.c.l.bf16 %v7039
    %v7056 = vunpack.c.l.bf16 %v7040
    %v7057 = vunpack.c.l.bf16 %v7041
    %v7058 = vunpack.c.l.bf16 %v7042
    %v7059 = vunpack.c.l.bf16 %v7043
    %v7060 = vunpack.c.l.bf16 %v7044
    %v7061 = vunpack.c.l.bf16 %v7045
    %v7062 = vunpack.c.l.bf16 %v7046
    %v7063 = vunpack.c.l.bf16 %v7047
    %v7064 = vunpack.c.l.bf16 %v7048
    %v7065 = vunpack.c.l.bf16 %v7049
    %v7066 = vunpack.c.l.bf16 %v7050
    %v7067 = vunpack.c.l.bf16 %v7051
    %v7068 = vunpack.c.l.bf16 %v7052
    %v7069 = vmul.f32 %v7053, 1.442695
    %v7070 = vpow.pop %v7069
    %v7071 = vmul.f32 %v7054, 1.442695
    %v7072 = vpow.pop %v7071
    %v7073 = vmul.f32 %v7055, 1.442695
    %v7074 = vpow.pop %v7073
    %v7075 = vmul.f32 %v7056, 1.442695
    %v7076 = vpow.pop %v7075
    %v7077 = vmul.f32 %v7057, 1.442695
    %v7078 = vpow.pop %v7077
    %v7079 = vmul.f32 %v7058, 1.442695
    %v7080 = vpow.pop %v7079
    %v7081 = vmul.f32 %v7059, 1.442695
    %v7082 = vpow.pop %v7081
    %v7083 = vmul.f32 %v7060, 1.442695
    %v7084 = vpow.pop %v7083
    %v7085 = vmul.f32 %v7061, 1.442695
    %v7086 = vpow.pop %v7085
    %v7087 = vmul.f32 %v7062, 1.442695
    %v7088 = vpow.pop %v7087
    %v7089 = vmul.f32 %v7063, 1.442695
    %v7090 = vpow.pop %v7089
    %v7091 = vmul.f32 %v7064, 1.442695
    %v7092 = vpow.pop %v7091
    %v7093 = vmul.f32 %v7065, 1.442695
    %v7094 = vpow.pop %v7093
    %v7095 = vmul.f32 %v7066, 1.442695
    %v7096 = vpow.pop %v7095
    %v7097 = vmul.f32 %v7067, 1.442695
    %v7098 = vpow.pop %v7097
    %v7099 = vmul.f32 %v7068, 1.442695
    %v7100 = vpow.pop %v7099
    %v7101 = vpack.c.bf16 %v7070, %v7070
    %v7102 = vpack.c.bf16 %v7072, %v7072
    %v7103 = vpack.c.bf16 %v7074, %v7074
    %v7104 = vpack.c.bf16 %v7076, %v7076
    %v7105 = vpack.c.bf16 %v7078, %v7078
    %v7106 = vpack.c.bf16 %v7080, %v7080
    %v7107 = vpack.c.bf16 %v7082, %v7082
    %v7108 = vpack.c.bf16 %v7084, %v7084
    %v7109 = vpack.c.bf16 %v7086, %v7086
    %v7110 = vpack.c.bf16 %v7088, %v7088
    %v7111 = vpack.c.bf16 %v7090, %v7090
    %v7112 = vpack.c.bf16 %v7092, %v7092
    %v7113 = vpack.c.bf16 %v7094, %v7094
    %v7114 = vpack.c.bf16 %v7096, %v7096
    %v7115 = vpack.c.bf16 %v7098, %v7098
    %v7116 = vpack.c.bf16 %v7100, %v7100
    %v7117 = vunpack.c.l.bf16 %v7101
    %v7118 = vunpack.c.l.bf16 %v7102
    %v7119 = vunpack.c.l.bf16 %v7103
    %v7120 = vunpack.c.l.bf16 %v7104
    %v7121 = vunpack.c.l.bf16 %v7105
    %v7122 = vunpack.c.l.bf16 %v7106
    %v7123 = vunpack.c.l.bf16 %v7107
    %v7124 = vunpack.c.l.bf16 %v7108
    %v7125 = vunpack.c.l.bf16 %v7109
    %v7126 = vunpack.c.l.bf16 %v7110
    %v7127 = vunpack.c.l.bf16 %v7111
    %v7128 = vunpack.c.l.bf16 %v7112
    %v7129 = vunpack.c.l.bf16 %v7113
    %v7130 = vunpack.c.l.bf16 %v7114
    %v7131 = vunpack.c.l.bf16 %v7115
    %v7132 = vunpack.c.l.bf16 %v7116
    %v7133 = vmul.f32 %v1447, %v7117
    %v7134 = vmul.f32 %v1448, %v7118
    %v7135 = vmul.f32 %v1449, %v7119
    %v7136 = vmul.f32 %v1450, %v7120
    %v7137 = vmul.f32 %v1451, %v7121
    %v7138 = vmul.f32 %v1452, %v7122
    %v7139 = vmul.f32 %v1453, %v7123
    %v7140 = vmul.f32 %v1454, %v7124
    %v7141 = vmul.f32 %v1455, %v7125
    %v7142 = vmul.f32 %v1456, %v7126
    %v7143 = vmul.f32 %v1457, %v7127
    %v7144 = vmul.f32 %v1458, %v7128
    %v7145 = vmul.f32 %v1459, %v7129
    %v7146 = vmul.f32 %v1460, %v7130
    %v7147 = vmul.f32 %v1461, %v7131
    %v7148 = vmul.f32 %v1462, %v7132
    %v7149 = vpack.c.bf16 %v7133, %v7133
    %v7150 = vpack.c.bf16 %v7134, %v7134
    %v7151 = vpack.c.bf16 %v7135, %v7135
    %v7152 = vpack.c.bf16 %v7136, %v7136
    %v7153 = vpack.c.bf16 %v7137, %v7137
    %v7154 = vpack.c.bf16 %v7138, %v7138
    %v7155 = vpack.c.bf16 %v7139, %v7139
    %v7156 = vpack.c.bf16 %v7140, %v7140
    %v7157 = vpack.c.bf16 %v7141, %v7141
    %v7158 = vpack.c.bf16 %v7142, %v7142
    %v7159 = vpack.c.bf16 %v7143, %v7143
    %v7160 = vpack.c.bf16 %v7144, %v7144
    %v7161 = vpack.c.bf16 %v7145, %v7145
    %v7162 = vpack.c.bf16 %v7146, %v7146
    %v7163 = vpack.c.bf16 %v7147, %v7147
    %v7164 = vpack.c.bf16 %v7148, %v7148
    %7165 = vst [vmem:[#allocation3 + $0x8] sm:$0xf] %v7149
    %7166 = vst [vmem:[#allocation3 + $0x14] sm:$0xf] %v7150
    %7167 = vst [vmem:[#allocation3 + $0x20] sm:$0xf] %v7151
    %7168 = vst [vmem:[#allocation3 + $0x2c] sm:$0xf] %v7152
    %7169 = vst [vmem:[#allocation3 + $0x38] sm:$0xf] %v7153
    %7170 = vst [vmem:[#allocation3 + $0x44] sm:$0xf] %v7154
    %7171 = vst [vmem:[#allocation3 + $0x50] sm:$0xf] %v7155
    %7172 = vst [vmem:[#allocation3 + $0x5c] sm:$0xf] %v7156
    %7173 = vst [vmem:[#allocation3 + $0x68] sm:$0xf] %v7157
    %7174 = vst [vmem:[#allocation3 + $0x74] sm:$0xf] %v7158
    %7175 = vst [vmem:[#allocation3 + $0x80] sm:$0xf] %v7159
    %7176 = vst [vmem:[#allocation3 + $0x8c] sm:$0xf] %v7160
    %7177 = vst [vmem:[#allocation3 + $0x98] sm:$0xf] %v7161
    %7178 = vst [vmem:[#allocation3 + $0xa4] sm:$0xf] %v7162
    %7179 = vst [vmem:[#allocation3 + $0xb0] sm:$0xf] %v7163
    %7180 = vst [vmem:[#allocation3 + $0xbc] sm:$0xf] %v7164
    %s7181 = scalar_lea.vmem %s14, 8
    %v7182 = vld [vmem:[%s7181] sm:$0xf]
    %v7184 = vsel %vm5345, %v7182, 0
    %7186 = vmatpush.bf16.msra.mxu0 0
    %7187 = vmatpush.bf16.msra.mxu0 0
    %7188 = vmatpush.bf16.msra.mxu0 0
    %7189 = vmatpush.bf16.msra.mxu0 0
    %7190 = vmatpush.bf16.msra.mxu0 0
    %7191 = vmatpush.bf16.msra.mxu0 0
    %7192 = vmatpush.bf16.msra.mxu0 0
    %7193 = vmatpush.bf16.msra.mxu0 %v7184
    %7194 = vmatmul.bf16.gmra.mxu0 %v5322
    %v7195 = vpop.f32.mrf.mxu0
    %v7196 = vadd.f32 0.0, %v7195
    %v7197 = vpop.f32.mrf.mxu0
    %v7198 = vadd.f32 0.0, %v7197
    %7199 = vmatmul.bf16.gmra.mxu0 %v5325
    %v7200 = vpop.f32.mrf.mxu0
    %v7201 = vadd.f32 0.0, %v7200
    %v7202 = vpop.f32.mrf.mxu0
    %v7203 = vadd.f32 0.0, %v7202
    %7204 = vmatmul.bf16.gmra.mxu0 %v5328
    %v7205 = vpop.f32.mrf.mxu0
    %v7206 = vadd.f32 0.0, %v7205
    %v7207 = vpop.f32.mrf.mxu0
    %v7208 = vadd.f32 0.0, %v7207
    %7209 = vmatmul.bf16.gmra.mxu0 %v5331
    %v7210 = vpop.f32.mrf.mxu0
    %v7211 = vadd.f32 0.0, %v7210
    %v7212 = vpop.f32.mrf.mxu0
    %v7213 = vadd.f32 0.0, %v7212
    %7214 = vmatmul.bf16.gmra.mxu0 %v5334
    %v7215 = vpop.f32.mrf.mxu0
    %v7216 = vadd.f32 0.0, %v7215
    %v7217 = vpop.f32.mrf.mxu0
    %v7218 = vadd.f32 0.0, %v7217
    %7219 = vmatmul.bf16.gmra.mxu0 %v5337
    %v7220 = vpop.f32.mrf.mxu0
    %v7221 = vadd.f32 0.0, %v7220
    %v7222 = vpop.f32.mrf.mxu0
    %v7223 = vadd.f32 0.0, %v7222
    %7224 = vmatmul.bf16.gmra.mxu0 %v5340
    %v7225 = vpop.f32.mrf.mxu0
    %v7226 = vadd.f32 0.0, %v7225
    %v7227 = vpop.f32.mrf.mxu0
    %v7228 = vadd.f32 0.0, %v7227
    %7229 = vmatmul.bf16.gmra.mxu0 %v5343
    %v7230 = vpop.f32.mrf.mxu0
    %v7231 = vadd.f32 0.0, %v7230
    %v7232 = vpop.f32.mrf.mxu0
    %v7233 = vadd.f32 0.0, %v7232
    %7234 = vdwg.mxu0
    %v7235 = vpack.c.bf16 %v7196, %v7196
    %v7236 = vpack.c.bf16 %v7198, %v7198
    %v7237 = vpack.c.bf16 %v7201, %v7201
    %v7238 = vpack.c.bf16 %v7203, %v7203
    %v7239 = vpack.c.bf16 %v7206, %v7206
    %v7240 = vpack.c.bf16 %v7208, %v7208
    %v7241 = vpack.c.bf16 %v7211, %v7211
    %v7242 = vpack.c.bf16 %v7213, %v7213
    %v7243 = vpack.c.bf16 %v7216, %v7216
    %v7244 = vpack.c.bf16 %v7218, %v7218
    %v7245 = vpack.c.bf16 %v7221, %v7221
    %v7246 = vpack.c.bf16 %v7223, %v7223
    %v7247 = vpack.c.bf16 %v7226, %v7226
    %v7248 = vpack.c.bf16 %v7228, %v7228
    %v7249 = vpack.c.bf16 %v7231, %v7231
    %v7250 = vpack.c.bf16 %v7233, %v7233
    %7251 = vst.msk [vmem:[#allocation4 + $0x80] sm:$0xf] %vm5414, %v7235
    %7252 = vst.msk [vmem:[#allocation4 + $0x84] sm:$0xf] %vm5414, %v7236
    %7253 = vst.msk [vmem:[#allocation4 + $0x88] sm:$0xf] %vm5414, %v7237
    %7254 = vst.msk [vmem:[#allocation4 + $0x8c] sm:$0xf] %vm5414, %v7238
    %7255 = vst.msk [vmem:[#allocation4 + $0x90] sm:$0xf] %vm5414, %v7239
    %7256 = vst.msk [vmem:[#allocation4 + $0x94] sm:$0xf] %vm5414, %v7240
    %7257 = vst.msk [vmem:[#allocation4 + $0x98] sm:$0xf] %vm5414, %v7241
    %7258 = vst.msk [vmem:[#allocation4 + $0x9c] sm:$0xf] %vm5414, %v7242
    %7259 = vst.msk [vmem:[#allocation4 + $0xa0] sm:$0xf] %vm5414, %v7243
    %7260 = vst.msk [vmem:[#allocation4 + $0xa4] sm:$0xf] %vm5414, %v7244
    %7261 = vst.msk [vmem:[#allocation4 + $0xa8] sm:$0xf] %vm5414, %v7245
    %7262 = vst.msk [vmem:[#allocation4 + $0xac] sm:$0xf] %vm5414, %v7246
    %7263 = vst.msk [vmem:[#allocation4 + $0xb0] sm:$0xf] %vm5414, %v7247
    %7264 = vst.msk [vmem:[#allocation4 + $0xb4] sm:$0xf] %vm5414, %v7248
    %7265 = vst.msk [vmem:[#allocation4 + $0xb8] sm:$0xf] %vm5414, %v7249
    %7266 = vst.msk [vmem:[#allocation4 + $0xbc] sm:$0xf] %vm5414, %v7250
    %v7267 = vld [vmem:[#allocation3] sm:$0xff]
    %v7268 = vld [vmem:[#allocation3 + $0x8] sm:$0xf]
    %v7269 = vld [vmem:[#allocation3 + $0xc] sm:$0xff]
    %v7270 = vld [vmem:[#allocation3 + $0x14] sm:$0xf]
    %v7271 = vld [vmem:[#allocation3 + $0x18] sm:$0xff]
    %v7272 = vld [vmem:[#allocation3 + $0x20] sm:$0xf]
    %v7273 = vld [vmem:[#allocation3 + $0x24] sm:$0xff]
    %v7274 = vld [vmem:[#allocation3 + $0x2c] sm:$0xf]
    %v7275 = vld [vmem:[#allocation3 + $0x30] sm:$0xff]
    %v7276 = vld [vmem:[#allocation3 + $0x38] sm:$0xf]
    %v7277 = vld [vmem:[#allocation3 + $0x3c] sm:$0xff]
    %v7278 = vld [vmem:[#allocation3 + $0x44] sm:$0xf]
    %v7279 = vld [vmem:[#allocation3 + $0x48] sm:$0xff]
    %v7280 = vld [vmem:[#allocation3 + $0x50] sm:$0xf]
    %v7281 = vld [vmem:[#allocation3 + $0x54] sm:$0xff]
    %v7282 = vld [vmem:[#allocation3 + $0x5c] sm:$0xf]
    %v7283 = vld [vmem:[#allocation3 + $0x60] sm:$0xff]
    %v7284 = vld [vmem:[#allocation3 + $0x68] sm:$0xf]
    %v7285 = vld [vmem:[#allocation3 + $0x6c] sm:$0xff]
    %v7286 = vld [vmem:[#allocation3 + $0x74] sm:$0xf]
    %v7287 = vld [vmem:[#allocation3 + $0x78] sm:$0xff]
    %v7288 = vld [vmem:[#allocation3 + $0x80] sm:$0xf]
    %v7289 = vld [vmem:[#allocation3 + $0x84] sm:$0xff]
    %v7290 = vld [vmem:[#allocation3 + $0x8c] sm:$0xf]
    %v7291 = vld [vmem:[#allocation3 + $0x90] sm:$0xff]
    %v7292 = vld [vmem:[#allocation3 + $0x98] sm:$0xf]
    %v7293 = vld [vmem:[#allocation3 + $0x9c] sm:$0xff]
    %v7294 = vld [vmem:[#allocation3 + $0xa4] sm:$0xf]
    %v7295 = vld [vmem:[#allocation3 + $0xa8] sm:$0xff]
    %v7296 = vld [vmem:[#allocation3 + $0xb0] sm:$0xf]
    %v7297 = vld [vmem:[#allocation3 + $0xb4] sm:$0xff]
    %v7298 = vld [vmem:[#allocation3 + $0xbc] sm:$0xf]
    %v7299 = vld [vmem:[#allocation4] sm:$0xf]
    %v7300 = vld [vmem:[#allocation4 + $0x4] sm:$0xf]
    %v7301 = vld [vmem:[#allocation4 + $0x8] sm:$0xf]
    %v7302 = vld [vmem:[#allocation4 + $0xc] sm:$0xf]
    %v7303 = vld [vmem:[#allocation4 + $0x10] sm:$0xf]
    %v7304 = vld [vmem:[#allocation4 + $0x14] sm:$0xf]
    %v7305 = vld [vmem:[#allocation4 + $0x18] sm:$0xf]
    %v7306 = vld [vmem:[#allocation4 + $0x1c] sm:$0xf]
    %v7307 = vld [vmem:[#allocation4 + $0x20] sm:$0xf]
    %v7308 = vld [vmem:[#allocation4 + $0x24] sm:$0xf]
    %v7309 = vld [vmem:[#allocation4 + $0x28] sm:$0xf]
    %v7310 = vld [vmem:[#allocation4 + $0x2c] sm:$0xf]
    %v7311 = vld [vmem:[#allocation4 + $0x30] sm:$0xf]
    %v7312 = vld [vmem:[#allocation4 + $0x34] sm:$0xf]
    %v7313 = vld [vmem:[#allocation4 + $0x38] sm:$0xf]
    %v7314 = vld [vmem:[#allocation4 + $0x3c] sm:$0xf]
    %v7315 = vld [vmem:[#allocation4 + $0x40] sm:$0xf]
    %v7316 = vld [vmem:[#allocation4 + $0x44] sm:$0xf]
    %v7317 = vld [vmem:[#allocation4 + $0x48] sm:$0xf]
    %v7318 = vld [vmem:[#allocation4 + $0x4c] sm:$0xf]
    %v7319 = vld [vmem:[#allocation4 + $0x50] sm:$0xf]
    %v7320 = vld [vmem:[#allocation4 + $0x54] sm:$0xf]
    %v7321 = vld [vmem:[#allocation4 + $0x58] sm:$0xf]
    %v7322 = vld [vmem:[#allocation4 + $0x5c] sm:$0xf]
    %v7323 = vld [vmem:[#allocation4 + $0x60] sm:$0xf]
    %v7324 = vld [vmem:[#allocation4 + $0x64] sm:$0xf]
    %v7325 = vld [vmem:[#allocation4 + $0x68] sm:$0xf]
    %v7326 = vld [vmem:[#allocation4 + $0x6c] sm:$0xf]
    %v7327 = vld [vmem:[#allocation4 + $0x70] sm:$0xf]
    %v7328 = vld [vmem:[#allocation4 + $0x74] sm:$0xf]
    %v7329 = vld [vmem:[#allocation4 + $0x78] sm:$0xf]
    %v7330 = vld [vmem:[#allocation4 + $0x7c] sm:$0xf]
    %v7331 = vld [vmem:[#allocation4 + $0x80] sm:$0xf]
    %v7332 = vld [vmem:[#allocation4 + $0x84] sm:$0xf]
    %v7333 = vld [vmem:[#allocation4 + $0x88] sm:$0xf]
    %v7334 = vld [vmem:[#allocation4 + $0x8c] sm:$0xf]
    %v7335 = vld [vmem:[#allocation4 + $0x90] sm:$0xf]
    %v7336 = vld [vmem:[#allocation4 + $0x94] sm:$0xf]
    %v7337 = vld [vmem:[#allocation4 + $0x98] sm:$0xf]
    %v7338 = vld [vmem:[#allocation4 + $0x9c] sm:$0xf]
    %v7339 = vld [vmem:[#allocation4 + $0xa0] sm:$0xf]
    %v7340 = vld [vmem:[#allocation4 + $0xa4] sm:$0xf]
    %v7341 = vld [vmem:[#allocation4 + $0xa8] sm:$0xf]
    %v7342 = vld [vmem:[#allocation4 + $0xac] sm:$0xf]
    %v7343 = vld [vmem:[#allocation4 + $0xb0] sm:$0xf]
    %v7344 = vld [vmem:[#allocation4 + $0xb4] sm:$0xf]
    %v7345 = vld [vmem:[#allocation4 + $0xb8] sm:$0xf]
    %v7346 = vld [vmem:[#allocation4 + $0xbc] sm:$0xf]
    %v7379 = vunpack.c.l.b16 %v7267
    %v7380 = vunpack.c.h.b16 %v7267
    %v7381 = vunpack.c.l.b16 %v7268
    %v7382 = vunpack.c.l.b16 %v7269
    %v7383 = vunpack.c.h.b16 %v7269
    %v7384 = vunpack.c.l.b16 %v7270
    %v7385 = vunpack.c.l.b16 %v7271
    %v7386 = vunpack.c.h.b16 %v7271
    %v7387 = vunpack.c.l.b16 %v7272
    %v7388 = vunpack.c.l.b16 %v7273
    %v7389 = vunpack.c.h.b16 %v7273
    %v7390 = vunpack.c.l.b16 %v7274
    %v7391 = vunpack.c.l.b16 %v7275
    %v7392 = vunpack.c.h.b16 %v7275
    %v7393 = vunpack.c.l.b16 %v7276
    %v7394 = vunpack.c.l.b16 %v7277
    %v7395 = vunpack.c.h.b16 %v7277
    %v7396 = vunpack.c.l.b16 %v7278
    %v7397 = vunpack.c.l.b16 %v7279
    %v7398 = vunpack.c.h.b16 %v7279
    %v7399 = vunpack.c.l.b16 %v7280
    %v7400 = vunpack.c.l.b16 %v7281
    %v7401 = vunpack.c.h.b16 %v7281
    %v7402 = vunpack.c.l.b16 %v7282
    %v7403 = vunpack.c.l.b16 %v7283
    %v7404 = vunpack.c.h.b16 %v7283
    %v7405 = vunpack.c.l.b16 %v7284
    %v7406 = vunpack.c.l.b16 %v7285
    %v7407 = vunpack.c.h.b16 %v7285
    %v7408 = vunpack.c.l.b16 %v7286
    %v7409 = vunpack.c.l.b16 %v7287
    %v7410 = vunpack.c.h.b16 %v7287
    %v7411 = vunpack.c.l.b16 %v7288
    %v7412 = vunpack.c.l.b16 %v7289
    %v7413 = vunpack.c.h.b16 %v7289
    %v7414 = vunpack.c.l.b16 %v7290
    %v7415 = vunpack.c.l.b16 %v7291
    %v7416 = vunpack.c.h.b16 %v7291
    %v7417 = vunpack.c.l.b16 %v7292
    %v7418 = vunpack.c.l.b16 %v7293
    %v7419 = vunpack.c.h.b16 %v7293
    %v7420 = vunpack.c.l.b16 %v7294
    %v7421 = vunpack.c.l.b16 %v7295
    %v7422 = vunpack.c.h.b16 %v7295
    %v7423 = vunpack.c.l.b16 %v7296
    %v7424 = vunpack.c.l.b16 %v7297
    %v7425 = vunpack.c.h.b16 %v7297
    %v7426 = vunpack.c.l.b16 %v7298
    %v7427 = vpack.c.b16 %v7382, %v7379
    %v7428 = vpack.c.b16 %v7383, %v7380
    %v7429 = vpack.c.b16 %v7384, %v7381
    %v7430 = vpack.c.b16 %v7388, %v7385
    %v7431 = vpack.c.b16 %v7389, %v7386
    %v7432 = vpack.c.b16 %v7390, %v7387
    %v7433 = vpack.c.b16 %v7394, %v7391
    %v7434 = vpack.c.b16 %v7395, %v7392
    %v7435 = vpack.c.b16 %v7396, %v7393
    %v7436 = vpack.c.b16 %v7400, %v7397
    %v7437 = vpack.c.b16 %v7401, %v7398
    %v7438 = vpack.c.b16 %v7402, %v7399
    %v7439 = vpack.c.b16 %v7406, %v7403
    %v7440 = vpack.c.b16 %v7407, %v7404
    %v7441 = vpack.c.b16 %v7408, %v7405
    %v7442 = vpack.c.b16 %v7412, %v7409
    %v7443 = vpack.c.b16 %v7413, %v7410
    %v7444 = vpack.c.b16 %v7414, %v7411
    %v7445 = vpack.c.b16 %v7418, %v7415
    %v7446 = vpack.c.b16 %v7419, %v7416
    %v7447 = vpack.c.b16 %v7420, %v7417
    %v7448 = vpack.c.b16 %v7424, %v7421
    %v7449 = vpack.c.b16 %v7425, %v7422
    %v7450 = vpack.c.b16 %v7426, %v7423
    %v7523 = vunpack.c.l.b16 %v7299
    %v7524 = vunpack.c.l.b16 %v7300
    %v7525 = vunpack.c.l.b16 %v7301
    %v7526 = vunpack.c.l.b16 %v7302
    %v7527 = vunpack.c.l.b16 %v7303
    %v7528 = vunpack.c.l.b16 %v7304
    %v7529 = vunpack.c.l.b16 %v7305
    %v7530 = vunpack.c.l.b16 %v7306
    %v7531 = vunpack.c.l.b16 %v7307
    %v7532 = vunpack.c.l.b16 %v7308
    %v7533 = vunpack.c.l.b16 %v7309
    %v7534 = vunpack.c.l.b16 %v7310
    %v7535 = vunpack.c.l.b16 %v7311
    %v7536 = vunpack.c.l.b16 %v7312
    %v7537 = vunpack.c.l.b16 %v7313
    %v7538 = vunpack.c.l.b16 %v7314
    %v7539 = vunpack.c.l.b16 %v7315
    %v7540 = vunpack.c.l.b16 %v7316
    %v7541 = vunpack.c.l.b16 %v7317
    %v7542 = vunpack.c.l.b16 %v7318
    %v7543 = vunpack.c.l.b16 %v7319
    %v7544 = vunpack.c.l.b16 %v7320
    %v7545 = vunpack.c.l.b16 %v7321
    %v7546 = vunpack.c.l.b16 %v7322
    %v7547 = vunpack.c.l.b16 %v7323
    %v7548 = vunpack.c.l.b16 %v7324
    %v7549 = vunpack.c.l.b16 %v7325
    %v7550 = vunpack.c.l.b16 %v7326
    %v7551 = vunpack.c.l.b16 %v7327
    %v7552 = vunpack.c.l.b16 %v7328
    %v7553 = vunpack.c.l.b16 %v7329
    %v7554 = vunpack.c.l.b16 %v7330
    %v7555 = vunpack.c.l.b16 %v7331
    %v7556 = vunpack.c.l.b16 %v7332
    %v7557 = vunpack.c.l.b16 %v7333
    %v7558 = vunpack.c.l.b16 %v7334
    %v7559 = vunpack.c.l.b16 %v7335
    %v7560 = vunpack.c.l.b16 %v7336
    %v7561 = vunpack.c.l.b16 %v7337
    %v7562 = vunpack.c.l.b16 %v7338
    %v7563 = vunpack.c.l.b16 %v7339
    %v7564 = vunpack.c.l.b16 %v7340
    %v7565 = vunpack.c.l.b16 %v7341
    %v7566 = vunpack.c.l.b16 %v7342
    %v7567 = vunpack.c.l.b16 %v7343
    %v7568 = vunpack.c.l.b16 %v7344
    %v7569 = vunpack.c.l.b16 %v7345
    %v7570 = vunpack.c.l.b16 %v7346
    %v7571 = vpack.c.b16 %v7524, %v7523
    %v7572 = vpack.c.b16 %v7526, %v7525
    %v7573 = vpack.c.b16 %v7528, %v7527
    %v7574 = vpack.c.b16 %v7530, %v7529
    %v7575 = vpack.c.b16 %v7532, %v7531
    %v7576 = vpack.c.b16 %v7534, %v7533
    %v7577 = vpack.c.b16 %v7536, %v7535
    %v7578 = vpack.c.b16 %v7538, %v7537
    %v7579 = vpack.c.b16 %v7540, %v7539
    %v7580 = vpack.c.b16 %v7542, %v7541
    %v7581 = vpack.c.b16 %v7544, %v7543
    %v7582 = vpack.c.b16 %v7546, %v7545
    %v7583 = vpack.c.b16 %v7548, %v7547
    %v7584 = vpack.c.b16 %v7550, %v7549
    %v7585 = vpack.c.b16 %v7552, %v7551
    %v7586 = vpack.c.b16 %v7554, %v7553
    %v7587 = vpack.c.b16 %v7556, %v7555
    %v7588 = vpack.c.b16 %v7558, %v7557
    %v7589 = vpack.c.b16 %v7560, %v7559
    %v7590 = vpack.c.b16 %v7562, %v7561
    %v7591 = vpack.c.b16 %v7564, %v7563
    %v7592 = vpack.c.b16 %v7566, %v7565
    %v7593 = vpack.c.b16 %v7568, %v7567
    %v7594 = vpack.c.b16 %v7570, %v7569
    %7619 = vmatpush.bf16.msra.mxu0 %v7578
    %7620 = vmatpush.bf16.msra.mxu0 %v7577
    %7621 = vmatpush.bf16.msra.mxu0 %v7576
    %7622 = vmatpush.bf16.msra.mxu0 %v7575
    %7623 = vmatpush.bf16.msra.mxu0 %v7574
    %7624 = vmatpush.bf16.msra.mxu0 %v7573
    %7625 = vmatpush.bf16.msra.mxu0 %v7572
    %7626 = vmatpush.bf16.msra.mxu0 %v7571
    %7627 = vmatmul.bf16.gmra.mxu0 %v7427
    %v7628 = vpop.f32.mrf.mxu0
    %v7629 = vadd.f32 0.0, %v7628
    %v7630 = vpop.f32.mrf.mxu0
    %v7631 = vadd.f32 0.0, %v7630
    %7632 = vmatmul.bf16.gmra.mxu0 %v7430
    %v7633 = vpop.f32.mrf.mxu0
    %v7634 = vadd.f32 0.0, %v7633
    %v7635 = vpop.f32.mrf.mxu0
    %v7636 = vadd.f32 0.0, %v7635
    %7637 = vmatmul.bf16.gmra.mxu0 %v7433
    %v7638 = vpop.f32.mrf.mxu0
    %v7639 = vadd.f32 0.0, %v7638
    %v7640 = vpop.f32.mrf.mxu0
    %v7641 = vadd.f32 0.0, %v7640
    %7642 = vmatmul.bf16.gmra.mxu0 %v7436
    %v7643 = vpop.f32.mrf.mxu0
    %v7644 = vadd.f32 0.0, %v7643
    %v7645 = vpop.f32.mrf.mxu0
    %v7646 = vadd.f32 0.0, %v7645
    %7647 = vmatmul.bf16.gmra.mxu0 %v7439
    %v7648 = vpop.f32.mrf.mxu0
    %v7649 = vadd.f32 0.0, %v7648
    %v7650 = vpop.f32.mrf.mxu0
    %v7651 = vadd.f32 0.0, %v7650
    %7652 = vmatmul.bf16.gmra.mxu0 %v7442
    %v7653 = vpop.f32.mrf.mxu0
    %v7654 = vadd.f32 0.0, %v7653
    %v7655 = vpop.f32.mrf.mxu0
    %v7656 = vadd.f32 0.0, %v7655
    %7657 = vmatmul.bf16.gmra.mxu0 %v7445
    %v7658 = vpop.f32.mrf.mxu0
    %v7659 = vadd.f32 0.0, %v7658
    %v7660 = vpop.f32.mrf.mxu0
    %v7661 = vadd.f32 0.0, %v7660
    %7662 = vmatmul.bf16.gmra.mxu0 %v7448
    %v7663 = vpop.f32.mrf.mxu0
    %v7664 = vadd.f32 0.0, %v7663
    %v7665 = vpop.f32.mrf.mxu0
    %v7666 = vadd.f32 0.0, %v7665
    %7667 = vdwg.mxu0
    %7668 = vmatpush.bf16.msra.mxu0 %v7586
    %7669 = vmatpush.bf16.msra.mxu0 %v7585
    %7670 = vmatpush.bf16.msra.mxu0 %v7584
    %7671 = vmatpush.bf16.msra.mxu0 %v7583
    %7672 = vmatpush.bf16.msra.mxu0 %v7582
    %7673 = vmatpush.bf16.msra.mxu0 %v7581
    %7674 = vmatpush.bf16.msra.mxu0 %v7580
    %7675 = vmatpush.bf16.msra.mxu0 %v7579
    %7676 = vmatmul.bf16.gmra.mxu0 %v7428
    %v7677 = vpop.f32.mrf.mxu0
    %v7678 = vadd.f32 %v7629, %v7677
    %v7679 = vpop.f32.mrf.mxu0
    %v7680 = vadd.f32 %v7631, %v7679
    %7681 = vmatmul.bf16.gmra.mxu0 %v7431
    %v7682 = vpop.f32.mrf.mxu0
    %v7683 = vadd.f32 %v7634, %v7682
    %v7684 = vpop.f32.mrf.mxu0
    %v7685 = vadd.f32 %v7636, %v7684
    %7686 = vmatmul.bf16.gmra.mxu0 %v7434
    %v7687 = vpop.f32.mrf.mxu0
    %v7688 = vadd.f32 %v7639, %v7687
    %v7689 = vpop.f32.mrf.mxu0
    %v7690 = vadd.f32 %v7641, %v7689
    %7691 = vmatmul.bf16.gmra.mxu0 %v7437
    %v7692 = vpop.f32.mrf.mxu0
    %v7693 = vadd.f32 %v7644, %v7692
    %v7694 = vpop.f32.mrf.mxu0
    %v7695 = vadd.f32 %v7646, %v7694
    %7696 = vmatmul.bf16.gmra.mxu0 %v7440
    %v7697 = vpop.f32.mrf.mxu0
    %v7698 = vadd.f32 %v7649, %v7697
    %v7699 = vpop.f32.mrf.mxu0
    %v7700 = vadd.f32 %v7651, %v7699
    %7701 = vmatmul.bf16.gmra.mxu0 %v7443
    %v7702 = vpop.f32.mrf.mxu0
    %v7703 = vadd.f32 %v7654, %v7702
    %v7704 = vpop.f32.mrf.mxu0
    %v7705 = vadd.f32 %v7656, %v7704
    %7706 = vmatmul.bf16.gmra.mxu0 %v7446
    %v7707 = vpop.f32.mrf.mxu0
    %v7708 = vadd.f32 %v7659, %v7707
    %v7709 = vpop.f32.mrf.mxu0
    %v7710 = vadd.f32 %v7661, %v7709
    %7711 = vmatmul.bf16.gmra.mxu0 %v7449
    %v7712 = vpop.f32.mrf.mxu0
    %v7713 = vadd.f32 %v7664, %v7712
    %v7714 = vpop.f32.mrf.mxu0
    %v7715 = vadd.f32 %v7666, %v7714
    %7716 = vdwg.mxu0
    %7717 = vmatpush.bf16.msra.mxu0 %v7594
    %7718 = vmatpush.bf16.msra.mxu0 %v7593
    %7719 = vmatpush.bf16.msra.mxu0 %v7592
    %7720 = vmatpush.bf16.msra.mxu0 %v7591
    %7721 = vmatpush.bf16.msra.mxu0 %v7590
    %7722 = vmatpush.bf16.msra.mxu0 %v7589
    %7723 = vmatpush.bf16.msra.mxu0 %v7588
    %7724 = vmatpush.bf16.msra.mxu0 %v7587
    %7725 = vmatmul.bf16.gmra.mxu0 %v7429
    %v7726 = vpop.f32.mrf.mxu0
    %v7727 = vadd.f32 %v7678, %v7726
    %v7728 = vpop.f32.mrf.mxu0
    %v7729 = vadd.f32 %v7680, %v7728
    %7730 = vmatmul.bf16.gmra.mxu0 %v7432
    %v7731 = vpop.f32.mrf.mxu0
    %v7732 = vadd.f32 %v7683, %v7731
    %v7733 = vpop.f32.mrf.mxu0
    %v7734 = vadd.f32 %v7685, %v7733
    %7735 = vmatmul.bf16.gmra.mxu0 %v7435
    %v7736 = vpop.f32.mrf.mxu0
    %v7737 = vadd.f32 %v7688, %v7736
    %v7738 = vpop.f32.mrf.mxu0
    %v7739 = vadd.f32 %v7690, %v7738
    %7740 = vmatmul.bf16.gmra.mxu0 %v7438
    %v7741 = vpop.f32.mrf.mxu0
    %v7742 = vadd.f32 %v7693, %v7741
    %v7743 = vpop.f32.mrf.mxu0
    %v7744 = vadd.f32 %v7695, %v7743
    %7745 = vmatmul.bf16.gmra.mxu0 %v7441
    %v7746 = vpop.f32.mrf.mxu0
    %v7747 = vadd.f32 %v7698, %v7746
    %v7748 = vpop.f32.mrf.mxu0
    %v7749 = vadd.f32 %v7700, %v7748
    %7750 = vmatmul.bf16.gmra.mxu0 %v7444
    %v7751 = vpop.f32.mrf.mxu0
    %v7752 = vadd.f32 %v7703, %v7751
    %v7753 = vpop.f32.mrf.mxu0
    %v7754 = vadd.f32 %v7705, %v7753
    %7755 = vmatmul.bf16.gmra.mxu0 %v7447
    %v7756 = vpop.f32.mrf.mxu0
    %v7757 = vadd.f32 %v7708, %v7756
    %v7758 = vpop.f32.mrf.mxu0
    %v7759 = vadd.f32 %v7710, %v7758
    %7760 = vmatmul.bf16.gmra.mxu0 %v7450
    %v7761 = vpop.f32.mrf.mxu0
    %v7762 = vadd.f32 %v7713, %v7761
    %v7763 = vpop.f32.mrf.mxu0
    %v7764 = vadd.f32 %v7715, %v7763
    %7765 = vdwg.mxu0
    %v7766 = vmul.f32 %v7727, %v3977
    %v7767 = vmul.f32 %v7729, %v3982
    %v7768 = vmul.f32 %v7732, %v3987
    %v7769 = vmul.f32 %v7734, %v3992
    %v7770 = vmul.f32 %v7737, %v3997
    %v7771 = vmul.f32 %v7739, %v4002
    %v7772 = vmul.f32 %v7742, %v4007
    %v7773 = vmul.f32 %v7744, %v4012
    %v7774 = vmul.f32 %v7747, %v4017
    %v7775 = vmul.f32 %v7749, %v4022
    %v7776 = vmul.f32 %v7752, %v4027
    %v7777 = vmul.f32 %v7754, %v4032
    %v7778 = vmul.f32 %v7757, %v4037
    %v7779 = vmul.f32 %v7759, %v4042
    %v7780 = vmul.f32 %v7762, %v4047
    %v7781 = vmul.f32 %v7764, %v4052
    %v7782 = vld [vmem:[%s15] sm:$0xf]
    %v7784 = vsel %vm5345, %v7782, 0
    %7786 = vmatpush.bf16.msra.mxu0 0
    %7787 = vmatpush.bf16.msra.mxu0 0
    %7788 = vmatpush.bf16.msra.mxu0 0
    %7789 = vmatpush.bf16.msra.mxu0 0
    %7790 = vmatpush.bf16.msra.mxu0 0
    %7791 = vmatpush.bf16.msra.mxu0 0
    %7792 = vmatpush.bf16.msra.mxu0 0
    %7793 = vmatpush.bf16.msra.mxu0 %v7784
    %7794 = vmatmul.bf16.gmra.mxu0 %v5322
    %v7795 = vpop.f32.mrf.mxu0
    %v7796 = vadd.f32 0.0, %v7795
    %v7797 = vpop.f32.mrf.mxu0
    %v7798 = vadd.f32 0.0, %v7797
    %7799 = vmatmul.bf16.gmra.mxu0 %v5325
    %v7800 = vpop.f32.mrf.mxu0
    %v7801 = vadd.f32 0.0, %v7800
    %v7802 = vpop.f32.mrf.mxu0
    %v7803 = vadd.f32 0.0, %v7802
    %7804 = vmatmul.bf16.gmra.mxu0 %v5328
    %v7805 = vpop.f32.mrf.mxu0
    %v7806 = vadd.f32 0.0, %v7805
    %v7807 = vpop.f32.mrf.mxu0
    %v7808 = vadd.f32 0.0, %v7807
    %7809 = vmatmul.bf16.gmra.mxu0 %v5331
    %v7810 = vpop.f32.mrf.mxu0
    %v7811 = vadd.f32 0.0, %v7810
    %v7812 = vpop.f32.mrf.mxu0
    %v7813 = vadd.f32 0.0, %v7812
    %7814 = vmatmul.bf16.gmra.mxu0 %v5334
    %v7815 = vpop.f32.mrf.mxu0
    %v7816 = vadd.f32 0.0, %v7815
    %v7817 = vpop.f32.mrf.mxu0
    %v7818 = vadd.f32 0.0, %v7817
    %7819 = vmatmul.bf16.gmra.mxu0 %v5337
    %v7820 = vpop.f32.mrf.mxu0
    %v7821 = vadd.f32 0.0, %v7820
    %v7822 = vpop.f32.mrf.mxu0
    %v7823 = vadd.f32 0.0, %v7822
    %7824 = vmatmul.bf16.gmra.mxu0 %v5340
    %v7825 = vpop.f32.mrf.mxu0
    %v7826 = vadd.f32 0.0, %v7825
    %v7827 = vpop.f32.mrf.mxu0
    %v7828 = vadd.f32 0.0, %v7827
    %7829 = vmatmul.bf16.gmra.mxu0 %v5343
    %v7830 = vpop.f32.mrf.mxu0
    %v7831 = vadd.f32 0.0, %v7830
    %v7832 = vpop.f32.mrf.mxu0
    %v7833 = vadd.f32 0.0, %v7832
    %7834 = vdwg.mxu0
    %v7835 = vadd.f32 %v7766, %v7796
    %v7836 = vadd.f32 %v7767, %v7798
    %v7837 = vadd.f32 %v7768, %v7801
    %v7838 = vadd.f32 %v7769, %v7803
    %v7839 = vadd.f32 %v7770, %v7806
    %v7840 = vadd.f32 %v7771, %v7808
    %v7841 = vadd.f32 %v7772, %v7811
    %v7842 = vadd.f32 %v7773, %v7813
    %v7843 = vadd.f32 %v7774, %v7816
    %v7844 = vadd.f32 %v7775, %v7818
    %v7845 = vadd.f32 %v7776, %v7821
    %v7846 = vadd.f32 %v7777, %v7823
    %v7847 = vadd.f32 %v7778, %v7826
    %v7848 = vadd.f32 %v7779, %v7828
    %v7849 = vadd.f32 %v7780, %v7831
    %v7850 = vadd.f32 %v7781, %v7833
    %v7851 = vld [vmem:[%s16] sm:$0x1]
    %v7853 = vperm.slane %v7851, 0
    %v7855 = vadd.f32 %v7835, %v7853
    %v7856 = vadd.f32 %v7836, %v7853
    %v7857 = vadd.f32 %v7837, %v7853
    %v7858 = vadd.f32 %v7838, %v7853
    %v7859 = vadd.f32 %v7839, %v7853
    %v7860 = vadd.f32 %v7840, %v7853
    %v7861 = vadd.f32 %v7841, %v7853
    %v7862 = vadd.f32 %v7842, %v7853
    %v7863 = vadd.f32 %v7843, %v7853
    %v7864 = vadd.f32 %v7844, %v7853
    %v7865 = vadd.f32 %v7845, %v7853
    %v7866 = vadd.f32 %v7846, %v7853
    %v7867 = vadd.f32 %v7847, %v7853
    %v7868 = vadd.f32 %v7848, %v7853
    %v7869 = vadd.f32 %v7849, %v7853
    %v7870 = vadd.f32 %v7850, %v7853
    %v7871 = vmul.f32 %v7855, %v4162
    %v7872 = vmul.f32 %v7856, %v4167
    %v7873 = vmul.f32 %v7857, %v4172
    %v7874 = vmul.f32 %v7858, %v4177
    %v7875 = vmul.f32 %v7859, %v4182
    %v7876 = vmul.f32 %v7860, %v4187
    %v7877 = vmul.f32 %v7861, %v4192
    %v7878 = vmul.f32 %v7862, %v4197
    %v7879 = vmul.f32 %v7863, %v4202
    %v7880 = vmul.f32 %v7864, %v4207
    %v7881 = vmul.f32 %v7865, %v4212
    %v7882 = vmul.f32 %v7866, %v4217
    %v7883 = vmul.f32 %v7867, %v4222
    %v7884 = vmul.f32 %v7868, %v4227
    %v7885 = vmul.f32 %v7869, %v4232
    %v7886 = vmul.f32 %v7870, %v4237
    %vm7887 = vcmask 80896
    %v7888 = vsel %vm7887, %v7871, 0.0
    %v7889 = vsel %vm7887, %v7872, 0.0
    %v7890 = vadd.f32 %v7888, %v7889
    %v7891 = vsel %vm7887, %v7873, 0.0
    %v7892 = vadd.f32 %v7890, %v7891
    %v7893 = vsel %vm7887, %v7874, 0.0
    %v7894 = vadd.f32 %v7892, %v7893
    %v7895 = vsel %vm7887, %v7875, 0.0
    %v7896 = vadd.f32 %v7894, %v7895
    %v7897 = vsel %vm7887, %v7876, 0.0
    %v7898 = vadd.f32 %v7896, %v7897
    %v7899 = vsel %vm7887, %v7877, 0.0
    %v7900 = vadd.f32 %v7898, %v7899
    %v7901 = vsel %vm7887, %v7878, 0.0
    %v7902 = vadd.f32 %v7900, %v7901
    %v7903 = vsel %vm7887, %v7879, 0.0
    %v7904 = vadd.f32 %v7902, %v7903
    %v7905 = vsel %vm7887, %v7880, 0.0
    %v7906 = vadd.f32 %v7904, %v7905
    %v7907 = vsel %vm7887, %v7881, 0.0
    %v7908 = vadd.f32 %v7906, %v7907
    %v7909 = vsel %vm7887, %v7882, 0.0
    %v7910 = vadd.f32 %v7908, %v7909
    %v7911 = vsel %vm7887, %v7883, 0.0
    %v7912 = vadd.f32 %v7910, %v7911
    %v7913 = vsel %vm7887, %v7884, 0.0
    %v7914 = vadd.f32 %v7912, %v7913
    %v7915 = vsel %vm7887, %v7885, 0.0
    %v7916 = vadd.f32 %v7914, %v7915
    %v7917 = vsel %vm7887, %v7886, 0.0
    %v7918 = vadd.f32 %v7916, %v7917
    %v7919 = vrot.slane %v7918, 4
    %v7920 = vadd.f32 %v7918, %v7919
    %v7921 = vrot.slane %v7920, 2
    %v7922 = vadd.f32 %v7920, %v7921
    %v7923 = vrot.slane %v7922, 1
    %v7924 = vadd.f32 %v7922, %v7923
    %v7925 = vmul.f32 %v7924, %v4293
    %v7926 = vsub.f32 %v7855, %v7925
    %v7927 = vsub.f32 %v7856, %v7925
    %v7928 = vsub.f32 %v7857, %v7925
    %v7929 = vsub.f32 %v7858, %v7925
    %v7930 = vsub.f32 %v7859, %v7925
    %v7931 = vsub.f32 %v7860, %v7925
    %v7932 = vsub.f32 %v7861, %v7925
    %v7933 = vsub.f32 %v7862, %v7925
    %v7934 = vsub.f32 %v7863, %v7925
    %v7935 = vsub.f32 %v7864, %v7925
    %v7936 = vsub.f32 %v7865, %v7925
    %v7937 = vsub.f32 %v7866, %v7925
    %v7938 = vsub.f32 %v7867, %v7925
    %v7939 = vsub.f32 %v7868, %v7925
    %v7940 = vsub.f32 %v7869, %v7925
    %v7941 = vsub.f32 %v7870, %v7925
    %v7942 = vmul.f32 %v7926, %v4162
    %v7943 = vmul.f32 %v7927, %v4167
    %v7944 = vmul.f32 %v7928, %v4172
    %v7945 = vmul.f32 %v7929, %v4177
    %v7946 = vmul.f32 %v7930, %v4182
    %v7947 = vmul.f32 %v7931, %v4187
    %v7948 = vmul.f32 %v7932, %v4192
    %v7949 = vmul.f32 %v7933, %v4197
    %v7950 = vmul.f32 %v7934, %v4202
    %v7951 = vmul.f32 %v7935, %v4207
    %v7952 = vmul.f32 %v7936, %v4212
    %v7953 = vmul.f32 %v7937, %v4217
    %v7954 = vmul.f32 %v7938, %v4222
    %v7955 = vmul.f32 %v7939, %v4227
    %v7956 = vmul.f32 %v7940, %v4232
    %v7957 = vmul.f32 %v7941, %v4237
    %v7958 = vmul.f32 %v7942, %v7942
    %v7959 = vmul.f32 %v7943, %v7943
    %v7960 = vmul.f32 %v7944, %v7944
    %v7961 = vmul.f32 %v7945, %v7945
    %v7962 = vmul.f32 %v7946, %v7946
    %v7963 = vmul.f32 %v7947, %v7947
    %v7964 = vmul.f32 %v7948, %v7948
    %v7965 = vmul.f32 %v7949, %v7949
    %v7966 = vmul.f32 %v7950, %v7950
    %v7967 = vmul.f32 %v7951, %v7951
    %v7968 = vmul.f32 %v7952, %v7952
    %v7969 = vmul.f32 %v7953, %v7953
    %v7970 = vmul.f32 %v7954, %v7954
    %v7971 = vmul.f32 %v7955, %v7955
    %v7972 = vmul.f32 %v7956, %v7956
    %v7973 = vmul.f32 %v7957, %v7957
    %v7974 = vsel %vm7887, %v7958, 0.0
    %v7975 = vsel %vm7887, %v7959, 0.0
    %v7976 = vadd.f32 %v7974, %v7975
    %v7977 = vsel %vm7887, %v7960, 0.0
    %v7978 = vadd.f32 %v7976, %v7977
    %v7979 = vsel %vm7887, %v7961, 0.0
    %v7980 = vadd.f32 %v7978, %v7979
    %v7981 = vsel %vm7887, %v7962, 0.0
    %v7982 = vadd.f32 %v7980, %v7981
    %v7983 = vsel %vm7887, %v7963, 0.0
    %v7984 = vadd.f32 %v7982, %v7983
    %v7985 = vsel %vm7887, %v7964, 0.0
    %v7986 = vadd.f32 %v7984, %v7985
    %v7987 = vsel %vm7887, %v7965, 0.0
    %v7988 = vadd.f32 %v7986, %v7987
    %v7989 = vsel %vm7887, %v7966, 0.0
    %v7990 = vadd.f32 %v7988, %v7989
    %v7991 = vsel %vm7887, %v7967, 0.0
    %v7992 = vadd.f32 %v7990, %v7991
    %v7993 = vsel %vm7887, %v7968, 0.0
    %v7994 = vadd.f32 %v7992, %v7993
    %v7995 = vsel %vm7887, %v7969, 0.0
    %v7996 = vadd.f32 %v7994, %v7995
    %v7997 = vsel %vm7887, %v7970, 0.0
    %v7998 = vadd.f32 %v7996, %v7997
    %v7999 = vsel %vm7887, %v7971, 0.0
    %v8000 = vadd.f32 %v7998, %v7999
    %v8001 = vsel %vm7887, %v7972, 0.0
    %v8002 = vadd.f32 %v8000, %v8001
    %v8003 = vsel %vm7887, %v7973, 0.0
    %v8004 = vadd.f32 %v8002, %v8003
    %v8005 = vrot.slane %v8004, 4
    %v8006 = vadd.f32 %v8004, %v8005
    %v8007 = vrot.slane %v8006, 2
    %v8008 = vadd.f32 %v8006, %v8007
    %v8009 = vrot.slane %v8008, 1
    %v8010 = vadd.f32 %v8008, %v8009
    %v8011 = vmul.f32 %v8010, %v4293
    %v8012 = vld [vmem:[%s17] sm:$0x1]
    %v8013 = vadd.f32 %v8011, 1e-05
    %v8014 = vrsqrt.pop %v8013
    %v8015 = vmul.f32 %v8014, %v8013
    %v8016 = vmul.f32 %v8015, %v8014
    %v8017 = vmul.f32 0.5, %v8016
    %v8018 = vsub.f32 1.5, %v8017
    %v8019 = vmul.f32 %v8014, %v8018
    %vm8020 = vweird.f32 %v8013
    %vm8021 = vweird.f32 %v8014
    %vm8022 = vmor %vm8020, %vm8021
    %v8023 = vsel %vm8022, %v8014, %v8019
    %v8024 = vmul.f32 %v7926, %v8023
    %v8025 = vmul.f32 %v7927, %v8023
    %v8026 = vmul.f32 %v7928, %v8023
    %v8027 = vmul.f32 %v7929, %v8023
    %v8028 = vmul.f32 %v7930, %v8023
    %v8029 = vmul.f32 %v7931, %v8023
    %v8030 = vmul.f32 %v7932, %v8023
    %v8031 = vmul.f32 %v7933, %v8023
    %v8032 = vmul.f32 %v7934, %v8023
    %v8033 = vmul.f32 %v7935, %v8023
    %v8034 = vmul.f32 %v7936, %v8023
    %v8035 = vmul.f32 %v7937, %v8023
    %v8036 = vmul.f32 %v7938, %v8023
    %v8037 = vmul.f32 %v7939, %v8023
    %v8038 = vmul.f32 %v7940, %v8023
    %v8039 = vmul.f32 %v7941, %v8023
    %v8041 = vperm.slane %v8012, 0
    %v8043 = vmul.f32 %v8041, %v8024
    %v8044 = vmul.f32 %v8041, %v8025
    %v8045 = vmul.f32 %v8041, %v8026
    %v8046 = vmul.f32 %v8041, %v8027
    %v8047 = vmul.f32 %v8041, %v8028
    %v8048 = vmul.f32 %v8041, %v8029
    %v8049 = vmul.f32 %v8041, %v8030
    %v8050 = vmul.f32 %v8041, %v8031
    %v8051 = vmul.f32 %v8041, %v8032
    %v8052 = vmul.f32 %v8041, %v8033
    %v8053 = vmul.f32 %v8041, %v8034
    %v8054 = vmul.f32 %v8041, %v8035
    %v8055 = vmul.f32 %v8041, %v8036
    %v8056 = vmul.f32 %v8041, %v8037
    %v8057 = vmul.f32 %v8041, %v8038
    %v8058 = vmul.f32 %v8041, %v8039
    %v8059 = vld [vmem:[%s18] sm:$0x1]
    %v8061 = vperm.slane %v8059, 0
    %v8063 = vadd.f32 %v8043, %v8061
    %v8064 = vadd.f32 %v8044, %v8061
    %v8065 = vadd.f32 %v8045, %v8061
    %v8066 = vadd.f32 %v8046, %v8061
    %v8067 = vadd.f32 %v8047, %v8061
    %v8068 = vadd.f32 %v8048, %v8061
    %v8069 = vadd.f32 %v8049, %v8061
    %v8070 = vadd.f32 %v8050, %v8061
    %v8071 = vadd.f32 %v8051, %v8061
    %v8072 = vadd.f32 %v8052, %v8061
    %v8073 = vadd.f32 %v8053, %v8061
    %v8074 = vadd.f32 %v8054, %v8061
    %v8075 = vadd.f32 %v8055, %v8061
    %v8076 = vadd.f32 %v8056, %v8061
    %v8077 = vadd.f32 %v8057, %v8061
    %v8078 = vadd.f32 %v8058, %v8061
    %v8079 = vmax.f32 %v8063, 0.0
    %v8080 = vmax.f32 %v8064, 0.0
    %v8081 = vmax.f32 %v8065, 0.0
    %v8082 = vmax.f32 %v8066, 0.0
    %v8083 = vmax.f32 %v8067, 0.0
    %v8084 = vmax.f32 %v8068, 0.0
    %v8085 = vmax.f32 %v8069, 0.0
    %v8086 = vmax.f32 %v8070, 0.0
    %v8087 = vmax.f32 %v8071, 0.0
    %v8088 = vmax.f32 %v8072, 0.0
    %v8089 = vmax.f32 %v8073, 0.0
    %v8090 = vmax.f32 %v8074, 0.0
    %v8091 = vmax.f32 %v8075, 0.0
    %v8092 = vmax.f32 %v8076, 0.0
    %v8093 = vmax.f32 %v8077, 0.0
    %v8094 = vmax.f32 %v8078, 0.0
    %v8095 = vmul.f32 %v8079, %v4162
    %v8096 = vmul.f32 %v8080, %v4167
    %v8097 = vmul.f32 %v8081, %v4172
    %v8098 = vmul.f32 %v8082, %v4177
    %v8099 = vmul.f32 %v8083, %v4182
    %v8100 = vmul.f32 %v8084, %v4187
    %v8101 = vmul.f32 %v8085, %v4192
    %v8102 = vmul.f32 %v8086, %v4197
    %v8103 = vmul.f32 %v8087, %v4202
    %v8104 = vmul.f32 %v8088, %v4207
    %v8105 = vmul.f32 %v8089, %v4212
    %v8106 = vmul.f32 %v8090, %v4217
    %v8107 = vmul.f32 %v8091, %v4222
    %v8108 = vmul.f32 %v8092, %v4227
    %v8109 = vmul.f32 %v8093, %v4232
    %v8110 = vmul.f32 %v8094, %v4237
    %8111 = vst.msk [vmem:[%s21] sm:$0xff] %vm7887, %v8095
    %8112 = vst.msk [vmem:[%s21 + $0x8] sm:$0xff] %vm7887, %v8096
    %8113 = vst.msk [vmem:[%s21 + $0x10] sm:$0xff] %vm7887, %v8097
    %8114 = vst.msk [vmem:[%s21 + $0x18] sm:$0xff] %vm7887, %v8098
    %8115 = vst.msk [vmem:[%s21 + $0x20] sm:$0xff] %vm7887, %v8099
    %8116 = vst.msk [vmem:[%s21 + $0x28] sm:$0xff] %vm7887, %v8100
    %8117 = vst.msk [vmem:[%s21 + $0x30] sm:$0xff] %vm7887, %v8101
    %8118 = vst.msk [vmem:[%s21 + $0x38] sm:$0xff] %vm7887, %v8102
    %8119 = vst.msk [vmem:[%s21 + $0x40] sm:$0xff] %vm7887, %v8103
    %8120 = vst.msk [vmem:[%s21 + $0x48] sm:$0xff] %vm7887, %v8104
    %8121 = vst.msk [vmem:[%s21 + $0x50] sm:$0xff] %vm7887, %v8105
    %8122 = vst.msk [vmem:[%s21 + $0x58] sm:$0xff] %vm7887, %v8106
    %8123 = vst.msk [vmem:[%s21 + $0x60] sm:$0xff] %vm7887, %v8107
    %8124 = vst.msk [vmem:[%s21 + $0x68] sm:$0xff] %vm7887, %v8108
    %8125 = vst.msk [vmem:[%s21 + $0x70] sm:$0xff] %vm7887, %v8109
    %8126 = vst.msk [vmem:[%s21 + $0x78] sm:$0xff] %vm7887, %v8110
    // Predicated region
    $region102: #{graph3dnet_forward.1} parent=1 // pred_check
      _
    $region103: #{graph3dnet_forward.1} parent=1 // pred_check_branch
      %8128 = sbr.rel (0) target = $region105
    $region104: #{graph3dnet_forward.1} parent=1 // pred_region
      _
    $region105: #{graph3dnet_forward.1} parent=1 // pred_fallthru
      _
    // Predicated region
    $region106: #{graph3dnet_forward.1} parent=1 // pred_check
      _
    $region107: #{graph3dnet_forward.1} parent=1 // pred_check_branch
      %8130 = sbr.rel (0) target = $region109
    $region108: #{graph3dnet_forward.1} parent=1 // pred_region
      _
    $region109: #{graph3dnet_forward.1} parent=1 // pred_fallthru
      _
    %8131 = vsyncpa [#allocation7], 1
    %8132 = vsyncpa [#allocation9], 1
    %8133 = vsyncpa [#allocation12], 1

</llo_original>
